<compile_context>
chip_gen: v7x
topology: tpu7x:2x2x1
jax: 0.10.0
libtpu: 0.0.40
codegen_flags: <defaults>
</compile_context>

<pallas_src>
from functools import partial

import numpy as np
import jax
import jax.numpy as jnp
from jax import lax
from jax.experimental import pallas as pl
from jax.experimental.pallas import tpu as pltpu


# --------------------------------------------------------------------------- utils
def make_divisible(v, divisor=8, min_value=None, round_limit=0.9):
    min_value = min_value or divisor
    new_v = max(min_value, int(v + divisor / 2) // divisor * divisor)
    if new_v < round_limit * v:
        new_v += divisor
    return new_v


def _conv3x3_weight_taps(w, groups):
    """(Cout, Cin_g, 3, 3) conv weight -> (9, Cout, Cin_total) tap matrices.

    tap index = kh*3 + kw.  Grouped convs are expanded to the full input-channel
    width with zeros across groups, so each tap is a single dense MXU matmul."""
    cout, cin_g = w.shape[0], w.shape[1]
    cout_g = cout // groups
    cin_total = cin_g * groups
    wt = jnp.transpose(w, (2, 3, 0, 1)).reshape(9, cout, cin_g)   # (tap, Cout, Cin_g)
    if groups == 1:
        return wt
    blocks = []
    for g in range(groups):
        wg = wt[:, g * cout_g:(g + 1) * cout_g, :]                # (9, Cout_g, Cin_g)
        wg = jnp.pad(wg, ((0, 0), (0, 0),
                          (g * cin_g, cin_total - (g + 1) * cin_g)))
        blocks.append(wg)
    return jnp.concatenate(blocks, axis=1)                        # (9, Cout, Cin_total)


def _spatial_mats(H, W):
    """Host-built constants for the lane-flattened (C, H*W) layout.

    pool_h (HW, H): xg @ pool_h == mean over W for each row h
    pool_w (HW, W): xg @ pool_w == mean over H for each column w
    eh (H, HW), ew (W, HW): one-hot expanders, (a_h @ eh)[c, i] = a_h[c, i//W]
    masks (9, HW): per-tap validity masks for the rolled 3x3 conv taps."""
    HW = H * W
    hh = np.arange(HW) // W
    ww = np.arange(HW) % W
    eh = (np.arange(H)[:, None] == hh[None, :]).astype(np.float32)   # (H, HW)
    ew = (np.arange(W)[:, None] == ww[None, :]).astype(np.float32)   # (W, HW)
    pool_h = eh.T / float(W)                                         # (HW, H)
    pool_w = ew.T / float(H)                                         # (HW, W)
    masks = np.zeros((9, HW), np.float32)
    for kh in range(3):
        for kw in range(3):
            dh, dw = kh - 1, kw - 1
            valid = (hh + dh >= 0) & (hh + dh < H) & (ww + dw >= 0) & (ww + dw < W)
            masks[kh * 3 + kw] = valid.astype(np.float32)
    return (jnp.asarray(pool_h), jnp.asarray(pool_w),
            jnp.asarray(eh), jnp.asarray(ew), jnp.asarray(masks))


def _full_spec(a):
    zeros = (0,) * a.ndim
    return pl.BlockSpec(a.shape, lambda b: zeros)


# ------------------------------------------------------------------- fused kernel
def segrs_kernel(x_ref, w0_ref, ph_ref, pw_ref, eh_ref, ew_ref, m9_ref,
                 fc1w_ref, fc1b_ref, fc20w_ref, fc20b_ref, fc21w_ref, fc21b_ref,
                 attg_ref, attb_ref, w2_ref, c2b_ref, w3_ref, c3b_ref,
                 g3g_ref, g3b_ref, aw_ref, ab_ref, out_ref,
                 *, radix, H, W, att_groups, gn3_groups):
    f32 = jnp.float32
    HW = H * W

    m9 = m9_ref[...]                                       # (9, HW) tap validity masks

    # ---------------- helpers ----------------
    def erf_approx(v):
        # Abramowitz & Stegun 7.1.26 — max abs error ~1.5e-7.  exp/abs/where only.
        p = 0.3275911
        a1, a2, a3, a4, a5 = (0.254829592, -0.284496736, 1.421413741,
                              -1.453152027, 1.061405429)
        av = jnp.abs(v)
        t = 1.0 / (1.0 + p * av)
        poly = ((((a5 * t + a4) * t + a3) * t + a2) * t + a1) * t
        e = 1.0 - poly * jnp.exp(-av * av)
        return jnp.where(v >= 0, e, -e)

    def gelu(v):                                           # exact (erf-based) GELU
        return 0.5 * v * (1.0 + erf_approx(v * 0.7071067811865476))

    def mean_all(v):                                       # (C, N) -> (1, 1), staged
        return jnp.mean(jnp.mean(v, axis=1, keepdims=True), axis=0, keepdims=True)

    def softmax_ch(v):                                     # softmax over channels, (C,1)
        m = jnp.max(v, axis=0, keepdims=True)
        e = jnp.exp(v - m)
        return e / jnp.sum(e, axis=0, keepdims=True)

    def conv3x3(xf, w9, bias=None):
        # xf: (Cin, HW); w9: (9, Cout, Cin) -> (Cout, HW); 3x3 / stride 1 / pad 1.
        cout = w9.shape[1]
        acc = jnp.zeros((cout, HW), f32)
        for k in range(9):
            kh, kw = divmod(k, 3)
            s = (kh - 1) * W + (kw - 1)                    # flattened source offset
            if s == 0:
                sh = xf                                    # center tap: always valid
            else:
                # sh[:, i] = xf[:, i+s] where valid, else 0 (XLU roll + mask)
                sh = pltpu.roll(xf, shift=(-s) % HW, axis=1) * m9[k:k + 1, :]
            acc = acc + jnp.dot(w9[k], sh, preferred_element_type=f32)
        if bias is not None:
            acc = acc + bias
        return acc

    def group_norm(xf, num_groups, gamma, beta, eps=1e-5):
        # xf: (C, HW); contiguous channel groups; biased variance (== torch GroupNorm)
        cc = xf.shape[0]
        if num_groups == 1:
            mu = mean_all(xf)
            var = mean_all((xf - mu) * (xf - mu))
            xn = (xf - mu) * lax.rsqrt(var + eps)
        else:
            cg = cc // num_groups
            ch = lax.broadcasted_iota(jnp.int32, (cc, 1), 0)
            mu_pc = jnp.zeros((cc, 1), f32)
            rs_pc = jnp.zeros((cc, 1), f32)
            for g in range(num_groups):
                xg = xf[g * cg:(g + 1) * cg]
                mu_g = mean_all(xg)                                   # (1, 1)
                var_g = mean_all((xg - mu_g) * (xg - mu_g))           # (1, 1)
                sel = (ch >= g * cg) & (ch < (g + 1) * cg)
                mu_pc = jnp.where(sel, mu_g, mu_pc)
                rs_pc = jnp.where(sel, lax.rsqrt(var_g + eps), rs_pc)
            xn = (xf - mu_pc) * rs_pc
        return xn * gamma + beta

    # ---------------- load params once ----------------
    pool_h, pool_w = ph_ref[...], pw_ref[...]
    eh, ew = eh_ref[...], ew_ref[...]
    fc1w, fc1b = fc1w_ref[...], fc1b_ref[...]
    fc20w, fc20b = fc20w_ref[...], fc20b_ref[...]
    fc21w, fc21b = fc21w_ref[...], fc21b_ref[...]
    attg, attb = attg_ref[...], attb_ref[...]
    w2, c2b = w2_ref[...], c2b_ref[...]
    w3, c3b = w3_ref[...], c3b_ref[...]
    g3g, g3b = g3g_ref[...], g3b_ref[...]
    aw, ab = aw_ref[...], ab_ref[...]

    x = x_ref[0].astype(f32)                               # (Cin, HW)

    # ---- conv (grouped 3x3, bias-free) + exact GELU
    y = gelu(conv3x3(x, w0_ref[...]))                      # (RC, HW)
    RC = y.shape[0]
    C = RC // radix

    # ---- split attention per radix slice (radix is a small static constant)
    x_sum = jnp.zeros((C, HW), f32)
    att = jnp.zeros((RC, HW), f32)
    for r in range(radix):
        xg = y[r * C:(r + 1) * C]                          # (C, HW)
        x_sum = x_sum + xg

        # pool_h / pool_w (kept separate; fc1 is 1x1 so this equals the torch concat)
        yph = jnp.dot(xg, pool_h, preferred_element_type=f32)                # (C, H)
        ypw = jnp.dot(xg, pool_w, preferred_element_type=f32)                # (C, W)
        y1h = jnp.dot(fc1w, yph, preferred_element_type=f32) + fc1b          # (A, H)
        y1w = jnp.dot(fc1w, ypw, preferred_element_type=f32) + fc1b          # (A, W)
        a_h = jax.nn.sigmoid(
            jnp.dot(fc20w, y1h, preferred_element_type=f32) + fc20b)         # (C, H)
        a_w = jax.nn.sigmoid(
            jnp.dot(fc21w, y1w, preferred_element_type=f32) + fc21b)         # (C, W)

        # broadcast a_h over W and a_w over H via one-hot expanders (stays lane-dense)
        gate = (jnp.dot(a_h, eh, preferred_element_type=f32) *
                jnp.dot(a_w, ew, preferred_element_type=f32))                # (C, HW)

        # att_norm: GroupNorm(att_groups, C), eps=1e-5, affine
        x1 = group_norm(gate * xg, att_groups, attg, attb)

        # conv2: 3x3, C->C, padding 1 (+bias)
        x2 = conv3x3(x1, w2, c2b)                                            # (C, HW)

        # agp + channel-softmax cross attention -> sigmoid spatial gate
        s1 = softmax_ch(jnp.mean(x1, axis=1, keepdims=True))                 # (C, 1)
        s2 = softmax_ch(jnp.mean(x2, axis=1, keepdims=True))                 # (C, 1)
        w_map = jax.nn.sigmoid(
            jnp.sum(s1 * x2 + s2 * x1, axis=0, keepdims=True))               # (1, HW)

        # attn_conv (1x1, RC->RC): accumulate per radix slice (avoids a concat)
        att = att + jnp.dot(aw[:, r * C:(r + 1) * C], x1 * w_map,
                            preferred_element_type=f32)
    att = att + ab                                                           # (RC, HW)

    # ---- main path: radix sum -> conv3 (3x3, C->RC, +bias) -> gn3 -> GELU
    x3 = conv3x3(x_sum, w3, c3b)                                             # (RC, HW)
    x3 = gelu(group_norm(x3, gn3_groups, g3g, g3b))

    out_ref[0] = (x3 * att).astype(out_ref.dtype)


# ------------------------------------------------------------------ forward (Pallas)
def seg_rs_forward(x, p, *, radix, groups, att_groups, gn3_groups):
    B, Cin, H, W = x.shape
    HW = H * W

    w0 = _conv3x3_weight_taps(p['conv_w'], groups * radix)     # (9, RC, Cin)
    RC = w0.shape[1]
    w2 = _conv3x3_weight_taps(p['conv2_w'], 1)                 # (9, C, C)
    w3 = _conv3x3_weight_taps(p['conv3_w'], 1)                 # (9, RC, C)
    pool_h, pool_w, eh, ew, masks = _spatial_mats(H, W)

    col = lambda v: jnp.asarray(v, jnp.float32).reshape(-1, 1)  # biases/scales -> (N, 1)

    args = (
        x.reshape(B, Cin, HW).astype(jnp.float32),
        w0, pool_h, pool_w, eh, ew, masks,
        p['fc1_w'], col(p['fc1_b']),
        p['fc20_w'], col(p['fc20_b']),
        p['fc21_w'], col(p['fc21_b']),
        col(p['att_g']), col(p['att_b']),
        w2, col(p['conv2_b']),
        w3, col(p['conv3_b']),
        col(p['gn3_g']), col(p['gn3_b']),
        p['attn_w'].reshape(RC, RC), col(p['attn_b']),
    )

    kernel = partial(segrs_kernel, radix=radix, H=H, W=W,
                     att_groups=att_groups, gn3_groups=gn3_groups)

    in_specs = [pl.BlockSpec((1, Cin, HW), lambda b: (b, 0, 0))]
    in_specs += [_full_spec(a) for a in args[1:]]

    out = pl.pallas_call(
        kernel,
        out_shape=jax.ShapeDtypeStruct((B, RC, HW), jnp.float32),
        grid=(B,),
        in_specs=in_specs,
        out_specs=pl.BlockSpec((1, RC, HW), lambda b: (b, 0, 0)),
        compiler_params=pltpu.CompilerParams(
            dimension_semantics=("parallel",)),
    )(*args)
    return out.reshape(B, RC, H, W)


# -------------------------------------------------------------- pure-JAX reference
def group_norm_ref(x, num_groups, gamma, beta, eps=1e-5):
    B, C, H, W = x.shape
    xg = x.reshape(B, num_groups, C // num_groups, H, W)
    mu = xg.mean(axis=(2, 3, 4), keepdims=True)
    var = ((xg - mu) ** 2).mean(axis=(2, 3, 4), keepdims=True)
    xn = ((xg - mu) / jnp.sqrt(var + eps)).reshape(B, C, H, W)
    return xn * gamma[None, :, None, None] + beta[None, :, None, None]


def seg_rs_reference(x, p, *, radix, groups, att_groups, gn3_groups):
    dn = ('NCHW', 'OIHW', 'NCHW')
    y = lax.conv_general_dilated(x, p['conv_w'], (1, 1), ((1, 1), (1, 1)),
                                 dimension_numbers=dn,
                                 feature_group_count=groups * radix)
    y = jax.nn.gelu(y, approximate=False)
    B, RC, H, W = y.shape
    C = RC // radix
    BR = B * radix
    x_gap = y.reshape(BR, C, H, W)
    x5 = y.reshape(B, radix, C, H, W)

    x_h = jnp.mean(x_gap, axis=3, keepdims=True)
    x_w = jnp.transpose(jnp.mean(x_gap, axis=2, keepdims=True), (0, 1, 3, 2))
    yc = jnp.concatenate([x_h, x_w], axis=2)
    y1 = jnp.einsum('ac,bchw->bahw', p['fc1_w'], yc) + p['fc1_b'][None, :, None, None]
    yh = y1[:, :, :H, :]
    yw = jnp.transpose(y1[:, :, H:, :], (0, 1, 3, 2))
    a_h = jax.nn.sigmoid(jnp.einsum('ca,bahw->bchw', p['fc20_w'], yh) + p['fc20_b'][None, :, None, None])
    a_w = jax.nn.sigmoid(jnp.einsum('ca,bahw->bchw', p['fc21_w'], yw) + p['fc21_b'][None, :, None, None])
    xa = a_h * a_w * x_gap
    xa = group_norm_ref(xa, att_groups, p['att_g'], p['att_b'])
    x1 = xa
    x2 = lax.conv_general_dilated(xa, p['conv2_w'], (1, 1), ((1, 1), (1, 1)),
                                  dimension_numbers=dn) + p['conv2_b'][None, :, None, None]
    s1 = jax.nn.softmax(jnp.mean(x1, axis=(2, 3)), axis=-1)[:, None, :]
    s2 = jax.nn.softmax(jnp.mean(x2, axis=(2, 3)), axis=-1)[:, None, :]
    w_map = jnp.matmul(s1, x2.reshape(BR, C, H * W)) + jnp.matmul(s2, x1.reshape(BR, C, H * W))
    w_map = jax.nn.sigmoid(w_map.reshape(BR, 1, H, W))
    xa = (x1 * w_map).reshape(B, RC, H, W)
    xa = jnp.einsum('oc,bchw->bohw', p['attn_w'].reshape(RC, RC), xa) + p['attn_b'][None, :, None, None]

    xs = x5.sum(axis=1)
    x3 = lax.conv_general_dilated(xs, p['conv3_w'], (1, 1), ((1, 1), (1, 1)),
                                  dimension_numbers=dn) + p['conv3_b'][None, :, None, None]
    x3 = group_norm_ref(x3, gn3_groups, p['gn3_g'], p['gn3_b'])
    x3 = jax.nn.gelu(x3, approximate=False)
    return x3 * xa


# ------------------------------------------------------------------------------ main
if __name__ == "__main__":
    B, Cin, H, W = 2, 4, 16, 16
    out_channels = Cin                                  # default: out_channels = in_channels
    radix, groups = 2, 1
    RC = out_channels                                   # conv output channels = mid_chs // radix
    C = out_channels // radix                           # per-radix channels
    attn_chs = make_divisible(Cin * radix * 0.25, min_value=32, divisor=8)   # 32
    att_groups = out_channels // radix // radix         # 1
    gn3_groups = out_channels // radix                  # 2

    key = jax.random.PRNGKey(0)
    ks = jax.random.split(key, 18)

    def rn(k, shape, s=0.3):
        return jax.random.normal(k, shape, jnp.float32) * s

    params = dict(
        conv_w=rn(ks[0], (RC, Cin // (groups * radix), 3, 3)),     # grouped 3x3, bias=False
        fc1_w=rn(ks[1], (attn_chs, C)),
        fc1_b=rn(ks[2], (attn_chs,), 0.1),
        fc20_w=rn(ks[3], (C, attn_chs)),
        fc20_b=rn(ks[4], (C,), 0.1),
        fc21_w=rn(ks[5], (C, attn_chs)),
        fc21_b=rn(ks[6], (C,), 0.1),
        att_g=1.0 + rn(ks[7], (C,), 0.1),
        att_b=rn(ks[8], (C,), 0.1),
        conv2_w=rn(ks[9], (C, C, 3, 3)),
        conv2_b=rn(ks[10], (C,), 0.1),
        conv3_w=rn(ks[11], (RC, C, 3, 3)),
        conv3_b=rn(ks[12], (RC,), 0.1),
        gn3_g=1.0 + rn(ks[13], (RC,), 0.1),
        gn3_b=rn(ks[14], (RC,), 0.1),
        attn_w=rn(ks[15], (RC, RC, 1, 1)),
        attn_b=rn(ks[16], (RC,), 0.1),
    )

    x = jax.random.normal(ks[17], (B, Cin, H, W), jnp.float32)

    fwd = jax.jit(partial(seg_rs_forward, radix=radix, groups=groups,
                          att_groups=att_groups, gn3_groups=gn3_groups))
    out = fwd(x, params)
    jax.block_until_ready(out)

    ref = seg_rs_reference(x, params, radix=radix, groups=groups,
                           att_groups=att_groups, gn3_groups=gn3_groups)
    np.testing.assert_allclose(np.asarray(out), np.asarray(ref), rtol=5e-3, atol=5e-3)
    print("KERNEL_OK")
</pallas_src>

<mosaic_0001>
module attributes {stable_mosaic.version = 11 : i64} {
  func.func @segrs_kernel(%arg0: i32, %arg1: memref<1x4x256xf32, #tpu.memory_space<vmem>>, %arg2: memref<9x4x4xf32, #tpu.memory_space<vmem>>, %arg3: memref<256x16xf32, #tpu.memory_space<vmem>>, %arg4: memref<256x16xf32, #tpu.memory_space<vmem>>, %arg5: memref<16x256xf32, #tpu.memory_space<vmem>>, %arg6: memref<16x256xf32, #tpu.memory_space<vmem>>, %arg7: memref<9x256xf32, #tpu.memory_space<vmem>>, %arg8: memref<32x2xf32, #tpu.memory_space<vmem>>, %arg9: memref<32x1xf32, #tpu.memory_space<vmem>>, %arg10: memref<2x32xf32, #tpu.memory_space<vmem>>, %arg11: memref<2x1xf32, #tpu.memory_space<vmem>>, %arg12: memref<2x32xf32, #tpu.memory_space<vmem>>, %arg13: memref<2x1xf32, #tpu.memory_space<vmem>>, %arg14: memref<2x1xf32, #tpu.memory_space<vmem>>, %arg15: memref<2x1xf32, #tpu.memory_space<vmem>>, %arg16: memref<9x2x2xf32, #tpu.memory_space<vmem>>, %arg17: memref<2x1xf32, #tpu.memory_space<vmem>>, %arg18: memref<9x4x2xf32, #tpu.memory_space<vmem>>, %arg19: memref<4x1xf32, #tpu.memory_space<vmem>>, %arg20: memref<4x1xf32, #tpu.memory_space<vmem>>, %arg21: memref<4x1xf32, #tpu.memory_space<vmem>>, %arg22: memref<4x4xf32, #tpu.memory_space<vmem>>, %arg23: memref<4x1xf32, #tpu.memory_space<vmem>>, %arg24: memref<1x4x256xf32, #tpu.memory_space<vmem>>) attributes {dimension_semantics = [#tpu.dimension_semantics<parallel>], iteration_bounds = array<i64: 2>, scalar_prefetch = 0 : i64, scratch_operands = 0 : i64, tpu.core_type = #tpu.core_type<tc>, window_params = [{transform_indices = @transform_0, window_bounds = array<i64: 1, 4, 256>}, {pipeline_mode = #tpu.pipeline_mode<synchronous>, transform_indices = @transform_1, window_bounds = array<i64: 9, 4, 4>}, {pipeline_mode = #tpu.pipeline_mode<synchronous>, transform_indices = @transform_2, window_bounds = array<i64: 256, 16>}, {pipeline_mode = #tpu.pipeline_mode<synchronous>, transform_indices = @transform_3, window_bounds = array<i64: 256, 16>}, {pipeline_mode = #tpu.pipeline_mode<synchronous>, transform_indices = @transform_4, window_bounds = array<i64: 16, 256>}, {pipeline_mode = #tpu.pipeline_mode<synchronous>, transform_indices = @transform_5, window_bounds = array<i64: 16, 256>}, {pipeline_mode = #tpu.pipeline_mode<synchronous>, transform_indices = @transform_6, window_bounds = array<i64: 9, 256>}, {pipeline_mode = #tpu.pipeline_mode<synchronous>, transform_indices = @transform_7, window_bounds = array<i64: 32, 2>}, {pipeline_mode = #tpu.pipeline_mode<synchronous>, transform_indices = @transform_8, window_bounds = array<i64: 32, 1>}, {pipeline_mode = #tpu.pipeline_mode<synchronous>, transform_indices = @transform_9, window_bounds = array<i64: 2, 32>}, {pipeline_mode = #tpu.pipeline_mode<synchronous>, transform_indices = @transform_10, window_bounds = array<i64: 2, 1>}, {pipeline_mode = #tpu.pipeline_mode<synchronous>, transform_indices = @transform_11, window_bounds = array<i64: 2, 32>}, {pipeline_mode = #tpu.pipeline_mode<synchronous>, transform_indices = @transform_12, window_bounds = array<i64: 2, 1>}, {pipeline_mode = #tpu.pipeline_mode<synchronous>, transform_indices = @transform_13, window_bounds = array<i64: 2, 1>}, {pipeline_mode = #tpu.pipeline_mode<synchronous>, transform_indices = @transform_14, window_bounds = array<i64: 2, 1>}, {pipeline_mode = #tpu.pipeline_mode<synchronous>, transform_indices = @transform_15, window_bounds = array<i64: 9, 2, 2>}, {pipeline_mode = #tpu.pipeline_mode<synchronous>, transform_indices = @transform_16, window_bounds = array<i64: 2, 1>}, {pipeline_mode = #tpu.pipeline_mode<synchronous>, transform_indices = @transform_17, window_bounds = array<i64: 9, 4, 2>}, {pipeline_mode = #tpu.pipeline_mode<synchronous>, transform_indices = @transform_18, window_bounds = array<i64: 4, 1>}, {pipeline_mode = #tpu.pipeline_mode<synchronous>, transform_indices = @transform_19, window_bounds = array<i64: 4, 1>}, {pipeline_mode = #tpu.pipeline_mode<synchronous>, transform_indices = @transform_20, window_bounds = array<i64: 4, 1>}, {pipeline_mode = #tpu.pipeline_mode<synchronous>, transform_indices = @transform_21, window_bounds = array<i64: 4, 4>}, {pipeline_mode = #tpu.pipeline_mode<synchronous>, transform_indices = @transform_22, window_bounds = array<i64: 4, 1>}, {transform_indices = @transform_23, window_bounds = array<i64: 1, 4, 256>}]} {
    %c0 = arith.constant 0 : index
    %c0_0 = arith.constant 0 : index
    %0 = vector.load %arg7[%c0, %c0_0] : memref<9x256xf32, #tpu.memory_space<vmem>>, vector<9x256xf32>
    %c0_1 = arith.constant 0 : index
    %c0_2 = arith.constant 0 : index
    %1 = vector.load %arg3[%c0_1, %c0_2] : memref<256x16xf32, #tpu.memory_space<vmem>>, vector<256x16xf32>
    %c0_3 = arith.constant 0 : index
    %c0_4 = arith.constant 0 : index
    %2 = vector.load %arg4[%c0_3, %c0_4] : memref<256x16xf32, #tpu.memory_space<vmem>>, vector<256x16xf32>
    %c0_5 = arith.constant 0 : index
    %c0_6 = arith.constant 0 : index
    %3 = vector.load %arg5[%c0_5, %c0_6] : memref<16x256xf32, #tpu.memory_space<vmem>>, vector<16x256xf32>
    %c0_7 = arith.constant 0 : index
    %c0_8 = arith.constant 0 : index
    %4 = vector.load %arg6[%c0_7, %c0_8] : memref<16x256xf32, #tpu.memory_space<vmem>>, vector<16x256xf32>
    %c0_9 = arith.constant 0 : index
    %c0_10 = arith.constant 0 : index
    %5 = vector.load %arg8[%c0_9, %c0_10] : memref<32x2xf32, #tpu.memory_space<vmem>>, vector<32x2xf32>
    %c0_11 = arith.constant 0 : index
    %c0_12 = arith.constant 0 : index
    %6 = vector.load %arg9[%c0_11, %c0_12] : memref<32x1xf32, #tpu.memory_space<vmem>>, vector<32x1xf32>
    %c0_13 = arith.constant 0 : index
    %c0_14 = arith.constant 0 : index
    %7 = vector.load %arg10[%c0_13, %c0_14] : memref<2x32xf32, #tpu.memory_space<vmem>>, vector<2x32xf32>
    %c0_15 = arith.constant 0 : index
    %c0_16 = arith.constant 0 : index
    %8 = vector.load %arg11[%c0_15, %c0_16] : memref<2x1xf32, #tpu.memory_space<vmem>>, vector<2x1xf32>
    %c0_17 = arith.constant 0 : index
    %c0_18 = arith.constant 0 : index
    %9 = vector.load %arg12[%c0_17, %c0_18] : memref<2x32xf32, #tpu.memory_space<vmem>>, vector<2x32xf32>
    %c0_19 = arith.constant 0 : index
    %c0_20 = arith.constant 0 : index
    %10 = vector.load %arg13[%c0_19, %c0_20] : memref<2x1xf32, #tpu.memory_space<vmem>>, vector<2x1xf32>
    %c0_21 = arith.constant 0 : index
    %c0_22 = arith.constant 0 : index
    %11 = vector.load %arg14[%c0_21, %c0_22] : memref<2x1xf32, #tpu.memory_space<vmem>>, vector<2x1xf32>
    %c0_23 = arith.constant 0 : index
    %c0_24 = arith.constant 0 : index
    %12 = vector.load %arg15[%c0_23, %c0_24] : memref<2x1xf32, #tpu.memory_space<vmem>>, vector<2x1xf32>
    %c0_25 = arith.constant 0 : index
    %c0_26 = arith.constant 0 : index
    %c0_27 = arith.constant 0 : index
    %13 = vector.load %arg16[%c0_25, %c0_26, %c0_27] : memref<9x2x2xf32, #tpu.memory_space<vmem>>, vector<9x2x2xf32>
    %c0_28 = arith.constant 0 : index
    %c0_29 = arith.constant 0 : index
    %14 = vector.load %arg17[%c0_28, %c0_29] : memref<2x1xf32, #tpu.memory_space<vmem>>, vector<2x1xf32>
    %c0_30 = arith.constant 0 : index
    %c0_31 = arith.constant 0 : index
    %c0_32 = arith.constant 0 : index
    %15 = vector.load %arg18[%c0_30, %c0_31, %c0_32] : memref<9x4x2xf32, #tpu.memory_space<vmem>>, vector<9x4x2xf32>
    %c0_33 = arith.constant 0 : index
    %c0_34 = arith.constant 0 : index
    %16 = vector.load %arg19[%c0_33, %c0_34] : memref<4x1xf32, #tpu.memory_space<vmem>>, vector<4x1xf32>
    %c0_35 = arith.constant 0 : index
    %c0_36 = arith.constant 0 : index
    %17 = vector.load %arg20[%c0_35, %c0_36] : memref<4x1xf32, #tpu.memory_space<vmem>>, vector<4x1xf32>
    %c0_37 = arith.constant 0 : index
    %c0_38 = arith.constant 0 : index
    %18 = vector.load %arg21[%c0_37, %c0_38] : memref<4x1xf32, #tpu.memory_space<vmem>>, vector<4x1xf32>
    %c0_39 = arith.constant 0 : index
    %c0_40 = arith.constant 0 : index
    %19 = vector.load %arg22[%c0_39, %c0_40] : memref<4x4xf32, #tpu.memory_space<vmem>>, vector<4x4xf32>
    %c0_41 = arith.constant 0 : index
    %c0_42 = arith.constant 0 : index
    %20 = vector.load %arg23[%c0_41, %c0_42] : memref<4x1xf32, #tpu.memory_space<vmem>>, vector<4x1xf32>
    %c0_43 = arith.constant 0 : index
    %c0_44 = arith.constant 0 : index
    %c0_45 = arith.constant 0 : index
    %21 = vector.load %arg1[%c0_43, %c0_44, %c0_45] : memref<1x4x256xf32, #tpu.memory_space<vmem>>, vector<1x4x256xf32>
    %22 = vector.shape_cast %21 : vector<1x4x256xf32> to vector<4x256xf32>
    %c0_46 = arith.constant 0 : index
    %c0_47 = arith.constant 0 : index
    %c0_48 = arith.constant 0 : index
    %23 = vector.load %arg2[%c0_46, %c0_47, %c0_48] : memref<9x4x4xf32, #tpu.memory_space<vmem>>, vector<9x4x4xf32>
    %cst = arith.constant 0.000000e+00 : f32
    %24 = vector.broadcast %cst : f32 to vector<4x256xf32>
    %c17_i32 = arith.constant 17 : i32
    %25 = tpu.dynamic_rotate %22 by %c17_i32 dim 1 : vector<4x256xf32>, i32 -> vector<4x256xf32>
    %26 = vector.extract_strided_slice %0 {offsets = [0, 0], sizes = [1, 256], strides = [1, 1]} : vector<9x256xf32> to vector<1x256xf32>
    %27 = vector.broadcast %26 : vector<1x256xf32> to vector<4x256xf32>
    %28 = arith.mulf %25, %27 : vector<4x256xf32>
    %29 = vector.extract_strided_slice %23 {offsets = [0, 0, 0], sizes = [1, 4, 4], strides = [1, 1, 1]} : vector<9x4x4xf32> to vector<1x4x4xf32>
    %30 = vector.shape_cast %29 : vector<1x4x4xf32> to vector<4x4xf32>
    %cst_49 = arith.constant dense<0.000000e+00> : vector<4x256xf32>
    %31 = tpu.matmul %30, %28, %cst_49 {dimension_numbers = #tpu.dot_dimension_numbers<[1], [0], [0], [1], [0, 0, 1, 1], [], []>} : vector<4x4xf32>, vector<4x256xf32>, vector<4x256xf32> -> vector<4x256xf32>
    %32 = arith.addf %24, %31 : vector<4x256xf32>
    %c16_i32 = arith.constant 16 : i32
    %33 = tpu.dynamic_rotate %22 by %c16_i32 dim 1 : vector<4x256xf32>, i32 -> vector<4x256xf32>
    %34 = vector.extract_strided_slice %0 {offsets = [1, 0], sizes = [1, 256], strides = [1, 1]} : vector<9x256xf32> to vector<1x256xf32>
    %35 = vector.broadcast %34 : vector<1x256xf32> to vector<4x256xf32>
    %36 = arith.mulf %33, %35 : vector<4x256xf32>
    %37 = vector.extract_strided_slice %23 {offsets = [1, 0, 0], sizes = [1, 4, 4], strides = [1, 1, 1]} : vector<9x4x4xf32> to vector<1x4x4xf32>
    %38 = vector.shape_cast %37 : vector<1x4x4xf32> to vector<4x4xf32>
    %cst_50 = arith.constant dense<0.000000e+00> : vector<4x256xf32>
    %39 = tpu.matmul %38, %36, %cst_50 {dimension_numbers = #tpu.dot_dimension_numbers<[1], [0], [0], [1], [0, 0, 1, 1], [], []>} : vector<4x4xf32>, vector<4x256xf32>, vector<4x256xf32> -> vector<4x256xf32>
    %40 = arith.addf %32, %39 : vector<4x256xf32>
    %c15_i32 = arith.constant 15 : i32
    %41 = tpu.dynamic_rotate %22 by %c15_i32 dim 1 : vector<4x256xf32>, i32 -> vector<4x256xf32>
    %42 = vector.extract_strided_slice %0 {offsets = [2, 0], sizes = [1, 256], strides = [1, 1]} : vector<9x256xf32> to vector<1x256xf32>
    %43 = vector.broadcast %42 : vector<1x256xf32> to vector<4x256xf32>
    %44 = arith.mulf %41, %43 : vector<4x256xf32>
    %45 = vector.extract_strided_slice %23 {offsets = [2, 0, 0], sizes = [1, 4, 4], strides = [1, 1, 1]} : vector<9x4x4xf32> to vector<1x4x4xf32>
    %46 = vector.shape_cast %45 : vector<1x4x4xf32> to vector<4x4xf32>
    %cst_51 = arith.constant dense<0.000000e+00> : vector<4x256xf32>
    %47 = tpu.matmul %46, %44, %cst_51 {dimension_numbers = #tpu.dot_dimension_numbers<[1], [0], [0], [1], [0, 0, 1, 1], [], []>} : vector<4x4xf32>, vector<4x256xf32>, vector<4x256xf32> -> vector<4x256xf32>
    %48 = arith.addf %40, %47 : vector<4x256xf32>
    %c1_i32 = arith.constant 1 : i32
    %49 = tpu.dynamic_rotate %22 by %c1_i32 dim 1 : vector<4x256xf32>, i32 -> vector<4x256xf32>
    %50 = vector.extract_strided_slice %0 {offsets = [3, 0], sizes = [1, 256], strides = [1, 1]} : vector<9x256xf32> to vector<1x256xf32>
    %51 = vector.broadcast %50 : vector<1x256xf32> to vector<4x256xf32>
    %52 = arith.mulf %49, %51 : vector<4x256xf32>
    %53 = vector.extract_strided_slice %23 {offsets = [3, 0, 0], sizes = [1, 4, 4], strides = [1, 1, 1]} : vector<9x4x4xf32> to vector<1x4x4xf32>
    %54 = vector.shape_cast %53 : vector<1x4x4xf32> to vector<4x4xf32>
    %cst_52 = arith.constant dense<0.000000e+00> : vector<4x256xf32>
    %55 = tpu.matmul %54, %52, %cst_52 {dimension_numbers = #tpu.dot_dimension_numbers<[1], [0], [0], [1], [0, 0, 1, 1], [], []>} : vector<4x4xf32>, vector<4x256xf32>, vector<4x256xf32> -> vector<4x256xf32>
    %56 = arith.addf %48, %55 : vector<4x256xf32>
    %57 = vector.extract_strided_slice %23 {offsets = [4, 0, 0], sizes = [1, 4, 4], strides = [1, 1, 1]} : vector<9x4x4xf32> to vector<1x4x4xf32>
    %58 = vector.shape_cast %57 : vector<1x4x4xf32> to vector<4x4xf32>
    %cst_53 = arith.constant dense<0.000000e+00> : vector<4x256xf32>
    %59 = tpu.matmul %58, %22, %cst_53 {dimension_numbers = #tpu.dot_dimension_numbers<[1], [0], [0], [1], [0, 0, 1, 1], [], []>} : vector<4x4xf32>, vector<4x256xf32>, vector<4x256xf32> -> vector<4x256xf32>
    %60 = arith.addf %56, %59 : vector<4x256xf32>
    %c255_i32 = arith.constant 255 : i32
    %61 = tpu.dynamic_rotate %22 by %c255_i32 dim 1 : vector<4x256xf32>, i32 -> vector<4x256xf32>
    %62 = vector.extract_strided_slice %0 {offsets = [5, 0], sizes = [1, 256], strides = [1, 1]} : vector<9x256xf32> to vector<1x256xf32>
    %63 = vector.broadcast %62 : vector<1x256xf32> to vector<4x256xf32>
    %64 = arith.mulf %61, %63 : vector<4x256xf32>
    %65 = vector.extract_strided_slice %23 {offsets = [5, 0, 0], sizes = [1, 4, 4], strides = [1, 1, 1]} : vector<9x4x4xf32> to vector<1x4x4xf32>
    %66 = vector.shape_cast %65 : vector<1x4x4xf32> to vector<4x4xf32>
    %cst_54 = arith.constant dense<0.000000e+00> : vector<4x256xf32>
    %67 = tpu.matmul %66, %64, %cst_54 {dimension_numbers = #tpu.dot_dimension_numbers<[1], [0], [0], [1], [0, 0, 1, 1], [], []>} : vector<4x4xf32>, vector<4x256xf32>, vector<4x256xf32> -> vector<4x256xf32>
    %68 = arith.addf %60, %67 : vector<4x256xf32>
    %c241_i32 = arith.constant 241 : i32
    %69 = tpu.dynamic_rotate %22 by %c241_i32 dim 1 : vector<4x256xf32>, i32 -> vector<4x256xf32>
    %70 = vector.extract_strided_slice %0 {offsets = [6, 0], sizes = [1, 256], strides = [1, 1]} : vector<9x256xf32> to vector<1x256xf32>
    %71 = vector.broadcast %70 : vector<1x256xf32> to vector<4x256xf32>
    %72 = arith.mulf %69, %71 : vector<4x256xf32>
    %73 = vector.extract_strided_slice %23 {offsets = [6, 0, 0], sizes = [1, 4, 4], strides = [1, 1, 1]} : vector<9x4x4xf32> to vector<1x4x4xf32>
    %74 = vector.shape_cast %73 : vector<1x4x4xf32> to vector<4x4xf32>
    %cst_55 = arith.constant dense<0.000000e+00> : vector<4x256xf32>
    %75 = tpu.matmul %74, %72, %cst_55 {dimension_numbers = #tpu.dot_dimension_numbers<[1], [0], [0], [1], [0, 0, 1, 1], [], []>} : vector<4x4xf32>, vector<4x256xf32>, vector<4x256xf32> -> vector<4x256xf32>
    %76 = arith.addf %68, %75 : vector<4x256xf32>
    %c240_i32 = arith.constant 240 : i32
    %77 = tpu.dynamic_rotate %22 by %c240_i32 dim 1 : vector<4x256xf32>, i32 -> vector<4x256xf32>
    %78 = vector.extract_strided_slice %0 {offsets = [7, 0], sizes = [1, 256], strides = [1, 1]} : vector<9x256xf32> to vector<1x256xf32>
    %79 = vector.broadcast %78 : vector<1x256xf32> to vector<4x256xf32>
    %80 = arith.mulf %77, %79 : vector<4x256xf32>
    %81 = vector.extract_strided_slice %23 {offsets = [7, 0, 0], sizes = [1, 4, 4], strides = [1, 1, 1]} : vector<9x4x4xf32> to vector<1x4x4xf32>
    %82 = vector.shape_cast %81 : vector<1x4x4xf32> to vector<4x4xf32>
    %cst_56 = arith.constant dense<0.000000e+00> : vector<4x256xf32>
    %83 = tpu.matmul %82, %80, %cst_56 {dimension_numbers = #tpu.dot_dimension_numbers<[1], [0], [0], [1], [0, 0, 1, 1], [], []>} : vector<4x4xf32>, vector<4x256xf32>, vector<4x256xf32> -> vector<4x256xf32>
    %84 = arith.addf %76, %83 : vector<4x256xf32>
    %c239_i32 = arith.constant 239 : i32
    %85 = tpu.dynamic_rotate %22 by %c239_i32 dim 1 : vector<4x256xf32>, i32 -> vector<4x256xf32>
    %86 = vector.extract_strided_slice %0 {offsets = [8, 0], sizes = [1, 256], strides = [1, 1]} : vector<9x256xf32> to vector<1x256xf32>
    %87 = vector.broadcast %86 : vector<1x256xf32> to vector<4x256xf32>
    %88 = arith.mulf %85, %87 : vector<4x256xf32>
    %89 = vector.extract_strided_slice %23 {offsets = [8, 0, 0], sizes = [1, 4, 4], strides = [1, 1, 1]} : vector<9x4x4xf32> to vector<1x4x4xf32>
    %90 = vector.shape_cast %89 : vector<1x4x4xf32> to vector<4x4xf32>
    %cst_57 = arith.constant dense<0.000000e+00> : vector<4x256xf32>
    %91 = tpu.matmul %90, %88, %cst_57 {dimension_numbers = #tpu.dot_dimension_numbers<[1], [0], [0], [1], [0, 0, 1, 1], [], []>} : vector<4x4xf32>, vector<4x256xf32>, vector<4x256xf32> -> vector<4x256xf32>
    %92 = arith.addf %84, %91 : vector<4x256xf32>
    %cst_58 = arith.constant 5.000000e-01 : f32
    %93 = vector.broadcast %cst_58 : f32 to vector<4x256xf32>
    %94 = arith.mulf %93, %92 : vector<4x256xf32>
    %cst_59 = arith.constant 0.707106769 : f32
    %95 = vector.broadcast %cst_59 : f32 to vector<4x256xf32>
    %96 = arith.mulf %92, %95 : vector<4x256xf32>
    %97 = math.absf %96 : vector<4x256xf32>
    %cst_60 = arith.constant 0.327591091 : f32
    %98 = vector.broadcast %cst_60 : f32 to vector<4x256xf32>
    %99 = arith.mulf %98, %97 : vector<4x256xf32>
    %cst_61 = arith.constant 1.000000e+00 : f32
    %100 = vector.broadcast %cst_61 : f32 to vector<4x256xf32>
    %101 = arith.addf %100, %99 : vector<4x256xf32>
    %cst_62 = arith.constant 1.000000e+00 : f32
    %102 = vector.broadcast %cst_62 : f32 to vector<4x256xf32>
    %103 = arith.divf %102, %101 : vector<4x256xf32>
    %cst_63 = arith.constant 1.06140542 : f32
    %104 = vector.broadcast %cst_63 : f32 to vector<4x256xf32>
    %105 = arith.mulf %104, %103 : vector<4x256xf32>
    %cst_64 = arith.constant -1.45315206 : f32
    %106 = vector.broadcast %cst_64 : f32 to vector<4x256xf32>
    %107 = arith.addf %105, %106 : vector<4x256xf32>
    %108 = arith.mulf %107, %103 : vector<4x256xf32>
    %cst_65 = arith.constant 1.42141378 : f32
    %109 = vector.broadcast %cst_65 : f32 to vector<4x256xf32>
    %110 = arith.addf %108, %109 : vector<4x256xf32>
    %111 = arith.mulf %110, %103 : vector<4x256xf32>
    %cst_66 = arith.constant -0.284496725 : f32
    %112 = vector.broadcast %cst_66 : f32 to vector<4x256xf32>
    %113 = arith.addf %111, %112 : vector<4x256xf32>
    %114 = arith.mulf %113, %103 : vector<4x256xf32>
    %cst_67 = arith.constant 0.254829586 : f32
    %115 = vector.broadcast %cst_67 : f32 to vector<4x256xf32>
    %116 = arith.addf %114, %115 : vector<4x256xf32>
    %117 = arith.mulf %116, %103 : vector<4x256xf32>
    %cst_68 = arith.constant 0.000000e+00 : f32
    %118 = vector.broadcast %cst_68 : f32 to vector<4x256xf32>
    %119 = arith.subf %118, %97 : vector<4x256xf32>
    %120 = arith.mulf %119, %97 : vector<4x256xf32>
    %121 = math.exp %120 : vector<4x256xf32>
    %122 = arith.mulf %117, %121 : vector<4x256xf32>
    %cst_69 = arith.constant 1.000000e+00 : f32
    %123 = vector.broadcast %cst_69 : f32 to vector<4x256xf32>
    %124 = arith.subf %123, %122 : vector<4x256xf32>
    %cst_70 = arith.constant 0.000000e+00 : f32
    %125 = vector.broadcast %cst_70 : f32 to vector<4x256xf32>
    %126 = arith.cmpf oge, %96, %125 : vector<4x256xf32>
    %cst_71 = arith.constant 0.000000e+00 : f32
    %127 = vector.broadcast %cst_71 : f32 to vector<4x256xf32>
    %128 = arith.subf %127, %124 : vector<4x256xf32>
    %129 = arith.select %126, %124, %128 : vector<4x256xi1>, vector<4x256xf32>
    %cst_72 = arith.constant 1.000000e+00 : f32
    %130 = vector.broadcast %cst_72 : f32 to vector<4x256xf32>
    %131 = arith.addf %130, %129 : vector<4x256xf32>
    %132 = arith.mulf %94, %131 : vector<4x256xf32>
    %cst_73 = arith.constant 0.000000e+00 : f32
    %133 = vector.broadcast %cst_73 : f32 to vector<2x256xf32>
    %cst_74 = arith.constant 0.000000e+00 : f32
    %134 = vector.broadcast %cst_74 : f32 to vector<4x256xf32>
    %135 = vector.extract_strided_slice %132 {offsets = [0, 0], sizes = [2, 256], strides = [1, 1]} : vector<4x256xf32> to vector<2x256xf32>
    %136 = arith.addf %133, %135 : vector<2x256xf32>
    %cst_75 = arith.constant dense<0.000000e+00> : vector<2x16xf32>
    %137 = tpu.matmul %135, %1, %cst_75 {dimension_numbers = #tpu.dot_dimension_numbers<[1], [0], [0], [1], [0, 0, 1, 1], [], []>} : vector<2x256xf32>, vector<256x16xf32>, vector<2x16xf32> -> vector<2x16xf32>
    %cst_76 = arith.constant dense<0.000000e+00> : vector<2x16xf32>
    %138 = tpu.matmul %135, %2, %cst_76 {dimension_numbers = #tpu.dot_dimension_numbers<[1], [0], [0], [1], [0, 0, 1, 1], [], []>} : vector<2x256xf32>, vector<256x16xf32>, vector<2x16xf32> -> vector<2x16xf32>
    %cst_77 = arith.constant dense<0.000000e+00> : vector<32x16xf32>
    %139 = tpu.matmul %5, %137, %cst_77 {dimension_numbers = #tpu.dot_dimension_numbers<[1], [0], [0], [1], [0, 0, 1, 1], [], []>} : vector<32x2xf32>, vector<2x16xf32>, vector<32x16xf32> -> vector<32x16xf32>
    %140 = vector.broadcast %6 : vector<32x1xf32> to vector<32x16xf32>
    %141 = arith.addf %139, %140 : vector<32x16xf32>
    %cst_78 = arith.constant dense<0.000000e+00> : vector<32x16xf32>
    %142 = tpu.matmul %5, %138, %cst_78 {dimension_numbers = #tpu.dot_dimension_numbers<[1], [0], [0], [1], [0, 0, 1, 1], [], []>} : vector<32x2xf32>, vector<2x16xf32>, vector<32x16xf32> -> vector<32x16xf32>
    %143 = vector.broadcast %6 : vector<32x1xf32> to vector<32x16xf32>
    %144 = arith.addf %142, %143 : vector<32x16xf32>
    %cst_79 = arith.constant dense<0.000000e+00> : vector<2x16xf32>
    %145 = tpu.matmul %7, %141, %cst_79 {dimension_numbers = #tpu.dot_dimension_numbers<[1], [0], [0], [1], [0, 0, 1, 1], [], []>} : vector<2x32xf32>, vector<32x16xf32>, vector<2x16xf32> -> vector<2x16xf32>
    %146 = vector.broadcast %8 : vector<2x1xf32> to vector<2x16xf32>
    %147 = arith.addf %145, %146 : vector<2x16xf32>
    %148 = arith.negf %147 : vector<2x16xf32>
    %149 = math.exp %148 : vector<2x16xf32>
    %cst_80 = arith.constant 1.000000e+00 : f32
    %150 = vector.broadcast %cst_80 : f32 to vector<2x16xf32>
    %151 = arith.addf %150, %149 : vector<2x16xf32>
    %152 = arith.divf %150, %151 : vector<2x16xf32>
    %cst_81 = arith.constant dense<0.000000e+00> : vector<2x16xf32>
    %153 = tpu.matmul %9, %144, %cst_81 {dimension_numbers = #tpu.dot_dimension_numbers<[1], [0], [0], [1], [0, 0, 1, 1], [], []>} : vector<2x32xf32>, vector<32x16xf32>, vector<2x16xf32> -> vector<2x16xf32>
    %154 = vector.broadcast %10 : vector<2x1xf32> to vector<2x16xf32>
    %155 = arith.addf %153, %154 : vector<2x16xf32>
    %156 = arith.negf %155 : vector<2x16xf32>
    %157 = math.exp %156 : vector<2x16xf32>
    %cst_82 = arith.constant 1.000000e+00 : f32
    %158 = vector.broadcast %cst_82 : f32 to vector<2x16xf32>
    %159 = arith.addf %158, %157 : vector<2x16xf32>
    %160 = arith.divf %158, %159 : vector<2x16xf32>
    %cst_83 = arith.constant dense<0.000000e+00> : vector<2x256xf32>
    %161 = tpu.matmul %152, %3, %cst_83 {dimension_numbers = #tpu.dot_dimension_numbers<[1], [0], [0], [1], [0, 0, 1, 1], [], []>} : vector<2x16xf32>, vector<16x256xf32>, vector<2x256xf32> -> vector<2x256xf32>
    %cst_84 = arith.constant dense<0.000000e+00> : vector<2x256xf32>
    %162 = tpu.matmul %160, %4, %cst_84 {dimension_numbers = #tpu.dot_dimension_numbers<[1], [0], [0], [1], [0, 0, 1, 1], [], []>} : vector<2x16xf32>, vector<16x256xf32>, vector<2x256xf32> -> vector<2x256xf32>
    %163 = arith.mulf %161, %162 : vector<2x256xf32>
    %164 = arith.mulf %163, %135 : vector<2x256xf32>
    %cst_85 = arith.constant dense<0.000000e+00> : vector<2xf32>
    %165 = vector.multi_reduction <add>, %164, %cst_85 [1] : vector<2x256xf32> to vector<2xf32>
    %166 = vector.shape_cast %165 : vector<2xf32> to vector<2x1xf32>
    %cst_86 = arith.constant 2.560000e+02 : f32
    %167 = vector.broadcast %cst_86 : f32 to vector<2x1xf32>
    %168 = arith.divf %166, %167 : vector<2x1xf32>
    %cst_87 = arith.constant dense<0.000000e+00> : vector<1xf32>
    %169 = vector.multi_reduction <add>, %168, %cst_87 [0] : vector<2x1xf32> to vector<1xf32>
    %170 = vector.shape_cast %169 : vector<1xf32> to vector<1x1xf32>
    %cst_88 = arith.constant 2.000000e+00 : f32
    %171 = vector.broadcast %cst_88 : f32 to vector<1x1xf32>
    %172 = arith.divf %170, %171 : vector<1x1xf32>
    %173 = vector.broadcast %172 : vector<1x1xf32> to vector<2x256xf32>
    %174 = arith.subf %164, %173 : vector<2x256xf32>
    %175 = vector.broadcast %172 : vector<1x1xf32> to vector<2x256xf32>
    %176 = arith.subf %164, %175 : vector<2x256xf32>
    %177 = arith.mulf %174, %176 : vector<2x256xf32>
    %cst_89 = arith.constant dense<0.000000e+00> : vector<2xf32>
    %178 = vector.multi_reduction <add>, %177, %cst_89 [1] : vector<2x256xf32> to vector<2xf32>
    %179 = vector.shape_cast %178 : vector<2xf32> to vector<2x1xf32>
    %cst_90 = arith.constant 2.560000e+02 : f32
    %180 = vector.broadcast %cst_90 : f32 to vector<2x1xf32>
    %181 = arith.divf %179, %180 : vector<2x1xf32>
    %cst_91 = arith.constant dense<0.000000e+00> : vector<1xf32>
    %182 = vector.multi_reduction <add>, %181, %cst_91 [0] : vector<2x1xf32> to vector<1xf32>
    %183 = vector.shape_cast %182 : vector<1xf32> to vector<1x1xf32>
    %cst_92 = arith.constant 2.000000e+00 : f32
    %184 = vector.broadcast %cst_92 : f32 to vector<1x1xf32>
    %185 = arith.divf %183, %184 : vector<1x1xf32>
    %186 = vector.broadcast %172 : vector<1x1xf32> to vector<2x256xf32>
    %187 = arith.subf %164, %186 : vector<2x256xf32>
    %cst_93 = arith.constant 9.99999974E-6 : f32
    %188 = vector.broadcast %cst_93 : f32 to vector<1x1xf32>
    %189 = arith.addf %185, %188 : vector<1x1xf32>
    %190 = math.rsqrt %189 : vector<1x1xf32>
    %191 = vector.broadcast %190 : vector<1x1xf32> to vector<2x256xf32>
    %192 = arith.mulf %187, %191 : vector<2x256xf32>
    %193 = vector.broadcast %11 : vector<2x1xf32> to vector<2x256xf32>
    %194 = arith.mulf %192, %193 : vector<2x256xf32>
    %195 = vector.broadcast %12 : vector<2x1xf32> to vector<2x256xf32>
    %196 = arith.addf %194, %195 : vector<2x256xf32>
    %cst_94 = arith.constant 0.000000e+00 : f32
    %197 = vector.broadcast %cst_94 : f32 to vector<2x256xf32>
    %c17_i32_95 = arith.constant 17 : i32
    %198 = tpu.dynamic_rotate %196 by %c17_i32_95 dim 1 : vector<2x256xf32>, i32 -> vector<2x256xf32>
    %199 = vector.extract_strided_slice %0 {offsets = [0, 0], sizes = [1, 256], strides = [1, 1]} : vector<9x256xf32> to vector<1x256xf32>
    %200 = vector.broadcast %199 : vector<1x256xf32> to vector<2x256xf32>
    %201 = arith.mulf %198, %200 : vector<2x256xf32>
    %202 = vector.extract_strided_slice %13 {offsets = [0, 0, 0], sizes = [1, 2, 2], strides = [1, 1, 1]} : vector<9x2x2xf32> to vector<1x2x2xf32>
    %203 = vector.shape_cast %202 : vector<1x2x2xf32> to vector<2x2xf32>
    %cst_96 = arith.constant dense<0.000000e+00> : vector<2x256xf32>
    %204 = tpu.matmul %203, %201, %cst_96 {dimension_numbers = #tpu.dot_dimension_numbers<[1], [0], [0], [1], [0, 0, 1, 1], [], []>} : vector<2x2xf32>, vector<2x256xf32>, vector<2x256xf32> -> vector<2x256xf32>
    %205 = arith.addf %197, %204 : vector<2x256xf32>
    %c16_i32_97 = arith.constant 16 : i32
    %206 = tpu.dynamic_rotate %196 by %c16_i32_97 dim 1 : vector<2x256xf32>, i32 -> vector<2x256xf32>
    %207 = vector.extract_strided_slice %0 {offsets = [1, 0], sizes = [1, 256], strides = [1, 1]} : vector<9x256xf32> to vector<1x256xf32>
    %208 = vector.broadcast %207 : vector<1x256xf32> to vector<2x256xf32>
    %209 = arith.mulf %206, %208 : vector<2x256xf32>
    %210 = vector.extract_strided_slice %13 {offsets = [1, 0, 0], sizes = [1, 2, 2], strides = [1, 1, 1]} : vector<9x2x2xf32> to vector<1x2x2xf32>
    %211 = vector.shape_cast %210 : vector<1x2x2xf32> to vector<2x2xf32>
    %cst_98 = arith.constant dense<0.000000e+00> : vector<2x256xf32>
    %212 = tpu.matmul %211, %209, %cst_98 {dimension_numbers = #tpu.dot_dimension_numbers<[1], [0], [0], [1], [0, 0, 1, 1], [], []>} : vector<2x2xf32>, vector<2x256xf32>, vector<2x256xf32> -> vector<2x256xf32>
    %213 = arith.addf %205, %212 : vector<2x256xf32>
    %c15_i32_99 = arith.constant 15 : i32
    %214 = tpu.dynamic_rotate %196 by %c15_i32_99 dim 1 : vector<2x256xf32>, i32 -> vector<2x256xf32>
    %215 = vector.extract_strided_slice %0 {offsets = [2, 0], sizes = [1, 256], strides = [1, 1]} : vector<9x256xf32> to vector<1x256xf32>
    %216 = vector.broadcast %215 : vector<1x256xf32> to vector<2x256xf32>
    %217 = arith.mulf %214, %216 : vector<2x256xf32>
    %218 = vector.extract_strided_slice %13 {offsets = [2, 0, 0], sizes = [1, 2, 2], strides = [1, 1, 1]} : vector<9x2x2xf32> to vector<1x2x2xf32>
    %219 = vector.shape_cast %218 : vector<1x2x2xf32> to vector<2x2xf32>
    %cst_100 = arith.constant dense<0.000000e+00> : vector<2x256xf32>
    %220 = tpu.matmul %219, %217, %cst_100 {dimension_numbers = #tpu.dot_dimension_numbers<[1], [0], [0], [1], [0, 0, 1, 1], [], []>} : vector<2x2xf32>, vector<2x256xf32>, vector<2x256xf32> -> vector<2x256xf32>
    %221 = arith.addf %213, %220 : vector<2x256xf32>
    %c1_i32_101 = arith.constant 1 : i32
    %222 = tpu.dynamic_rotate %196 by %c1_i32_101 dim 1 : vector<2x256xf32>, i32 -> vector<2x256xf32>
    %223 = vector.extract_strided_slice %0 {offsets = [3, 0], sizes = [1, 256], strides = [1, 1]} : vector<9x256xf32> to vector<1x256xf32>
    %224 = vector.broadcast %223 : vector<1x256xf32> to vector<2x256xf32>
    %225 = arith.mulf %222, %224 : vector<2x256xf32>
    %226 = vector.extract_strided_slice %13 {offsets = [3, 0, 0], sizes = [1, 2, 2], strides = [1, 1, 1]} : vector<9x2x2xf32> to vector<1x2x2xf32>
    %227 = vector.shape_cast %226 : vector<1x2x2xf32> to vector<2x2xf32>
    %cst_102 = arith.constant dense<0.000000e+00> : vector<2x256xf32>
    %228 = tpu.matmul %227, %225, %cst_102 {dimension_numbers = #tpu.dot_dimension_numbers<[1], [0], [0], [1], [0, 0, 1, 1], [], []>} : vector<2x2xf32>, vector<2x256xf32>, vector<2x256xf32> -> vector<2x256xf32>
    %229 = arith.addf %221, %228 : vector<2x256xf32>
    %230 = vector.extract_strided_slice %13 {offsets = [4, 0, 0], sizes = [1, 2, 2], strides = [1, 1, 1]} : vector<9x2x2xf32> to vector<1x2x2xf32>
    %231 = vector.shape_cast %230 : vector<1x2x2xf32> to vector<2x2xf32>
    %cst_103 = arith.constant dense<0.000000e+00> : vector<2x256xf32>
    %232 = tpu.matmul %231, %196, %cst_103 {dimension_numbers = #tpu.dot_dimension_numbers<[1], [0], [0], [1], [0, 0, 1, 1], [], []>} : vector<2x2xf32>, vector<2x256xf32>, vector<2x256xf32> -> vector<2x256xf32>
    %233 = arith.addf %229, %232 : vector<2x256xf32>
    %c255_i32_104 = arith.constant 255 : i32
    %234 = tpu.dynamic_rotate %196 by %c255_i32_104 dim 1 : vector<2x256xf32>, i32 -> vector<2x256xf32>
    %235 = vector.extract_strided_slice %0 {offsets = [5, 0], sizes = [1, 256], strides = [1, 1]} : vector<9x256xf32> to vector<1x256xf32>
    %236 = vector.broadcast %235 : vector<1x256xf32> to vector<2x256xf32>
    %237 = arith.mulf %234, %236 : vector<2x256xf32>
    %238 = vector.extract_strided_slice %13 {offsets = [5, 0, 0], sizes = [1, 2, 2], strides = [1, 1, 1]} : vector<9x2x2xf32> to vector<1x2x2xf32>
    %239 = vector.shape_cast %238 : vector<1x2x2xf32> to vector<2x2xf32>
    %cst_105 = arith.constant dense<0.000000e+00> : vector<2x256xf32>
    %240 = tpu.matmul %239, %237, %cst_105 {dimension_numbers = #tpu.dot_dimension_numbers<[1], [0], [0], [1], [0, 0, 1, 1], [], []>} : vector<2x2xf32>, vector<2x256xf32>, vector<2x256xf32> -> vector<2x256xf32>
    %241 = arith.addf %233, %240 : vector<2x256xf32>
    %c241_i32_106 = arith.constant 241 : i32
    %242 = tpu.dynamic_rotate %196 by %c241_i32_106 dim 1 : vector<2x256xf32>, i32 -> vector<2x256xf32>
    %243 = vector.extract_strided_slice %0 {offsets = [6, 0], sizes = [1, 256], strides = [1, 1]} : vector<9x256xf32> to vector<1x256xf32>
    %244 = vector.broadcast %243 : vector<1x256xf32> to vector<2x256xf32>
    %245 = arith.mulf %242, %244 : vector<2x256xf32>
    %246 = vector.extract_strided_slice %13 {offsets = [6, 0, 0], sizes = [1, 2, 2], strides = [1, 1, 1]} : vector<9x2x2xf32> to vector<1x2x2xf32>
    %247 = vector.shape_cast %246 : vector<1x2x2xf32> to vector<2x2xf32>
    %cst_107 = arith.constant dense<0.000000e+00> : vector<2x256xf32>
    %248 = tpu.matmul %247, %245, %cst_107 {dimension_numbers = #tpu.dot_dimension_numbers<[1], [0], [0], [1], [0, 0, 1, 1], [], []>} : vector<2x2xf32>, vector<2x256xf32>, vector<2x256xf32> -> vector<2x256xf32>
    %249 = arith.addf %241, %248 : vector<2x256xf32>
    %c240_i32_108 = arith.constant 240 : i32
    %250 = tpu.dynamic_rotate %196 by %c240_i32_108 dim 1 : vector<2x256xf32>, i32 -> vector<2x256xf32>
    %251 = vector.extract_strided_slice %0 {offsets = [7, 0], sizes = [1, 256], strides = [1, 1]} : vector<9x256xf32> to vector<1x256xf32>
    %252 = vector.broadcast %251 : vector<1x256xf32> to vector<2x256xf32>
    %253 = arith.mulf %250, %252 : vector<2x256xf32>
    %254 = vector.extract_strided_slice %13 {offsets = [7, 0, 0], sizes = [1, 2, 2], strides = [1, 1, 1]} : vector<9x2x2xf32> to vector<1x2x2xf32>
    %255 = vector.shape_cast %254 : vector<1x2x2xf32> to vector<2x2xf32>
    %cst_109 = arith.constant dense<0.000000e+00> : vector<2x256xf32>
    %256 = tpu.matmul %255, %253, %cst_109 {dimension_numbers = #tpu.dot_dimension_numbers<[1], [0], [0], [1], [0, 0, 1, 1], [], []>} : vector<2x2xf32>, vector<2x256xf32>, vector<2x256xf32> -> vector<2x256xf32>
    %257 = arith.addf %249, %256 : vector<2x256xf32>
    %c239_i32_110 = arith.constant 239 : i32
    %258 = tpu.dynamic_rotate %196 by %c239_i32_110 dim 1 : vector<2x256xf32>, i32 -> vector<2x256xf32>
    %259 = vector.extract_strided_slice %0 {offsets = [8, 0], sizes = [1, 256], strides = [1, 1]} : vector<9x256xf32> to vector<1x256xf32>
    %260 = vector.broadcast %259 : vector<1x256xf32> to vector<2x256xf32>
    %261 = arith.mulf %258, %260 : vector<2x256xf32>
    %262 = vector.extract_strided_slice %13 {offsets = [8, 0, 0], sizes = [1, 2, 2], strides = [1, 1, 1]} : vector<9x2x2xf32> to vector<1x2x2xf32>
    %263 = vector.shape_cast %262 : vector<1x2x2xf32> to vector<2x2xf32>
    %cst_111 = arith.constant dense<0.000000e+00> : vector<2x256xf32>
    %264 = tpu.matmul %263, %261, %cst_111 {dimension_numbers = #tpu.dot_dimension_numbers<[1], [0], [0], [1], [0, 0, 1, 1], [], []>} : vector<2x2xf32>, vector<2x256xf32>, vector<2x256xf32> -> vector<2x256xf32>
    %265 = arith.addf %257, %264 : vector<2x256xf32>
    %266 = vector.broadcast %14 : vector<2x1xf32> to vector<2x256xf32>
    %267 = arith.addf %265, %266 : vector<2x256xf32>
    %cst_112 = arith.constant dense<0.000000e+00> : vector<2xf32>
    %268 = vector.multi_reduction <add>, %196, %cst_112 [1] : vector<2x256xf32> to vector<2xf32>
    %269 = vector.shape_cast %268 : vector<2xf32> to vector<2x1xf32>
    %cst_113 = arith.constant 2.560000e+02 : f32
    %270 = vector.broadcast %cst_113 : f32 to vector<2x1xf32>
    %271 = arith.divf %269, %270 : vector<2x1xf32>
    %cst_114 = arith.constant dense<0xFF800000> : vector<1xf32>
    %272 = vector.multi_reduction <maximumf>, %271, %cst_114 [0] : vector<2x1xf32> to vector<1xf32>
    %273 = vector.shape_cast %272 : vector<1xf32> to vector<1x1xf32>
    %274 = vector.broadcast %273 : vector<1x1xf32> to vector<2x1xf32>
    %275 = arith.subf %271, %274 : vector<2x1xf32>
    %276 = math.exp %275 : vector<2x1xf32>
    %cst_115 = arith.constant dense<0.000000e+00> : vector<1xf32>
    %277 = vector.multi_reduction <add>, %276, %cst_115 [0] : vector<2x1xf32> to vector<1xf32>
    %278 = vector.shape_cast %277 : vector<1xf32> to vector<1x1xf32>
    %279 = vector.broadcast %278 : vector<1x1xf32> to vector<2x1xf32>
    %280 = arith.divf %276, %279 : vector<2x1xf32>
    %cst_116 = arith.constant dense<0.000000e+00> : vector<2xf32>
    %281 = vector.multi_reduction <add>, %267, %cst_116 [1] : vector<2x256xf32> to vector<2xf32>
    %282 = vector.shape_cast %281 : vector<2xf32> to vector<2x1xf32>
    %cst_117 = arith.constant 2.560000e+02 : f32
    %283 = vector.broadcast %cst_117 : f32 to vector<2x1xf32>
    %284 = arith.divf %282, %283 : vector<2x1xf32>
    %cst_118 = arith.constant dense<0xFF800000> : vector<1xf32>
    %285 = vector.multi_reduction <maximumf>, %284, %cst_118 [0] : vector<2x1xf32> to vector<1xf32>
    %286 = vector.shape_cast %285 : vector<1xf32> to vector<1x1xf32>
    %287 = vector.broadcast %286 : vector<1x1xf32> to vector<2x1xf32>
    %288 = arith.subf %284, %287 : vector<2x1xf32>
    %289 = math.exp %288 : vector<2x1xf32>
    %cst_119 = arith.constant dense<0.000000e+00> : vector<1xf32>
    %290 = vector.multi_reduction <add>, %289, %cst_119 [0] : vector<2x1xf32> to vector<1xf32>
    %291 = vector.shape_cast %290 : vector<1xf32> to vector<1x1xf32>
    %292 = vector.broadcast %291 : vector<1x1xf32> to vector<2x1xf32>
    %293 = arith.divf %289, %292 : vector<2x1xf32>
    %294 = vector.broadcast %280 : vector<2x1xf32> to vector<2x256xf32>
    %295 = arith.mulf %294, %267 : vector<2x256xf32>
    %296 = vector.broadcast %293 : vector<2x1xf32> to vector<2x256xf32>
    %297 = arith.mulf %296, %196 : vector<2x256xf32>
    %298 = arith.addf %295, %297 : vector<2x256xf32>
    %cst_120 = arith.constant dense<0.000000e+00> : vector<256xf32>
    %299 = vector.multi_reduction <add>, %298, %cst_120 [0] : vector<2x256xf32> to vector<256xf32>
    %300 = vector.shape_cast %299 : vector<256xf32> to vector<1x256xf32>
    %301 = arith.negf %300 : vector<1x256xf32>
    %302 = math.exp %301 : vector<1x256xf32>
    %cst_121 = arith.constant 1.000000e+00 : f32
    %303 = vector.broadcast %cst_121 : f32 to vector<1x256xf32>
    %304 = arith.addf %303, %302 : vector<1x256xf32>
    %305 = arith.divf %303, %304 : vector<1x256xf32>
    %306 = vector.extract_strided_slice %19 {offsets = [0, 0], sizes = [4, 2], strides = [1, 1]} : vector<4x4xf32> to vector<4x2xf32>
    %307 = vector.broadcast %305 : vector<1x256xf32> to vector<2x256xf32>
    %308 = arith.mulf %196, %307 : vector<2x256xf32>
    %cst_122 = arith.constant dense<0.000000e+00> : vector<4x256xf32>
    %309 = tpu.matmul %306, %308, %cst_122 {dimension_numbers = #tpu.dot_dimension_numbers<[1], [0], [0], [1], [0, 0, 1, 1], [], []>} : vector<4x2xf32>, vector<2x256xf32>, vector<4x256xf32> -> vector<4x256xf32>
    %310 = arith.addf %134, %309 : vector<4x256xf32>
    %311 = vector.extract_strided_slice %132 {offsets = [2, 0], sizes = [2, 256], strides = [1, 1]} : vector<4x256xf32> to vector<2x256xf32>
    %312 = arith.addf %136, %311 : vector<2x256xf32>
    %cst_123 = arith.constant dense<0.000000e+00> : vector<2x16xf32>
    %313 = tpu.matmul %311, %1, %cst_123 {dimension_numbers = #tpu.dot_dimension_numbers<[1], [0], [0], [1], [0, 0, 1, 1], [], []>} : vector<2x256xf32>, vector<256x16xf32>, vector<2x16xf32> -> vector<2x16xf32>
    %cst_124 = arith.constant dense<0.000000e+00> : vector<2x16xf32>
    %314 = tpu.matmul %311, %2, %cst_124 {dimension_numbers = #tpu.dot_dimension_numbers<[1], [0], [0], [1], [0, 0, 1, 1], [], []>} : vector<2x256xf32>, vector<256x16xf32>, vector<2x16xf32> -> vector<2x16xf32>
    %cst_125 = arith.constant dense<0.000000e+00> : vector<32x16xf32>
    %315 = tpu.matmul %5, %313, %cst_125 {dimension_numbers = #tpu.dot_dimension_numbers<[1], [0], [0], [1], [0, 0, 1, 1], [], []>} : vector<32x2xf32>, vector<2x16xf32>, vector<32x16xf32> -> vector<32x16xf32>
    %316 = vector.broadcast %6 : vector<32x1xf32> to vector<32x16xf32>
    %317 = arith.addf %315, %316 : vector<32x16xf32>
    %cst_126 = arith.constant dense<0.000000e+00> : vector<32x16xf32>
    %318 = tpu.matmul %5, %314, %cst_126 {dimension_numbers = #tpu.dot_dimension_numbers<[1], [0], [0], [1], [0, 0, 1, 1], [], []>} : vector<32x2xf32>, vector<2x16xf32>, vector<32x16xf32> -> vector<32x16xf32>
    %319 = vector.broadcast %6 : vector<32x1xf32> to vector<32x16xf32>
    %320 = arith.addf %318, %319 : vector<32x16xf32>
    %cst_127 = arith.constant dense<0.000000e+00> : vector<2x16xf32>
    %321 = tpu.matmul %7, %317, %cst_127 {dimension_numbers = #tpu.dot_dimension_numbers<[1], [0], [0], [1], [0, 0, 1, 1], [], []>} : vector<2x32xf32>, vector<32x16xf32>, vector<2x16xf32> -> vector<2x16xf32>
    %322 = vector.broadcast %8 : vector<2x1xf32> to vector<2x16xf32>
    %323 = arith.addf %321, %322 : vector<2x16xf32>
    %324 = arith.negf %323 : vector<2x16xf32>
    %325 = math.exp %324 : vector<2x16xf32>
    %cst_128 = arith.constant 1.000000e+00 : f32
    %326 = vector.broadcast %cst_128 : f32 to vector<2x16xf32>
    %327 = arith.addf %326, %325 : vector<2x16xf32>
    %328 = arith.divf %326, %327 : vector<2x16xf32>
    %cst_129 = arith.constant dense<0.000000e+00> : vector<2x16xf32>
    %329 = tpu.matmul %9, %320, %cst_129 {dimension_numbers = #tpu.dot_dimension_numbers<[1], [0], [0], [1], [0, 0, 1, 1], [], []>} : vector<2x32xf32>, vector<32x16xf32>, vector<2x16xf32> -> vector<2x16xf32>
    %330 = vector.broadcast %10 : vector<2x1xf32> to vector<2x16xf32>
    %331 = arith.addf %329, %330 : vector<2x16xf32>
    %332 = arith.negf %331 : vector<2x16xf32>
    %333 = math.exp %332 : vector<2x16xf32>
    %cst_130 = arith.constant 1.000000e+00 : f32
    %334 = vector.broadcast %cst_130 : f32 to vector<2x16xf32>
    %335 = arith.addf %334, %333 : vector<2x16xf32>
    %336 = arith.divf %334, %335 : vector<2x16xf32>
    %cst_131 = arith.constant dense<0.000000e+00> : vector<2x256xf32>
    %337 = tpu.matmul %328, %3, %cst_131 {dimension_numbers = #tpu.dot_dimension_numbers<[1], [0], [0], [1], [0, 0, 1, 1], [], []>} : vector<2x16xf32>, vector<16x256xf32>, vector<2x256xf32> -> vector<2x256xf32>
    %cst_132 = arith.constant dense<0.000000e+00> : vector<2x256xf32>
    %338 = tpu.matmul %336, %4, %cst_132 {dimension_numbers = #tpu.dot_dimension_numbers<[1], [0], [0], [1], [0, 0, 1, 1], [], []>} : vector<2x16xf32>, vector<16x256xf32>, vector<2x256xf32> -> vector<2x256xf32>
    %339 = arith.mulf %337, %338 : vector<2x256xf32>
    %340 = arith.mulf %339, %311 : vector<2x256xf32>
    %cst_133 = arith.constant dense<0.000000e+00> : vector<2xf32>
    %341 = vector.multi_reduction <add>, %340, %cst_133 [1] : vector<2x256xf32> to vector<2xf32>
    %342 = vector.shape_cast %341 : vector<2xf32> to vector<2x1xf32>
    %cst_134 = arith.constant 2.560000e+02 : f32
    %343 = vector.broadcast %cst_134 : f32 to vector<2x1xf32>
    %344 = arith.divf %342, %343 : vector<2x1xf32>
    %cst_135 = arith.constant dense<0.000000e+00> : vector<1xf32>
    %345 = vector.multi_reduction <add>, %344, %cst_135 [0] : vector<2x1xf32> to vector<1xf32>
    %346 = vector.shape_cast %345 : vector<1xf32> to vector<1x1xf32>
    %cst_136 = arith.constant 2.000000e+00 : f32
    %347 = vector.broadcast %cst_136 : f32 to vector<1x1xf32>
    %348 = arith.divf %346, %347 : vector<1x1xf32>
    %349 = vector.broadcast %348 : vector<1x1xf32> to vector<2x256xf32>
    %350 = arith.subf %340, %349 : vector<2x256xf32>
    %351 = vector.broadcast %348 : vector<1x1xf32> to vector<2x256xf32>
    %352 = arith.subf %340, %351 : vector<2x256xf32>
    %353 = arith.mulf %350, %352 : vector<2x256xf32>
    %cst_137 = arith.constant dense<0.000000e+00> : vector<2xf32>
    %354 = vector.multi_reduction <add>, %353, %cst_137 [1] : vector<2x256xf32> to vector<2xf32>
    %355 = vector.shape_cast %354 : vector<2xf32> to vector<2x1xf32>
    %cst_138 = arith.constant 2.560000e+02 : f32
    %356 = vector.broadcast %cst_138 : f32 to vector<2x1xf32>
    %357 = arith.divf %355, %356 : vector<2x1xf32>
    %cst_139 = arith.constant dense<0.000000e+00> : vector<1xf32>
    %358 = vector.multi_reduction <add>, %357, %cst_139 [0] : vector<2x1xf32> to vector<1xf32>
    %359 = vector.shape_cast %358 : vector<1xf32> to vector<1x1xf32>
    %cst_140 = arith.constant 2.000000e+00 : f32
    %360 = vector.broadcast %cst_140 : f32 to vector<1x1xf32>
    %361 = arith.divf %359, %360 : vector<1x1xf32>
    %362 = vector.broadcast %348 : vector<1x1xf32> to vector<2x256xf32>
    %363 = arith.subf %340, %362 : vector<2x256xf32>
    %cst_141 = arith.constant 9.99999974E-6 : f32
    %364 = vector.broadcast %cst_141 : f32 to vector<1x1xf32>
    %365 = arith.addf %361, %364 : vector<1x1xf32>
    %366 = math.rsqrt %365 : vector<1x1xf32>
    %367 = vector.broadcast %366 : vector<1x1xf32> to vector<2x256xf32>
    %368 = arith.mulf %363, %367 : vector<2x256xf32>
    %369 = vector.broadcast %11 : vector<2x1xf32> to vector<2x256xf32>
    %370 = arith.mulf %368, %369 : vector<2x256xf32>
    %371 = vector.broadcast %12 : vector<2x1xf32> to vector<2x256xf32>
    %372 = arith.addf %370, %371 : vector<2x256xf32>
    %cst_142 = arith.constant 0.000000e+00 : f32
    %373 = vector.broadcast %cst_142 : f32 to vector<2x256xf32>
    %c17_i32_143 = arith.constant 17 : i32
    %374 = tpu.dynamic_rotate %372 by %c17_i32_143 dim 1 : vector<2x256xf32>, i32 -> vector<2x256xf32>
    %375 = vector.extract_strided_slice %0 {offsets = [0, 0], sizes = [1, 256], strides = [1, 1]} : vector<9x256xf32> to vector<1x256xf32>
    %376 = vector.broadcast %375 : vector<1x256xf32> to vector<2x256xf32>
    %377 = arith.mulf %374, %376 : vector<2x256xf32>
    %378 = vector.extract_strided_slice %13 {offsets = [0, 0, 0], sizes = [1, 2, 2], strides = [1, 1, 1]} : vector<9x2x2xf32> to vector<1x2x2xf32>
    %379 = vector.shape_cast %378 : vector<1x2x2xf32> to vector<2x2xf32>
    %cst_144 = arith.constant dense<0.000000e+00> : vector<2x256xf32>
    %380 = tpu.matmul %379, %377, %cst_144 {dimension_numbers = #tpu.dot_dimension_numbers<[1], [0], [0], [1], [0, 0, 1, 1], [], []>} : vector<2x2xf32>, vector<2x256xf32>, vector<2x256xf32> -> vector<2x256xf32>
    %381 = arith.addf %373, %380 : vector<2x256xf32>
    %c16_i32_145 = arith.constant 16 : i32
    %382 = tpu.dynamic_rotate %372 by %c16_i32_145 dim 1 : vector<2x256xf32>, i32 -> vector<2x256xf32>
    %383 = vector.extract_strided_slice %0 {offsets = [1, 0], sizes = [1, 256], strides = [1, 1]} : vector<9x256xf32> to vector<1x256xf32>
    %384 = vector.broadcast %383 : vector<1x256xf32> to vector<2x256xf32>
    %385 = arith.mulf %382, %384 : vector<2x256xf32>
    %386 = vector.extract_strided_slice %13 {offsets = [1, 0, 0], sizes = [1, 2, 2], strides = [1, 1, 1]} : vector<9x2x2xf32> to vector<1x2x2xf32>
    %387 = vector.shape_cast %386 : vector<1x2x2xf32> to vector<2x2xf32>
    %cst_146 = arith.constant dense<0.000000e+00> : vector<2x256xf32>
    %388 = tpu.matmul %387, %385, %cst_146 {dimension_numbers = #tpu.dot_dimension_numbers<[1], [0], [0], [1], [0, 0, 1, 1], [], []>} : vector<2x2xf32>, vector<2x256xf32>, vector<2x256xf32> -> vector<2x256xf32>
    %389 = arith.addf %381, %388 : vector<2x256xf32>
    %c15_i32_147 = arith.constant 15 : i32
    %390 = tpu.dynamic_rotate %372 by %c15_i32_147 dim 1 : vector<2x256xf32>, i32 -> vector<2x256xf32>
    %391 = vector.extract_strided_slice %0 {offsets = [2, 0], sizes = [1, 256], strides = [1, 1]} : vector<9x256xf32> to vector<1x256xf32>
    %392 = vector.broadcast %391 : vector<1x256xf32> to vector<2x256xf32>
    %393 = arith.mulf %390, %392 : vector<2x256xf32>
    %394 = vector.extract_strided_slice %13 {offsets = [2, 0, 0], sizes = [1, 2, 2], strides = [1, 1, 1]} : vector<9x2x2xf32> to vector<1x2x2xf32>
    %395 = vector.shape_cast %394 : vector<1x2x2xf32> to vector<2x2xf32>
    %cst_148 = arith.constant dense<0.000000e+00> : vector<2x256xf32>
    %396 = tpu.matmul %395, %393, %cst_148 {dimension_numbers = #tpu.dot_dimension_numbers<[1], [0], [0], [1], [0, 0, 1, 1], [], []>} : vector<2x2xf32>, vector<2x256xf32>, vector<2x256xf32> -> vector<2x256xf32>
    %397 = arith.addf %389, %396 : vector<2x256xf32>
    %c1_i32_149 = arith.constant 1 : i32
    %398 = tpu.dynamic_rotate %372 by %c1_i32_149 dim 1 : vector<2x256xf32>, i32 -> vector<2x256xf32>
    %399 = vector.extract_strided_slice %0 {offsets = [3, 0], sizes = [1, 256], strides = [1, 1]} : vector<9x256xf32> to vector<1x256xf32>
    %400 = vector.broadcast %399 : vector<1x256xf32> to vector<2x256xf32>
    %401 = arith.mulf %398, %400 : vector<2x256xf32>
    %402 = vector.extract_strided_slice %13 {offsets = [3, 0, 0], sizes = [1, 2, 2], strides = [1, 1, 1]} : vector<9x2x2xf32> to vector<1x2x2xf32>
    %403 = vector.shape_cast %402 : vector<1x2x2xf32> to vector<2x2xf32>
    %cst_150 = arith.constant dense<0.000000e+00> : vector<2x256xf32>
    %404 = tpu.matmul %403, %401, %cst_150 {dimension_numbers = #tpu.dot_dimension_numbers<[1], [0], [0], [1], [0, 0, 1, 1], [], []>} : vector<2x2xf32>, vector<2x256xf32>, vector<2x256xf32> -> vector<2x256xf32>
    %405 = arith.addf %397, %404 : vector<2x256xf32>
    %406 = vector.extract_strided_slice %13 {offsets = [4, 0, 0], sizes = [1, 2, 2], strides = [1, 1, 1]} : vector<9x2x2xf32> to vector<1x2x2xf32>
    %407 = vector.shape_cast %406 : vector<1x2x2xf32> to vector<2x2xf32>
    %cst_151 = arith.constant dense<0.000000e+00> : vector<2x256xf32>
    %408 = tpu.matmul %407, %372, %cst_151 {dimension_numbers = #tpu.dot_dimension_numbers<[1], [0], [0], [1], [0, 0, 1, 1], [], []>} : vector<2x2xf32>, vector<2x256xf32>, vector<2x256xf32> -> vector<2x256xf32>
    %409 = arith.addf %405, %408 : vector<2x256xf32>
    %c255_i32_152 = arith.constant 255 : i32
    %410 = tpu.dynamic_rotate %372 by %c255_i32_152 dim 1 : vector<2x256xf32>, i32 -> vector<2x256xf32>
    %411 = vector.extract_strided_slice %0 {offsets = [5, 0], sizes = [1, 256], strides = [1, 1]} : vector<9x256xf32> to vector<1x256xf32>
    %412 = vector.broadcast %411 : vector<1x256xf32> to vector<2x256xf32>
    %413 = arith.mulf %410, %412 : vector<2x256xf32>
    %414 = vector.extract_strided_slice %13 {offsets = [5, 0, 0], sizes = [1, 2, 2], strides = [1, 1, 1]} : vector<9x2x2xf32> to vector<1x2x2xf32>
    %415 = vector.shape_cast %414 : vector<1x2x2xf32> to vector<2x2xf32>
    %cst_153 = arith.constant dense<0.000000e+00> : vector<2x256xf32>
    %416 = tpu.matmul %415, %413, %cst_153 {dimension_numbers = #tpu.dot_dimension_numbers<[1], [0], [0], [1], [0, 0, 1, 1], [], []>} : vector<2x2xf32>, vector<2x256xf32>, vector<2x256xf32> -> vector<2x256xf32>
    %417 = arith.addf %409, %416 : vector<2x256xf32>
    %c241_i32_154 = arith.constant 241 : i32
    %418 = tpu.dynamic_rotate %372 by %c241_i32_154 dim 1 : vector<2x256xf32>, i32 -> vector<2x256xf32>
    %419 = vector.extract_strided_slice %0 {offsets = [6, 0], sizes = [1, 256], strides = [1, 1]} : vector<9x256xf32> to vector<1x256xf32>
    %420 = vector.broadcast %419 : vector<1x256xf32> to vector<2x256xf32>
    %421 = arith.mulf %418, %420 : vector<2x256xf32>
    %422 = vector.extract_strided_slice %13 {offsets = [6, 0, 0], sizes = [1, 2, 2], strides = [1, 1, 1]} : vector<9x2x2xf32> to vector<1x2x2xf32>
    %423 = vector.shape_cast %422 : vector<1x2x2xf32> to vector<2x2xf32>
    %cst_155 = arith.constant dense<0.000000e+00> : vector<2x256xf32>
    %424 = tpu.matmul %423, %421, %cst_155 {dimension_numbers = #tpu.dot_dimension_numbers<[1], [0], [0], [1], [0, 0, 1, 1], [], []>} : vector<2x2xf32>, vector<2x256xf32>, vector<2x256xf32> -> vector<2x256xf32>
    %425 = arith.addf %417, %424 : vector<2x256xf32>
    %c240_i32_156 = arith.constant 240 : i32
    %426 = tpu.dynamic_rotate %372 by %c240_i32_156 dim 1 : vector<2x256xf32>, i32 -> vector<2x256xf32>
    %427 = vector.extract_strided_slice %0 {offsets = [7, 0], sizes = [1, 256], strides = [1, 1]} : vector<9x256xf32> to vector<1x256xf32>
    %428 = vector.broadcast %427 : vector<1x256xf32> to vector<2x256xf32>
    %429 = arith.mulf %426, %428 : vector<2x256xf32>
    %430 = vector.extract_strided_slice %13 {offsets = [7, 0, 0], sizes = [1, 2, 2], strides = [1, 1, 1]} : vector<9x2x2xf32> to vector<1x2x2xf32>
    %431 = vector.shape_cast %430 : vector<1x2x2xf32> to vector<2x2xf32>
    %cst_157 = arith.constant dense<0.000000e+00> : vector<2x256xf32>
    %432 = tpu.matmul %431, %429, %cst_157 {dimension_numbers = #tpu.dot_dimension_numbers<[1], [0], [0], [1], [0, 0, 1, 1], [], []>} : vector<2x2xf32>, vector<2x256xf32>, vector<2x256xf32> -> vector<2x256xf32>
    %433 = arith.addf %425, %432 : vector<2x256xf32>
    %c239_i32_158 = arith.constant 239 : i32
    %434 = tpu.dynamic_rotate %372 by %c239_i32_158 dim 1 : vector<2x256xf32>, i32 -> vector<2x256xf32>
    %435 = vector.extract_strided_slice %0 {offsets = [8, 0], sizes = [1, 256], strides = [1, 1]} : vector<9x256xf32> to vector<1x256xf32>
    %436 = vector.broadcast %435 : vector<1x256xf32> to vector<2x256xf32>
    %437 = arith.mulf %434, %436 : vector<2x256xf32>
    %438 = vector.extract_strided_slice %13 {offsets = [8, 0, 0], sizes = [1, 2, 2], strides = [1, 1, 1]} : vector<9x2x2xf32> to vector<1x2x2xf32>
    %439 = vector.shape_cast %438 : vector<1x2x2xf32> to vector<2x2xf32>
    %cst_159 = arith.constant dense<0.000000e+00> : vector<2x256xf32>
    %440 = tpu.matmul %439, %437, %cst_159 {dimension_numbers = #tpu.dot_dimension_numbers<[1], [0], [0], [1], [0, 0, 1, 1], [], []>} : vector<2x2xf32>, vector<2x256xf32>, vector<2x256xf32> -> vector<2x256xf32>
    %441 = arith.addf %433, %440 : vector<2x256xf32>
    %442 = vector.broadcast %14 : vector<2x1xf32> to vector<2x256xf32>
    %443 = arith.addf %441, %442 : vector<2x256xf32>
    %cst_160 = arith.constant dense<0.000000e+00> : vector<2xf32>
    %444 = vector.multi_reduction <add>, %372, %cst_160 [1] : vector<2x256xf32> to vector<2xf32>
    %445 = vector.shape_cast %444 : vector<2xf32> to vector<2x1xf32>
    %cst_161 = arith.constant 2.560000e+02 : f32
    %446 = vector.broadcast %cst_161 : f32 to vector<2x1xf32>
    %447 = arith.divf %445, %446 : vector<2x1xf32>
    %cst_162 = arith.constant dense<0xFF800000> : vector<1xf32>
    %448 = vector.multi_reduction <maximumf>, %447, %cst_162 [0] : vector<2x1xf32> to vector<1xf32>
    %449 = vector.shape_cast %448 : vector<1xf32> to vector<1x1xf32>
    %450 = vector.broadcast %449 : vector<1x1xf32> to vector<2x1xf32>
    %451 = arith.subf %447, %450 : vector<2x1xf32>
    %452 = math.exp %451 : vector<2x1xf32>
    %cst_163 = arith.constant dense<0.000000e+00> : vector<1xf32>
    %453 = vector.multi_reduction <add>, %452, %cst_163 [0] : vector<2x1xf32> to vector<1xf32>
    %454 = vector.shape_cast %453 : vector<1xf32> to vector<1x1xf32>
    %455 = vector.broadcast %454 : vector<1x1xf32> to vector<2x1xf32>
    %456 = arith.divf %452, %455 : vector<2x1xf32>
    %cst_164 = arith.constant dense<0.000000e+00> : vector<2xf32>
    %457 = vector.multi_reduction <add>, %443, %cst_164 [1] : vector<2x256xf32> to vector<2xf32>
    %458 = vector.shape_cast %457 : vector<2xf32> to vector<2x1xf32>
    %cst_165 = arith.constant 2.560000e+02 : f32
    %459 = vector.broadcast %cst_165 : f32 to vector<2x1xf32>
    %460 = arith.divf %458, %459 : vector<2x1xf32>
    %cst_166 = arith.constant dense<0xFF800000> : vector<1xf32>
    %461 = vector.multi_reduction <maximumf>, %460, %cst_166 [0] : vector<2x1xf32> to vector<1xf32>
    %462 = vector.shape_cast %461 : vector<1xf32> to vector<1x1xf32>
    %463 = vector.broadcast %462 : vector<1x1xf32> to vector<2x1xf32>
    %464 = arith.subf %460, %463 : vector<2x1xf32>
    %465 = math.exp %464 : vector<2x1xf32>
    %cst_167 = arith.constant dense<0.000000e+00> : vector<1xf32>
    %466 = vector.multi_reduction <add>, %465, %cst_167 [0] : vector<2x1xf32> to vector<1xf32>
    %467 = vector.shape_cast %466 : vector<1xf32> to vector<1x1xf32>
    %468 = vector.broadcast %467 : vector<1x1xf32> to vector<2x1xf32>
    %469 = arith.divf %465, %468 : vector<2x1xf32>
    %470 = vector.broadcast %456 : vector<2x1xf32> to vector<2x256xf32>
    %471 = arith.mulf %470, %443 : vector<2x256xf32>
    %472 = vector.broadcast %469 : vector<2x1xf32> to vector<2x256xf32>
    %473 = arith.mulf %472, %372 : vector<2x256xf32>
    %474 = arith.addf %471, %473 : vector<2x256xf32>
    %cst_168 = arith.constant dense<0.000000e+00> : vector<256xf32>
    %475 = vector.multi_reduction <add>, %474, %cst_168 [0] : vector<2x256xf32> to vector<256xf32>
    %476 = vector.shape_cast %475 : vector<256xf32> to vector<1x256xf32>
    %477 = arith.negf %476 : vector<1x256xf32>
    %478 = math.exp %477 : vector<1x256xf32>
    %cst_169 = arith.constant 1.000000e+00 : f32
    %479 = vector.broadcast %cst_169 : f32 to vector<1x256xf32>
    %480 = arith.addf %479, %478 : vector<1x256xf32>
    %481 = arith.divf %479, %480 : vector<1x256xf32>
    %482 = vector.extract_strided_slice %19 {offsets = [0, 2], sizes = [4, 2], strides = [1, 1]} : vector<4x4xf32> to vector<4x2xf32>
    %483 = vector.broadcast %481 : vector<1x256xf32> to vector<2x256xf32>
    %484 = arith.mulf %372, %483 : vector<2x256xf32>
    %cst_170 = arith.constant dense<0.000000e+00> : vector<4x256xf32>
    %485 = tpu.matmul %482, %484, %cst_170 {dimension_numbers = #tpu.dot_dimension_numbers<[1], [0], [0], [1], [0, 0, 1, 1], [], []>} : vector<4x2xf32>, vector<2x256xf32>, vector<4x256xf32> -> vector<4x256xf32>
    %486 = arith.addf %310, %485 : vector<4x256xf32>
    %487 = vector.broadcast %20 : vector<4x1xf32> to vector<4x256xf32>
    %488 = arith.addf %486, %487 : vector<4x256xf32>
    %cst_171 = arith.constant 0.000000e+00 : f32
    %489 = vector.broadcast %cst_171 : f32 to vector<4x256xf32>
    %c17_i32_172 = arith.constant 17 : i32
    %490 = tpu.dynamic_rotate %312 by %c17_i32_172 dim 1 : vector<2x256xf32>, i32 -> vector<2x256xf32>
    %491 = vector.extract_strided_slice %0 {offsets = [0, 0], sizes = [1, 256], strides = [1, 1]} : vector<9x256xf32> to vector<1x256xf32>
    %492 = vector.broadcast %491 : vector<1x256xf32> to vector<2x256xf32>
    %493 = arith.mulf %490, %492 : vector<2x256xf32>
    %494 = vector.extract_strided_slice %15 {offsets = [0, 0, 0], sizes = [1, 4, 2], strides = [1, 1, 1]} : vector<9x4x2xf32> to vector<1x4x2xf32>
    %495 = vector.shape_cast %494 : vector<1x4x2xf32> to vector<4x2xf32>
    %cst_173 = arith.constant dense<0.000000e+00> : vector<4x256xf32>
    %496 = tpu.matmul %495, %493, %cst_173 {dimension_numbers = #tpu.dot_dimension_numbers<[1], [0], [0], [1], [0, 0, 1, 1], [], []>} : vector<4x2xf32>, vector<2x256xf32>, vector<4x256xf32> -> vector<4x256xf32>
    %497 = arith.addf %489, %496 : vector<4x256xf32>
    %c16_i32_174 = arith.constant 16 : i32
    %498 = tpu.dynamic_rotate %312 by %c16_i32_174 dim 1 : vector<2x256xf32>, i32 -> vector<2x256xf32>
    %499 = vector.extract_strided_slice %0 {offsets = [1, 0], sizes = [1, 256], strides = [1, 1]} : vector<9x256xf32> to vector<1x256xf32>
    %500 = vector.broadcast %499 : vector<1x256xf32> to vector<2x256xf32>
    %501 = arith.mulf %498, %500 : vector<2x256xf32>
    %502 = vector.extract_strided_slice %15 {offsets = [1, 0, 0], sizes = [1, 4, 2], strides = [1, 1, 1]} : vector<9x4x2xf32> to vector<1x4x2xf32>
    %503 = vector.shape_cast %502 : vector<1x4x2xf32> to vector<4x2xf32>
    %cst_175 = arith.constant dense<0.000000e+00> : vector<4x256xf32>
    %504 = tpu.matmul %503, %501, %cst_175 {dimension_numbers = #tpu.dot_dimension_numbers<[1], [0], [0], [1], [0, 0, 1, 1], [], []>} : vector<4x2xf32>, vector<2x256xf32>, vector<4x256xf32> -> vector<4x256xf32>
    %505 = arith.addf %497, %504 : vector<4x256xf32>
    %c15_i32_176 = arith.constant 15 : i32
    %506 = tpu.dynamic_rotate %312 by %c15_i32_176 dim 1 : vector<2x256xf32>, i32 -> vector<2x256xf32>
    %507 = vector.extract_strided_slice %0 {offsets = [2, 0], sizes = [1, 256], strides = [1, 1]} : vector<9x256xf32> to vector<1x256xf32>
    %508 = vector.broadcast %507 : vector<1x256xf32> to vector<2x256xf32>
    %509 = arith.mulf %506, %508 : vector<2x256xf32>
    %510 = vector.extract_strided_slice %15 {offsets = [2, 0, 0], sizes = [1, 4, 2], strides = [1, 1, 1]} : vector<9x4x2xf32> to vector<1x4x2xf32>
    %511 = vector.shape_cast %510 : vector<1x4x2xf32> to vector<4x2xf32>
    %cst_177 = arith.constant dense<0.000000e+00> : vector<4x256xf32>
    %512 = tpu.matmul %511, %509, %cst_177 {dimension_numbers = #tpu.dot_dimension_numbers<[1], [0], [0], [1], [0, 0, 1, 1], [], []>} : vector<4x2xf32>, vector<2x256xf32>, vector<4x256xf32> -> vector<4x256xf32>
    %513 = arith.addf %505, %512 : vector<4x256xf32>
    %c1_i32_178 = arith.constant 1 : i32
    %514 = tpu.dynamic_rotate %312 by %c1_i32_178 dim 1 : vector<2x256xf32>, i32 -> vector<2x256xf32>
    %515 = vector.extract_strided_slice %0 {offsets = [3, 0], sizes = [1, 256], strides = [1, 1]} : vector<9x256xf32> to vector<1x256xf32>
    %516 = vector.broadcast %515 : vector<1x256xf32> to vector<2x256xf32>
    %517 = arith.mulf %514, %516 : vector<2x256xf32>
    %518 = vector.extract_strided_slice %15 {offsets = [3, 0, 0], sizes = [1, 4, 2], strides = [1, 1, 1]} : vector<9x4x2xf32> to vector<1x4x2xf32>
    %519 = vector.shape_cast %518 : vector<1x4x2xf32> to vector<4x2xf32>
    %cst_179 = arith.constant dense<0.000000e+00> : vector<4x256xf32>
    %520 = tpu.matmul %519, %517, %cst_179 {dimension_numbers = #tpu.dot_dimension_numbers<[1], [0], [0], [1], [0, 0, 1, 1], [], []>} : vector<4x2xf32>, vector<2x256xf32>, vector<4x256xf32> -> vector<4x256xf32>
    %521 = arith.addf %513, %520 : vector<4x256xf32>
    %522 = vector.extract_strided_slice %15 {offsets = [4, 0, 0], sizes = [1, 4, 2], strides = [1, 1, 1]} : vector<9x4x2xf32> to vector<1x4x2xf32>
    %523 = vector.shape_cast %522 : vector<1x4x2xf32> to vector<4x2xf32>
    %cst_180 = arith.constant dense<0.000000e+00> : vector<4x256xf32>
    %524 = tpu.matmul %523, %312, %cst_180 {dimension_numbers = #tpu.dot_dimension_numbers<[1], [0], [0], [1], [0, 0, 1, 1], [], []>} : vector<4x2xf32>, vector<2x256xf32>, vector<4x256xf32> -> vector<4x256xf32>
    %525 = arith.addf %521, %524 : vector<4x256xf32>
    %c255_i32_181 = arith.constant 255 : i32
    %526 = tpu.dynamic_rotate %312 by %c255_i32_181 dim 1 : vector<2x256xf32>, i32 -> vector<2x256xf32>
    %527 = vector.extract_strided_slice %0 {offsets = [5, 0], sizes = [1, 256], strides = [1, 1]} : vector<9x256xf32> to vector<1x256xf32>
    %528 = vector.broadcast %527 : vector<1x256xf32> to vector<2x256xf32>
    %529 = arith.mulf %526, %528 : vector<2x256xf32>
    %530 = vector.extract_strided_slice %15 {offsets = [5, 0, 0], sizes = [1, 4, 2], strides = [1, 1, 1]} : vector<9x4x2xf32> to vector<1x4x2xf32>
    %531 = vector.shape_cast %530 : vector<1x4x2xf32> to vector<4x2xf32>
    %cst_182 = arith.constant dense<0.000000e+00> : vector<4x256xf32>
    %532 = tpu.matmul %531, %529, %cst_182 {dimension_numbers = #tpu.dot_dimension_numbers<[1], [0], [0], [1], [0, 0, 1, 1], [], []>} : vector<4x2xf32>, vector<2x256xf32>, vector<4x256xf32> -> vector<4x256xf32>
    %533 = arith.addf %525, %532 : vector<4x256xf32>
    %c241_i32_183 = arith.constant 241 : i32
    %534 = tpu.dynamic_rotate %312 by %c241_i32_183 dim 1 : vector<2x256xf32>, i32 -> vector<2x256xf32>
    %535 = vector.extract_strided_slice %0 {offsets = [6, 0], sizes = [1, 256], strides = [1, 1]} : vector<9x256xf32> to vector<1x256xf32>
    %536 = vector.broadcast %535 : vector<1x256xf32> to vector<2x256xf32>
    %537 = arith.mulf %534, %536 : vector<2x256xf32>
    %538 = vector.extract_strided_slice %15 {offsets = [6, 0, 0], sizes = [1, 4, 2], strides = [1, 1, 1]} : vector<9x4x2xf32> to vector<1x4x2xf32>
    %539 = vector.shape_cast %538 : vector<1x4x2xf32> to vector<4x2xf32>
    %cst_184 = arith.constant dense<0.000000e+00> : vector<4x256xf32>
    %540 = tpu.matmul %539, %537, %cst_184 {dimension_numbers = #tpu.dot_dimension_numbers<[1], [0], [0], [1], [0, 0, 1, 1], [], []>} : vector<4x2xf32>, vector<2x256xf32>, vector<4x256xf32> -> vector<4x256xf32>
    %541 = arith.addf %533, %540 : vector<4x256xf32>
    %c240_i32_185 = arith.constant 240 : i32
    %542 = tpu.dynamic_rotate %312 by %c240_i32_185 dim 1 : vector<2x256xf32>, i32 -> vector<2x256xf32>
    %543 = vector.extract_strided_slice %0 {offsets = [7, 0], sizes = [1, 256], strides = [1, 1]} : vector<9x256xf32> to vector<1x256xf32>
    %544 = vector.broadcast %543 : vector<1x256xf32> to vector<2x256xf32>
    %545 = arith.mulf %542, %544 : vector<2x256xf32>
    %546 = vector.extract_strided_slice %15 {offsets = [7, 0, 0], sizes = [1, 4, 2], strides = [1, 1, 1]} : vector<9x4x2xf32> to vector<1x4x2xf32>
    %547 = vector.shape_cast %546 : vector<1x4x2xf32> to vector<4x2xf32>
    %cst_186 = arith.constant dense<0.000000e+00> : vector<4x256xf32>
    %548 = tpu.matmul %547, %545, %cst_186 {dimension_numbers = #tpu.dot_dimension_numbers<[1], [0], [0], [1], [0, 0, 1, 1], [], []>} : vector<4x2xf32>, vector<2x256xf32>, vector<4x256xf32> -> vector<4x256xf32>
    %549 = arith.addf %541, %548 : vector<4x256xf32>
    %c239_i32_187 = arith.constant 239 : i32
    %550 = tpu.dynamic_rotate %312 by %c239_i32_187 dim 1 : vector<2x256xf32>, i32 -> vector<2x256xf32>
    %551 = vector.extract_strided_slice %0 {offsets = [8, 0], sizes = [1, 256], strides = [1, 1]} : vector<9x256xf32> to vector<1x256xf32>
    %552 = vector.broadcast %551 : vector<1x256xf32> to vector<2x256xf32>
    %553 = arith.mulf %550, %552 : vector<2x256xf32>
    %554 = vector.extract_strided_slice %15 {offsets = [8, 0, 0], sizes = [1, 4, 2], strides = [1, 1, 1]} : vector<9x4x2xf32> to vector<1x4x2xf32>
    %555 = vector.shape_cast %554 : vector<1x4x2xf32> to vector<4x2xf32>
    %cst_188 = arith.constant dense<0.000000e+00> : vector<4x256xf32>
    %556 = tpu.matmul %555, %553, %cst_188 {dimension_numbers = #tpu.dot_dimension_numbers<[1], [0], [0], [1], [0, 0, 1, 1], [], []>} : vector<4x2xf32>, vector<2x256xf32>, vector<4x256xf32> -> vector<4x256xf32>
    %557 = arith.addf %549, %556 : vector<4x256xf32>
    %558 = vector.broadcast %16 : vector<4x1xf32> to vector<4x256xf32>
    %559 = arith.addf %557, %558 : vector<4x256xf32>
    %560 = tpu.iota {dimensions = array<i32: 0>} : vector<4x1xi32>
    %cst_189 = arith.constant 0.000000e+00 : f32
    %561 = vector.broadcast %cst_189 : f32 to vector<4x1xf32>
    %cst_190 = arith.constant 0.000000e+00 : f32
    %562 = vector.broadcast %cst_190 : f32 to vector<4x1xf32>
    %563 = vector.extract_strided_slice %559 {offsets = [0, 0], sizes = [2, 256], strides = [1, 1]} : vector<4x256xf32> to vector<2x256xf32>
    %cst_191 = arith.constant dense<0.000000e+00> : vector<2xf32>
    %564 = vector.multi_reduction <add>, %563, %cst_191 [1] : vector<2x256xf32> to vector<2xf32>
    %565 = vector.shape_cast %564 : vector<2xf32> to vector<2x1xf32>
    %cst_192 = arith.constant 2.560000e+02 : f32
    %566 = vector.broadcast %cst_192 : f32 to vector<2x1xf32>
    %567 = arith.divf %565, %566 : vector<2x1xf32>
    %cst_193 = arith.constant dense<0.000000e+00> : vector<1xf32>
    %568 = vector.multi_reduction <add>, %567, %cst_193 [0] : vector<2x1xf32> to vector<1xf32>
    %569 = vector.shape_cast %568 : vector<1xf32> to vector<1x1xf32>
    %cst_194 = arith.constant 2.000000e+00 : f32
    %570 = vector.broadcast %cst_194 : f32 to vector<1x1xf32>
    %571 = arith.divf %569, %570 : vector<1x1xf32>
    %572 = vector.broadcast %571 : vector<1x1xf32> to vector<2x256xf32>
    %573 = arith.subf %563, %572 : vector<2x256xf32>
    %574 = vector.broadcast %571 : vector<1x1xf32> to vector<2x256xf32>
    %575 = arith.subf %563, %574 : vector<2x256xf32>
    %576 = arith.mulf %573, %575 : vector<2x256xf32>
    %cst_195 = arith.constant dense<0.000000e+00> : vector<2xf32>
    %577 = vector.multi_reduction <add>, %576, %cst_195 [1] : vector<2x256xf32> to vector<2xf32>
    %578 = vector.shape_cast %577 : vector<2xf32> to vector<2x1xf32>
    %cst_196 = arith.constant 2.560000e+02 : f32
    %579 = vector.broadcast %cst_196 : f32 to vector<2x1xf32>
    %580 = arith.divf %578, %579 : vector<2x1xf32>
    %cst_197 = arith.constant dense<0.000000e+00> : vector<1xf32>
    %581 = vector.multi_reduction <add>, %580, %cst_197 [0] : vector<2x1xf32> to vector<1xf32>
    %582 = vector.shape_cast %581 : vector<1xf32> to vector<1x1xf32>
    %cst_198 = arith.constant 2.000000e+00 : f32
    %583 = vector.broadcast %cst_198 : f32 to vector<1x1xf32>
    %584 = arith.divf %582, %583 : vector<1x1xf32>
    %c0_i32 = arith.constant 0 : i32
    %585 = vector.broadcast %c0_i32 : i32 to vector<4x1xi32>
    %586 = arith.cmpi sge, %560, %585 : vector<4x1xi32>
    %c2_i32 = arith.constant 2 : i32
    %587 = vector.broadcast %c2_i32 : i32 to vector<4x1xi32>
    %588 = arith.cmpi slt, %560, %587 : vector<4x1xi32>
    %589 = arith.andi %586, %588 : vector<4x1xi1>
    %590 = vector.shape_cast %571 : vector<1x1xf32> to vector<1x1xf32>
    %591 = vector.broadcast %590 : vector<1x1xf32> to vector<4x1xf32>
    %592 = arith.select %589, %591, %561 : vector<4x1xi1>, vector<4x1xf32>
    %cst_199 = arith.constant 9.99999974E-6 : f32
    %593 = vector.broadcast %cst_199 : f32 to vector<1x1xf32>
    %594 = arith.addf %584, %593 : vector<1x1xf32>
    %595 = math.rsqrt %594 : vector<1x1xf32>
    %596 = vector.shape_cast %595 : vector<1x1xf32> to vector<1x1xf32>
    %597 = vector.broadcast %596 : vector<1x1xf32> to vector<4x1xf32>
    %598 = arith.select %589, %597, %562 : vector<4x1xi1>, vector<4x1xf32>
    %599 = vector.extract_strided_slice %559 {offsets = [2, 0], sizes = [2, 256], strides = [1, 1]} : vector<4x256xf32> to vector<2x256xf32>
    %cst_200 = arith.constant dense<0.000000e+00> : vector<2xf32>
    %600 = vector.multi_reduction <add>, %599, %cst_200 [1] : vector<2x256xf32> to vector<2xf32>
    %601 = vector.shape_cast %600 : vector<2xf32> to vector<2x1xf32>
    %cst_201 = arith.constant 2.560000e+02 : f32
    %602 = vector.broadcast %cst_201 : f32 to vector<2x1xf32>
    %603 = arith.divf %601, %602 : vector<2x1xf32>
    %cst_202 = arith.constant dense<0.000000e+00> : vector<1xf32>
    %604 = vector.multi_reduction <add>, %603, %cst_202 [0] : vector<2x1xf32> to vector<1xf32>
    %605 = vector.shape_cast %604 : vector<1xf32> to vector<1x1xf32>
    %cst_203 = arith.constant 2.000000e+00 : f32
    %606 = vector.broadcast %cst_203 : f32 to vector<1x1xf32>
    %607 = arith.divf %605, %606 : vector<1x1xf32>
    %608 = vector.broadcast %607 : vector<1x1xf32> to vector<2x256xf32>
    %609 = arith.subf %599, %608 : vector<2x256xf32>
    %610 = vector.broadcast %607 : vector<1x1xf32> to vector<2x256xf32>
    %611 = arith.subf %599, %610 : vector<2x256xf32>
    %612 = arith.mulf %609, %611 : vector<2x256xf32>
    %cst_204 = arith.constant dense<0.000000e+00> : vector<2xf32>
    %613 = vector.multi_reduction <add>, %612, %cst_204 [1] : vector<2x256xf32> to vector<2xf32>
    %614 = vector.shape_cast %613 : vector<2xf32> to vector<2x1xf32>
    %cst_205 = arith.constant 2.560000e+02 : f32
    %615 = vector.broadcast %cst_205 : f32 to vector<2x1xf32>
    %616 = arith.divf %614, %615 : vector<2x1xf32>
    %cst_206 = arith.constant dense<0.000000e+00> : vector<1xf32>
    %617 = vector.multi_reduction <add>, %616, %cst_206 [0] : vector<2x1xf32> to vector<1xf32>
    %618 = vector.shape_cast %617 : vector<1xf32> to vector<1x1xf32>
    %cst_207 = arith.constant 2.000000e+00 : f32
    %619 = vector.broadcast %cst_207 : f32 to vector<1x1xf32>
    %620 = arith.divf %618, %619 : vector<1x1xf32>
    %c2_i32_208 = arith.constant 2 : i32
    %621 = vector.broadcast %c2_i32_208 : i32 to vector<4x1xi32>
    %622 = arith.cmpi sge, %560, %621 : vector<4x1xi32>
    %c4_i32 = arith.constant 4 : i32
    %623 = vector.broadcast %c4_i32 : i32 to vector<4x1xi32>
    %624 = arith.cmpi slt, %560, %623 : vector<4x1xi32>
    %625 = arith.andi %622, %624 : vector<4x1xi1>
    %626 = vector.shape_cast %607 : vector<1x1xf32> to vector<1x1xf32>
    %627 = vector.broadcast %626 : vector<1x1xf32> to vector<4x1xf32>
    %628 = arith.select %625, %627, %592 : vector<4x1xi1>, vector<4x1xf32>
    %cst_209 = arith.constant 9.99999974E-6 : f32
    %629 = vector.broadcast %cst_209 : f32 to vector<1x1xf32>
    %630 = arith.addf %620, %629 : vector<1x1xf32>
    %631 = math.rsqrt %630 : vector<1x1xf32>
    %632 = vector.shape_cast %631 : vector<1x1xf32> to vector<1x1xf32>
    %633 = vector.broadcast %632 : vector<1x1xf32> to vector<4x1xf32>
    %634 = arith.select %625, %633, %598 : vector<4x1xi1>, vector<4x1xf32>
    %635 = vector.broadcast %628 : vector<4x1xf32> to vector<4x256xf32>
    %636 = arith.subf %559, %635 : vector<4x256xf32>
    %637 = vector.broadcast %634 : vector<4x1xf32> to vector<4x256xf32>
    %638 = arith.mulf %636, %637 : vector<4x256xf32>
    %639 = vector.broadcast %17 : vector<4x1xf32> to vector<4x256xf32>
    %640 = arith.mulf %638, %639 : vector<4x256xf32>
    %641 = vector.broadcast %18 : vector<4x1xf32> to vector<4x256xf32>
    %642 = arith.addf %640, %641 : vector<4x256xf32>
    %cst_210 = arith.constant 5.000000e-01 : f32
    %643 = vector.broadcast %cst_210 : f32 to vector<4x256xf32>
    %644 = arith.mulf %643, %642 : vector<4x256xf32>
    %cst_211 = arith.constant 0.707106769 : f32
    %645 = vector.broadcast %cst_211 : f32 to vector<4x256xf32>
    %646 = arith.mulf %642, %645 : vector<4x256xf32>
    %647 = math.absf %646 : vector<4x256xf32>
    %cst_212 = arith.constant 0.327591091 : f32
    %648 = vector.broadcast %cst_212 : f32 to vector<4x256xf32>
    %649 = arith.mulf %648, %647 : vector<4x256xf32>
    %cst_213 = arith.constant 1.000000e+00 : f32
    %650 = vector.broadcast %cst_213 : f32 to vector<4x256xf32>
    %651 = arith.addf %650, %649 : vector<4x256xf32>
    %cst_214 = arith.constant 1.000000e+00 : f32
    %652 = vector.broadcast %cst_214 : f32 to vector<4x256xf32>
    %653 = arith.divf %652, %651 : vector<4x256xf32>
    %cst_215 = arith.constant 1.06140542 : f32
    %654 = vector.broadcast %cst_215 : f32 to vector<4x256xf32>
    %655 = arith.mulf %654, %653 : vector<4x256xf32>
    %cst_216 = arith.constant -1.45315206 : f32
    %656 = vector.broadcast %cst_216 : f32 to vector<4x256xf32>
    %657 = arith.addf %655, %656 : vector<4x256xf32>
    %658 = arith.mulf %657, %653 : vector<4x256xf32>
    %cst_217 = arith.constant 1.42141378 : f32
    %659 = vector.broadcast %cst_217 : f32 to vector<4x256xf32>
    %660 = arith.addf %658, %659 : vector<4x256xf32>
    %661 = arith.mulf %660, %653 : vector<4x256xf32>
    %cst_218 = arith.constant -0.284496725 : f32
    %662 = vector.broadcast %cst_218 : f32 to vector<4x256xf32>
    %663 = arith.addf %661, %662 : vector<4x256xf32>
    %664 = arith.mulf %663, %653 : vector<4x256xf32>
    %cst_219 = arith.constant 0.254829586 : f32
    %665 = vector.broadcast %cst_219 : f32 to vector<4x256xf32>
    %666 = arith.addf %664, %665 : vector<4x256xf32>
    %667 = arith.mulf %666, %653 : vector<4x256xf32>
    %cst_220 = arith.constant 0.000000e+00 : f32
    %668 = vector.broadcast %cst_220 : f32 to vector<4x256xf32>
    %669 = arith.subf %668, %647 : vector<4x256xf32>
    %670 = arith.mulf %669, %647 : vector<4x256xf32>
    %671 = math.exp %670 : vector<4x256xf32>
    %672 = arith.mulf %667, %671 : vector<4x256xf32>
    %cst_221 = arith.constant 1.000000e+00 : f32
    %673 = vector.broadcast %cst_221 : f32 to vector<4x256xf32>
    %674 = arith.subf %673, %672 : vector<4x256xf32>
    %cst_222 = arith.constant 0.000000e+00 : f32
    %675 = vector.broadcast %cst_222 : f32 to vector<4x256xf32>
    %676 = arith.cmpf oge, %646, %675 : vector<4x256xf32>
    %cst_223 = arith.constant 0.000000e+00 : f32
    %677 = vector.broadcast %cst_223 : f32 to vector<4x256xf32>
    %678 = arith.subf %677, %674 : vector<4x256xf32>
    %679 = arith.select %676, %674, %678 : vector<4x256xi1>, vector<4x256xf32>
    %cst_224 = arith.constant 1.000000e+00 : f32
    %680 = vector.broadcast %cst_224 : f32 to vector<4x256xf32>
    %681 = arith.addf %680, %679 : vector<4x256xf32>
    %682 = arith.mulf %644, %681 : vector<4x256xf32>
    %683 = arith.mulf %682, %488 : vector<4x256xf32>
    %c0_225 = arith.constant 0 : index
    %c0_226 = arith.constant 0 : index
    %c0_227 = arith.constant 0 : index
    %684 = vector.load %arg24[%c0_225, %c0_226, %c0_227] : memref<1x4x256xf32, #tpu.memory_space<vmem>>, vector<1x4x256xf32>
    %685 = vector.shape_cast %684 : vector<1x4x256xf32> to vector<4x256xf32>
    %686 = vector.shape_cast %683 : vector<4x256xf32> to vector<1x4x256xf32>
    tpu.vector_store %arg24[%c0_225, %c0_226, %c0_227], %686 {strides = array<i32>} : memref<1x4x256xf32, #tpu.memory_space<vmem>>, vector<1x4x256xf32>,
    return
  }
  func.func @transform_0(%arg0: i32) -> (i32, i32, i32) {
    %c0_i32 = arith.constant 0 : i32
    %c0_i32_0 = arith.constant 0 : i32
    %c0_i32_1 = arith.constant 0 : i32
    return %arg0, %c0_i32, %c0_i32_0 : i32, i32, i32
  }
  func.func @transform_1(%arg0: i32) -> (i32, i32, i32) {
    %c0_i32 = arith.constant 0 : i32
    %c0_i32_0 = arith.constant 0 : i32
    %c0_i32_1 = arith.constant 0 : i32
    %c0_i32_2 = arith.constant 0 : i32
    return %c0_i32, %c0_i32_0, %c0_i32_1 : i32, i32, i32
  }
  func.func @transform_2(%arg0: i32) -> (i32, i32) {
    %c0_i32 = arith.constant 0 : i32
    %c0_i32_0 = arith.constant 0 : i32
    %c0_i32_1 = arith.constant 0 : i32
    return %c0_i32, %c0_i32_0 : i32, i32
  }
  func.func @transform_3(%arg0: i32) -> (i32, i32) {
    %c0_i32 = arith.constant 0 : i32
    %c0_i32_0 = arith.constant 0 : i32
    %c0_i32_1 = arith.constant 0 : i32
    return %c0_i32, %c0_i32_0 : i32, i32
  }
  func.func @transform_4(%arg0: i32) -> (i32, i32) {
    %c0_i32 = arith.constant 0 : i32
    %c0_i32_0 = arith.constant 0 : i32
    %c0_i32_1 = arith.constant 0 : i32
    return %c0_i32, %c0_i32_0 : i32, i32
  }
  func.func @transform_5(%arg0: i32) -> (i32, i32) {
    %c0_i32 = arith.constant 0 : i32
    %c0_i32_0 = arith.constant 0 : i32
    %c0_i32_1 = arith.constant 0 : i32
    return %c0_i32, %c0_i32_0 : i32, i32
  }
  func.func @transform_6(%arg0: i32) -> (i32, i32) {
    %c0_i32 = arith.constant 0 : i32
    %c0_i32_0 = arith.constant 0 : i32
    %c0_i32_1 = arith.constant 0 : i32
    return %c0_i32, %c0_i32_0 : i32, i32
  }
  func.func @transform_7(%arg0: i32) -> (i32, i32) {
    %c0_i32 = arith.constant 0 : i32
    %c0_i32_0 = arith.constant 0 : i32
    %c0_i32_1 = arith.constant 0 : i32
    return %c0_i32, %c0_i32_0 : i32, i32
  }
  func.func @transform_8(%arg0: i32) -> (i32, i32) {
    %c0_i32 = arith.constant 0 : i32
    %c0_i32_0 = arith.constant 0 : i32
    %c0_i32_1 = arith.constant 0 : i32
    return %c0_i32, %c0_i32_0 : i32, i32
  }
  func.func @transform_9(%arg0: i32) -> (i32, i32) {
    %c0_i32 = arith.constant 0 : i32
    %c0_i32_0 = arith.constant 0 : i32
    %c0_i32_1 = arith.constant 0 : i32
    return %c0_i32, %c0_i32_0 : i32, i32
  }
  func.func @transform_10(%arg0: i32) -> (i32, i32) {
    %c0_i32 = arith.constant 0 : i32
    %c0_i32_0 = arith.constant 0 : i32
    %c0_i32_1 = arith.constant 0 : i32
    return %c0_i32, %c0_i32_0 : i32, i32
  }
  func.func @transform_11(%arg0: i32) -> (i32, i32) {
    %c0_i32 = arith.constant 0 : i32
    %c0_i32_0 = arith.constant 0 : i32
    %c0_i32_1 = arith.constant 0 : i32
    return %c0_i32, %c0_i32_0 : i32, i32
  }
  func.func @transform_12(%arg0: i32) -> (i32, i32) {
    %c0_i32 = arith.constant 0 : i32
    %c0_i32_0 = arith.constant 0 : i32
    %c0_i32_1 = arith.constant 0 : i32
    return %c0_i32, %c0_i32_0 : i32, i32
  }
  func.func @transform_13(%arg0: i32) -> (i32, i32) {
    %c0_i32 = arith.constant 0 : i32
    %c0_i32_0 = arith.constant 0 : i32
    %c0_i32_1 = arith.constant 0 : i32
    return %c0_i32, %c0_i32_0 : i32, i32
  }
  func.func @transform_14(%arg0: i32) -> (i32, i32) {
    %c0_i32 = arith.constant 0 : i32
    %c0_i32_0 = arith.constant 0 : i32
    %c0_i32_1 = arith.constant 0 : i32
    return %c0_i32, %c0_i32_0 : i32, i32
  }
  func.func @transform_15(%arg0: i32) -> (i32, i32, i32) {
    %c0_i32 = arith.constant 0 : i32
    %c0_i32_0 = arith.constant 0 : i32
    %c0_i32_1 = arith.constant 0 : i32
    %c0_i32_2 = arith.constant 0 : i32
    return %c0_i32, %c0_i32_0, %c0_i32_1 : i32, i32, i32
  }
  func.func @transform_16(%arg0: i32) -> (i32, i32) {
    %c0_i32 = arith.constant 0 : i32
    %c0_i32_0 = arith.constant 0 : i32
    %c0_i32_1 = arith.constant 0 : i32
    return %c0_i32, %c0_i32_0 : i32, i32
  }
  func.func @transform_17(%arg0: i32) -> (i32, i32, i32) {
    %c0_i32 = arith.constant 0 : i32
    %c0_i32_0 = arith.constant 0 : i32
    %c0_i32_1 = arith.constant 0 : i32
    %c0_i32_2 = arith.constant 0 : i32
    return %c0_i32, %c0_i32_0, %c0_i32_1 : i32, i32, i32
  }
  func.func @transform_18(%arg0: i32) -> (i32, i32) {
    %c0_i32 = arith.constant 0 : i32
    %c0_i32_0 = arith.constant 0 : i32
    %c0_i32_1 = arith.constant 0 : i32
    return %c0_i32, %c0_i32_0 : i32, i32
  }
  func.func @transform_19(%arg0: i32) -> (i32, i32) {
    %c0_i32 = arith.constant 0 : i32
    %c0_i32_0 = arith.constant 0 : i32
    %c0_i32_1 = arith.constant 0 : i32
    return %c0_i32, %c0_i32_0 : i32, i32
  }
  func.func @transform_20(%arg0: i32) -> (i32, i32) {
    %c0_i32 = arith.constant 0 : i32
    %c0_i32_0 = arith.constant 0 : i32
    %c0_i32_1 = arith.constant 0 : i32
    return %c0_i32, %c0_i32_0 : i32, i32
  }
  func.func @transform_21(%arg0: i32) -> (i32, i32) {
    %c0_i32 = arith.constant 0 : i32
    %c0_i32_0 = arith.constant 0 : i32
    %c0_i32_1 = arith.constant 0 : i32
    return %c0_i32, %c0_i32_0 : i32, i32
  }
  func.func @transform_22(%arg0: i32) -> (i32, i32) {
    %c0_i32 = arith.constant 0 : i32
    %c0_i32_0 = arith.constant 0 : i32
    %c0_i32_1 = arith.constant 0 : i32
    return %c0_i32, %c0_i32_0 : i32, i32
  }
  func.func @transform_23(%arg0: i32) -> (i32, i32, i32) {
    %c0_i32 = arith.constant 0 : i32
    %c0_i32_0 = arith.constant 0 : i32
    %c0_i32_1 = arith.constant 0 : i32
    return %arg0, %c0_i32, %c0_i32_0 : i32, i32, i32
  }
}

</mosaic_0001>

<llo_original>
// kernel: seg_rs_forward.1
$region0: #{seg_rs_forward.1}
  #allocation0 [shape = 'u32[]', space=smem, size = 0x4, offset = 0x4, fixed_abs, tag = 'smem constant byte address 0x4 - core index']
  #allocation1 [shape = 'u32[144,128]{1,0:T(1,128)}', space=vmem, size = 0x12000, scoped, tag = 'internal scratch']
  %s0 = inlined_call_operand.vmem [shape: f32[2,4,256], index: 0, kind: input, shape index: {}]
  %s1 = inlined_call_operand.vmem [shape: f32[9,4,4], index: 1, kind: input, shape index: {}]
  %s2 = inlined_call_operand.vmem [shape: f32[256,16], index: 2, kind: input, shape index: {}]
  %s3 = inlined_call_operand.vmem [shape: f32[256,16], index: 3, kind: input, shape index: {}]
  %s4 = inlined_call_operand.hbm [shape: f32[16,256], index: 4, kind: input, shape index: {}]
  %s5 = inlined_call_operand.vmem [shape: f32[16,256], index: 5, kind: input, shape index: {}]
  %s6 = inlined_call_operand.hbm [shape: f32[9,256], index: 6, kind: input, shape index: {}]
  %s7 = inlined_call_operand.vmem [shape: f32[32,2], index: 7, kind: input, shape index: {}]
  %s8 = inlined_call_operand.vmem [shape: f32[32,1], index: 8, kind: input, shape index: {}]
  %s9 = inlined_call_operand.hbm [shape: f32[2,32], index: 9, kind: input, shape index: {}]
  %s10 = inlined_call_operand.vmem [shape: f32[2,1], index: 10, kind: input, shape index: {}]
  %s11 = inlined_call_operand.hbm [shape: f32[2,32], index: 11, kind: input, shape index: {}]
  %s12 = inlined_call_operand.vmem [shape: f32[2,1], index: 12, kind: input, shape index: {}]
  %s13 = inlined_call_operand.vmem [shape: f32[2,1], index: 13, kind: input, shape index: {}]
  %s14 = inlined_call_operand.vmem [shape: f32[2,1], index: 14, kind: input, shape index: {}]
  %s15 = inlined_call_operand.vmem [shape: f32[9,2,2], index: 15, kind: input, shape index: {}]
  %s16 = inlined_call_operand.vmem [shape: f32[2,1], index: 16, kind: input, shape index: {}]
  %s17 = inlined_call_operand.vmem [shape: f32[9,4,2], index: 17, kind: input, shape index: {}]
  %s18 = inlined_call_operand.vmem [shape: f32[4,1], index: 18, kind: input, shape index: {}]
  %s19 = inlined_call_operand.vmem [shape: f32[4,1], index: 19, kind: input, shape index: {}]
  %s20 = inlined_call_operand.vmem [shape: f32[4,1], index: 20, kind: input, shape index: {}]
  %s21 = inlined_call_operand.hbm [shape: f32[4,4], index: 21, kind: input, shape index: {}]
  %s22 = inlined_call_operand.vmem [shape: f32[4,1], index: 22, kind: input, shape index: {}]
  %s23 = inlined_call_operand.vmem [shape: f32[2,4,256], index: 23, kind: output, shape index: {}]
  %s24 = sld [smem:[#allocation0]]
  $region145: #{seg_rs_forward.1} parent=0
    _
  %s26 = ssub.s32 1, %s24
  %s27 = scalar_select 0, %s26, %s24
  $region1: #{seg_rs_forward.1} parent=0
    #allocation2 [shape = 'u8[16384]{0}', space=vmem, size = 0x4000, scoped, tag = 'input window, operand 4, single buffered']
    #allocation3 [shape = 's32[2]{0}', space=sflag, size = 0x8, scoped, tag = 'scoped memory for seg_rs_forward.1']
    #allocation4 [shape = 'u8[16384]{0}', space=vmem, size = 0x4000, scoped, tag = 'input window, operand 6, single buffered']
    #allocation5 [shape = 's32[1]{0}', space=sflag, size = 0x4, scoped, tag = 'scoped memory for seg_rs_forward.1']
    #allocation6 [shape = 'u8[1024]{0}', space=vmem, size = 0x400, scoped, tag = 'input window, operand 9, single buffered']
    #allocation7 [shape = 'u8[1024]{0}', space=vmem, size = 0x400, scoped, tag = 'input window, operand 11, single buffered']
    #allocation8 [shape = 's32[1]{0}', space=sflag, size = 0x4, scoped, tag = 'scoped memory for seg_rs_forward.1']
    #allocation9 [shape = 'u8[2048]{0}', space=vmem, size = 0x800, scoped, tag = 'input window, operand 21, single buffered']
    %28 = vsyncpa [#allocation3], 0
    %29 = vsyncpa [#allocation5], 0
    %30 = vsyncpa [#allocation8], 0
    loop: start=0, step=1, limit=4
    $region2: #{seg_rs_forward.1} parent=1 // loop_pre_header
      _
    $region3: #{seg_rs_forward.1} parent=1 // loop_header
      %s32 = sphi 0, %s36
      %p33 = scmp.ge.s32.totalorder %s32, 4
      %s42 = sphi 0, %s44
      %s45 = sphi 0, %s42
      %s46 = sphi 0, %s45
      %s62 = sphi 0, %s46
      %s66 = sphi 0, %s66
      %s68 = sphi 0, %s66
      %s69 = sphi 0, %s68
      %s83 = sphi 0, %s69
      %s87 = sphi 0, %s87
      %s89 = sphi 0, %s87
      %s90 = sphi 0, %s89
      %s104 = sphi 0, %s90
      %s108 = sphi 0, %s108
      %s110 = sphi 0, %s108
      %s111 = sphi 0, %s110
      %s125 = sphi 0, %s111
      %s129 = sphi 0, %s129
      %s131 = sphi 0, %s129
      %s132 = sphi 0, %s131
      %s146 = sphi 0, %s132
      %s150 = sphi 0, %s150
      %s152 = sphi 0, %s150
      %s153 = sphi 0, %s152
      %s167 = sphi 0, %s153
      %s171 = sphi 0, %s171
      %s173 = sphi 0, %s171
      %s174 = sphi 0, %s173
      %s188 = sphi 0, %s174
      %s192 = sphi 0, %s192
      %s194 = sphi 0, %s192
      %s195 = sphi 0, %s194
      %s209 = sphi 0, %s195
      %s213 = sphi 0, %s213
      %s215 = sphi 0, %s213
      %s216 = sphi 0, %s215
      %s230 = sphi 0, %s216
      %s234 = sphi 0, %s234
      %s236 = sphi 0, %s234
      %s237 = sphi 0, %s236
      %s251 = sphi 0, %s237
      %s255 = sphi 0, %s255
      %s257 = sphi 0, %s255
      %s258 = sphi 0, %s257
      %s272 = sphi 0, %s258
      %s276 = sphi 0, %s276
      %s278 = sphi 0, %s276
      %s279 = sphi 0, %s278
      %s293 = sphi 0, %s279
      %s297 = sphi 0, %s297
      %s299 = sphi 0, %s297
      %s300 = sphi 0, %s299
      %s314 = sphi 0, %s300
      %s318 = sphi 0, %s318
      %s320 = sphi 0, %s318
      %s321 = sphi 0, %s320
      %s335 = sphi 0, %s321
      %s339 = sphi 0, %s339
      %s341 = sphi 0, %s339
      %s342 = sphi 0, %s341
      %s356 = sphi 0, %s342
      %s360 = sphi 0, %s360
      %s362 = sphi 0, %s360
      %s363 = sphi 0, %s362
      %s377 = sphi 0, %s363
      %s381 = sphi 0, %s381
      %s383 = sphi 0, %s381
      %s384 = sphi 0, %s383
      %s398 = sphi 0, %s384
      %s402 = sphi 0, %s402
      %s404 = sphi 0, %s402
      %s405 = sphi 0, %s404
      %s419 = sphi 0, %s405
      %s423 = sphi 0, %s423
      %s425 = sphi 0, %s423
      %s426 = sphi 0, %s425
      %s440 = sphi 0, %s426
      %s444 = sphi 0, %s444
      %s446 = sphi 0, %s444
      %s447 = sphi 0, %s446
      %s461 = sphi 0, %s447
      %s465 = sphi 0, %s465
      %s467 = sphi 0, %s465
      %s468 = sphi 0, %s467
      %s482 = sphi 0, %s468
      %s486 = sphi 0, %s486
      %s488 = sphi 0, %s486
      %s489 = sphi 0, %s488
      %s503 = sphi 0, %s489
      %s507 = sphi 0, %s507
      %s509 = sphi 0, %s507
      %s510 = sphi 0, %s509
      %s524 = sphi 0, %s510
      %s530 = sphi 0, %s532
      %s533 = sphi 0, %s530
      %s534 = sphi 0, %s533
      %s550 = sphi 0, %s534
    $region4: #{seg_rs_forward.1} parent=1 // loop_header_branch
      %35 = sbr.rel (%p33) target = $region8
    $region5: #{seg_rs_forward.1} parent=1 // loop_body
      %s37 = ssub.s32 %s32, 1
      %s38 = ssub.s32 %s32, 2
      %s39 = sadd.s32 %s32, 1
      %s40 = ssub.s32 %s32, %s39
      %p41 = scmp.eq.s32.totalorder %s40, 0
      %s43 = sadd.s32 %s42, 1
      %s44 = scalar_select %p41, %s42, %s43
      %p47 = pneg %p41
      %p48 = scmp.eq.s32.totalorder %s32, 1
      %p49 = por %p47, %p48
      %p50 = scmp.ne.s32.totalorder %s42, %s45
      %p51 = scmp.eq.s32.totalorder %s32, 0
      %p52 = por %p50, %p51
      %p53 = scmp.ne.s32.totalorder %s42, %s45
      %p54 = scmp.eq.s32.totalorder %s37, 1
      %p55 = por %p53, %p54
      %p56 = scmp.ne.s32.totalorder %s45, %s46
      %p57 = scmp.eq.s32.totalorder %s37, 0
      %p58 = por %p56, %p57
      %p59 = scmp.ne.s32.totalorder %s45, %s46
      %p60 = scmp.eq.s32.totalorder %s38, 1
      %p61 = por %p59, %p60
      %p63 = scmp.ne.s32.totalorder %s46, %s62
      %p64 = scmp.eq.s32.totalorder %s38, 0
      %p65 = por %p63, %p64
      %s67 = sadd.s32 %s66, 1
      %p70 = scmp.eq.s32.totalorder %s32, 1
      %p71 = scmp.ne.s32.totalorder %s66, %s68
      %p72 = scmp.eq.s32.totalorder %s32, 0
      %p73 = por %p71, %p72
      %p74 = scmp.ne.s32.totalorder %s66, %s68
      %p75 = scmp.eq.s32.totalorder %s37, 1
      %p76 = por %p74, %p75
      %p77 = scmp.ne.s32.totalorder %s68, %s69
      %p78 = scmp.eq.s32.totalorder %s37, 0
      %p79 = por %p77, %p78
      %p80 = scmp.ne.s32.totalorder %s68, %s69
      %p81 = scmp.eq.s32.totalorder %s38, 1
      %p82 = por %p80, %p81
      %p84 = scmp.ne.s32.totalorder %s69, %s83
      %p85 = scmp.eq.s32.totalorder %s38, 0
      %p86 = por %p84, %p85
      %s88 = sadd.s32 %s87, 1
      %p91 = scmp.eq.s32.totalorder %s32, 1
      %p92 = scmp.ne.s32.totalorder %s87, %s89
      %p93 = scmp.eq.s32.totalorder %s32, 0
      %p94 = por %p92, %p93
      %p95 = scmp.ne.s32.totalorder %s87, %s89
      %p96 = scmp.eq.s32.totalorder %s37, 1
      %p97 = por %p95, %p96
      %p98 = scmp.ne.s32.totalorder %s89, %s90
      %p99 = scmp.eq.s32.totalorder %s37, 0
      %p100 = por %p98, %p99
      %p101 = scmp.ne.s32.totalorder %s89, %s90
      %p102 = scmp.eq.s32.totalorder %s38, 1
      %p103 = por %p101, %p102
      %p105 = scmp.ne.s32.totalorder %s90, %s104
      %p106 = scmp.eq.s32.totalorder %s38, 0
      %p107 = por %p105, %p106
      %s109 = sadd.s32 %s108, 1
      %p112 = scmp.eq.s32.totalorder %s32, 1
      %p113 = scmp.ne.s32.totalorder %s108, %s110
      %p114 = scmp.eq.s32.totalorder %s32, 0
      %p115 = por %p113, %p114
      %p116 = scmp.ne.s32.totalorder %s108, %s110
      %p117 = scmp.eq.s32.totalorder %s37, 1
      %p118 = por %p116, %p117
      %p119 = scmp.ne.s32.totalorder %s110, %s111
      %p120 = scmp.eq.s32.totalorder %s37, 0
      %p121 = por %p119, %p120
      %p122 = scmp.ne.s32.totalorder %s110, %s111
      %p123 = scmp.eq.s32.totalorder %s38, 1
      %p124 = por %p122, %p123
      %p126 = scmp.ne.s32.totalorder %s111, %s125
      %p127 = scmp.eq.s32.totalorder %s38, 0
      %p128 = por %p126, %p127
      %s130 = sadd.s32 %s129, 1
      %p133 = scmp.eq.s32.totalorder %s32, 1
      %p134 = scmp.ne.s32.totalorder %s129, %s131
      %p135 = scmp.eq.s32.totalorder %s32, 0
      %p136 = por %p134, %p135
      %p137 = scmp.ne.s32.totalorder %s129, %s131
      %p138 = scmp.eq.s32.totalorder %s37, 1
      %p139 = por %p137, %p138
      %p140 = scmp.ne.s32.totalorder %s131, %s132
      %p141 = scmp.eq.s32.totalorder %s37, 0
      %p142 = por %p140, %p141
      %p143 = scmp.ne.s32.totalorder %s131, %s132
      %p144 = scmp.eq.s32.totalorder %s38, 1
      %p145 = por %p143, %p144
      %p147 = scmp.ne.s32.totalorder %s132, %s146
      %p148 = scmp.eq.s32.totalorder %s38, 0
      %p149 = por %p147, %p148
      %s151 = sadd.s32 %s150, 1
      %p154 = scmp.eq.s32.totalorder %s32, 1
      %p155 = scmp.ne.s32.totalorder %s150, %s152
      %p156 = scmp.eq.s32.totalorder %s32, 0
      %p157 = por %p155, %p156
      %p158 = scmp.ne.s32.totalorder %s150, %s152
      %p159 = scmp.eq.s32.totalorder %s37, 1
      %p160 = por %p158, %p159
      %p161 = scmp.ne.s32.totalorder %s152, %s153
      %p162 = scmp.eq.s32.totalorder %s37, 0
      %p163 = por %p161, %p162
      %p164 = scmp.ne.s32.totalorder %s152, %s153
      %p165 = scmp.eq.s32.totalorder %s38, 1
      %p166 = por %p164, %p165
      %p168 = scmp.ne.s32.totalorder %s153, %s167
      %p169 = scmp.eq.s32.totalorder %s38, 0
      %p170 = por %p168, %p169
      %s172 = sadd.s32 %s171, 1
      %p175 = scmp.eq.s32.totalorder %s32, 1
      %p176 = scmp.ne.s32.totalorder %s171, %s173
      %p177 = scmp.eq.s32.totalorder %s32, 0
      %p178 = por %p176, %p177
      %p179 = scmp.ne.s32.totalorder %s171, %s173
      %p180 = scmp.eq.s32.totalorder %s37, 1
      %p181 = por %p179, %p180
      %p182 = scmp.ne.s32.totalorder %s173, %s174
      %p183 = scmp.eq.s32.totalorder %s37, 0
      %p184 = por %p182, %p183
      %p185 = scmp.ne.s32.totalorder %s173, %s174
      %p186 = scmp.eq.s32.totalorder %s38, 1
      %p187 = por %p185, %p186
      %p189 = scmp.ne.s32.totalorder %s174, %s188
      %p190 = scmp.eq.s32.totalorder %s38, 0
      %p191 = por %p189, %p190
      %s193 = sadd.s32 %s192, 1
      %p196 = scmp.eq.s32.totalorder %s32, 1
      %p197 = scmp.ne.s32.totalorder %s192, %s194
      %p198 = scmp.eq.s32.totalorder %s32, 0
      %p199 = por %p197, %p198
      %p200 = scmp.ne.s32.totalorder %s192, %s194
      %p201 = scmp.eq.s32.totalorder %s37, 1
      %p202 = por %p200, %p201
      %p203 = scmp.ne.s32.totalorder %s194, %s195
      %p204 = scmp.eq.s32.totalorder %s37, 0
      %p205 = por %p203, %p204
      %p206 = scmp.ne.s32.totalorder %s194, %s195
      %p207 = scmp.eq.s32.totalorder %s38, 1
      %p208 = por %p206, %p207
      %p210 = scmp.ne.s32.totalorder %s195, %s209
      %p211 = scmp.eq.s32.totalorder %s38, 0
      %p212 = por %p210, %p211
      %s214 = sadd.s32 %s213, 1
      %p217 = scmp.eq.s32.totalorder %s32, 1
      %p218 = scmp.ne.s32.totalorder %s213, %s215
      %p219 = scmp.eq.s32.totalorder %s32, 0
      %p220 = por %p218, %p219
      %p221 = scmp.ne.s32.totalorder %s213, %s215
      %p222 = scmp.eq.s32.totalorder %s37, 1
      %p223 = por %p221, %p222
      %p224 = scmp.ne.s32.totalorder %s215, %s216
      %p225 = scmp.eq.s32.totalorder %s37, 0
      %p226 = por %p224, %p225
      %p227 = scmp.ne.s32.totalorder %s215, %s216
      %p228 = scmp.eq.s32.totalorder %s38, 1
      %p229 = por %p227, %p228
      %p231 = scmp.ne.s32.totalorder %s216, %s230
      %p232 = scmp.eq.s32.totalorder %s38, 0
      %p233 = por %p231, %p232
      %s235 = sadd.s32 %s234, 1
      %p238 = scmp.eq.s32.totalorder %s32, 1
      %p239 = scmp.ne.s32.totalorder %s234, %s236
      %p240 = scmp.eq.s32.totalorder %s32, 0
      %p241 = por %p239, %p240
      %p242 = scmp.ne.s32.totalorder %s234, %s236
      %p243 = scmp.eq.s32.totalorder %s37, 1
      %p244 = por %p242, %p243
      %p245 = scmp.ne.s32.totalorder %s236, %s237
      %p246 = scmp.eq.s32.totalorder %s37, 0
      %p247 = por %p245, %p246
      %p248 = scmp.ne.s32.totalorder %s236, %s237
      %p249 = scmp.eq.s32.totalorder %s38, 1
      %p250 = por %p248, %p249
      %p252 = scmp.ne.s32.totalorder %s237, %s251
      %p253 = scmp.eq.s32.totalorder %s38, 0
      %p254 = por %p252, %p253
      %s256 = sadd.s32 %s255, 1
      %p259 = scmp.eq.s32.totalorder %s32, 1
      %p260 = scmp.ne.s32.totalorder %s255, %s257
      %p261 = scmp.eq.s32.totalorder %s32, 0
      %p262 = por %p260, %p261
      %p263 = scmp.ne.s32.totalorder %s255, %s257
      %p264 = scmp.eq.s32.totalorder %s37, 1
      %p265 = por %p263, %p264
      %p266 = scmp.ne.s32.totalorder %s257, %s258
      %p267 = scmp.eq.s32.totalorder %s37, 0
      %p268 = por %p266, %p267
      %p269 = scmp.ne.s32.totalorder %s257, %s258
      %p270 = scmp.eq.s32.totalorder %s38, 1
      %p271 = por %p269, %p270
      %p273 = scmp.ne.s32.totalorder %s258, %s272
      %p274 = scmp.eq.s32.totalorder %s38, 0
      %p275 = por %p273, %p274
      %s277 = sadd.s32 %s276, 1
      %p280 = scmp.eq.s32.totalorder %s32, 1
      %p281 = scmp.ne.s32.totalorder %s276, %s278
      %p282 = scmp.eq.s32.totalorder %s32, 0
      %p283 = por %p281, %p282
      %p284 = scmp.ne.s32.totalorder %s276, %s278
      %p285 = scmp.eq.s32.totalorder %s37, 1
      %p286 = por %p284, %p285
      %p287 = scmp.ne.s32.totalorder %s278, %s279
      %p288 = scmp.eq.s32.totalorder %s37, 0
      %p289 = por %p287, %p288
      %p290 = scmp.ne.s32.totalorder %s278, %s279
      %p291 = scmp.eq.s32.totalorder %s38, 1
      %p292 = por %p290, %p291
      %p294 = scmp.ne.s32.totalorder %s279, %s293
      %p295 = scmp.eq.s32.totalorder %s38, 0
      %p296 = por %p294, %p295
      %s298 = sadd.s32 %s297, 1
      %p301 = scmp.eq.s32.totalorder %s32, 1
      %p302 = scmp.ne.s32.totalorder %s297, %s299
      %p303 = scmp.eq.s32.totalorder %s32, 0
      %p304 = por %p302, %p303
      %p305 = scmp.ne.s32.totalorder %s297, %s299
      %p306 = scmp.eq.s32.totalorder %s37, 1
      %p307 = por %p305, %p306
      %p308 = scmp.ne.s32.totalorder %s299, %s300
      %p309 = scmp.eq.s32.totalorder %s37, 0
      %p310 = por %p308, %p309
      %p311 = scmp.ne.s32.totalorder %s299, %s300
      %p312 = scmp.eq.s32.totalorder %s38, 1
      %p313 = por %p311, %p312
      %p315 = scmp.ne.s32.totalorder %s300, %s314
      %p316 = scmp.eq.s32.totalorder %s38, 0
      %p317 = por %p315, %p316
      %s319 = sadd.s32 %s318, 1
      %p322 = scmp.eq.s32.totalorder %s32, 1
      %p323 = scmp.ne.s32.totalorder %s318, %s320
      %p324 = scmp.eq.s32.totalorder %s32, 0
      %p325 = por %p323, %p324
      %p326 = scmp.ne.s32.totalorder %s318, %s320
      %p327 = scmp.eq.s32.totalorder %s37, 1
      %p328 = por %p326, %p327
      %p329 = scmp.ne.s32.totalorder %s320, %s321
      %p330 = scmp.eq.s32.totalorder %s37, 0
      %p331 = por %p329, %p330
      %p332 = scmp.ne.s32.totalorder %s320, %s321
      %p333 = scmp.eq.s32.totalorder %s38, 1
      %p334 = por %p332, %p333
      %p336 = scmp.ne.s32.totalorder %s321, %s335
      %p337 = scmp.eq.s32.totalorder %s38, 0
      %p338 = por %p336, %p337
      %s340 = sadd.s32 %s339, 1
      %p343 = scmp.eq.s32.totalorder %s32, 1
      %p344 = scmp.ne.s32.totalorder %s339, %s341
      %p345 = scmp.eq.s32.totalorder %s32, 0
      %p346 = por %p344, %p345
      %p347 = scmp.ne.s32.totalorder %s339, %s341
      %p348 = scmp.eq.s32.totalorder %s37, 1
      %p349 = por %p347, %p348
      %p350 = scmp.ne.s32.totalorder %s341, %s342
      %p351 = scmp.eq.s32.totalorder %s37, 0
      %p352 = por %p350, %p351
      %p353 = scmp.ne.s32.totalorder %s341, %s342
      %p354 = scmp.eq.s32.totalorder %s38, 1
      %p355 = por %p353, %p354
      %p357 = scmp.ne.s32.totalorder %s342, %s356
      %p358 = scmp.eq.s32.totalorder %s38, 0
      %p359 = por %p357, %p358
      %s361 = sadd.s32 %s360, 1
      %p364 = scmp.eq.s32.totalorder %s32, 1
      %p365 = scmp.ne.s32.totalorder %s360, %s362
      %p366 = scmp.eq.s32.totalorder %s32, 0
      %p367 = por %p365, %p366
      %p368 = scmp.ne.s32.totalorder %s360, %s362
      %p369 = scmp.eq.s32.totalorder %s37, 1
      %p370 = por %p368, %p369
      %p371 = scmp.ne.s32.totalorder %s362, %s363
      %p372 = scmp.eq.s32.totalorder %s37, 0
      %p373 = por %p371, %p372
      %p374 = scmp.ne.s32.totalorder %s362, %s363
      %p375 = scmp.eq.s32.totalorder %s38, 1
      %p376 = por %p374, %p375
      %p378 = scmp.ne.s32.totalorder %s363, %s377
      %p379 = scmp.eq.s32.totalorder %s38, 0
      %p380 = por %p378, %p379
      %s382 = sadd.s32 %s381, 1
      %p385 = scmp.eq.s32.totalorder %s32, 1
      %p386 = scmp.ne.s32.totalorder %s381, %s383
      %p387 = scmp.eq.s32.totalorder %s32, 0
      %p388 = por %p386, %p387
      %p389 = scmp.ne.s32.totalorder %s381, %s383
      %p390 = scmp.eq.s32.totalorder %s37, 1
      %p391 = por %p389, %p390
      %p392 = scmp.ne.s32.totalorder %s383, %s384
      %p393 = scmp.eq.s32.totalorder %s37, 0
      %p394 = por %p392, %p393
      %p395 = scmp.ne.s32.totalorder %s383, %s384
      %p396 = scmp.eq.s32.totalorder %s38, 1
      %p397 = por %p395, %p396
      %p399 = scmp.ne.s32.totalorder %s384, %s398
      %p400 = scmp.eq.s32.totalorder %s38, 0
      %p401 = por %p399, %p400
      %s403 = sadd.s32 %s402, 1
      %p406 = scmp.eq.s32.totalorder %s32, 1
      %p407 = scmp.ne.s32.totalorder %s402, %s404
      %p408 = scmp.eq.s32.totalorder %s32, 0
      %p409 = por %p407, %p408
      %p410 = scmp.ne.s32.totalorder %s402, %s404
      %p411 = scmp.eq.s32.totalorder %s37, 1
      %p412 = por %p410, %p411
      %p413 = scmp.ne.s32.totalorder %s404, %s405
      %p414 = scmp.eq.s32.totalorder %s37, 0
      %p415 = por %p413, %p414
      %p416 = scmp.ne.s32.totalorder %s404, %s405
      %p417 = scmp.eq.s32.totalorder %s38, 1
      %p418 = por %p416, %p417
      %p420 = scmp.ne.s32.totalorder %s405, %s419
      %p421 = scmp.eq.s32.totalorder %s38, 0
      %p422 = por %p420, %p421
      %s424 = sadd.s32 %s423, 1
      %p427 = scmp.eq.s32.totalorder %s32, 1
      %p428 = scmp.ne.s32.totalorder %s423, %s425
      %p429 = scmp.eq.s32.totalorder %s32, 0
      %p430 = por %p428, %p429
      %p431 = scmp.ne.s32.totalorder %s423, %s425
      %p432 = scmp.eq.s32.totalorder %s37, 1
      %p433 = por %p431, %p432
      %p434 = scmp.ne.s32.totalorder %s425, %s426
      %p435 = scmp.eq.s32.totalorder %s37, 0
      %p436 = por %p434, %p435
      %p437 = scmp.ne.s32.totalorder %s425, %s426
      %p438 = scmp.eq.s32.totalorder %s38, 1
      %p439 = por %p437, %p438
      %p441 = scmp.ne.s32.totalorder %s426, %s440
      %p442 = scmp.eq.s32.totalorder %s38, 0
      %p443 = por %p441, %p442
      %s445 = sadd.s32 %s444, 1
      %p448 = scmp.eq.s32.totalorder %s32, 1
      %p449 = scmp.ne.s32.totalorder %s444, %s446
      %p450 = scmp.eq.s32.totalorder %s32, 0
      %p451 = por %p449, %p450
      %p452 = scmp.ne.s32.totalorder %s444, %s446
      %p453 = scmp.eq.s32.totalorder %s37, 1
      %p454 = por %p452, %p453
      %p455 = scmp.ne.s32.totalorder %s446, %s447
      %p456 = scmp.eq.s32.totalorder %s37, 0
      %p457 = por %p455, %p456
      %p458 = scmp.ne.s32.totalorder %s446, %s447
      %p459 = scmp.eq.s32.totalorder %s38, 1
      %p460 = por %p458, %p459
      %p462 = scmp.ne.s32.totalorder %s447, %s461
      %p463 = scmp.eq.s32.totalorder %s38, 0
      %p464 = por %p462, %p463
      %s466 = sadd.s32 %s465, 1
      %p469 = scmp.eq.s32.totalorder %s32, 1
      %p470 = scmp.ne.s32.totalorder %s465, %s467
      %p471 = scmp.eq.s32.totalorder %s32, 0
      %p472 = por %p470, %p471
      %p473 = scmp.ne.s32.totalorder %s465, %s467
      %p474 = scmp.eq.s32.totalorder %s37, 1
      %p475 = por %p473, %p474
      %p476 = scmp.ne.s32.totalorder %s467, %s468
      %p477 = scmp.eq.s32.totalorder %s37, 0
      %p478 = por %p476, %p477
      %p479 = scmp.ne.s32.totalorder %s467, %s468
      %p480 = scmp.eq.s32.totalorder %s38, 1
      %p481 = por %p479, %p480
      %p483 = scmp.ne.s32.totalorder %s468, %s482
      %p484 = scmp.eq.s32.totalorder %s38, 0
      %p485 = por %p483, %p484
      %s487 = sadd.s32 %s486, 1
      %p490 = scmp.eq.s32.totalorder %s32, 1
      %p491 = scmp.ne.s32.totalorder %s486, %s488
      %p492 = scmp.eq.s32.totalorder %s32, 0
      %p493 = por %p491, %p492
      %p494 = scmp.ne.s32.totalorder %s486, %s488
      %p495 = scmp.eq.s32.totalorder %s37, 1
      %p496 = por %p494, %p495
      %p497 = scmp.ne.s32.totalorder %s488, %s489
      %p498 = scmp.eq.s32.totalorder %s37, 0
      %p499 = por %p497, %p498
      %p500 = scmp.ne.s32.totalorder %s488, %s489
      %p501 = scmp.eq.s32.totalorder %s38, 1
      %p502 = por %p500, %p501
      %p504 = scmp.ne.s32.totalorder %s489, %s503
      %p505 = scmp.eq.s32.totalorder %s38, 0
      %p506 = por %p504, %p505
      %s508 = sadd.s32 %s507, 1
      %p511 = scmp.eq.s32.totalorder %s32, 1
      %p512 = scmp.ne.s32.totalorder %s507, %s509
      %p513 = scmp.eq.s32.totalorder %s32, 0
      %p514 = por %p512, %p513
      %p515 = scmp.ne.s32.totalorder %s507, %s509
      %p516 = scmp.eq.s32.totalorder %s37, 1
      %p517 = por %p515, %p516
      %p518 = scmp.ne.s32.totalorder %s509, %s510
      %p519 = scmp.eq.s32.totalorder %s37, 0
      %p520 = por %p518, %p519
      %p521 = scmp.ne.s32.totalorder %s509, %s510
      %p522 = scmp.eq.s32.totalorder %s38, 1
      %p523 = por %p521, %p522
      %p525 = scmp.ne.s32.totalorder %s510, %s524
      %p526 = scmp.eq.s32.totalorder %s38, 0
      %p527 = por %p525, %p526
      %s528 = ssub.s32 %s32, %s39
      %p529 = scmp.eq.s32.totalorder %s528, 0
      %s531 = sadd.s32 %s530, 1
      %s532 = scalar_select %p529, %s530, %s531
      %p535 = pneg %p529
      %p536 = scmp.eq.s32.totalorder %s32, 1
      %p537 = por %p535, %p536
      %p538 = scmp.ne.s32.totalorder %s530, %s533
      %p539 = scmp.eq.s32.totalorder %s32, 0
      %p540 = por %p538, %p539
      %p541 = scmp.ne.s32.totalorder %s530, %s533
      %p542 = scmp.eq.s32.totalorder %s37, 1
      %p543 = por %p541, %p542
      %p544 = scmp.ne.s32.totalorder %s533, %s534
      %p545 = scmp.eq.s32.totalorder %s37, 0
      %p546 = por %p544, %p545
      %p547 = scmp.ne.s32.totalorder %s533, %s534
      %p548 = scmp.eq.s32.totalorder %s38, 1
      %p549 = por %p547, %p548
      %p551 = scmp.ne.s32.totalorder %s534, %s550
      %p552 = scmp.eq.s32.totalorder %s38, 0
      %p553 = por %p551, %p552
      %p554 = scmp.le.s32.totalorder 1, %s32
      %p555 = scmp.lt.s32.totalorder %s32, 3
      %p556 = pnand %p554, %p555
      %p557 = pneg %p556
      // Predicated region
      $region9: #{seg_rs_forward.1} parent=5 // pred_check
        _
      $region10: #{seg_rs_forward.1} parent=5 // pred_check_branch
        %559 = sbr.rel (%p556) target = $region12
      $region11: #{seg_rs_forward.1} parent=5 // pred_region
        %s560 = ssub.s32 %s32, 1
        // Predicated region
        $region13: #{seg_rs_forward.1} parent=11 // pred_check
          %p561 = pneg %p79
        $region14: #{seg_rs_forward.1} parent=11 // pred_check_branch
          %563 = sbr.rel (%p561) target = $region16
        $region15: #{seg_rs_forward.1} parent=11 // pred_region
          _
        $region16: #{seg_rs_forward.1} parent=11 // pred_fallthru
          _
        // Predicated region
        $region17: #{seg_rs_forward.1} parent=11 // pred_check
          %p564 = pneg %p100
        $region18: #{seg_rs_forward.1} parent=11 // pred_check_branch
          %566 = sbr.rel (%p564) target = $region20
        $region19: #{seg_rs_forward.1} parent=11 // pred_region
          _
        $region20: #{seg_rs_forward.1} parent=11 // pred_fallthru
          _
        // Predicated region
        $region21: #{seg_rs_forward.1} parent=11 // pred_check
          %p567 = pneg %p121
        $region22: #{seg_rs_forward.1} parent=11 // pred_check_branch
          %569 = sbr.rel (%p567) target = $region24
        $region23: #{seg_rs_forward.1} parent=11 // pred_region
          _
        $region24: #{seg_rs_forward.1} parent=11 // pred_fallthru
          _
        // Predicated region
        $region25: #{seg_rs_forward.1} parent=11 // pred_check
          %p570 = pneg %p142
        $region26: #{seg_rs_forward.1} parent=11 // pred_check_branch
          %572 = sbr.rel (%p570) target = $region28
        $region27: #{seg_rs_forward.1} parent=11 // pred_region
          %s574 = ssub.s32 512, 512
          %575 = vsyncadd [#allocation3], %s574
          %s576 = sshll.u32 [#allocation2], 4
          %s577 = int_to_ptr.vmem [resolvable:$true] %s576
          %582 = dma.hbm_to_vmem [thread:$0]  %s4, 512, %s577, [#allocation3], 256, 256, 16
        $region28: #{seg_rs_forward.1} parent=11 // pred_fallthru
          _
        // Predicated region
        $region29: #{seg_rs_forward.1} parent=11 // pred_check
          %p583 = pneg %p163
        $region30: #{seg_rs_forward.1} parent=11 // pred_check_branch
          %585 = sbr.rel (%p583) target = $region32
        $region31: #{seg_rs_forward.1} parent=11 // pred_region
          _
        $region32: #{seg_rs_forward.1} parent=11 // pred_fallthru
          _
        // Predicated region
        $region33: #{seg_rs_forward.1} parent=11 // pred_check
          %p586 = pneg %p184
        $region34: #{seg_rs_forward.1} parent=11 // pred_check_branch
          %588 = sbr.rel (%p586) target = $region36
        $region35: #{seg_rs_forward.1} parent=11 // pred_region
          %s590 = ssub.s32 512, 512
          %591 = vsyncadd [#allocation5], %s590
          %s592 = sshll.u32 [#allocation4], 4
          %s593 = int_to_ptr.vmem [resolvable:$true] %s592
          %598 = dma.hbm_to_vmem [thread:$0]  %s6, 512, %s593, [#allocation5], 256, 256, 16
        $region36: #{seg_rs_forward.1} parent=11 // pred_fallthru
          _
        // Predicated region
        $region37: #{seg_rs_forward.1} parent=11 // pred_check
          %p599 = pneg %p205
        $region38: #{seg_rs_forward.1} parent=11 // pred_check_branch
          %601 = sbr.rel (%p599) target = $region40
        $region39: #{seg_rs_forward.1} parent=11 // pred_region
          _
        $region40: #{seg_rs_forward.1} parent=11 // pred_fallthru
          _
        // Predicated region
        $region41: #{seg_rs_forward.1} parent=11 // pred_check
          %p602 = pneg %p226
        $region42: #{seg_rs_forward.1} parent=11 // pred_check_branch
          %604 = sbr.rel (%p602) target = $region44
        $region43: #{seg_rs_forward.1} parent=11 // pred_region
          _
        $region44: #{seg_rs_forward.1} parent=11 // pred_fallthru
          _
        // Predicated region
        $region45: #{seg_rs_forward.1} parent=11 // pred_check
          %p605 = pneg %p247
        $region46: #{seg_rs_forward.1} parent=11 // pred_check_branch
          %607 = sbr.rel (%p605) target = $region48
        $region47: #{seg_rs_forward.1} parent=11 // pred_region
          %s609 = ssub.s32 32, 32
          %610 = vsyncadd [#allocation5], %s609
          %s612 = sshll.u32 [#allocation6], 4
          %s613 = int_to_ptr.vmem [resolvable:$true] %s612
          %615 = dma.hbm_to_vmem [thread:$0]  %s9, 32, %s613, [#allocation5]
        $region48: #{seg_rs_forward.1} parent=11 // pred_fallthru
          _
        // Predicated region
        $region49: #{seg_rs_forward.1} parent=11 // pred_check
          %p616 = pneg %p268
        $region50: #{seg_rs_forward.1} parent=11 // pred_check_branch
          %618 = sbr.rel (%p616) target = $region52
        $region51: #{seg_rs_forward.1} parent=11 // pred_region
          _
        $region52: #{seg_rs_forward.1} parent=11 // pred_fallthru
          _
        // Predicated region
        $region53: #{seg_rs_forward.1} parent=11 // pred_check
          %p619 = pneg %p289
        $region54: #{seg_rs_forward.1} parent=11 // pred_check_branch
          %621 = sbr.rel (%p619) target = $region56
        $region55: #{seg_rs_forward.1} parent=11 // pred_region
          %s623 = ssub.s32 32, 32
          %624 = vsyncadd [#allocation8], %s623
          %s626 = sshll.u32 [#allocation7], 4
          %s627 = int_to_ptr.vmem [resolvable:$true] %s626
          %629 = dma.hbm_to_vmem [thread:$0]  %s11, 32, %s627, [#allocation8]
        $region56: #{seg_rs_forward.1} parent=11 // pred_fallthru
          _
        // Predicated region
        $region57: #{seg_rs_forward.1} parent=11 // pred_check
          %p630 = pneg %p310
        $region58: #{seg_rs_forward.1} parent=11 // pred_check_branch
          %632 = sbr.rel (%p630) target = $region60
        $region59: #{seg_rs_forward.1} parent=11 // pred_region
          _
        $region60: #{seg_rs_forward.1} parent=11 // pred_fallthru
          _
        // Predicated region
        $region61: #{seg_rs_forward.1} parent=11 // pred_check
          %p633 = pneg %p331
        $region62: #{seg_rs_forward.1} parent=11 // pred_check_branch
          %635 = sbr.rel (%p633) target = $region64
        $region63: #{seg_rs_forward.1} parent=11 // pred_region
          _
        $region64: #{seg_rs_forward.1} parent=11 // pred_fallthru
          _
        // Predicated region
        $region65: #{seg_rs_forward.1} parent=11 // pred_check
          %p636 = pneg %p352
        $region66: #{seg_rs_forward.1} parent=11 // pred_check_branch
          %638 = sbr.rel (%p636) target = $region68
        $region67: #{seg_rs_forward.1} parent=11 // pred_region
          _
        $region68: #{seg_rs_forward.1} parent=11 // pred_fallthru
          _
        // Predicated region
        $region69: #{seg_rs_forward.1} parent=11 // pred_check
          %p639 = pneg %p373
        $region70: #{seg_rs_forward.1} parent=11 // pred_check_branch
          %641 = sbr.rel (%p639) target = $region72
        $region71: #{seg_rs_forward.1} parent=11 // pred_region
          _
        $region72: #{seg_rs_forward.1} parent=11 // pred_fallthru
          _
        // Predicated region
        $region73: #{seg_rs_forward.1} parent=11 // pred_check
          %p642 = pneg %p394
        $region74: #{seg_rs_forward.1} parent=11 // pred_check_branch
          %644 = sbr.rel (%p642) target = $region76
        $region75: #{seg_rs_forward.1} parent=11 // pred_region
          _
        $region76: #{seg_rs_forward.1} parent=11 // pred_fallthru
          _
        // Predicated region
        $region77: #{seg_rs_forward.1} parent=11 // pred_check
          %p645 = pneg %p415
        $region78: #{seg_rs_forward.1} parent=11 // pred_check_branch
          %647 = sbr.rel (%p645) target = $region80
        $region79: #{seg_rs_forward.1} parent=11 // pred_region
          _
        $region80: #{seg_rs_forward.1} parent=11 // pred_fallthru
          _
        // Predicated region
        $region81: #{seg_rs_forward.1} parent=11 // pred_check
          %p648 = pneg %p436
        $region82: #{seg_rs_forward.1} parent=11 // pred_check_branch
          %650 = sbr.rel (%p648) target = $region84
        $region83: #{seg_rs_forward.1} parent=11 // pred_region
          _
        $region84: #{seg_rs_forward.1} parent=11 // pred_fallthru
          _
        // Predicated region
        $region85: #{seg_rs_forward.1} parent=11 // pred_check
          %p651 = pneg %p457
        $region86: #{seg_rs_forward.1} parent=11 // pred_check_branch
          %653 = sbr.rel (%p651) target = $region88
        $region87: #{seg_rs_forward.1} parent=11 // pred_region
          _
        $region88: #{seg_rs_forward.1} parent=11 // pred_fallthru
          _
        // Predicated region
        $region89: #{seg_rs_forward.1} parent=11 // pred_check
          %p654 = pneg %p478
        $region90: #{seg_rs_forward.1} parent=11 // pred_check_branch
          %656 = sbr.rel (%p654) target = $region92
        $region91: #{seg_rs_forward.1} parent=11 // pred_region
          _
        $region92: #{seg_rs_forward.1} parent=11 // pred_fallthru
          _
        // Predicated region
        $region93: #{seg_rs_forward.1} parent=11 // pred_check
          %p657 = pneg %p499
        $region94: #{seg_rs_forward.1} parent=11 // pred_check_branch
          %659 = sbr.rel (%p657) target = $region96
        $region95: #{seg_rs_forward.1} parent=11 // pred_region
          %s661 = ssub.s32 64, 64
          %662 = vsyncadd [#allocation8], %s661
          %s664 = sshll.u32 [#allocation9], 4
          %s665 = int_to_ptr.vmem [resolvable:$true] %s664
          %667 = dma.hbm_to_vmem [thread:$0]  %s21, 64, %s665, [#allocation8]
        $region96: #{seg_rs_forward.1} parent=11 // pred_fallthru
          _
        // Predicated region
        $region97: #{seg_rs_forward.1} parent=11 // pred_check
          %p668 = pneg %p520
        $region98: #{seg_rs_forward.1} parent=11 // pred_check_branch
          %670 = sbr.rel (%p668) target = $region100
        $region99: #{seg_rs_forward.1} parent=11 // pred_region
          _
        $region100: #{seg_rs_forward.1} parent=11 // pred_fallthru
          _
      $region12: #{seg_rs_forward.1} parent=5 // pred_fallthru
        _
      %p671 = scmp.lt.s32.totalorder %s32, 2
      // Predicated region
      $region101: #{seg_rs_forward.1} parent=5 // pred_check
        %p672 = pneg %p671
      $region102: #{seg_rs_forward.1} parent=5 // pred_check_branch
        %674 = sbr.rel (%p672) target = $region104
      $region103: #{seg_rs_forward.1} parent=5 // pred_region
        // Predicated region
        $region105: #{seg_rs_forward.1} parent=103 // pred_check
          %p675 = pneg %p52
        $region106: #{seg_rs_forward.1} parent=103 // pred_check_branch
          %677 = sbr.rel (%p675) target = $region108
        $region107: #{seg_rs_forward.1} parent=103 // pred_region
          %p678 = scmp.lt.s32.totalorder %s32, 1
          %s679 = scalar_select %p678, %s32, 1
          %s680 = smul.addr %s679, 2
          %s681 = smul.addr %s680, 4
          %s682 = scalar_lea.vmem %s0, %s681
        $region108: #{seg_rs_forward.1} parent=103 // pred_fallthru
          _
      $region104: #{seg_rs_forward.1} parent=5 // pred_fallthru
        _
      %p683 = scmp.le.s32.totalorder 1, %s32
      %p684 = scmp.lt.s32.totalorder %s32, 3
      %p685 = pnand %p683, %p684
      %p686 = pneg %p685
      // Predicated region
      $region109: #{seg_rs_forward.1} parent=5 // pred_check
        _
      $region110: #{seg_rs_forward.1} parent=5 // pred_check_branch
        %688 = sbr.rel (%p685) target = $region112
      $region111: #{seg_rs_forward.1} parent=5 // pred_region
        %s689 = ssub.s32 %s32, 1
        // Predicated region
        $region113: #{seg_rs_forward.1} parent=111 // pred_check
          %p690 = pneg %p142
        $region114: #{seg_rs_forward.1} parent=111 // pred_check_branch
          %692 = sbr.rel (%p690) target = $region116
        $region115: #{seg_rs_forward.1} parent=111 // pred_region
          %693 = dma.done [#allocation3], 512
        $region116: #{seg_rs_forward.1} parent=111 // pred_fallthru
          _
        // Predicated region
        $region117: #{seg_rs_forward.1} parent=111 // pred_check
          %p694 = pneg %p184
        $region118: #{seg_rs_forward.1} parent=111 // pred_check_branch
          %696 = sbr.rel (%p694) target = $region120
        $region119: #{seg_rs_forward.1} parent=111 // pred_region
          %697 = dma.done [#allocation5], 512
        $region120: #{seg_rs_forward.1} parent=111 // pred_fallthru
          _
        // Predicated region
        $region121: #{seg_rs_forward.1} parent=111 // pred_check
          %p698 = pneg %p247
        $region122: #{seg_rs_forward.1} parent=111 // pred_check_branch
          %700 = sbr.rel (%p698) target = $region124
        $region123: #{seg_rs_forward.1} parent=111 // pred_region
          %701 = dma.done [#allocation5], 32
        $region124: #{seg_rs_forward.1} parent=111 // pred_fallthru
          _
        // Predicated region
        $region125: #{seg_rs_forward.1} parent=111 // pred_check
          %p702 = pneg %p289
        $region126: #{seg_rs_forward.1} parent=111 // pred_check_branch
          %704 = sbr.rel (%p702) target = $region128
        $region127: #{seg_rs_forward.1} parent=111 // pred_region
          %705 = dma.done [#allocation8], 32
        $region128: #{seg_rs_forward.1} parent=111 // pred_fallthru
          _
        // Predicated region
        $region129: #{seg_rs_forward.1} parent=111 // pred_check
          %p706 = pneg %p499
        $region130: #{seg_rs_forward.1} parent=111 // pred_check_branch
          %708 = sbr.rel (%p706) target = $region132
        $region131: #{seg_rs_forward.1} parent=111 // pred_region
          %709 = dma.done [#allocation8], 64
        $region132: #{seg_rs_forward.1} parent=111 // pred_fallthru
          _
        %p710 = scmp.lt.s32.totalorder %s37, 1
        %s711 = scalar_select %p710, %s37, 1
        %s712 = smul.addr %s711, 2
        %s713 = smul.addr %s712, 4
        %s714 = scalar_lea.vmem %s0, %s713
        %p715 = pneg %p58
        %p716 = pneg %p55
        %p717 = pneg %p79
        %p718 = pneg %p76
        %p719 = pneg %p100
        %p720 = pneg %p97
        %p721 = pneg %p121
        %p722 = pneg %p118
        %p723 = pneg %p142
        %p724 = pneg %p139
        %p725 = pneg %p163
        %p726 = pneg %p160
        %p727 = pneg %p184
        %p728 = pneg %p181
        %p729 = pneg %p205
        %p730 = pneg %p202
        %p731 = pneg %p226
        %p732 = pneg %p223
        %p733 = pneg %p247
        %p734 = pneg %p244
        %p735 = pneg %p268
        %p736 = pneg %p265
        %p737 = pneg %p289
        %p738 = pneg %p286
        %p739 = pneg %p310
        %p740 = pneg %p307
        %p741 = pneg %p331
        %p742 = pneg %p328
        %p743 = pneg %p352
        %p744 = pneg %p349
        %p745 = pneg %p373
        %p746 = pneg %p370
        %p747 = pneg %p394
        %p748 = pneg %p391
        %p749 = pneg %p415
        %p750 = pneg %p412
        %p751 = pneg %p436
        %p752 = pneg %p433
        %p753 = pneg %p457
        %p754 = pneg %p454
        %p755 = pneg %p478
        %p756 = pneg %p475
        %p757 = pneg %p499
        %p758 = pneg %p496
        %p759 = pneg %p520
        %p760 = pneg %p517
        %p761 = pneg %p546
        %p762 = pneg %p543
        %p763 = scmp.lt.s32.totalorder %s37, 1
        %s764 = scalar_select %p763, %s37, 1
        %s765 = smul.addr %s764, 2
        %s766 = smul.addr %s765, 4
        %s767 = scalar_lea.vmem %s23, %s766
        %p768 = scmp.lt.s32.totalorder %s37, 1
        %s769 = scalar_select %p768, %s37, 1
        %s770 = smul.addr %s769, 2
        %s771 = smul.addr %s770, 4
        %s772 = scalar_lea.vmem %s0, %s771
        %p773 = scmp.lt.s32.totalorder %s37, 1
        %s774 = scalar_select %p773, %s37, 1
        %s775 = smul.addr %s774, 2
        %s776 = smul.addr %s775, 4
        %s777 = scalar_lea.vmem %s23, %s776
        %v778 = vld [vmem:[#allocation4] sm:$0xff]
        %v779 = vld [vmem:[#allocation4 + $0x8] sm:$0xff]
        %v780 = vld [vmem:[#allocation4 + $0x10] sm:$0x1]
        %v781 = vld [vmem:[#allocation4 + $0x18] sm:$0x1]
        %v782 = vld [vmem:[%s2] sm:$0xff]
        %v783 = vld [vmem:[%s2 + $0x8] sm:$0xff]
        %v784 = vld [vmem:[%s2 + $0x10] sm:$0xff]
        %v785 = vld [vmem:[%s2 + $0x18] sm:$0xff]
        %v786 = vld [vmem:[%s2 + $0x20] sm:$0xff]
        %v787 = vld [vmem:[%s2 + $0x28] sm:$0xff]
        %v788 = vld [vmem:[%s2 + $0x30] sm:$0xff]
        %v789 = vld [vmem:[%s2 + $0x38] sm:$0xff]
        %v790 = vld [vmem:[%s2 + $0x40] sm:$0xff]
        %v791 = vld [vmem:[%s2 + $0x48] sm:$0xff]
        %v792 = vld [vmem:[%s2 + $0x50] sm:$0xff]
        %v793 = vld [vmem:[%s2 + $0x58] sm:$0xff]
        %v794 = vld [vmem:[%s2 + $0x60] sm:$0xff]
        %v795 = vld [vmem:[%s2 + $0x68] sm:$0xff]
        %v796 = vld [vmem:[%s2 + $0x70] sm:$0xff]
        %v797 = vld [vmem:[%s2 + $0x78] sm:$0xff]
        %v798 = vld [vmem:[%s2 + $0x80] sm:$0xff]
        %v799 = vld [vmem:[%s2 + $0x88] sm:$0xff]
        %v800 = vld [vmem:[%s2 + $0x90] sm:$0xff]
        %v801 = vld [vmem:[%s2 + $0x98] sm:$0xff]
        %v802 = vld [vmem:[%s2 + $0xa0] sm:$0xff]
        %v803 = vld [vmem:[%s2 + $0xa8] sm:$0xff]
        %v804 = vld [vmem:[%s2 + $0xb0] sm:$0xff]
        %v805 = vld [vmem:[%s2 + $0xb8] sm:$0xff]
        %v806 = vld [vmem:[%s2 + $0xc0] sm:$0xff]
        %v807 = vld [vmem:[%s2 + $0xc8] sm:$0xff]
        %v808 = vld [vmem:[%s2 + $0xd0] sm:$0xff]
        %v809 = vld [vmem:[%s2 + $0xd8] sm:$0xff]
        %v810 = vld [vmem:[%s2 + $0xe0] sm:$0xff]
        %v811 = vld [vmem:[%s2 + $0xe8] sm:$0xff]
        %v812 = vld [vmem:[%s2 + $0xf0] sm:$0xff]
        %v813 = vld [vmem:[%s2 + $0xf8] sm:$0xff]
        %v814 = vld [vmem:[%s3] sm:$0xff]
        %v815 = vld [vmem:[%s3 + $0x8] sm:$0xff]
        %v816 = vld [vmem:[%s3 + $0x10] sm:$0xff]
        %v817 = vld [vmem:[%s3 + $0x18] sm:$0xff]
        %v818 = vld [vmem:[%s3 + $0x20] sm:$0xff]
        %v819 = vld [vmem:[%s3 + $0x28] sm:$0xff]
        %v820 = vld [vmem:[%s3 + $0x30] sm:$0xff]
        %v821 = vld [vmem:[%s3 + $0x38] sm:$0xff]
        %v822 = vld [vmem:[%s3 + $0x40] sm:$0xff]
        %v823 = vld [vmem:[%s3 + $0x48] sm:$0xff]
        %v824 = vld [vmem:[%s3 + $0x50] sm:$0xff]
        %v825 = vld [vmem:[%s3 + $0x58] sm:$0xff]
        %v826 = vld [vmem:[%s3 + $0x60] sm:$0xff]
        %v827 = vld [vmem:[%s3 + $0x68] sm:$0xff]
        %v828 = vld [vmem:[%s3 + $0x70] sm:$0xff]
        %v829 = vld [vmem:[%s3 + $0x78] sm:$0xff]
        %v830 = vld [vmem:[%s3 + $0x80] sm:$0xff]
        %v831 = vld [vmem:[%s3 + $0x88] sm:$0xff]
        %v832 = vld [vmem:[%s3 + $0x90] sm:$0xff]
        %v833 = vld [vmem:[%s3 + $0x98] sm:$0xff]
        %v834 = vld [vmem:[%s3 + $0xa0] sm:$0xff]
        %v835 = vld [vmem:[%s3 + $0xa8] sm:$0xff]
        %v836 = vld [vmem:[%s3 + $0xb0] sm:$0xff]
        %v837 = vld [vmem:[%s3 + $0xb8] sm:$0xff]
        %v838 = vld [vmem:[%s3 + $0xc0] sm:$0xff]
        %v839 = vld [vmem:[%s3 + $0xc8] sm:$0xff]
        %v840 = vld [vmem:[%s3 + $0xd0] sm:$0xff]
        %v841 = vld [vmem:[%s3 + $0xd8] sm:$0xff]
        %v842 = vld [vmem:[%s3 + $0xe0] sm:$0xff]
        %v843 = vld [vmem:[%s3 + $0xe8] sm:$0xff]
        %v844 = vld [vmem:[%s3 + $0xf0] sm:$0xff]
        %v845 = vld [vmem:[%s3 + $0xf8] sm:$0xff]
        %v846 = vld [vmem:[#allocation2] sm:$0xff]
        %v847 = vld [vmem:[#allocation2 + $0x8] sm:$0xff]
        %v848 = vld [vmem:[#allocation2 + $0x10] sm:$0xff]
        %v849 = vld [vmem:[#allocation2 + $0x18] sm:$0xff]
        %v850 = vld [vmem:[%s5] sm:$0xff]
        %v851 = vld [vmem:[%s5 + $0x8] sm:$0xff]
        %v852 = vld [vmem:[%s5 + $0x10] sm:$0xff]
        %v853 = vld [vmem:[%s5 + $0x18] sm:$0xff]
        %v854 = vld [vmem:[%s7] sm:$0xff]
        %v855 = vld [vmem:[%s7 + $0x8] sm:$0xff]
        %v856 = vld [vmem:[%s7 + $0x10] sm:$0xff]
        %v857 = vld [vmem:[%s7 + $0x18] sm:$0xff]
        %v858 = vld [vmem:[%s8] sm:$0xff]
        %v859 = vld [vmem:[%s8 + $0x8] sm:$0xff]
        %v860 = vld [vmem:[%s8 + $0x10] sm:$0xff]
        %v861 = vld [vmem:[%s8 + $0x18] sm:$0xff]
        %v862 = vld [vmem:[#allocation6] sm:$0x3]
        %v863 = vld [vmem:[%s10] sm:$0x3]
        %v864 = vld [vmem:[#allocation7] sm:$0x3]
        %v865 = vld [vmem:[%s12] sm:$0x3]
        %v866 = vld [vmem:[%s13] sm:$0x3]
        %v867 = vld [vmem:[%s14] sm:$0x3]
        %v868 = vld [vmem:[%s15] sm:$0x3]
        %v869 = vld [vmem:[%s15 + $0x2] sm:$0x3]
        %v870 = vld [vmem:[%s15 + $0x4] sm:$0x3]
        %v871 = vld [vmem:[%s15 + $0x6] sm:$0x3]
        %v872 = vld [vmem:[%s15 + $0x8] sm:$0x3]
        %v873 = vld [vmem:[%s15 + $0xa] sm:$0x3]
        %v874 = vld [vmem:[%s15 + $0xc] sm:$0x3]
        %v875 = vld [vmem:[%s15 + $0xe] sm:$0x3]
        %v876 = vld [vmem:[%s15 + $0x10] sm:$0x3]
        %v877 = vld [vmem:[%s16] sm:$0x3]
        %v878 = vld [vmem:[%s17] sm:$0xf]
        %v879 = vld [vmem:[%s17 + $0x4] sm:$0xf]
        %v880 = vld [vmem:[%s17 + $0x8] sm:$0xf]
        %v881 = vld [vmem:[%s17 + $0xc] sm:$0xf]
        %v882 = vld [vmem:[%s17 + $0x10] sm:$0xf]
        %v883 = vld [vmem:[%s17 + $0x14] sm:$0xf]
        %v884 = vld [vmem:[%s17 + $0x18] sm:$0xf]
        %v885 = vld [vmem:[%s17 + $0x1c] sm:$0xf]
        %v886 = vld [vmem:[%s17 + $0x20] sm:$0xf]
        %v887 = vld [vmem:[%s18] sm:$0xf]
        %v888 = vld [vmem:[%s19] sm:$0xf]
        %v889 = vld [vmem:[%s20] sm:$0xf]
        %v890 = vld [vmem:[#allocation9] sm:$0xf]
        %v891 = vld [vmem:[%s22] sm:$0xf]
        %v892 = vld [vmem:[%s772] sm:$0xff]
        %v893 = vld [vmem:[%s1] sm:$0xf]
        %v894 = vld [vmem:[%s1 + $0x4] sm:$0xf]
        %v895 = vld [vmem:[%s1 + $0x8] sm:$0xf]
        %v896 = vld [vmem:[%s1 + $0xc] sm:$0xf]
        %v897 = vld [vmem:[%s1 + $0x10] sm:$0xf]
        %v898 = vld [vmem:[%s1 + $0x14] sm:$0xf]
        %v899 = vld [vmem:[%s1 + $0x18] sm:$0xf]
        %v900 = vld [vmem:[%s1 + $0x1c] sm:$0xf]
        %v901 = vld [vmem:[%s1 + $0x20] sm:$0xf]
        %v903 = vcombine.high %v892, %v892
        %905 = vrot.lane.b32.xlu0 %v892, 17
        %v906 = vpop.permute.xlu0 %905
        %907 = vrot.lane.b32.xlu0 %v903, 17
        %v908 = vpop.permute.xlu0 %907
        %v909 = vlaneseq
        %v910 = vand.u32 %v909, 127
        %vm911 = vcmp.lt.s32.totalorder %v910, 17
        %v912 = vsel %vm911, %v906, %v908
        %v913 = vsel %vm911, %v908, %v906
        %v914 = vlaneseq
        %v915 = vshrl.u32 %v914, 7
        %v916 = vsub.s32 0, %v915
        %v917 = vrot.slane %v778, %v916
        %v918 = vlaneseq
        %v919 = vshrl.u32 %v918, 7
        %v920 = vsub.s32 0, %v919
        %v921 = vrot.slane %v779, %v920
        %v922 = vmul.f32 %v913, %v917
        %v923 = vmul.f32 %v912, %v921
        %924 = vrot.lane.b32.xlu0 %v892, 16
        %v925 = vpop.permute.xlu0 %924
        %926 = vrot.lane.b32.xlu0 %v903, 16
        %v927 = vpop.permute.xlu0 %926
        %vm928 = vcmp.lt.s32.totalorder %v910, 16
        %v929 = vsel %vm928, %v925, %v927
        %v930 = vsel %vm928, %v927, %v925
        %v931 = vlaneseq
        %v932 = vshrl.u32 %v931, 7
        %v933 = vsub.s32 1, %v932
        %v934 = vrot.slane %v778, %v933
        %v935 = vlaneseq
        %v936 = vshrl.u32 %v935, 7
        %v937 = vsub.s32 1, %v936
        %v938 = vrot.slane %v779, %v937
        %v939 = vmul.f32 %v930, %v934
        %v940 = vmul.f32 %v929, %v938
        %vm941 = vcmask 31744
        %v943 = vsel %vm941, %v894, 0
        %vm945 = vcmask 1043456
        %v947 = vsel %vm945, %v939, 0
        %v950 = vsel %vm945, %v940, 0
        %952 = vmatprep.subr.mxu0 %v950
        %953 = vmatpush1.msra.mxu0 %v947
        %954 = vmatprep.subr.mxu0 0.0
        %955 = vmatpush1.msra.mxu0 0.0
        %956 = vmatprep.subr.mxu0 0.0
        %957 = vmatpush1.msra.mxu0 0.0
        %958 = vmatprep.subr.mxu0 0.0
        %959 = vmatpush1.msra.mxu0 0.0
        %960 = vmatprep.subr.mxu0 0.0
        %961 = vmatpush1.msra.mxu0 0.0
        %962 = vmatprep.subr.mxu0 0.0
        %963 = vmatpush1.msra.mxu0 0.0
        %964 = vmatprep.subr.mxu0 0.0
        %965 = vmatpush1.msra.mxu0 0.0
        %966 = vmatprep.subr.mxu0 0.0
        %967 = vmatpush1.msra.mxu0 0.0
        %968 = vmatprep.subr.mxu0 0.0
        %969 = vmatpush1.msra.mxu0 0.0
        %970 = vmatprep.subr.mxu0 0.0
        %971 = vmatpush1.msra.mxu0 0.0
        %972 = vmatprep.subr.mxu0 0.0
        %973 = vmatpush1.msra.mxu0 0.0
        %974 = vmatprep.subr.mxu0 0.0
        %975 = vmatpush1.msra.mxu0 0.0
        %976 = vmatprep.subr.mxu0 0.0
        %977 = vmatpush1.msra.mxu0 0.0
        %978 = vmatprep.subr.mxu0 0.0
        %979 = vmatpush1.msra.mxu0 0.0
        %980 = vmatprep.subr.mxu0 0.0
        %981 = vmatpush1.msra.mxu0 0.0
        %982 = vmatprep.subr.mxu0 0.0
        %983 = vmatpush1.msra.mxu0 0.0
        %984 = vmatprep.subr.mxu0 0.0
        %985 = vmatpush1.msra.mxu0 0.0
        %986 = vmatprep.subr.mxu0 0.0
        %987 = vmatpush1.msra.mxu0 0.0
        %988 = vmatprep.subr.mxu0 0.0
        %989 = vmatpush1.msra.mxu0 0.0
        %990 = vmatprep.subr.mxu0 0.0
        %991 = vmatpush1.msra.mxu0 0.0
        %992 = vmatprep.subr.mxu0 0.0
        %993 = vmatpush1.msra.mxu0 0.0
        %994 = vmatprep.subr.mxu0 0.0
        %995 = vmatpush1.msra.mxu0 0.0
        %996 = vmatprep.subr.mxu0 0.0
        %997 = vmatpush1.msra.mxu0 0.0
        %998 = vmatprep.subr.mxu0 0.0
        %999 = vmatpush1.msra.mxu0 0.0
        %1000 = vmatprep.subr.mxu0 0.0
        %1001 = vmatpush1.msra.mxu0 0.0
        %1002 = vmatprep.subr.mxu0 0.0
        %1003 = vmatpush1.msra.mxu0 0.0
        %1004 = vmatprep.subr.mxu0 0.0
        %1005 = vmatpush1.msra.mxu0 0.0
        %1006 = vmatprep.subr.mxu0 0.0
        %1007 = vmatpush1.msra.mxu0 0.0
        %1008 = vmatprep.subr.mxu0 0.0
        %1009 = vmatpush1.msra.mxu0 0.0
        %1010 = vmatprep.subr.mxu0 0.0
        %1011 = vmatpush1.msra.mxu0 0.0
        %1012 = vmatprep.subr.mxu0 0.0
        %1013 = vmatpush1.msra.mxu0 0.0
        %1014 = vmatprep.subr.mxu0 0.0
        %1015 = vmatpush1.msra.mxu0 0.0
        %1016 = vmatprep.mubr.f32.mxu0 0.0
        %1017 = vmatmul.mubr.f32.gmra.mrb[0].mxu0 %v943
        %v1018 = vpop.f32.mrb[0].mxu0
        %v1019 = vadd.f32 0.0, %v1018
        %v1020 = vpop.f32.mrb[0].mxu0
        %v1021 = vadd.f32 0.0, %v1020
        %1022 = vdwg.mxu0
        %v1024 = vsel %vm941, %v893, 0
        %v1027 = vsel %vm945, %v922, 0
        %v1030 = vsel %vm945, %v923, 0
        %1032 = vmatprep.subr.mxu0 %v1030
        %1033 = vmatpush1.msra.mxu0 %v1027
        %1034 = vmatprep.subr.mxu0 0.0
        %1035 = vmatpush1.msra.mxu0 0.0
        %1036 = vmatprep.subr.mxu0 0.0
        %1037 = vmatpush1.msra.mxu0 0.0
        %1038 = vmatprep.subr.mxu0 0.0
        %1039 = vmatpush1.msra.mxu0 0.0
        %1040 = vmatprep.subr.mxu0 0.0
        %1041 = vmatpush1.msra.mxu0 0.0
        %1042 = vmatprep.subr.mxu0 0.0
        %1043 = vmatpush1.msra.mxu0 0.0
        %1044 = vmatprep.subr.mxu0 0.0
        %1045 = vmatpush1.msra.mxu0 0.0
        %1046 = vmatprep.subr.mxu0 0.0
        %1047 = vmatpush1.msra.mxu0 0.0
        %1048 = vmatprep.subr.mxu0 0.0
        %1049 = vmatpush1.msra.mxu0 0.0
        %1050 = vmatprep.subr.mxu0 0.0
        %1051 = vmatpush1.msra.mxu0 0.0
        %1052 = vmatprep.subr.mxu0 0.0
        %1053 = vmatpush1.msra.mxu0 0.0
        %1054 = vmatprep.subr.mxu0 0.0
        %1055 = vmatpush1.msra.mxu0 0.0
        %1056 = vmatprep.subr.mxu0 0.0
        %1057 = vmatpush1.msra.mxu0 0.0
        %1058 = vmatprep.subr.mxu0 0.0
        %1059 = vmatpush1.msra.mxu0 0.0
        %1060 = vmatprep.subr.mxu0 0.0
        %1061 = vmatpush1.msra.mxu0 0.0
        %1062 = vmatprep.subr.mxu0 0.0
        %1063 = vmatpush1.msra.mxu0 0.0
        %1064 = vmatprep.subr.mxu0 0.0
        %1065 = vmatpush1.msra.mxu0 0.0
        %1066 = vmatprep.subr.mxu0 0.0
        %1067 = vmatpush1.msra.mxu0 0.0
        %1068 = vmatprep.subr.mxu0 0.0
        %1069 = vmatpush1.msra.mxu0 0.0
        %1070 = vmatprep.subr.mxu0 0.0
        %1071 = vmatpush1.msra.mxu0 0.0
        %1072 = vmatprep.subr.mxu0 0.0
        %1073 = vmatpush1.msra.mxu0 0.0
        %1074 = vmatprep.subr.mxu0 0.0
        %1075 = vmatpush1.msra.mxu0 0.0
        %1076 = vmatprep.subr.mxu0 0.0
        %1077 = vmatpush1.msra.mxu0 0.0
        %1078 = vmatprep.subr.mxu0 0.0
        %1079 = vmatpush1.msra.mxu0 0.0
        %1080 = vmatprep.subr.mxu0 0.0
        %1081 = vmatpush1.msra.mxu0 0.0
        %1082 = vmatprep.subr.mxu0 0.0
        %1083 = vmatpush1.msra.mxu0 0.0
        %1084 = vmatprep.subr.mxu0 0.0
        %1085 = vmatpush1.msra.mxu0 0.0
        %1086 = vmatprep.subr.mxu0 0.0
        %1087 = vmatpush1.msra.mxu0 0.0
        %1088 = vmatprep.subr.mxu0 0.0
        %1089 = vmatpush1.msra.mxu0 0.0
        %1090 = vmatprep.subr.mxu0 0.0
        %1091 = vmatpush1.msra.mxu0 0.0
        %1092 = vmatprep.subr.mxu0 0.0
        %1093 = vmatpush1.msra.mxu0 0.0
        %1094 = vmatprep.subr.mxu0 0.0
        %1095 = vmatpush1.msra.mxu0 0.0
        %1096 = vmatprep.mubr.f32.mxu0 0.0
        %1097 = vmatmul.mubr.f32.gmra.mrb[0].mxu0 %v1024
        %v1098 = vpop.f32.mrb[0].mxu0
        %v1099 = vadd.f32 %v1019, %v1098
        %v1100 = vpop.f32.mrb[0].mxu0
        %v1101 = vadd.f32 %v1021, %v1100
        %1102 = vdwg.mxu0
        %1103 = vrot.lane.b32.xlu0 %v892, 15
        %v1104 = vpop.permute.xlu0 %1103
        %1105 = vrot.lane.b32.xlu0 %v903, 15
        %v1106 = vpop.permute.xlu0 %1105
        %vm1107 = vcmp.lt.s32.totalorder %v910, 15
        %v1108 = vsel %vm1107, %v1104, %v1106
        %v1109 = vsel %vm1107, %v1106, %v1104
        %v1110 = vlaneseq
        %v1111 = vshrl.u32 %v1110, 7
        %v1112 = vsub.s32 2, %v1111
        %v1113 = vrot.slane %v778, %v1112
        %v1114 = vlaneseq
        %v1115 = vshrl.u32 %v1114, 7
        %v1116 = vsub.s32 2, %v1115
        %v1117 = vrot.slane %v779, %v1116
        %v1118 = vmul.f32 %v1109, %v1113
        %v1119 = vmul.f32 %v1108, %v1117
        %v1121 = vsel %vm941, %v895, 0
        %v1124 = vsel %vm945, %v1118, 0
        %v1127 = vsel %vm945, %v1119, 0
        %1129 = vmatprep.subr.mxu0 %v1127
        %1130 = vmatpush1.msra.mxu0 %v1124
        %1131 = vmatprep.subr.mxu0 0.0
        %1132 = vmatpush1.msra.mxu0 0.0
        %1133 = vmatprep.subr.mxu0 0.0
        %1134 = vmatpush1.msra.mxu0 0.0
        %1135 = vmatprep.subr.mxu0 0.0
        %1136 = vmatpush1.msra.mxu0 0.0
        %1137 = vmatprep.subr.mxu0 0.0
        %1138 = vmatpush1.msra.mxu0 0.0
        %1139 = vmatprep.subr.mxu0 0.0
        %1140 = vmatpush1.msra.mxu0 0.0
        %1141 = vmatprep.subr.mxu0 0.0
        %1142 = vmatpush1.msra.mxu0 0.0
        %1143 = vmatprep.subr.mxu0 0.0
        %1144 = vmatpush1.msra.mxu0 0.0
        %1145 = vmatprep.subr.mxu0 0.0
        %1146 = vmatpush1.msra.mxu0 0.0
        %1147 = vmatprep.subr.mxu0 0.0
        %1148 = vmatpush1.msra.mxu0 0.0
        %1149 = vmatprep.subr.mxu0 0.0
        %1150 = vmatpush1.msra.mxu0 0.0
        %1151 = vmatprep.subr.mxu0 0.0
        %1152 = vmatpush1.msra.mxu0 0.0
        %1153 = vmatprep.subr.mxu0 0.0
        %1154 = vmatpush1.msra.mxu0 0.0
        %1155 = vmatprep.subr.mxu0 0.0
        %1156 = vmatpush1.msra.mxu0 0.0
        %1157 = vmatprep.subr.mxu0 0.0
        %1158 = vmatpush1.msra.mxu0 0.0
        %1159 = vmatprep.subr.mxu0 0.0
        %1160 = vmatpush1.msra.mxu0 0.0
        %1161 = vmatprep.subr.mxu0 0.0
        %1162 = vmatpush1.msra.mxu0 0.0
        %1163 = vmatprep.subr.mxu0 0.0
        %1164 = vmatpush1.msra.mxu0 0.0
        %1165 = vmatprep.subr.mxu0 0.0
        %1166 = vmatpush1.msra.mxu0 0.0
        %1167 = vmatprep.subr.mxu0 0.0
        %1168 = vmatpush1.msra.mxu0 0.0
        %1169 = vmatprep.subr.mxu0 0.0
        %1170 = vmatpush1.msra.mxu0 0.0
        %1171 = vmatprep.subr.mxu0 0.0
        %1172 = vmatpush1.msra.mxu0 0.0
        %1173 = vmatprep.subr.mxu0 0.0
        %1174 = vmatpush1.msra.mxu0 0.0
        %1175 = vmatprep.subr.mxu0 0.0
        %1176 = vmatpush1.msra.mxu0 0.0
        %1177 = vmatprep.subr.mxu0 0.0
        %1178 = vmatpush1.msra.mxu0 0.0
        %1179 = vmatprep.subr.mxu0 0.0
        %1180 = vmatpush1.msra.mxu0 0.0
        %1181 = vmatprep.subr.mxu0 0.0
        %1182 = vmatpush1.msra.mxu0 0.0
        %1183 = vmatprep.subr.mxu0 0.0
        %1184 = vmatpush1.msra.mxu0 0.0
        %1185 = vmatprep.subr.mxu0 0.0
        %1186 = vmatpush1.msra.mxu0 0.0
        %1187 = vmatprep.subr.mxu0 0.0
        %1188 = vmatpush1.msra.mxu0 0.0
        %1189 = vmatprep.subr.mxu0 0.0
        %1190 = vmatpush1.msra.mxu0 0.0
        %1191 = vmatprep.subr.mxu0 0.0
        %1192 = vmatpush1.msra.mxu0 0.0
        %1193 = vmatprep.mubr.f32.mxu0 0.0
        %1194 = vmatmul.mubr.f32.gmra.mrb[0].mxu0 %v1121
        %v1195 = vpop.f32.mrb[0].mxu0
        %v1196 = vadd.f32 0.0, %v1195
        %v1197 = vpop.f32.mrb[0].mxu0
        %v1198 = vadd.f32 0.0, %v1197
        %1199 = vdwg.mxu0
        %v1200 = vadd.f32 %v1099, %v1196
        %v1201 = vadd.f32 %v1101, %v1198
        %1202 = vrot.lane.b32.xlu0 %v892, 1
        %v1203 = vpop.permute.xlu0 %1202
        %1204 = vrot.lane.b32.xlu0 %v903, 1
        %v1205 = vpop.permute.xlu0 %1204
        %vm1206 = vcmp.lt.s32.totalorder %v910, 1
        %v1207 = vsel %vm1206, %v1203, %v1205
        %v1208 = vsel %vm1206, %v1205, %v1203
        %v1209 = vlaneseq
        %v1210 = vshrl.u32 %v1209, 7
        %v1211 = vsub.s32 3, %v1210
        %v1212 = vrot.slane %v778, %v1211
        %v1213 = vlaneseq
        %v1214 = vshrl.u32 %v1213, 7
        %v1215 = vsub.s32 3, %v1214
        %v1216 = vrot.slane %v779, %v1215
        %v1217 = vmul.f32 %v1208, %v1212
        %v1218 = vmul.f32 %v1207, %v1216
        %v1220 = vsel %vm941, %v896, 0
        %v1223 = vsel %vm945, %v1217, 0
        %v1226 = vsel %vm945, %v1218, 0
        %1228 = vmatprep.subr.mxu0 %v1226
        %1229 = vmatpush1.msra.mxu0 %v1223
        %1230 = vmatprep.subr.mxu0 0.0
        %1231 = vmatpush1.msra.mxu0 0.0
        %1232 = vmatprep.subr.mxu0 0.0
        %1233 = vmatpush1.msra.mxu0 0.0
        %1234 = vmatprep.subr.mxu0 0.0
        %1235 = vmatpush1.msra.mxu0 0.0
        %1236 = vmatprep.subr.mxu0 0.0
        %1237 = vmatpush1.msra.mxu0 0.0
        %1238 = vmatprep.subr.mxu0 0.0
        %1239 = vmatpush1.msra.mxu0 0.0
        %1240 = vmatprep.subr.mxu0 0.0
        %1241 = vmatpush1.msra.mxu0 0.0
        %1242 = vmatprep.subr.mxu0 0.0
        %1243 = vmatpush1.msra.mxu0 0.0
        %1244 = vmatprep.subr.mxu0 0.0
        %1245 = vmatpush1.msra.mxu0 0.0
        %1246 = vmatprep.subr.mxu0 0.0
        %1247 = vmatpush1.msra.mxu0 0.0
        %1248 = vmatprep.subr.mxu0 0.0
        %1249 = vmatpush1.msra.mxu0 0.0
        %1250 = vmatprep.subr.mxu0 0.0
        %1251 = vmatpush1.msra.mxu0 0.0
        %1252 = vmatprep.subr.mxu0 0.0
        %1253 = vmatpush1.msra.mxu0 0.0
        %1254 = vmatprep.subr.mxu0 0.0
        %1255 = vmatpush1.msra.mxu0 0.0
        %1256 = vmatprep.subr.mxu0 0.0
        %1257 = vmatpush1.msra.mxu0 0.0
        %1258 = vmatprep.subr.mxu0 0.0
        %1259 = vmatpush1.msra.mxu0 0.0
        %1260 = vmatprep.subr.mxu0 0.0
        %1261 = vmatpush1.msra.mxu0 0.0
        %1262 = vmatprep.subr.mxu0 0.0
        %1263 = vmatpush1.msra.mxu0 0.0
        %1264 = vmatprep.subr.mxu0 0.0
        %1265 = vmatpush1.msra.mxu0 0.0
        %1266 = vmatprep.subr.mxu0 0.0
        %1267 = vmatpush1.msra.mxu0 0.0
        %1268 = vmatprep.subr.mxu0 0.0
        %1269 = vmatpush1.msra.mxu0 0.0
        %1270 = vmatprep.subr.mxu0 0.0
        %1271 = vmatpush1.msra.mxu0 0.0
        %1272 = vmatprep.subr.mxu0 0.0
        %1273 = vmatpush1.msra.mxu0 0.0
        %1274 = vmatprep.subr.mxu0 0.0
        %1275 = vmatpush1.msra.mxu0 0.0
        %1276 = vmatprep.subr.mxu0 0.0
        %1277 = vmatpush1.msra.mxu0 0.0
        %1278 = vmatprep.subr.mxu0 0.0
        %1279 = vmatpush1.msra.mxu0 0.0
        %1280 = vmatprep.subr.mxu0 0.0
        %1281 = vmatpush1.msra.mxu0 0.0
        %1282 = vmatprep.subr.mxu0 0.0
        %1283 = vmatpush1.msra.mxu0 0.0
        %1284 = vmatprep.subr.mxu0 0.0
        %1285 = vmatpush1.msra.mxu0 0.0
        %1286 = vmatprep.subr.mxu0 0.0
        %1287 = vmatpush1.msra.mxu0 0.0
        %1288 = vmatprep.subr.mxu0 0.0
        %1289 = vmatpush1.msra.mxu0 0.0
        %1290 = vmatprep.subr.mxu0 0.0
        %1291 = vmatpush1.msra.mxu0 0.0
        %1292 = vmatprep.mubr.f32.mxu0 0.0
        %1293 = vmatmul.mubr.f32.gmra.mrb[0].mxu0 %v1220
        %v1294 = vpop.f32.mrb[0].mxu0
        %v1295 = vadd.f32 0.0, %v1294
        %v1296 = vpop.f32.mrb[0].mxu0
        %v1297 = vadd.f32 0.0, %v1296
        %1298 = vdwg.mxu0
        %v1299 = vadd.f32 %v1200, %v1295
        %v1300 = vadd.f32 %v1201, %v1297
        %v1302 = vsel %vm941, %v897, 0
        %v1304 = vsel %vm945, %v892, 0
        %v1306 = vsel %vm945, %v903, 0
        %1308 = vmatprep.subr.mxu0 %v1306
        %1309 = vmatpush1.msra.mxu0 %v1304
        %1310 = vmatprep.subr.mxu0 0.0
        %1311 = vmatpush1.msra.mxu0 0.0
        %1312 = vmatprep.subr.mxu0 0.0
        %1313 = vmatpush1.msra.mxu0 0.0
        %1314 = vmatprep.subr.mxu0 0.0
        %1315 = vmatpush1.msra.mxu0 0.0
        %1316 = vmatprep.subr.mxu0 0.0
        %1317 = vmatpush1.msra.mxu0 0.0
        %1318 = vmatprep.subr.mxu0 0.0
        %1319 = vmatpush1.msra.mxu0 0.0
        %1320 = vmatprep.subr.mxu0 0.0
        %1321 = vmatpush1.msra.mxu0 0.0
        %1322 = vmatprep.subr.mxu0 0.0
        %1323 = vmatpush1.msra.mxu0 0.0
        %1324 = vmatprep.subr.mxu0 0.0
        %1325 = vmatpush1.msra.mxu0 0.0
        %1326 = vmatprep.subr.mxu0 0.0
        %1327 = vmatpush1.msra.mxu0 0.0
        %1328 = vmatprep.subr.mxu0 0.0
        %1329 = vmatpush1.msra.mxu0 0.0
        %1330 = vmatprep.subr.mxu0 0.0
        %1331 = vmatpush1.msra.mxu0 0.0
        %1332 = vmatprep.subr.mxu0 0.0
        %1333 = vmatpush1.msra.mxu0 0.0
        %1334 = vmatprep.subr.mxu0 0.0
        %1335 = vmatpush1.msra.mxu0 0.0
        %1336 = vmatprep.subr.mxu0 0.0
        %1337 = vmatpush1.msra.mxu0 0.0
        %1338 = vmatprep.subr.mxu0 0.0
        %1339 = vmatpush1.msra.mxu0 0.0
        %1340 = vmatprep.subr.mxu0 0.0
        %1341 = vmatpush1.msra.mxu0 0.0
        %1342 = vmatprep.subr.mxu0 0.0
        %1343 = vmatpush1.msra.mxu0 0.0
        %1344 = vmatprep.subr.mxu0 0.0
        %1345 = vmatpush1.msra.mxu0 0.0
        %1346 = vmatprep.subr.mxu0 0.0
        %1347 = vmatpush1.msra.mxu0 0.0
        %1348 = vmatprep.subr.mxu0 0.0
        %1349 = vmatpush1.msra.mxu0 0.0
        %1350 = vmatprep.subr.mxu0 0.0
        %1351 = vmatpush1.msra.mxu0 0.0
        %1352 = vmatprep.subr.mxu0 0.0
        %1353 = vmatpush1.msra.mxu0 0.0
        %1354 = vmatprep.subr.mxu0 0.0
        %1355 = vmatpush1.msra.mxu0 0.0
        %1356 = vmatprep.subr.mxu0 0.0
        %1357 = vmatpush1.msra.mxu0 0.0
        %1358 = vmatprep.subr.mxu0 0.0
        %1359 = vmatpush1.msra.mxu0 0.0
        %1360 = vmatprep.subr.mxu0 0.0
        %1361 = vmatpush1.msra.mxu0 0.0
        %1362 = vmatprep.subr.mxu0 0.0
        %1363 = vmatpush1.msra.mxu0 0.0
        %1364 = vmatprep.subr.mxu0 0.0
        %1365 = vmatpush1.msra.mxu0 0.0
        %1366 = vmatprep.subr.mxu0 0.0
        %1367 = vmatpush1.msra.mxu0 0.0
        %1368 = vmatprep.subr.mxu0 0.0
        %1369 = vmatpush1.msra.mxu0 0.0
        %1370 = vmatprep.subr.mxu0 0.0
        %1371 = vmatpush1.msra.mxu0 0.0
        %1372 = vmatprep.mubr.f32.mxu0 0.0
        %1373 = vmatmul.mubr.f32.gmra.mrb[0].mxu0 %v1302
        %v1374 = vpop.f32.mrb[0].mxu0
        %v1375 = vadd.f32 0.0, %v1374
        %v1376 = vpop.f32.mrb[0].mxu0
        %v1377 = vadd.f32 0.0, %v1376
        %1378 = vdwg.mxu0
        %v1379 = vadd.f32 %v1299, %v1375
        %v1380 = vadd.f32 %v1300, %v1377
        %1381 = vrot.lane.b32.xlu0 %v892, 127
        %v1382 = vpop.permute.xlu0 %1381
        %1383 = vrot.lane.b32.xlu0 %v903, 127
        %v1384 = vpop.permute.xlu0 %1383
        %vm1385 = vcmp.lt.s32.totalorder %v910, 127
        %v1386 = vsel %vm1385, %v1382, %v1384
        %v1387 = vsel %vm1385, %v1384, %v1382
        %v1388 = vlaneseq
        %v1389 = vshrl.u32 %v1388, 7
        %v1390 = vsub.s32 5, %v1389
        %v1391 = vrot.slane %v778, %v1390
        %v1392 = vlaneseq
        %v1393 = vshrl.u32 %v1392, 7
        %v1394 = vsub.s32 5, %v1393
        %v1395 = vrot.slane %v779, %v1394
        %v1396 = vmul.f32 %v1386, %v1391
        %v1397 = vmul.f32 %v1387, %v1395
        %v1399 = vsel %vm941, %v898, 0
        %v1402 = vsel %vm945, %v1396, 0
        %v1405 = vsel %vm945, %v1397, 0
        %1407 = vmatprep.subr.mxu0 %v1405
        %1408 = vmatpush1.msra.mxu0 %v1402
        %1409 = vmatprep.subr.mxu0 0.0
        %1410 = vmatpush1.msra.mxu0 0.0
        %1411 = vmatprep.subr.mxu0 0.0
        %1412 = vmatpush1.msra.mxu0 0.0
        %1413 = vmatprep.subr.mxu0 0.0
        %1414 = vmatpush1.msra.mxu0 0.0
        %1415 = vmatprep.subr.mxu0 0.0
        %1416 = vmatpush1.msra.mxu0 0.0
        %1417 = vmatprep.subr.mxu0 0.0
        %1418 = vmatpush1.msra.mxu0 0.0
        %1419 = vmatprep.subr.mxu0 0.0
        %1420 = vmatpush1.msra.mxu0 0.0
        %1421 = vmatprep.subr.mxu0 0.0
        %1422 = vmatpush1.msra.mxu0 0.0
        %1423 = vmatprep.subr.mxu0 0.0
        %1424 = vmatpush1.msra.mxu0 0.0
        %1425 = vmatprep.subr.mxu0 0.0
        %1426 = vmatpush1.msra.mxu0 0.0
        %1427 = vmatprep.subr.mxu0 0.0
        %1428 = vmatpush1.msra.mxu0 0.0
        %1429 = vmatprep.subr.mxu0 0.0
        %1430 = vmatpush1.msra.mxu0 0.0
        %1431 = vmatprep.subr.mxu0 0.0
        %1432 = vmatpush1.msra.mxu0 0.0
        %1433 = vmatprep.subr.mxu0 0.0
        %1434 = vmatpush1.msra.mxu0 0.0
        %1435 = vmatprep.subr.mxu0 0.0
        %1436 = vmatpush1.msra.mxu0 0.0
        %1437 = vmatprep.subr.mxu0 0.0
        %1438 = vmatpush1.msra.mxu0 0.0
        %1439 = vmatprep.subr.mxu0 0.0
        %1440 = vmatpush1.msra.mxu0 0.0
        %1441 = vmatprep.subr.mxu0 0.0
        %1442 = vmatpush1.msra.mxu0 0.0
        %1443 = vmatprep.subr.mxu0 0.0
        %1444 = vmatpush1.msra.mxu0 0.0
        %1445 = vmatprep.subr.mxu0 0.0
        %1446 = vmatpush1.msra.mxu0 0.0
        %1447 = vmatprep.subr.mxu0 0.0
        %1448 = vmatpush1.msra.mxu0 0.0
        %1449 = vmatprep.subr.mxu0 0.0
        %1450 = vmatpush1.msra.mxu0 0.0
        %1451 = vmatprep.subr.mxu0 0.0
        %1452 = vmatpush1.msra.mxu0 0.0
        %1453 = vmatprep.subr.mxu0 0.0
        %1454 = vmatpush1.msra.mxu0 0.0
        %1455 = vmatprep.subr.mxu0 0.0
        %1456 = vmatpush1.msra.mxu0 0.0
        %1457 = vmatprep.subr.mxu0 0.0
        %1458 = vmatpush1.msra.mxu0 0.0
        %1459 = vmatprep.subr.mxu0 0.0
        %1460 = vmatpush1.msra.mxu0 0.0
        %1461 = vmatprep.subr.mxu0 0.0
        %1462 = vmatpush1.msra.mxu0 0.0
        %1463 = vmatprep.subr.mxu0 0.0
        %1464 = vmatpush1.msra.mxu0 0.0
        %1465 = vmatprep.subr.mxu0 0.0
        %1466 = vmatpush1.msra.mxu0 0.0
        %1467 = vmatprep.subr.mxu0 0.0
        %1468 = vmatpush1.msra.mxu0 0.0
        %1469 = vmatprep.subr.mxu0 0.0
        %1470 = vmatpush1.msra.mxu0 0.0
        %1471 = vmatprep.mubr.f32.mxu0 0.0
        %1472 = vmatmul.mubr.f32.gmra.mrb[0].mxu0 %v1399
        %v1473 = vpop.f32.mrb[0].mxu0
        %v1474 = vadd.f32 0.0, %v1473
        %v1475 = vpop.f32.mrb[0].mxu0
        %v1476 = vadd.f32 0.0, %v1475
        %1477 = vdwg.mxu0
        %v1478 = vadd.f32 %v1379, %v1474
        %v1479 = vadd.f32 %v1380, %v1476
        %1480 = vrot.lane.b32.xlu0 %v892, 113
        %v1481 = vpop.permute.xlu0 %1480
        %1482 = vrot.lane.b32.xlu0 %v903, 113
        %v1483 = vpop.permute.xlu0 %1482
        %vm1484 = vcmp.lt.s32.totalorder %v910, 113
        %v1485 = vsel %vm1484, %v1481, %v1483
        %v1486 = vsel %vm1484, %v1483, %v1481
        %v1487 = vlaneseq
        %v1488 = vshrl.u32 %v1487, 7
        %v1489 = vsub.s32 6, %v1488
        %v1490 = vrot.slane %v778, %v1489
        %v1491 = vlaneseq
        %v1492 = vshrl.u32 %v1491, 7
        %v1493 = vsub.s32 6, %v1492
        %v1494 = vrot.slane %v779, %v1493
        %v1495 = vmul.f32 %v1485, %v1490
        %v1496 = vmul.f32 %v1486, %v1494
        %v1498 = vsel %vm941, %v899, 0
        %v1501 = vsel %vm945, %v1495, 0
        %v1504 = vsel %vm945, %v1496, 0
        %1506 = vmatprep.subr.mxu0 %v1504
        %1507 = vmatpush1.msra.mxu0 %v1501
        %1508 = vmatprep.subr.mxu0 0.0
        %1509 = vmatpush1.msra.mxu0 0.0
        %1510 = vmatprep.subr.mxu0 0.0
        %1511 = vmatpush1.msra.mxu0 0.0
        %1512 = vmatprep.subr.mxu0 0.0
        %1513 = vmatpush1.msra.mxu0 0.0
        %1514 = vmatprep.subr.mxu0 0.0
        %1515 = vmatpush1.msra.mxu0 0.0
        %1516 = vmatprep.subr.mxu0 0.0
        %1517 = vmatpush1.msra.mxu0 0.0
        %1518 = vmatprep.subr.mxu0 0.0
        %1519 = vmatpush1.msra.mxu0 0.0
        %1520 = vmatprep.subr.mxu0 0.0
        %1521 = vmatpush1.msra.mxu0 0.0
        %1522 = vmatprep.subr.mxu0 0.0
        %1523 = vmatpush1.msra.mxu0 0.0
        %1524 = vmatprep.subr.mxu0 0.0
        %1525 = vmatpush1.msra.mxu0 0.0
        %1526 = vmatprep.subr.mxu0 0.0
        %1527 = vmatpush1.msra.mxu0 0.0
        %1528 = vmatprep.subr.mxu0 0.0
        %1529 = vmatpush1.msra.mxu0 0.0
        %1530 = vmatprep.subr.mxu0 0.0
        %1531 = vmatpush1.msra.mxu0 0.0
        %1532 = vmatprep.subr.mxu0 0.0
        %1533 = vmatpush1.msra.mxu0 0.0
        %1534 = vmatprep.subr.mxu0 0.0
        %1535 = vmatpush1.msra.mxu0 0.0
        %1536 = vmatprep.subr.mxu0 0.0
        %1537 = vmatpush1.msra.mxu0 0.0
        %1538 = vmatprep.subr.mxu0 0.0
        %1539 = vmatpush1.msra.mxu0 0.0
        %1540 = vmatprep.subr.mxu0 0.0
        %1541 = vmatpush1.msra.mxu0 0.0
        %1542 = vmatprep.subr.mxu0 0.0
        %1543 = vmatpush1.msra.mxu0 0.0
        %1544 = vmatprep.subr.mxu0 0.0
        %1545 = vmatpush1.msra.mxu0 0.0
        %1546 = vmatprep.subr.mxu0 0.0
        %1547 = vmatpush1.msra.mxu0 0.0
        %1548 = vmatprep.subr.mxu0 0.0
        %1549 = vmatpush1.msra.mxu0 0.0
        %1550 = vmatprep.subr.mxu0 0.0
        %1551 = vmatpush1.msra.mxu0 0.0
        %1552 = vmatprep.subr.mxu0 0.0
        %1553 = vmatpush1.msra.mxu0 0.0
        %1554 = vmatprep.subr.mxu0 0.0
        %1555 = vmatpush1.msra.mxu0 0.0
        %1556 = vmatprep.subr.mxu0 0.0
        %1557 = vmatpush1.msra.mxu0 0.0
        %1558 = vmatprep.subr.mxu0 0.0
        %1559 = vmatpush1.msra.mxu0 0.0
        %1560 = vmatprep.subr.mxu0 0.0
        %1561 = vmatpush1.msra.mxu0 0.0
        %1562 = vmatprep.subr.mxu0 0.0
        %1563 = vmatpush1.msra.mxu0 0.0
        %1564 = vmatprep.subr.mxu0 0.0
        %1565 = vmatpush1.msra.mxu0 0.0
        %1566 = vmatprep.subr.mxu0 0.0
        %1567 = vmatpush1.msra.mxu0 0.0
        %1568 = vmatprep.subr.mxu0 0.0
        %1569 = vmatpush1.msra.mxu0 0.0
        %1570 = vmatprep.mubr.f32.mxu0 0.0
        %1571 = vmatmul.mubr.f32.gmra.mrb[0].mxu0 %v1498
        %v1572 = vpop.f32.mrb[0].mxu0
        %v1573 = vadd.f32 0.0, %v1572
        %v1574 = vpop.f32.mrb[0].mxu0
        %v1575 = vadd.f32 0.0, %v1574
        %1576 = vdwg.mxu0
        %v1577 = vadd.f32 %v1478, %v1573
        %v1578 = vadd.f32 %v1479, %v1575
        %1579 = vrot.lane.b32.xlu0 %v892, 112
        %v1580 = vpop.permute.xlu0 %1579
        %1581 = vrot.lane.b32.xlu0 %v903, 112
        %v1582 = vpop.permute.xlu0 %1581
        %vm1583 = vcmp.lt.s32.totalorder %v910, 112
        %v1584 = vsel %vm1583, %v1580, %v1582
        %v1585 = vsel %vm1583, %v1582, %v1580
        %v1586 = vlaneseq
        %v1587 = vshrl.u32 %v1586, 7
        %v1588 = vsub.s32 7, %v1587
        %v1589 = vrot.slane %v778, %v1588
        %v1590 = vlaneseq
        %v1591 = vshrl.u32 %v1590, 7
        %v1592 = vsub.s32 7, %v1591
        %v1593 = vrot.slane %v779, %v1592
        %v1594 = vmul.f32 %v1584, %v1589
        %v1595 = vmul.f32 %v1585, %v1593
        %v1597 = vsel %vm941, %v900, 0
        %v1600 = vsel %vm945, %v1594, 0
        %v1603 = vsel %vm945, %v1595, 0
        %1605 = vmatprep.subr.mxu0 %v1603
        %1606 = vmatpush1.msra.mxu0 %v1600
        %1607 = vmatprep.subr.mxu0 0.0
        %1608 = vmatpush1.msra.mxu0 0.0
        %1609 = vmatprep.subr.mxu0 0.0
        %1610 = vmatpush1.msra.mxu0 0.0
        %1611 = vmatprep.subr.mxu0 0.0
        %1612 = vmatpush1.msra.mxu0 0.0
        %1613 = vmatprep.subr.mxu0 0.0
        %1614 = vmatpush1.msra.mxu0 0.0
        %1615 = vmatprep.subr.mxu0 0.0
        %1616 = vmatpush1.msra.mxu0 0.0
        %1617 = vmatprep.subr.mxu0 0.0
        %1618 = vmatpush1.msra.mxu0 0.0
        %1619 = vmatprep.subr.mxu0 0.0
        %1620 = vmatpush1.msra.mxu0 0.0
        %1621 = vmatprep.subr.mxu0 0.0
        %1622 = vmatpush1.msra.mxu0 0.0
        %1623 = vmatprep.subr.mxu0 0.0
        %1624 = vmatpush1.msra.mxu0 0.0
        %1625 = vmatprep.subr.mxu0 0.0
        %1626 = vmatpush1.msra.mxu0 0.0
        %1627 = vmatprep.subr.mxu0 0.0
        %1628 = vmatpush1.msra.mxu0 0.0
        %1629 = vmatprep.subr.mxu0 0.0
        %1630 = vmatpush1.msra.mxu0 0.0
        %1631 = vmatprep.subr.mxu0 0.0
        %1632 = vmatpush1.msra.mxu0 0.0
        %1633 = vmatprep.subr.mxu0 0.0
        %1634 = vmatpush1.msra.mxu0 0.0
        %1635 = vmatprep.subr.mxu0 0.0
        %1636 = vmatpush1.msra.mxu0 0.0
        %1637 = vmatprep.subr.mxu0 0.0
        %1638 = vmatpush1.msra.mxu0 0.0
        %1639 = vmatprep.subr.mxu0 0.0
        %1640 = vmatpush1.msra.mxu0 0.0
        %1641 = vmatprep.subr.mxu0 0.0
        %1642 = vmatpush1.msra.mxu0 0.0
        %1643 = vmatprep.subr.mxu0 0.0
        %1644 = vmatpush1.msra.mxu0 0.0
        %1645 = vmatprep.subr.mxu0 0.0
        %1646 = vmatpush1.msra.mxu0 0.0
        %1647 = vmatprep.subr.mxu0 0.0
        %1648 = vmatpush1.msra.mxu0 0.0
        %1649 = vmatprep.subr.mxu0 0.0
        %1650 = vmatpush1.msra.mxu0 0.0
        %1651 = vmatprep.subr.mxu0 0.0
        %1652 = vmatpush1.msra.mxu0 0.0
        %1653 = vmatprep.subr.mxu0 0.0
        %1654 = vmatpush1.msra.mxu0 0.0
        %1655 = vmatprep.subr.mxu0 0.0
        %1656 = vmatpush1.msra.mxu0 0.0
        %1657 = vmatprep.subr.mxu0 0.0
        %1658 = vmatpush1.msra.mxu0 0.0
        %1659 = vmatprep.subr.mxu0 0.0
        %1660 = vmatpush1.msra.mxu0 0.0
        %1661 = vmatprep.subr.mxu0 0.0
        %1662 = vmatpush1.msra.mxu0 0.0
        %1663 = vmatprep.subr.mxu0 0.0
        %1664 = vmatpush1.msra.mxu0 0.0
        %1665 = vmatprep.subr.mxu0 0.0
        %1666 = vmatpush1.msra.mxu0 0.0
        %1667 = vmatprep.subr.mxu0 0.0
        %1668 = vmatpush1.msra.mxu0 0.0
        %1669 = vmatprep.mubr.f32.mxu0 0.0
        %1670 = vmatmul.mubr.f32.gmra.mrb[0].mxu0 %v1597
        %v1671 = vpop.f32.mrb[0].mxu0
        %v1672 = vadd.f32 0.0, %v1671
        %v1673 = vpop.f32.mrb[0].mxu0
        %v1674 = vadd.f32 0.0, %v1673
        %1675 = vdwg.mxu0
        %v1676 = vadd.f32 %v1577, %v1672
        %v1677 = vadd.f32 %v1578, %v1674
        %1678 = vrot.lane.b32.xlu0 %v892, 111
        %v1679 = vpop.permute.xlu0 %1678
        %1680 = vrot.lane.b32.xlu0 %v903, 111
        %v1681 = vpop.permute.xlu0 %1680
        %vm1682 = vcmp.lt.s32.totalorder %v910, 111
        %v1683 = vsel %vm1682, %v1679, %v1681
        %v1684 = vsel %vm1682, %v1681, %v1679
        %v1685 = vlaneseq
        %v1686 = vshrl.u32 %v1685, 7
        %v1687 = vsub.s32 0, %v1686
        %v1688 = vrot.slane %v780, %v1687
        %v1689 = vlaneseq
        %v1690 = vshrl.u32 %v1689, 7
        %v1691 = vsub.s32 0, %v1690
        %v1692 = vrot.slane %v781, %v1691
        %v1693 = vmul.f32 %v1683, %v1688
        %v1694 = vmul.f32 %v1684, %v1692
        %v1696 = vsel %vm941, %v901, 0
        %v1699 = vsel %vm945, %v1693, 0
        %v1702 = vsel %vm945, %v1694, 0
        %1704 = vmatprep.subr.mxu0 %v1702
        %1705 = vmatpush1.msra.mxu0 %v1699
        %1706 = vmatprep.subr.mxu0 0.0
        %1707 = vmatpush1.msra.mxu0 0.0
        %1708 = vmatprep.subr.mxu0 0.0
        %1709 = vmatpush1.msra.mxu0 0.0
        %1710 = vmatprep.subr.mxu0 0.0
        %1711 = vmatpush1.msra.mxu0 0.0
        %1712 = vmatprep.subr.mxu0 0.0
        %1713 = vmatpush1.msra.mxu0 0.0
        %1714 = vmatprep.subr.mxu0 0.0
        %1715 = vmatpush1.msra.mxu0 0.0
        %1716 = vmatprep.subr.mxu0 0.0
        %1717 = vmatpush1.msra.mxu0 0.0
        %1718 = vmatprep.subr.mxu0 0.0
        %1719 = vmatpush1.msra.mxu0 0.0
        %1720 = vmatprep.subr.mxu0 0.0
        %1721 = vmatpush1.msra.mxu0 0.0
        %1722 = vmatprep.subr.mxu0 0.0
        %1723 = vmatpush1.msra.mxu0 0.0
        %1724 = vmatprep.subr.mxu0 0.0
        %1725 = vmatpush1.msra.mxu0 0.0
        %1726 = vmatprep.subr.mxu0 0.0
        %1727 = vmatpush1.msra.mxu0 0.0
        %1728 = vmatprep.subr.mxu0 0.0
        %1729 = vmatpush1.msra.mxu0 0.0
        %1730 = vmatprep.subr.mxu0 0.0
        %1731 = vmatpush1.msra.mxu0 0.0
        %1732 = vmatprep.subr.mxu0 0.0
        %1733 = vmatpush1.msra.mxu0 0.0
        %1734 = vmatprep.subr.mxu0 0.0
        %1735 = vmatpush1.msra.mxu0 0.0
        %1736 = vmatprep.subr.mxu0 0.0
        %1737 = vmatpush1.msra.mxu0 0.0
        %1738 = vmatprep.subr.mxu0 0.0
        %1739 = vmatpush1.msra.mxu0 0.0
        %1740 = vmatprep.subr.mxu0 0.0
        %1741 = vmatpush1.msra.mxu0 0.0
        %1742 = vmatprep.subr.mxu0 0.0
        %1743 = vmatpush1.msra.mxu0 0.0
        %1744 = vmatprep.subr.mxu0 0.0
        %1745 = vmatpush1.msra.mxu0 0.0
        %1746 = vmatprep.subr.mxu0 0.0
        %1747 = vmatpush1.msra.mxu0 0.0
        %1748 = vmatprep.subr.mxu0 0.0
        %1749 = vmatpush1.msra.mxu0 0.0
        %1750 = vmatprep.subr.mxu0 0.0
        %1751 = vmatpush1.msra.mxu0 0.0
        %1752 = vmatprep.subr.mxu0 0.0
        %1753 = vmatpush1.msra.mxu0 0.0
        %1754 = vmatprep.subr.mxu0 0.0
        %1755 = vmatpush1.msra.mxu0 0.0
        %1756 = vmatprep.subr.mxu0 0.0
        %1757 = vmatpush1.msra.mxu0 0.0
        %1758 = vmatprep.subr.mxu0 0.0
        %1759 = vmatpush1.msra.mxu0 0.0
        %1760 = vmatprep.subr.mxu0 0.0
        %1761 = vmatpush1.msra.mxu0 0.0
        %1762 = vmatprep.subr.mxu0 0.0
        %1763 = vmatpush1.msra.mxu0 0.0
        %1764 = vmatprep.subr.mxu0 0.0
        %1765 = vmatpush1.msra.mxu0 0.0
        %1766 = vmatprep.subr.mxu0 0.0
        %1767 = vmatpush1.msra.mxu0 0.0
        %1768 = vmatprep.mubr.f32.mxu0 0.0
        %1769 = vmatmul.mubr.f32.gmra.mrb[0].mxu0 %v1696
        %v1770 = vpop.f32.mrb[0].mxu0
        %v1771 = vadd.f32 0.0, %v1770
        %v1772 = vpop.f32.mrb[0].mxu0
        %v1773 = vadd.f32 0.0, %v1772
        %1774 = vdwg.mxu0
        %v1775 = vadd.f32 %v1676, %v1771
        %v1776 = vadd.f32 %v1677, %v1773
        %v1777 = vmul.f32 %v1775, 0.5
        %v1778 = vmul.f32 %v1776, 0.5
        %v1779 = vmul.f32 %v1775, 0.70710677
        %v1780 = vmul.f32 %v1776, 0.70710677
        %v1781 = vand.u32 2147483647, %v1779
        %v1782 = vand.u32 2147483647, %v1780
        %v1783 = vmul.f32 %v1781, 0.3275911
        %v1784 = vmul.f32 %v1782, 0.3275911
        %v1785 = vadd.f32 %v1783, 1.0
        %v1786 = vadd.f32 %v1784, 1.0
        %v1787 = vrcp.pop %v1785
        %v1788 = vmul.f32 1.0, %v1787
        %v1789 = vrcp.pop %v1786
        %v1790 = vmul.f32 1.0, %v1789
        %v1791 = vmul.f32 %v1788, 1.0614054
        %v1792 = vmul.f32 %v1790, 1.0614054
        %v1793 = vadd.f32 %v1791, -1.4531521
        %v1794 = vadd.f32 %v1792, -1.4531521
        %v1795 = vmul.f32 %v1793, %v1788
        %v1796 = vmul.f32 %v1794, %v1790
        %v1797 = vadd.f32 %v1795, 1.4214138
        %v1798 = vadd.f32 %v1796, 1.4214138
        %v1799 = vmul.f32 %v1797, %v1788
        %v1800 = vmul.f32 %v1798, %v1790
        %v1801 = vadd.f32 %v1799, -0.28449672
        %v1802 = vadd.f32 %v1800, -0.28449672
        %v1803 = vmul.f32 %v1801, %v1788
        %v1804 = vmul.f32 %v1802, %v1790
        %v1805 = vadd.f32 %v1803, 0.2548296
        %v1806 = vadd.f32 %v1804, 0.2548296
        %v1807 = vmul.f32 %v1805, %v1788
        %v1808 = vmul.f32 %v1806, %v1790
        %v1809 = vsub.f32 0.0, %v1781
        %v1810 = vsub.f32 0.0, %v1782
        %v1811 = vmul.f32 %v1809, %v1781
        %v1812 = vmul.f32 %v1810, %v1782
        %v1813 = vmul.f32 %v1811, 1.442695
        %v1814 = vpow.pop %v1813
        %v1815 = vmul.f32 %v1812, 1.442695
        %v1816 = vpow.pop %v1815
        %v1817 = vmul.f32 %v1807, %v1814
        %v1818 = vmul.f32 %v1808, %v1816
        %v1819 = vsub.f32 1.0, %v1817
        %v1820 = vsub.f32 1.0, %v1818
        %vm1821 = vcmp.ge.f32.partialorder %v1779, 0.0
        %vm1822 = vcmp.ge.f32.partialorder %v1780, 0.0
        %v1823 = vsub.f32 0.0, %v1819
        %v1824 = vsub.f32 0.0, %v1820
        %v1825 = vsel %vm1821, %v1819, %v1823
        %v1826 = vsel %vm1822, %v1820, %v1824
        %v1827 = vadd.f32 %v1825, 1.0
        %v1828 = vadd.f32 %v1826, 1.0
        %v1829 = vmul.f32 %v1777, %v1827
        %v1830 = vmul.f32 %v1778, %v1828
        %v1831 = vadd.f32 %v1829, 0.0
        %v1832 = vadd.f32 %v1830, 0.0
        %1833 = vmatprep.subr.mxu0 0.0
        %1834 = vmatpush1.msra.mxu0 %v782
        %1835 = vmatprep.subr.mxu0 0.0
        %1836 = vmatpush1.msra.mxu0 %v783
        %1837 = vmatprep.subr.mxu0 0.0
        %1838 = vmatpush1.msra.mxu0 %v784
        %1839 = vmatprep.subr.mxu0 0.0
        %1840 = vmatpush1.msra.mxu0 %v785
        %1841 = vmatprep.subr.mxu0 0.0
        %1842 = vmatpush1.msra.mxu0 %v786
        %1843 = vmatprep.subr.mxu0 0.0
        %1844 = vmatpush1.msra.mxu0 %v787
        %1845 = vmatprep.subr.mxu0 0.0
        %1846 = vmatpush1.msra.mxu0 %v788
        %1847 = vmatprep.subr.mxu0 0.0
        %1848 = vmatpush1.msra.mxu0 %v789
        %1849 = vmatprep.subr.mxu0 0.0
        %1850 = vmatpush1.msra.mxu0 %v790
        %1851 = vmatprep.subr.mxu0 0.0
        %1852 = vmatpush1.msra.mxu0 %v791
        %1853 = vmatprep.subr.mxu0 0.0
        %1854 = vmatpush1.msra.mxu0 %v792
        %1855 = vmatprep.subr.mxu0 0.0
        %1856 = vmatpush1.msra.mxu0 %v793
        %1857 = vmatprep.subr.mxu0 0.0
        %1858 = vmatpush1.msra.mxu0 %v794
        %1859 = vmatprep.subr.mxu0 0.0
        %1860 = vmatpush1.msra.mxu0 %v795
        %1861 = vmatprep.subr.mxu0 0.0
        %1862 = vmatpush1.msra.mxu0 %v796
        %1863 = vmatprep.subr.mxu0 0.0
        %1864 = vmatpush1.msra.mxu0 %v797
        %1865 = vmatprep.subr.mxu0 0.0
        %1866 = vmatpush1.msra.mxu0 %v798
        %1867 = vmatprep.subr.mxu0 0.0
        %1868 = vmatpush1.msra.mxu0 %v799
        %1869 = vmatprep.subr.mxu0 0.0
        %1870 = vmatpush1.msra.mxu0 %v800
        %1871 = vmatprep.subr.mxu0 0.0
        %1872 = vmatpush1.msra.mxu0 %v801
        %1873 = vmatprep.subr.mxu0 0.0
        %1874 = vmatpush1.msra.mxu0 %v802
        %1875 = vmatprep.subr.mxu0 0.0
        %1876 = vmatpush1.msra.mxu0 %v803
        %1877 = vmatprep.subr.mxu0 0.0
        %1878 = vmatpush1.msra.mxu0 %v804
        %1879 = vmatprep.subr.mxu0 0.0
        %1880 = vmatpush1.msra.mxu0 %v805
        %1881 = vmatprep.subr.mxu0 0.0
        %1882 = vmatpush1.msra.mxu0 %v806
        %1883 = vmatprep.subr.mxu0 0.0
        %1884 = vmatpush1.msra.mxu0 %v807
        %1885 = vmatprep.subr.mxu0 0.0
        %1886 = vmatpush1.msra.mxu0 %v808
        %1887 = vmatprep.subr.mxu0 0.0
        %1888 = vmatpush1.msra.mxu0 %v809
        %1889 = vmatprep.subr.mxu0 0.0
        %1890 = vmatpush1.msra.mxu0 %v810
        %1891 = vmatprep.subr.mxu0 0.0
        %1892 = vmatpush1.msra.mxu0 %v811
        %1893 = vmatprep.subr.mxu0 0.0
        %1894 = vmatpush1.msra.mxu0 %v812
        %1895 = vmatprep.subr.mxu0 0.0
        %1896 = vmatpush1.msra.mxu0 %v813
        %1897 = vmatprep.mubr.f32.mxu0 %v1830
        %1898 = vmatmul.mubr.f32.gmra.mrb[0].mxu0 %v1829
        %v1899 = vpop.f32.mrb[0].mxu0
        %v1900 = vadd.f32 0.0, %v1899
        %v1901 = vpop.f32.mrb[0].mxu0
        %1902 = vdwg.mxu0
        %1903 = vmatprep.subr.mxu0 0.0
        %1904 = vmatpush1.msra.mxu0 %v814
        %1905 = vmatprep.subr.mxu0 0.0
        %1906 = vmatpush1.msra.mxu0 %v815
        %1907 = vmatprep.subr.mxu0 0.0
        %1908 = vmatpush1.msra.mxu0 %v816
        %1909 = vmatprep.subr.mxu0 0.0
        %1910 = vmatpush1.msra.mxu0 %v817
        %1911 = vmatprep.subr.mxu0 0.0
        %1912 = vmatpush1.msra.mxu0 %v818
        %1913 = vmatprep.subr.mxu0 0.0
        %1914 = vmatpush1.msra.mxu0 %v819
        %1915 = vmatprep.subr.mxu0 0.0
        %1916 = vmatpush1.msra.mxu0 %v820
        %1917 = vmatprep.subr.mxu0 0.0
        %1918 = vmatpush1.msra.mxu0 %v821
        %1919 = vmatprep.subr.mxu0 0.0
        %1920 = vmatpush1.msra.mxu0 %v822
        %1921 = vmatprep.subr.mxu0 0.0
        %1922 = vmatpush1.msra.mxu0 %v823
        %1923 = vmatprep.subr.mxu0 0.0
        %1924 = vmatpush1.msra.mxu0 %v824
        %1925 = vmatprep.subr.mxu0 0.0
        %1926 = vmatpush1.msra.mxu0 %v825
        %1927 = vmatprep.subr.mxu0 0.0
        %1928 = vmatpush1.msra.mxu0 %v826
        %1929 = vmatprep.subr.mxu0 0.0
        %1930 = vmatpush1.msra.mxu0 %v827
        %1931 = vmatprep.subr.mxu0 0.0
        %1932 = vmatpush1.msra.mxu0 %v828
        %1933 = vmatprep.subr.mxu0 0.0
        %1934 = vmatpush1.msra.mxu0 %v829
        %1935 = vmatprep.subr.mxu0 0.0
        %1936 = vmatpush1.msra.mxu0 %v830
        %1937 = vmatprep.subr.mxu0 0.0
        %1938 = vmatpush1.msra.mxu0 %v831
        %1939 = vmatprep.subr.mxu0 0.0
        %1940 = vmatpush1.msra.mxu0 %v832
        %1941 = vmatprep.subr.mxu0 0.0
        %1942 = vmatpush1.msra.mxu0 %v833
        %1943 = vmatprep.subr.mxu0 0.0
        %1944 = vmatpush1.msra.mxu0 %v834
        %1945 = vmatprep.subr.mxu0 0.0
        %1946 = vmatpush1.msra.mxu0 %v835
        %1947 = vmatprep.subr.mxu0 0.0
        %1948 = vmatpush1.msra.mxu0 %v836
        %1949 = vmatprep.subr.mxu0 0.0
        %1950 = vmatpush1.msra.mxu0 %v837
        %1951 = vmatprep.subr.mxu0 0.0
        %1952 = vmatpush1.msra.mxu0 %v838
        %1953 = vmatprep.subr.mxu0 0.0
        %1954 = vmatpush1.msra.mxu0 %v839
        %1955 = vmatprep.subr.mxu0 0.0
        %1956 = vmatpush1.msra.mxu0 %v840
        %1957 = vmatprep.subr.mxu0 0.0
        %1958 = vmatpush1.msra.mxu0 %v841
        %1959 = vmatprep.subr.mxu0 0.0
        %1960 = vmatpush1.msra.mxu0 %v842
        %1961 = vmatprep.subr.mxu0 0.0
        %1962 = vmatpush1.msra.mxu0 %v843
        %1963 = vmatprep.subr.mxu0 0.0
        %1964 = vmatpush1.msra.mxu0 %v844
        %1965 = vmatprep.subr.mxu0 0.0
        %1966 = vmatpush1.msra.mxu0 %v845
        %1967 = vmatprep.mubr.f32.mxu0 %v1830
        %1968 = vmatmul.mubr.f32.gmra.mrb[0].mxu0 %v1829
        %v1969 = vpop.f32.mrb[0].mxu0
        %v1970 = vadd.f32 0.0, %v1969
        %v1971 = vpop.f32.mrb[0].mxu0
        %1972 = vdwg.mxu0
        %1974 = vset.pattern.permute.xlu0 0
        %1975 = vperm.xlu0 %1974, %v858
        %v1976 = vpop.permute.xlu0 %1975
        %1979 = vset.pattern.permute.xlu0 0
        %1980 = vperm.xlu0 %1979, %v859
        %v1981 = vpop.permute.xlu0 %1980
        %1984 = vset.pattern.permute.xlu0 0
        %1985 = vperm.xlu0 %1984, %v860
        %v1986 = vpop.permute.xlu0 %1985
        %1989 = vset.pattern.permute.xlu0 0
        %1990 = vperm.xlu0 %1989, %v861
        %v1991 = vpop.permute.xlu0 %1990
        %vm1993 = vcmask 15360
        %v1995 = vsel %vm1993, %v854, 0
        %v1998 = vsel %vm1993, %v855, 0
        %v2001 = vsel %vm1993, %v856, 0
        %v2004 = vsel %vm1993, %v857, 0
        %vm2006 = vcmask 1041408
        %v2008 = vsel %vm2006, %v1900, 0
        %2010 = vmatprep.subr.mxu0 0.0
        %2011 = vmatpush1.msra.mxu0 %v2008
        %2012 = vmatprep.subr.mxu0 0.0
        %2013 = vmatpush1.msra.mxu0 0.0
        %2014 = vmatprep.subr.mxu0 0.0
        %2015 = vmatpush1.msra.mxu0 0.0
        %2016 = vmatprep.subr.mxu0 0.0
        %2017 = vmatpush1.msra.mxu0 0.0
        %2018 = vmatprep.subr.mxu0 0.0
        %2019 = vmatpush1.msra.mxu0 0.0
        %2020 = vmatprep.subr.mxu0 0.0
        %2021 = vmatpush1.msra.mxu0 0.0
        %2022 = vmatprep.subr.mxu0 0.0
        %2023 = vmatpush1.msra.mxu0 0.0
        %2024 = vmatprep.subr.mxu0 0.0
        %2025 = vmatpush1.msra.mxu0 0.0
        %2026 = vmatprep.subr.mxu0 0.0
        %2027 = vmatpush1.msra.mxu0 0.0
        %2028 = vmatprep.subr.mxu0 0.0
        %2029 = vmatpush1.msra.mxu0 0.0
        %2030 = vmatprep.subr.mxu0 0.0
        %2031 = vmatpush1.msra.mxu0 0.0
        %2032 = vmatprep.subr.mxu0 0.0
        %2033 = vmatpush1.msra.mxu0 0.0
        %2034 = vmatprep.subr.mxu0 0.0
        %2035 = vmatpush1.msra.mxu0 0.0
        %2036 = vmatprep.subr.mxu0 0.0
        %2037 = vmatpush1.msra.mxu0 0.0
        %2038 = vmatprep.subr.mxu0 0.0
        %2039 = vmatpush1.msra.mxu0 0.0
        %2040 = vmatprep.subr.mxu0 0.0
        %2041 = vmatpush1.msra.mxu0 0.0
        %2042 = vmatprep.subr.mxu0 0.0
        %2043 = vmatpush1.msra.mxu0 0.0
        %2044 = vmatprep.subr.mxu0 0.0
        %2045 = vmatpush1.msra.mxu0 0.0
        %2046 = vmatprep.subr.mxu0 0.0
        %2047 = vmatpush1.msra.mxu0 0.0
        %2048 = vmatprep.subr.mxu0 0.0
        %2049 = vmatpush1.msra.mxu0 0.0
        %2050 = vmatprep.subr.mxu0 0.0
        %2051 = vmatpush1.msra.mxu0 0.0
        %2052 = vmatprep.subr.mxu0 0.0
        %2053 = vmatpush1.msra.mxu0 0.0
        %2054 = vmatprep.subr.mxu0 0.0
        %2055 = vmatpush1.msra.mxu0 0.0
        %2056 = vmatprep.subr.mxu0 0.0
        %2057 = vmatpush1.msra.mxu0 0.0
        %2058 = vmatprep.subr.mxu0 0.0
        %2059 = vmatpush1.msra.mxu0 0.0
        %2060 = vmatprep.subr.mxu0 0.0
        %2061 = vmatpush1.msra.mxu0 0.0
        %2062 = vmatprep.subr.mxu0 0.0
        %2063 = vmatpush1.msra.mxu0 0.0
        %2064 = vmatprep.subr.mxu0 0.0
        %2065 = vmatpush1.msra.mxu0 0.0
        %2066 = vmatprep.subr.mxu0 0.0
        %2067 = vmatpush1.msra.mxu0 0.0
        %2068 = vmatprep.subr.mxu0 0.0
        %2069 = vmatpush1.msra.mxu0 0.0
        %2070 = vmatprep.subr.mxu0 0.0
        %2071 = vmatpush1.msra.mxu0 0.0
        %2072 = vmatprep.subr.mxu0 0.0
        %2073 = vmatpush1.msra.mxu0 0.0
        %2074 = vmatprep.mubr.f32.mxu0 0.0
        %2075 = vmatmul.mubr.f32.gmra.mrb[0].mxu0 %v1995
        %v2076 = vpop.f32.mrb[0].mxu0
        %v2077 = vadd.f32 %v1976, %v2076
        %v2078 = vpop.f32.mrb[0].mxu0
        %2079 = vmatprep.mubr.f32.mxu0 0.0
        %2080 = vmatmul.mubr.f32.gmra.mrb[0].mxu0 %v1998
        %v2081 = vpop.f32.mrb[0].mxu0
        %v2082 = vadd.f32 %v1981, %v2081
        %v2083 = vpop.f32.mrb[0].mxu0
        %2084 = vmatprep.mubr.f32.mxu0 0.0
        %2085 = vmatmul.mubr.f32.gmra.mrb[0].mxu0 %v2001
        %v2086 = vpop.f32.mrb[0].mxu0
        %v2087 = vadd.f32 %v1986, %v2086
        %v2088 = vpop.f32.mrb[0].mxu0
        %2089 = vmatprep.mubr.f32.mxu0 0.0
        %2090 = vmatmul.mubr.f32.gmra.mrb[0].mxu0 %v2004
        %v2091 = vpop.f32.mrb[0].mxu0
        %v2092 = vadd.f32 %v1991, %v2091
        %v2093 = vpop.f32.mrb[0].mxu0
        %2094 = vdwg.mxu0
        %v2096 = vsel %vm2006, %v1970, 0
        %2098 = vmatprep.subr.mxu0 0.0
        %2099 = vmatpush1.msra.mxu0 %v2096
        %2100 = vmatprep.subr.mxu0 0.0
        %2101 = vmatpush1.msra.mxu0 0.0
        %2102 = vmatprep.subr.mxu0 0.0
        %2103 = vmatpush1.msra.mxu0 0.0
        %2104 = vmatprep.subr.mxu0 0.0
        %2105 = vmatpush1.msra.mxu0 0.0
        %2106 = vmatprep.subr.mxu0 0.0
        %2107 = vmatpush1.msra.mxu0 0.0
        %2108 = vmatprep.subr.mxu0 0.0
        %2109 = vmatpush1.msra.mxu0 0.0
        %2110 = vmatprep.subr.mxu0 0.0
        %2111 = vmatpush1.msra.mxu0 0.0
        %2112 = vmatprep.subr.mxu0 0.0
        %2113 = vmatpush1.msra.mxu0 0.0
        %2114 = vmatprep.subr.mxu0 0.0
        %2115 = vmatpush1.msra.mxu0 0.0
        %2116 = vmatprep.subr.mxu0 0.0
        %2117 = vmatpush1.msra.mxu0 0.0
        %2118 = vmatprep.subr.mxu0 0.0
        %2119 = vmatpush1.msra.mxu0 0.0
        %2120 = vmatprep.subr.mxu0 0.0
        %2121 = vmatpush1.msra.mxu0 0.0
        %2122 = vmatprep.subr.mxu0 0.0
        %2123 = vmatpush1.msra.mxu0 0.0
        %2124 = vmatprep.subr.mxu0 0.0
        %2125 = vmatpush1.msra.mxu0 0.0
        %2126 = vmatprep.subr.mxu0 0.0
        %2127 = vmatpush1.msra.mxu0 0.0
        %2128 = vmatprep.subr.mxu0 0.0
        %2129 = vmatpush1.msra.mxu0 0.0
        %2130 = vmatprep.subr.mxu0 0.0
        %2131 = vmatpush1.msra.mxu0 0.0
        %2132 = vmatprep.subr.mxu0 0.0
        %2133 = vmatpush1.msra.mxu0 0.0
        %2134 = vmatprep.subr.mxu0 0.0
        %2135 = vmatpush1.msra.mxu0 0.0
        %2136 = vmatprep.subr.mxu0 0.0
        %2137 = vmatpush1.msra.mxu0 0.0
        %2138 = vmatprep.subr.mxu0 0.0
        %2139 = vmatpush1.msra.mxu0 0.0
        %2140 = vmatprep.subr.mxu0 0.0
        %2141 = vmatpush1.msra.mxu0 0.0
        %2142 = vmatprep.subr.mxu0 0.0
        %2143 = vmatpush1.msra.mxu0 0.0
        %2144 = vmatprep.subr.mxu0 0.0
        %2145 = vmatpush1.msra.mxu0 0.0
        %2146 = vmatprep.subr.mxu0 0.0
        %2147 = vmatpush1.msra.mxu0 0.0
        %2148 = vmatprep.subr.mxu0 0.0
        %2149 = vmatpush1.msra.mxu0 0.0
        %2150 = vmatprep.subr.mxu0 0.0
        %2151 = vmatpush1.msra.mxu0 0.0
        %2152 = vmatprep.subr.mxu0 0.0
        %2153 = vmatpush1.msra.mxu0 0.0
        %2154 = vmatprep.subr.mxu0 0.0
        %2155 = vmatpush1.msra.mxu0 0.0
        %2156 = vmatprep.subr.mxu0 0.0
        %2157 = vmatpush1.msra.mxu0 0.0
        %2158 = vmatprep.subr.mxu0 0.0
        %2159 = vmatpush1.msra.mxu0 0.0
        %2160 = vmatprep.subr.mxu0 0.0
        %2161 = vmatpush1.msra.mxu0 0.0
        %2162 = vmatprep.mubr.f32.mxu0 0.0
        %2163 = vmatmul.mubr.f32.gmra.mrb[0].mxu0 %v1995
        %v2164 = vpop.f32.mrb[0].mxu0
        %v2165 = vadd.f32 %v1976, %v2164
        %v2166 = vpop.f32.mrb[0].mxu0
        %2167 = vmatprep.mubr.f32.mxu0 0.0
        %2168 = vmatmul.mubr.f32.gmra.mrb[0].mxu0 %v1998
        %v2169 = vpop.f32.mrb[0].mxu0
        %v2170 = vadd.f32 %v1981, %v2169
        %v2171 = vpop.f32.mrb[0].mxu0
        %2172 = vmatprep.mubr.f32.mxu0 0.0
        %2173 = vmatmul.mubr.f32.gmra.mrb[0].mxu0 %v2001
        %v2174 = vpop.f32.mrb[0].mxu0
        %v2175 = vadd.f32 %v1986, %v2174
        %v2176 = vpop.f32.mrb[0].mxu0
        %2177 = vmatprep.mubr.f32.mxu0 0.0
        %2178 = vmatmul.mubr.f32.gmra.mrb[0].mxu0 %v2004
        %v2179 = vpop.f32.mrb[0].mxu0
        %v2180 = vadd.f32 %v1991, %v2179
        %v2181 = vpop.f32.mrb[0].mxu0
        %2182 = vdwg.mxu0
        %2184 = vset.pattern.permute.xlu0 0
        %2185 = vperm.xlu0 %2184, %v863
        %v2186 = vpop.permute.xlu0 %2185
        %vm2188 = vcmask 261120
        %v2190 = vsel %vm2188, %v862, 0
        %2192 = vmatprep.subr.mxu0 0.0
        %2193 = vmatpush1.msra.mxu0 %v2077
        %2194 = vmatprep.subr.mxu0 0.0
        %2195 = vmatpush1.msra.mxu0 %v2082
        %2196 = vmatprep.subr.mxu0 0.0
        %2197 = vmatpush1.msra.mxu0 %v2087
        %2198 = vmatprep.subr.mxu0 0.0
        %2199 = vmatpush1.msra.mxu0 %v2092
        %2200 = vmatprep.subr.mxu0 0.0
        %2201 = vmatpush1.msra.mxu0 0.0
        %2202 = vmatprep.subr.mxu0 0.0
        %2203 = vmatpush1.msra.mxu0 0.0
        %2204 = vmatprep.subr.mxu0 0.0
        %2205 = vmatpush1.msra.mxu0 0.0
        %2206 = vmatprep.subr.mxu0 0.0
        %2207 = vmatpush1.msra.mxu0 0.0
        %2208 = vmatprep.subr.mxu0 0.0
        %2209 = vmatpush1.msra.mxu0 0.0
        %2210 = vmatprep.subr.mxu0 0.0
        %2211 = vmatpush1.msra.mxu0 0.0
        %2212 = vmatprep.subr.mxu0 0.0
        %2213 = vmatpush1.msra.mxu0 0.0
        %2214 = vmatprep.subr.mxu0 0.0
        %2215 = vmatpush1.msra.mxu0 0.0
        %2216 = vmatprep.subr.mxu0 0.0
        %2217 = vmatpush1.msra.mxu0 0.0
        %2218 = vmatprep.subr.mxu0 0.0
        %2219 = vmatpush1.msra.mxu0 0.0
        %2220 = vmatprep.subr.mxu0 0.0
        %2221 = vmatpush1.msra.mxu0 0.0
        %2222 = vmatprep.subr.mxu0 0.0
        %2223 = vmatpush1.msra.mxu0 0.0
        %2224 = vmatprep.subr.mxu0 0.0
        %2225 = vmatpush1.msra.mxu0 0.0
        %2226 = vmatprep.subr.mxu0 0.0
        %2227 = vmatpush1.msra.mxu0 0.0
        %2228 = vmatprep.subr.mxu0 0.0
        %2229 = vmatpush1.msra.mxu0 0.0
        %2230 = vmatprep.subr.mxu0 0.0
        %2231 = vmatpush1.msra.mxu0 0.0
        %2232 = vmatprep.subr.mxu0 0.0
        %2233 = vmatpush1.msra.mxu0 0.0
        %2234 = vmatprep.subr.mxu0 0.0
        %2235 = vmatpush1.msra.mxu0 0.0
        %2236 = vmatprep.subr.mxu0 0.0
        %2237 = vmatpush1.msra.mxu0 0.0
        %2238 = vmatprep.subr.mxu0 0.0
        %2239 = vmatpush1.msra.mxu0 0.0
        %2240 = vmatprep.subr.mxu0 0.0
        %2241 = vmatpush1.msra.mxu0 0.0
        %2242 = vmatprep.subr.mxu0 0.0
        %2243 = vmatpush1.msra.mxu0 0.0
        %2244 = vmatprep.subr.mxu0 0.0
        %2245 = vmatpush1.msra.mxu0 0.0
        %2246 = vmatprep.subr.mxu0 0.0
        %2247 = vmatpush1.msra.mxu0 0.0
        %2248 = vmatprep.subr.mxu0 0.0
        %2249 = vmatpush1.msra.mxu0 0.0
        %2250 = vmatprep.subr.mxu0 0.0
        %2251 = vmatpush1.msra.mxu0 0.0
        %2252 = vmatprep.subr.mxu0 0.0
        %2253 = vmatpush1.msra.mxu0 0.0
        %2254 = vmatprep.subr.mxu0 0.0
        %2255 = vmatpush1.msra.mxu0 0.0
        %2256 = vmatprep.mubr.f32.mxu0 0.0
        %2257 = vmatmul.mubr.f32.gmra.mrb[0].mxu0 %v2190
        %v2258 = vpop.f32.mrb[0].mxu0
        %v2259 = vadd.f32 %v2186, %v2258
        %v2260 = vpop.f32.mrb[0].mxu0
        %2261 = vdwg.mxu0
        %v2262 = vxor.u32 %v2259, 2147483648
        %v2263 = vmul.f32 %v2262, 1.442695
        %v2264 = vpow.pop %v2263
        %v2265 = vadd.f32 %v2264, 1.0
        %v2266 = vrcp.pop %v2265
        %v2267 = vmul.f32 1.0, %v2266
        %2269 = vset.pattern.permute.xlu0 0
        %2270 = vperm.xlu0 %2269, %v865
        %v2271 = vpop.permute.xlu0 %2270
        %v2274 = vsel %vm2188, %v864, 0
        %2276 = vmatprep.subr.mxu0 0.0
        %2277 = vmatpush1.msra.mxu0 %v2165
        %2278 = vmatprep.subr.mxu0 0.0
        %2279 = vmatpush1.msra.mxu0 %v2170
        %2280 = vmatprep.subr.mxu0 0.0
        %2281 = vmatpush1.msra.mxu0 %v2175
        %2282 = vmatprep.subr.mxu0 0.0
        %2283 = vmatpush1.msra.mxu0 %v2180
        %2284 = vmatprep.subr.mxu0 0.0
        %2285 = vmatpush1.msra.mxu0 0.0
        %2286 = vmatprep.subr.mxu0 0.0
        %2287 = vmatpush1.msra.mxu0 0.0
        %2288 = vmatprep.subr.mxu0 0.0
        %2289 = vmatpush1.msra.mxu0 0.0
        %2290 = vmatprep.subr.mxu0 0.0
        %2291 = vmatpush1.msra.mxu0 0.0
        %2292 = vmatprep.subr.mxu0 0.0
        %2293 = vmatpush1.msra.mxu0 0.0
        %2294 = vmatprep.subr.mxu0 0.0
        %2295 = vmatpush1.msra.mxu0 0.0
        %2296 = vmatprep.subr.mxu0 0.0
        %2297 = vmatpush1.msra.mxu0 0.0
        %2298 = vmatprep.subr.mxu0 0.0
        %2299 = vmatpush1.msra.mxu0 0.0
        %2300 = vmatprep.subr.mxu0 0.0
        %2301 = vmatpush1.msra.mxu0 0.0
        %2302 = vmatprep.subr.mxu0 0.0
        %2303 = vmatpush1.msra.mxu0 0.0
        %2304 = vmatprep.subr.mxu0 0.0
        %2305 = vmatpush1.msra.mxu0 0.0
        %2306 = vmatprep.subr.mxu0 0.0
        %2307 = vmatpush1.msra.mxu0 0.0
        %2308 = vmatprep.subr.mxu0 0.0
        %2309 = vmatpush1.msra.mxu0 0.0
        %2310 = vmatprep.subr.mxu0 0.0
        %2311 = vmatpush1.msra.mxu0 0.0
        %2312 = vmatprep.subr.mxu0 0.0
        %2313 = vmatpush1.msra.mxu0 0.0
        %2314 = vmatprep.subr.mxu0 0.0
        %2315 = vmatpush1.msra.mxu0 0.0
        %2316 = vmatprep.subr.mxu0 0.0
        %2317 = vmatpush1.msra.mxu0 0.0
        %2318 = vmatprep.subr.mxu0 0.0
        %2319 = vmatpush1.msra.mxu0 0.0
        %2320 = vmatprep.subr.mxu0 0.0
        %2321 = vmatpush1.msra.mxu0 0.0
        %2322 = vmatprep.subr.mxu0 0.0
        %2323 = vmatpush1.msra.mxu0 0.0
        %2324 = vmatprep.subr.mxu0 0.0
        %2325 = vmatpush1.msra.mxu0 0.0
        %2326 = vmatprep.subr.mxu0 0.0
        %2327 = vmatpush1.msra.mxu0 0.0
        %2328 = vmatprep.subr.mxu0 0.0
        %2329 = vmatpush1.msra.mxu0 0.0
        %2330 = vmatprep.subr.mxu0 0.0
        %2331 = vmatpush1.msra.mxu0 0.0
        %2332 = vmatprep.subr.mxu0 0.0
        %2333 = vmatpush1.msra.mxu0 0.0
        %2334 = vmatprep.subr.mxu0 0.0
        %2335 = vmatpush1.msra.mxu0 0.0
        %2336 = vmatprep.subr.mxu0 0.0
        %2337 = vmatpush1.msra.mxu0 0.0
        %2338 = vmatprep.subr.mxu0 0.0
        %2339 = vmatpush1.msra.mxu0 0.0
        %2340 = vmatprep.mubr.f32.mxu0 0.0
        %2341 = vmatmul.mubr.f32.gmra.mrb[0].mxu0 %v2274
        %v2342 = vpop.f32.mrb[0].mxu0
        %v2343 = vadd.f32 %v2271, %v2342
        %v2344 = vpop.f32.mrb[0].mxu0
        %2345 = vdwg.mxu0
        %v2346 = vxor.u32 %v2343, 2147483648
        %v2347 = vmul.f32 %v2346, 1.442695
        %v2348 = vpow.pop %v2347
        %v2349 = vadd.f32 %v2348, 1.0
        %v2350 = vrcp.pop %v2349
        %v2351 = vmul.f32 1.0, %v2350
        %vm2352 = vcmask 130048
        %v2354 = vsel %vm2352, %v2267, 0
        %2356 = vmatprep.subr.mxu0 %v847
        %2357 = vmatpush1.msra.mxu0 %v846
        %2358 = vmatprep.subr.mxu0 %v849
        %2359 = vmatpush1.msra.mxu0 %v848
        %2360 = vmatprep.subr.mxu0 0.0
        %2361 = vmatpush1.msra.mxu0 0.0
        %2362 = vmatprep.subr.mxu0 0.0
        %2363 = vmatpush1.msra.mxu0 0.0
        %2364 = vmatprep.subr.mxu0 0.0
        %2365 = vmatpush1.msra.mxu0 0.0
        %2366 = vmatprep.subr.mxu0 0.0
        %2367 = vmatpush1.msra.mxu0 0.0
        %2368 = vmatprep.subr.mxu0 0.0
        %2369 = vmatpush1.msra.mxu0 0.0
        %2370 = vmatprep.subr.mxu0 0.0
        %2371 = vmatpush1.msra.mxu0 0.0
        %2372 = vmatprep.subr.mxu0 0.0
        %2373 = vmatpush1.msra.mxu0 0.0
        %2374 = vmatprep.subr.mxu0 0.0
        %2375 = vmatpush1.msra.mxu0 0.0
        %2376 = vmatprep.subr.mxu0 0.0
        %2377 = vmatpush1.msra.mxu0 0.0
        %2378 = vmatprep.subr.mxu0 0.0
        %2379 = vmatpush1.msra.mxu0 0.0
        %2380 = vmatprep.subr.mxu0 0.0
        %2381 = vmatpush1.msra.mxu0 0.0
        %2382 = vmatprep.subr.mxu0 0.0
        %2383 = vmatpush1.msra.mxu0 0.0
        %2384 = vmatprep.subr.mxu0 0.0
        %2385 = vmatpush1.msra.mxu0 0.0
        %2386 = vmatprep.subr.mxu0 0.0
        %2387 = vmatpush1.msra.mxu0 0.0
        %2388 = vmatprep.subr.mxu0 0.0
        %2389 = vmatpush1.msra.mxu0 0.0
        %2390 = vmatprep.subr.mxu0 0.0
        %2391 = vmatpush1.msra.mxu0 0.0
        %2392 = vmatprep.subr.mxu0 0.0
        %2393 = vmatpush1.msra.mxu0 0.0
        %2394 = vmatprep.subr.mxu0 0.0
        %2395 = vmatpush1.msra.mxu0 0.0
        %2396 = vmatprep.subr.mxu0 0.0
        %2397 = vmatpush1.msra.mxu0 0.0
        %2398 = vmatprep.subr.mxu0 0.0
        %2399 = vmatpush1.msra.mxu0 0.0
        %2400 = vmatprep.subr.mxu0 0.0
        %2401 = vmatpush1.msra.mxu0 0.0
        %2402 = vmatprep.subr.mxu0 0.0
        %2403 = vmatpush1.msra.mxu0 0.0
        %2404 = vmatprep.subr.mxu0 0.0
        %2405 = vmatpush1.msra.mxu0 0.0
        %2406 = vmatprep.subr.mxu0 0.0
        %2407 = vmatpush1.msra.mxu0 0.0
        %2408 = vmatprep.subr.mxu0 0.0
        %2409 = vmatpush1.msra.mxu0 0.0
        %2410 = vmatprep.subr.mxu0 0.0
        %2411 = vmatpush1.msra.mxu0 0.0
        %2412 = vmatprep.subr.mxu0 0.0
        %2413 = vmatpush1.msra.mxu0 0.0
        %2414 = vmatprep.subr.mxu0 0.0
        %2415 = vmatpush1.msra.mxu0 0.0
        %2416 = vmatprep.subr.mxu0 0.0
        %2417 = vmatpush1.msra.mxu0 0.0
        %2418 = vmatprep.subr.mxu0 0.0
        %2419 = vmatpush1.msra.mxu0 0.0
        %2420 = vmatprep.mubr.f32.mxu0 0.0
        %2421 = vmatmul.mubr.f32.gmra.mrb[0].mxu0 %v2354
        %v2422 = vpop.f32.mrb[0].mxu0
        %v2423 = vadd.f32 0.0, %v2422
        %v2424 = vpop.f32.mrb[0].mxu0
        %v2425 = vadd.f32 0.0, %v2424
        %2426 = vdwg.mxu0
        %v2428 = vsel %vm2352, %v2351, 0
        %2430 = vmatprep.subr.mxu0 %v851
        %2431 = vmatpush1.msra.mxu0 %v850
        %2432 = vmatprep.subr.mxu0 %v853
        %2433 = vmatpush1.msra.mxu0 %v852
        %2434 = vmatprep.subr.mxu0 0.0
        %2435 = vmatpush1.msra.mxu0 0.0
        %2436 = vmatprep.subr.mxu0 0.0
        %2437 = vmatpush1.msra.mxu0 0.0
        %2438 = vmatprep.subr.mxu0 0.0
        %2439 = vmatpush1.msra.mxu0 0.0
        %2440 = vmatprep.subr.mxu0 0.0
        %2441 = vmatpush1.msra.mxu0 0.0
        %2442 = vmatprep.subr.mxu0 0.0
        %2443 = vmatpush1.msra.mxu0 0.0
        %2444 = vmatprep.subr.mxu0 0.0
        %2445 = vmatpush1.msra.mxu0 0.0
        %2446 = vmatprep.subr.mxu0 0.0
        %2447 = vmatpush1.msra.mxu0 0.0
        %2448 = vmatprep.subr.mxu0 0.0
        %2449 = vmatpush1.msra.mxu0 0.0
        %2450 = vmatprep.subr.mxu0 0.0
        %2451 = vmatpush1.msra.mxu0 0.0
        %2452 = vmatprep.subr.mxu0 0.0
        %2453 = vmatpush1.msra.mxu0 0.0
        %2454 = vmatprep.subr.mxu0 0.0
        %2455 = vmatpush1.msra.mxu0 0.0
        %2456 = vmatprep.subr.mxu0 0.0
        %2457 = vmatpush1.msra.mxu0 0.0
        %2458 = vmatprep.subr.mxu0 0.0
        %2459 = vmatpush1.msra.mxu0 0.0
        %2460 = vmatprep.subr.mxu0 0.0
        %2461 = vmatpush1.msra.mxu0 0.0
        %2462 = vmatprep.subr.mxu0 0.0
        %2463 = vmatpush1.msra.mxu0 0.0
        %2464 = vmatprep.subr.mxu0 0.0
        %2465 = vmatpush1.msra.mxu0 0.0
        %2466 = vmatprep.subr.mxu0 0.0
        %2467 = vmatpush1.msra.mxu0 0.0
        %2468 = vmatprep.subr.mxu0 0.0
        %2469 = vmatpush1.msra.mxu0 0.0
        %2470 = vmatprep.subr.mxu0 0.0
        %2471 = vmatpush1.msra.mxu0 0.0
        %2472 = vmatprep.subr.mxu0 0.0
        %2473 = vmatpush1.msra.mxu0 0.0
        %2474 = vmatprep.subr.mxu0 0.0
        %2475 = vmatpush1.msra.mxu0 0.0
        %2476 = vmatprep.subr.mxu0 0.0
        %2477 = vmatpush1.msra.mxu0 0.0
        %2478 = vmatprep.subr.mxu0 0.0
        %2479 = vmatpush1.msra.mxu0 0.0
        %2480 = vmatprep.subr.mxu0 0.0
        %2481 = vmatpush1.msra.mxu0 0.0
        %2482 = vmatprep.subr.mxu0 0.0
        %2483 = vmatpush1.msra.mxu0 0.0
        %2484 = vmatprep.subr.mxu0 0.0
        %2485 = vmatpush1.msra.mxu0 0.0
        %2486 = vmatprep.subr.mxu0 0.0
        %2487 = vmatpush1.msra.mxu0 0.0
        %2488 = vmatprep.subr.mxu0 0.0
        %2489 = vmatpush1.msra.mxu0 0.0
        %2490 = vmatprep.subr.mxu0 0.0
        %2491 = vmatpush1.msra.mxu0 0.0
        %2492 = vmatprep.subr.mxu0 0.0
        %2493 = vmatpush1.msra.mxu0 0.0
        %2494 = vmatprep.mubr.f32.mxu0 0.0
        %2495 = vmatmul.mubr.f32.gmra.mrb[0].mxu0 %v2428
        %v2496 = vpop.f32.mrb[0].mxu0
        %v2497 = vadd.f32 0.0, %v2496
        %v2498 = vpop.f32.mrb[0].mxu0
        %v2499 = vadd.f32 0.0, %v2498
        %2500 = vdwg.mxu0
        %v2501 = vmul.f32 %v2423, %v2497
        %v2502 = vmul.f32 %v2425, %v2499
        %v2503 = vmul.f32 %v2501, %v1829
        %v2504 = vmul.f32 %v2502, %v1830
        %v2505 = vsel %vm2006, %v2503, 0.0
        %v2506 = vsel %vm2006, %v2504, 0.0
        %v2507 = vadd.f32 %v2505, %v2506
        %2508 = vadd.xlane.f32.xlu0 %v2507
        %v2509 = vpop.xlane.xlu0 %2508
        %v2510 = vrcp.pop 256.0
        %v2511 = vmul.f32 %v2509, %v2510
        %v2512 = vsel %vm2006, %v2511, 0.0
        %v2513 = vrot.slane %v2512, 4
        %v2514 = vadd.f32 %v2512, %v2513
        %v2515 = vrot.slane %v2514, 2
        %v2516 = vadd.f32 %v2514, %v2515
        %v2517 = vrot.slane %v2516, 1
        %v2518 = vadd.f32 %v2516, %v2517
        %v2519 = vrcp.pop 2.0
        %v2520 = vmul.f32 %v2518, %v2519
        %v2521 = vsub.f32 %v2503, %v2520
        %v2522 = vsub.f32 %v2504, %v2520
        %v2523 = vmul.f32 %v2521, %v2521
        %v2524 = vmul.f32 %v2522, %v2522
        %v2525 = vsel %vm2006, %v2523, 0.0
        %v2526 = vsel %vm2006, %v2524, 0.0
        %v2527 = vadd.f32 %v2525, %v2526
        %2528 = vadd.xlane.f32.xlu0 %v2527
        %v2529 = vpop.xlane.xlu0 %2528
        %v2530 = vmul.f32 %v2529, %v2510
        %v2531 = vsel %vm2006, %v2530, 0.0
        %v2532 = vrot.slane %v2531, 4
        %v2533 = vadd.f32 %v2531, %v2532
        %v2534 = vrot.slane %v2533, 2
        %v2535 = vadd.f32 %v2533, %v2534
        %v2536 = vrot.slane %v2535, 1
        %v2537 = vadd.f32 %v2535, %v2536
        %v2538 = vmul.f32 %v2537, %v2519
        %v2539 = vadd.f32 %v2538, 1e-05
        %v2540 = vrsqrt.pop %v2539
        %v2541 = vmul.f32 %v2521, %v2540
        %v2542 = vmul.f32 %v2522, %v2540
        %2544 = vset.pattern.permute.xlu0 0
        %2545 = vperm.xlu0 %2544, %v866
        %v2546 = vpop.permute.xlu0 %2545
        %v2548 = vmul.f32 %v2541, %v2546
        %v2549 = vmul.f32 %v2542, %v2546
        %2551 = vset.pattern.permute.xlu0 0
        %2552 = vperm.xlu0 %2551, %v867
        %v2553 = vpop.permute.xlu0 %2552
        %v2555 = vadd.f32 %v2548, %v2553
        %v2556 = vadd.f32 %v2549, %v2553
        %2557 = vrot.lane.b32.xlu0 %v2555, 17
        %v2558 = vpop.permute.xlu0 %2557
        %2559 = vrot.lane.b32.xlu0 %v2556, 17
        %v2560 = vpop.permute.xlu0 %2559
        %v2561 = vsel %vm911, %v2558, %v2560
        %v2562 = vsel %vm911, %v2560, %v2558
        %v2563 = vmul.f32 %v2562, %v917
        %v2564 = vmul.f32 %v2561, %v921
        %2565 = vrot.lane.b32.xlu0 %v2555, 16
        %v2566 = vpop.permute.xlu0 %2565
        %2567 = vrot.lane.b32.xlu0 %v2556, 16
        %v2568 = vpop.permute.xlu0 %2567
        %v2569 = vsel %vm928, %v2566, %v2568
        %v2570 = vsel %vm928, %v2568, %v2566
        %v2571 = vmul.f32 %v2570, %v934
        %v2572 = vmul.f32 %v2569, %v938
        %v2574 = vsel %vm1993, %v869, 0
        %v2577 = vsel %vm2006, %v2571, 0
        %v2580 = vsel %vm2006, %v2572, 0
        %2582 = vmatprep.subr.mxu0 %v2580
        %2583 = vmatpush1.msra.mxu0 %v2577
        %2584 = vmatprep.subr.mxu0 0.0
        %2585 = vmatpush1.msra.mxu0 0.0
        %2586 = vmatprep.subr.mxu0 0.0
        %2587 = vmatpush1.msra.mxu0 0.0
        %2588 = vmatprep.subr.mxu0 0.0
        %2589 = vmatpush1.msra.mxu0 0.0
        %2590 = vmatprep.subr.mxu0 0.0
        %2591 = vmatpush1.msra.mxu0 0.0
        %2592 = vmatprep.subr.mxu0 0.0
        %2593 = vmatpush1.msra.mxu0 0.0
        %2594 = vmatprep.subr.mxu0 0.0
        %2595 = vmatpush1.msra.mxu0 0.0
        %2596 = vmatprep.subr.mxu0 0.0
        %2597 = vmatpush1.msra.mxu0 0.0
        %2598 = vmatprep.subr.mxu0 0.0
        %2599 = vmatpush1.msra.mxu0 0.0
        %2600 = vmatprep.subr.mxu0 0.0
        %2601 = vmatpush1.msra.mxu0 0.0
        %2602 = vmatprep.subr.mxu0 0.0
        %2603 = vmatpush1.msra.mxu0 0.0
        %2604 = vmatprep.subr.mxu0 0.0
        %2605 = vmatpush1.msra.mxu0 0.0
        %2606 = vmatprep.subr.mxu0 0.0
        %2607 = vmatpush1.msra.mxu0 0.0
        %2608 = vmatprep.subr.mxu0 0.0
        %2609 = vmatpush1.msra.mxu0 0.0
        %2610 = vmatprep.subr.mxu0 0.0
        %2611 = vmatpush1.msra.mxu0 0.0
        %2612 = vmatprep.subr.mxu0 0.0
        %2613 = vmatpush1.msra.mxu0 0.0
        %2614 = vmatprep.subr.mxu0 0.0
        %2615 = vmatpush1.msra.mxu0 0.0
        %2616 = vmatprep.subr.mxu0 0.0
        %2617 = vmatpush1.msra.mxu0 0.0
        %2618 = vmatprep.subr.mxu0 0.0
        %2619 = vmatpush1.msra.mxu0 0.0
        %2620 = vmatprep.subr.mxu0 0.0
        %2621 = vmatpush1.msra.mxu0 0.0
        %2622 = vmatprep.subr.mxu0 0.0
        %2623 = vmatpush1.msra.mxu0 0.0
        %2624 = vmatprep.subr.mxu0 0.0
        %2625 = vmatpush1.msra.mxu0 0.0
        %2626 = vmatprep.subr.mxu0 0.0
        %2627 = vmatpush1.msra.mxu0 0.0
        %2628 = vmatprep.subr.mxu0 0.0
        %2629 = vmatpush1.msra.mxu0 0.0
        %2630 = vmatprep.subr.mxu0 0.0
        %2631 = vmatpush1.msra.mxu0 0.0
        %2632 = vmatprep.subr.mxu0 0.0
        %2633 = vmatpush1.msra.mxu0 0.0
        %2634 = vmatprep.subr.mxu0 0.0
        %2635 = vmatpush1.msra.mxu0 0.0
        %2636 = vmatprep.subr.mxu0 0.0
        %2637 = vmatpush1.msra.mxu0 0.0
        %2638 = vmatprep.subr.mxu0 0.0
        %2639 = vmatpush1.msra.mxu0 0.0
        %2640 = vmatprep.subr.mxu0 0.0
        %2641 = vmatpush1.msra.mxu0 0.0
        %2642 = vmatprep.subr.mxu0 0.0
        %2643 = vmatpush1.msra.mxu0 0.0
        %2644 = vmatprep.subr.mxu0 0.0
        %2645 = vmatpush1.msra.mxu0 0.0
        %2646 = vmatprep.mubr.f32.mxu0 0.0
        %2647 = vmatmul.mubr.f32.gmra.mrb[0].mxu0 %v2574
        %v2648 = vpop.f32.mrb[0].mxu0
        %v2649 = vadd.f32 0.0, %v2648
        %v2650 = vpop.f32.mrb[0].mxu0
        %v2651 = vadd.f32 0.0, %v2650
        %2652 = vdwg.mxu0
        %v2654 = vsel %vm1993, %v868, 0
        %v2657 = vsel %vm2006, %v2563, 0
        %v2660 = vsel %vm2006, %v2564, 0
        %2662 = vmatprep.subr.mxu0 %v2660
        %2663 = vmatpush1.msra.mxu0 %v2657
        %2664 = vmatprep.subr.mxu0 0.0
        %2665 = vmatpush1.msra.mxu0 0.0
        %2666 = vmatprep.subr.mxu0 0.0
        %2667 = vmatpush1.msra.mxu0 0.0
        %2668 = vmatprep.subr.mxu0 0.0
        %2669 = vmatpush1.msra.mxu0 0.0
        %2670 = vmatprep.subr.mxu0 0.0
        %2671 = vmatpush1.msra.mxu0 0.0
        %2672 = vmatprep.subr.mxu0 0.0
        %2673 = vmatpush1.msra.mxu0 0.0
        %2674 = vmatprep.subr.mxu0 0.0
        %2675 = vmatpush1.msra.mxu0 0.0
        %2676 = vmatprep.subr.mxu0 0.0
        %2677 = vmatpush1.msra.mxu0 0.0
        %2678 = vmatprep.subr.mxu0 0.0
        %2679 = vmatpush1.msra.mxu0 0.0
        %2680 = vmatprep.subr.mxu0 0.0
        %2681 = vmatpush1.msra.mxu0 0.0
        %2682 = vmatprep.subr.mxu0 0.0
        %2683 = vmatpush1.msra.mxu0 0.0
        %2684 = vmatprep.subr.mxu0 0.0
        %2685 = vmatpush1.msra.mxu0 0.0
        %2686 = vmatprep.subr.mxu0 0.0
        %2687 = vmatpush1.msra.mxu0 0.0
        %2688 = vmatprep.subr.mxu0 0.0
        %2689 = vmatpush1.msra.mxu0 0.0
        %2690 = vmatprep.subr.mxu0 0.0
        %2691 = vmatpush1.msra.mxu0 0.0
        %2692 = vmatprep.subr.mxu0 0.0
        %2693 = vmatpush1.msra.mxu0 0.0
        %2694 = vmatprep.subr.mxu0 0.0
        %2695 = vmatpush1.msra.mxu0 0.0
        %2696 = vmatprep.subr.mxu0 0.0
        %2697 = vmatpush1.msra.mxu0 0.0
        %2698 = vmatprep.subr.mxu0 0.0
        %2699 = vmatpush1.msra.mxu0 0.0
        %2700 = vmatprep.subr.mxu0 0.0
        %2701 = vmatpush1.msra.mxu0 0.0
        %2702 = vmatprep.subr.mxu0 0.0
        %2703 = vmatpush1.msra.mxu0 0.0
        %2704 = vmatprep.subr.mxu0 0.0
        %2705 = vmatpush1.msra.mxu0 0.0
        %2706 = vmatprep.subr.mxu0 0.0
        %2707 = vmatpush1.msra.mxu0 0.0
        %2708 = vmatprep.subr.mxu0 0.0
        %2709 = vmatpush1.msra.mxu0 0.0
        %2710 = vmatprep.subr.mxu0 0.0
        %2711 = vmatpush1.msra.mxu0 0.0
        %2712 = vmatprep.subr.mxu0 0.0
        %2713 = vmatpush1.msra.mxu0 0.0
        %2714 = vmatprep.subr.mxu0 0.0
        %2715 = vmatpush1.msra.mxu0 0.0
        %2716 = vmatprep.subr.mxu0 0.0
        %2717 = vmatpush1.msra.mxu0 0.0
        %2718 = vmatprep.subr.mxu0 0.0
        %2719 = vmatpush1.msra.mxu0 0.0
        %2720 = vmatprep.subr.mxu0 0.0
        %2721 = vmatpush1.msra.mxu0 0.0
        %2722 = vmatprep.subr.mxu0 0.0
        %2723 = vmatpush1.msra.mxu0 0.0
        %2724 = vmatprep.subr.mxu0 0.0
        %2725 = vmatpush1.msra.mxu0 0.0
        %2726 = vmatprep.mubr.f32.mxu0 0.0
        %2727 = vmatmul.mubr.f32.gmra.mrb[0].mxu0 %v2654
        %v2728 = vpop.f32.mrb[0].mxu0
        %v2729 = vadd.f32 %v2649, %v2728
        %v2730 = vpop.f32.mrb[0].mxu0
        %v2731 = vadd.f32 %v2651, %v2730
        %2732 = vdwg.mxu0
        %2733 = vrot.lane.b32.xlu0 %v2555, 15
        %v2734 = vpop.permute.xlu0 %2733
        %2735 = vrot.lane.b32.xlu0 %v2556, 15
        %v2736 = vpop.permute.xlu0 %2735
        %v2737 = vsel %vm1107, %v2734, %v2736
        %v2738 = vsel %vm1107, %v2736, %v2734
        %v2739 = vmul.f32 %v2738, %v1113
        %v2740 = vmul.f32 %v2737, %v1117
        %v2742 = vsel %vm1993, %v870, 0
        %v2745 = vsel %vm2006, %v2739, 0
        %v2748 = vsel %vm2006, %v2740, 0
        %2750 = vmatprep.subr.mxu0 %v2748
        %2751 = vmatpush1.msra.mxu0 %v2745
        %2752 = vmatprep.subr.mxu0 0.0
        %2753 = vmatpush1.msra.mxu0 0.0
        %2754 = vmatprep.subr.mxu0 0.0
        %2755 = vmatpush1.msra.mxu0 0.0
        %2756 = vmatprep.subr.mxu0 0.0
        %2757 = vmatpush1.msra.mxu0 0.0
        %2758 = vmatprep.subr.mxu0 0.0
        %2759 = vmatpush1.msra.mxu0 0.0
        %2760 = vmatprep.subr.mxu0 0.0
        %2761 = vmatpush1.msra.mxu0 0.0
        %2762 = vmatprep.subr.mxu0 0.0
        %2763 = vmatpush1.msra.mxu0 0.0
        %2764 = vmatprep.subr.mxu0 0.0
        %2765 = vmatpush1.msra.mxu0 0.0
        %2766 = vmatprep.subr.mxu0 0.0
        %2767 = vmatpush1.msra.mxu0 0.0
        %2768 = vmatprep.subr.mxu0 0.0
        %2769 = vmatpush1.msra.mxu0 0.0
        %2770 = vmatprep.subr.mxu0 0.0
        %2771 = vmatpush1.msra.mxu0 0.0
        %2772 = vmatprep.subr.mxu0 0.0
        %2773 = vmatpush1.msra.mxu0 0.0
        %2774 = vmatprep.subr.mxu0 0.0
        %2775 = vmatpush1.msra.mxu0 0.0
        %2776 = vmatprep.subr.mxu0 0.0
        %2777 = vmatpush1.msra.mxu0 0.0
        %2778 = vmatprep.subr.mxu0 0.0
        %2779 = vmatpush1.msra.mxu0 0.0
        %2780 = vmatprep.subr.mxu0 0.0
        %2781 = vmatpush1.msra.mxu0 0.0
        %2782 = vmatprep.subr.mxu0 0.0
        %2783 = vmatpush1.msra.mxu0 0.0
        %2784 = vmatprep.subr.mxu0 0.0
        %2785 = vmatpush1.msra.mxu0 0.0
        %2786 = vmatprep.subr.mxu0 0.0
        %2787 = vmatpush1.msra.mxu0 0.0
        %2788 = vmatprep.subr.mxu0 0.0
        %2789 = vmatpush1.msra.mxu0 0.0
        %2790 = vmatprep.subr.mxu0 0.0
        %2791 = vmatpush1.msra.mxu0 0.0
        %2792 = vmatprep.subr.mxu0 0.0
        %2793 = vmatpush1.msra.mxu0 0.0
        %2794 = vmatprep.subr.mxu0 0.0
        %2795 = vmatpush1.msra.mxu0 0.0
        %2796 = vmatprep.subr.mxu0 0.0
        %2797 = vmatpush1.msra.mxu0 0.0
        %2798 = vmatprep.subr.mxu0 0.0
        %2799 = vmatpush1.msra.mxu0 0.0
        %2800 = vmatprep.subr.mxu0 0.0
        %2801 = vmatpush1.msra.mxu0 0.0
        %2802 = vmatprep.subr.mxu0 0.0
        %2803 = vmatpush1.msra.mxu0 0.0
        %2804 = vmatprep.subr.mxu0 0.0
        %2805 = vmatpush1.msra.mxu0 0.0
        %2806 = vmatprep.subr.mxu0 0.0
        %2807 = vmatpush1.msra.mxu0 0.0
        %2808 = vmatprep.subr.mxu0 0.0
        %2809 = vmatpush1.msra.mxu0 0.0
        %2810 = vmatprep.subr.mxu0 0.0
        %2811 = vmatpush1.msra.mxu0 0.0
        %2812 = vmatprep.subr.mxu0 0.0
        %2813 = vmatpush1.msra.mxu0 0.0
        %2814 = vmatprep.mubr.f32.mxu0 0.0
        %2815 = vmatmul.mubr.f32.gmra.mrb[0].mxu0 %v2742
        %v2816 = vpop.f32.mrb[0].mxu0
        %v2817 = vadd.f32 0.0, %v2816
        %v2818 = vpop.f32.mrb[0].mxu0
        %v2819 = vadd.f32 0.0, %v2818
        %2820 = vdwg.mxu0
        %v2821 = vadd.f32 %v2729, %v2817
        %v2822 = vadd.f32 %v2731, %v2819
        %2823 = vrot.lane.b32.xlu0 %v2555, 1
        %v2824 = vpop.permute.xlu0 %2823
        %2825 = vrot.lane.b32.xlu0 %v2556, 1
        %v2826 = vpop.permute.xlu0 %2825
        %v2827 = vsel %vm1206, %v2824, %v2826
        %v2828 = vsel %vm1206, %v2826, %v2824
        %v2829 = vmul.f32 %v2828, %v1212
        %v2830 = vmul.f32 %v2827, %v1216
        %v2832 = vsel %vm1993, %v871, 0
        %v2835 = vsel %vm2006, %v2829, 0
        %v2838 = vsel %vm2006, %v2830, 0
        %2840 = vmatprep.subr.mxu0 %v2838
        %2841 = vmatpush1.msra.mxu0 %v2835
        %2842 = vmatprep.subr.mxu0 0.0
        %2843 = vmatpush1.msra.mxu0 0.0
        %2844 = vmatprep.subr.mxu0 0.0
        %2845 = vmatpush1.msra.mxu0 0.0
        %2846 = vmatprep.subr.mxu0 0.0
        %2847 = vmatpush1.msra.mxu0 0.0
        %2848 = vmatprep.subr.mxu0 0.0
        %2849 = vmatpush1.msra.mxu0 0.0
        %2850 = vmatprep.subr.mxu0 0.0
        %2851 = vmatpush1.msra.mxu0 0.0
        %2852 = vmatprep.subr.mxu0 0.0
        %2853 = vmatpush1.msra.mxu0 0.0
        %2854 = vmatprep.subr.mxu0 0.0
        %2855 = vmatpush1.msra.mxu0 0.0
        %2856 = vmatprep.subr.mxu0 0.0
        %2857 = vmatpush1.msra.mxu0 0.0
        %2858 = vmatprep.subr.mxu0 0.0
        %2859 = vmatpush1.msra.mxu0 0.0
        %2860 = vmatprep.subr.mxu0 0.0
        %2861 = vmatpush1.msra.mxu0 0.0
        %2862 = vmatprep.subr.mxu0 0.0
        %2863 = vmatpush1.msra.mxu0 0.0
        %2864 = vmatprep.subr.mxu0 0.0
        %2865 = vmatpush1.msra.mxu0 0.0
        %2866 = vmatprep.subr.mxu0 0.0
        %2867 = vmatpush1.msra.mxu0 0.0
        %2868 = vmatprep.subr.mxu0 0.0
        %2869 = vmatpush1.msra.mxu0 0.0
        %2870 = vmatprep.subr.mxu0 0.0
        %2871 = vmatpush1.msra.mxu0 0.0
        %2872 = vmatprep.subr.mxu0 0.0
        %2873 = vmatpush1.msra.mxu0 0.0
        %2874 = vmatprep.subr.mxu0 0.0
        %2875 = vmatpush1.msra.mxu0 0.0
        %2876 = vmatprep.subr.mxu0 0.0
        %2877 = vmatpush1.msra.mxu0 0.0
        %2878 = vmatprep.subr.mxu0 0.0
        %2879 = vmatpush1.msra.mxu0 0.0
        %2880 = vmatprep.subr.mxu0 0.0
        %2881 = vmatpush1.msra.mxu0 0.0
        %2882 = vmatprep.subr.mxu0 0.0
        %2883 = vmatpush1.msra.mxu0 0.0
        %2884 = vmatprep.subr.mxu0 0.0
        %2885 = vmatpush1.msra.mxu0 0.0
        %2886 = vmatprep.subr.mxu0 0.0
        %2887 = vmatpush1.msra.mxu0 0.0
        %2888 = vmatprep.subr.mxu0 0.0
        %2889 = vmatpush1.msra.mxu0 0.0
        %2890 = vmatprep.subr.mxu0 0.0
        %2891 = vmatpush1.msra.mxu0 0.0
        %2892 = vmatprep.subr.mxu0 0.0
        %2893 = vmatpush1.msra.mxu0 0.0
        %2894 = vmatprep.subr.mxu0 0.0
        %2895 = vmatpush1.msra.mxu0 0.0
        %2896 = vmatprep.subr.mxu0 0.0
        %2897 = vmatpush1.msra.mxu0 0.0
        %2898 = vmatprep.subr.mxu0 0.0
        %2899 = vmatpush1.msra.mxu0 0.0
        %2900 = vmatprep.subr.mxu0 0.0
        %2901 = vmatpush1.msra.mxu0 0.0
        %2902 = vmatprep.subr.mxu0 0.0
        %2903 = vmatpush1.msra.mxu0 0.0
        %2904 = vmatprep.mubr.f32.mxu0 0.0
        %2905 = vmatmul.mubr.f32.gmra.mrb[0].mxu0 %v2832
        %v2906 = vpop.f32.mrb[0].mxu0
        %v2907 = vadd.f32 0.0, %v2906
        %v2908 = vpop.f32.mrb[0].mxu0
        %v2909 = vadd.f32 0.0, %v2908
        %2910 = vdwg.mxu0
        %v2911 = vadd.f32 %v2821, %v2907
        %v2912 = vadd.f32 %v2822, %v2909
        %v2914 = vsel %vm1993, %v872, 0
        %v2917 = vsel %vm2006, %v2555, 0
        %v2920 = vsel %vm2006, %v2556, 0
        %2922 = vmatprep.subr.mxu0 %v2920
        %2923 = vmatpush1.msra.mxu0 %v2917
        %2924 = vmatprep.subr.mxu0 0.0
        %2925 = vmatpush1.msra.mxu0 0.0
        %2926 = vmatprep.subr.mxu0 0.0
        %2927 = vmatpush1.msra.mxu0 0.0
        %2928 = vmatprep.subr.mxu0 0.0
        %2929 = vmatpush1.msra.mxu0 0.0
        %2930 = vmatprep.subr.mxu0 0.0
        %2931 = vmatpush1.msra.mxu0 0.0
        %2932 = vmatprep.subr.mxu0 0.0
        %2933 = vmatpush1.msra.mxu0 0.0
        %2934 = vmatprep.subr.mxu0 0.0
        %2935 = vmatpush1.msra.mxu0 0.0
        %2936 = vmatprep.subr.mxu0 0.0
        %2937 = vmatpush1.msra.mxu0 0.0
        %2938 = vmatprep.subr.mxu0 0.0
        %2939 = vmatpush1.msra.mxu0 0.0
        %2940 = vmatprep.subr.mxu0 0.0
        %2941 = vmatpush1.msra.mxu0 0.0
        %2942 = vmatprep.subr.mxu0 0.0
        %2943 = vmatpush1.msra.mxu0 0.0
        %2944 = vmatprep.subr.mxu0 0.0
        %2945 = vmatpush1.msra.mxu0 0.0
        %2946 = vmatprep.subr.mxu0 0.0
        %2947 = vmatpush1.msra.mxu0 0.0
        %2948 = vmatprep.subr.mxu0 0.0
        %2949 = vmatpush1.msra.mxu0 0.0
        %2950 = vmatprep.subr.mxu0 0.0
        %2951 = vmatpush1.msra.mxu0 0.0
        %2952 = vmatprep.subr.mxu0 0.0
        %2953 = vmatpush1.msra.mxu0 0.0
        %2954 = vmatprep.subr.mxu0 0.0
        %2955 = vmatpush1.msra.mxu0 0.0
        %2956 = vmatprep.subr.mxu0 0.0
        %2957 = vmatpush1.msra.mxu0 0.0
        %2958 = vmatprep.subr.mxu0 0.0
        %2959 = vmatpush1.msra.mxu0 0.0
        %2960 = vmatprep.subr.mxu0 0.0
        %2961 = vmatpush1.msra.mxu0 0.0
        %2962 = vmatprep.subr.mxu0 0.0
        %2963 = vmatpush1.msra.mxu0 0.0
        %2964 = vmatprep.subr.mxu0 0.0
        %2965 = vmatpush1.msra.mxu0 0.0
        %2966 = vmatprep.subr.mxu0 0.0
        %2967 = vmatpush1.msra.mxu0 0.0
        %2968 = vmatprep.subr.mxu0 0.0
        %2969 = vmatpush1.msra.mxu0 0.0
        %2970 = vmatprep.subr.mxu0 0.0
        %2971 = vmatpush1.msra.mxu0 0.0
        %2972 = vmatprep.subr.mxu0 0.0
        %2973 = vmatpush1.msra.mxu0 0.0
        %2974 = vmatprep.subr.mxu0 0.0
        %2975 = vmatpush1.msra.mxu0 0.0
        %2976 = vmatprep.subr.mxu0 0.0
        %2977 = vmatpush1.msra.mxu0 0.0
        %2978 = vmatprep.subr.mxu0 0.0
        %2979 = vmatpush1.msra.mxu0 0.0
        %2980 = vmatprep.subr.mxu0 0.0
        %2981 = vmatpush1.msra.mxu0 0.0
        %2982 = vmatprep.subr.mxu0 0.0
        %2983 = vmatpush1.msra.mxu0 0.0
        %2984 = vmatprep.subr.mxu0 0.0
        %2985 = vmatpush1.msra.mxu0 0.0
        %2986 = vmatprep.mubr.f32.mxu0 0.0
        %2987 = vmatmul.mubr.f32.gmra.mrb[0].mxu0 %v2914
        %v2988 = vpop.f32.mrb[0].mxu0
        %v2989 = vadd.f32 0.0, %v2988
        %v2990 = vpop.f32.mrb[0].mxu0
        %v2991 = vadd.f32 0.0, %v2990
        %2992 = vdwg.mxu0
        %v2993 = vadd.f32 %v2911, %v2989
        %v2994 = vadd.f32 %v2912, %v2991
        %2995 = vrot.lane.b32.xlu0 %v2555, 127
        %v2996 = vpop.permute.xlu0 %2995
        %2997 = vrot.lane.b32.xlu0 %v2556, 127
        %v2998 = vpop.permute.xlu0 %2997
        %v2999 = vsel %vm1385, %v2996, %v2998
        %v3000 = vsel %vm1385, %v2998, %v2996
        %v3001 = vmul.f32 %v2999, %v1391
        %v3002 = vmul.f32 %v3000, %v1395
        %v3004 = vsel %vm1993, %v873, 0
        %v3007 = vsel %vm2006, %v3001, 0
        %v3010 = vsel %vm2006, %v3002, 0
        %3012 = vmatprep.subr.mxu0 %v3010
        %3013 = vmatpush1.msra.mxu0 %v3007
        %3014 = vmatprep.subr.mxu0 0.0
        %3015 = vmatpush1.msra.mxu0 0.0
        %3016 = vmatprep.subr.mxu0 0.0
        %3017 = vmatpush1.msra.mxu0 0.0
        %3018 = vmatprep.subr.mxu0 0.0
        %3019 = vmatpush1.msra.mxu0 0.0
        %3020 = vmatprep.subr.mxu0 0.0
        %3021 = vmatpush1.msra.mxu0 0.0
        %3022 = vmatprep.subr.mxu0 0.0
        %3023 = vmatpush1.msra.mxu0 0.0
        %3024 = vmatprep.subr.mxu0 0.0
        %3025 = vmatpush1.msra.mxu0 0.0
        %3026 = vmatprep.subr.mxu0 0.0
        %3027 = vmatpush1.msra.mxu0 0.0
        %3028 = vmatprep.subr.mxu0 0.0
        %3029 = vmatpush1.msra.mxu0 0.0
        %3030 = vmatprep.subr.mxu0 0.0
        %3031 = vmatpush1.msra.mxu0 0.0
        %3032 = vmatprep.subr.mxu0 0.0
        %3033 = vmatpush1.msra.mxu0 0.0
        %3034 = vmatprep.subr.mxu0 0.0
        %3035 = vmatpush1.msra.mxu0 0.0
        %3036 = vmatprep.subr.mxu0 0.0
        %3037 = vmatpush1.msra.mxu0 0.0
        %3038 = vmatprep.subr.mxu0 0.0
        %3039 = vmatpush1.msra.mxu0 0.0
        %3040 = vmatprep.subr.mxu0 0.0
        %3041 = vmatpush1.msra.mxu0 0.0
        %3042 = vmatprep.subr.mxu0 0.0
        %3043 = vmatpush1.msra.mxu0 0.0
        %3044 = vmatprep.subr.mxu0 0.0
        %3045 = vmatpush1.msra.mxu0 0.0
        %3046 = vmatprep.subr.mxu0 0.0
        %3047 = vmatpush1.msra.mxu0 0.0
        %3048 = vmatprep.subr.mxu0 0.0
        %3049 = vmatpush1.msra.mxu0 0.0
        %3050 = vmatprep.subr.mxu0 0.0
        %3051 = vmatpush1.msra.mxu0 0.0
        %3052 = vmatprep.subr.mxu0 0.0
        %3053 = vmatpush1.msra.mxu0 0.0
        %3054 = vmatprep.subr.mxu0 0.0
        %3055 = vmatpush1.msra.mxu0 0.0
        %3056 = vmatprep.subr.mxu0 0.0
        %3057 = vmatpush1.msra.mxu0 0.0
        %3058 = vmatprep.subr.mxu0 0.0
        %3059 = vmatpush1.msra.mxu0 0.0
        %3060 = vmatprep.subr.mxu0 0.0
        %3061 = vmatpush1.msra.mxu0 0.0
        %3062 = vmatprep.subr.mxu0 0.0
        %3063 = vmatpush1.msra.mxu0 0.0
        %3064 = vmatprep.subr.mxu0 0.0
        %3065 = vmatpush1.msra.mxu0 0.0
        %3066 = vmatprep.subr.mxu0 0.0
        %3067 = vmatpush1.msra.mxu0 0.0
        %3068 = vmatprep.subr.mxu0 0.0
        %3069 = vmatpush1.msra.mxu0 0.0
        %3070 = vmatprep.subr.mxu0 0.0
        %3071 = vmatpush1.msra.mxu0 0.0
        %3072 = vmatprep.subr.mxu0 0.0
        %3073 = vmatpush1.msra.mxu0 0.0
        %3074 = vmatprep.subr.mxu0 0.0
        %3075 = vmatpush1.msra.mxu0 0.0
        %3076 = vmatprep.mubr.f32.mxu0 0.0
        %3077 = vmatmul.mubr.f32.gmra.mrb[0].mxu0 %v3004
        %v3078 = vpop.f32.mrb[0].mxu0
        %v3079 = vadd.f32 0.0, %v3078
        %v3080 = vpop.f32.mrb[0].mxu0
        %v3081 = vadd.f32 0.0, %v3080
        %3082 = vdwg.mxu0
        %v3083 = vadd.f32 %v2993, %v3079
        %v3084 = vadd.f32 %v2994, %v3081
        %3085 = vrot.lane.b32.xlu0 %v2555, 113
        %v3086 = vpop.permute.xlu0 %3085
        %3087 = vrot.lane.b32.xlu0 %v2556, 113
        %v3088 = vpop.permute.xlu0 %3087
        %v3089 = vsel %vm1484, %v3086, %v3088
        %v3090 = vsel %vm1484, %v3088, %v3086
        %v3091 = vmul.f32 %v3089, %v1490
        %v3092 = vmul.f32 %v3090, %v1494
        %v3094 = vsel %vm1993, %v874, 0
        %v3097 = vsel %vm2006, %v3091, 0
        %v3100 = vsel %vm2006, %v3092, 0
        %3102 = vmatprep.subr.mxu0 %v3100
        %3103 = vmatpush1.msra.mxu0 %v3097
        %3104 = vmatprep.subr.mxu0 0.0
        %3105 = vmatpush1.msra.mxu0 0.0
        %3106 = vmatprep.subr.mxu0 0.0
        %3107 = vmatpush1.msra.mxu0 0.0
        %3108 = vmatprep.subr.mxu0 0.0
        %3109 = vmatpush1.msra.mxu0 0.0
        %3110 = vmatprep.subr.mxu0 0.0
        %3111 = vmatpush1.msra.mxu0 0.0
        %3112 = vmatprep.subr.mxu0 0.0
        %3113 = vmatpush1.msra.mxu0 0.0
        %3114 = vmatprep.subr.mxu0 0.0
        %3115 = vmatpush1.msra.mxu0 0.0
        %3116 = vmatprep.subr.mxu0 0.0
        %3117 = vmatpush1.msra.mxu0 0.0
        %3118 = vmatprep.subr.mxu0 0.0
        %3119 = vmatpush1.msra.mxu0 0.0
        %3120 = vmatprep.subr.mxu0 0.0
        %3121 = vmatpush1.msra.mxu0 0.0
        %3122 = vmatprep.subr.mxu0 0.0
        %3123 = vmatpush1.msra.mxu0 0.0
        %3124 = vmatprep.subr.mxu0 0.0
        %3125 = vmatpush1.msra.mxu0 0.0
        %3126 = vmatprep.subr.mxu0 0.0
        %3127 = vmatpush1.msra.mxu0 0.0
        %3128 = vmatprep.subr.mxu0 0.0
        %3129 = vmatpush1.msra.mxu0 0.0
        %3130 = vmatprep.subr.mxu0 0.0
        %3131 = vmatpush1.msra.mxu0 0.0
        %3132 = vmatprep.subr.mxu0 0.0
        %3133 = vmatpush1.msra.mxu0 0.0
        %3134 = vmatprep.subr.mxu0 0.0
        %3135 = vmatpush1.msra.mxu0 0.0
        %3136 = vmatprep.subr.mxu0 0.0
        %3137 = vmatpush1.msra.mxu0 0.0
        %3138 = vmatprep.subr.mxu0 0.0
        %3139 = vmatpush1.msra.mxu0 0.0
        %3140 = vmatprep.subr.mxu0 0.0
        %3141 = vmatpush1.msra.mxu0 0.0
        %3142 = vmatprep.subr.mxu0 0.0
        %3143 = vmatpush1.msra.mxu0 0.0
        %3144 = vmatprep.subr.mxu0 0.0
        %3145 = vmatpush1.msra.mxu0 0.0
        %3146 = vmatprep.subr.mxu0 0.0
        %3147 = vmatpush1.msra.mxu0 0.0
        %3148 = vmatprep.subr.mxu0 0.0
        %3149 = vmatpush1.msra.mxu0 0.0
        %3150 = vmatprep.subr.mxu0 0.0
        %3151 = vmatpush1.msra.mxu0 0.0
        %3152 = vmatprep.subr.mxu0 0.0
        %3153 = vmatpush1.msra.mxu0 0.0
        %3154 = vmatprep.subr.mxu0 0.0
        %3155 = vmatpush1.msra.mxu0 0.0
        %3156 = vmatprep.subr.mxu0 0.0
        %3157 = vmatpush1.msra.mxu0 0.0
        %3158 = vmatprep.subr.mxu0 0.0
        %3159 = vmatpush1.msra.mxu0 0.0
        %3160 = vmatprep.subr.mxu0 0.0
        %3161 = vmatpush1.msra.mxu0 0.0
        %3162 = vmatprep.subr.mxu0 0.0
        %3163 = vmatpush1.msra.mxu0 0.0
        %3164 = vmatprep.subr.mxu0 0.0
        %3165 = vmatpush1.msra.mxu0 0.0
        %3166 = vmatprep.mubr.f32.mxu0 0.0
        %3167 = vmatmul.mubr.f32.gmra.mrb[0].mxu0 %v3094
        %v3168 = vpop.f32.mrb[0].mxu0
        %v3169 = vadd.f32 0.0, %v3168
        %v3170 = vpop.f32.mrb[0].mxu0
        %v3171 = vadd.f32 0.0, %v3170
        %3172 = vdwg.mxu0
        %v3173 = vadd.f32 %v3083, %v3169
        %v3174 = vadd.f32 %v3084, %v3171
        %3175 = vrot.lane.b32.xlu0 %v2555, 112
        %v3176 = vpop.permute.xlu0 %3175
        %3177 = vrot.lane.b32.xlu0 %v2556, 112
        %v3178 = vpop.permute.xlu0 %3177
        %v3179 = vsel %vm1583, %v3176, %v3178
        %v3180 = vsel %vm1583, %v3178, %v3176
        %v3181 = vmul.f32 %v3179, %v1589
        %v3182 = vmul.f32 %v3180, %v1593
        %v3184 = vsel %vm1993, %v875, 0
        %v3187 = vsel %vm2006, %v3181, 0
        %v3190 = vsel %vm2006, %v3182, 0
        %3192 = vmatprep.subr.mxu0 %v3190
        %3193 = vmatpush1.msra.mxu0 %v3187
        %3194 = vmatprep.subr.mxu0 0.0
        %3195 = vmatpush1.msra.mxu0 0.0
        %3196 = vmatprep.subr.mxu0 0.0
        %3197 = vmatpush1.msra.mxu0 0.0
        %3198 = vmatprep.subr.mxu0 0.0
        %3199 = vmatpush1.msra.mxu0 0.0
        %3200 = vmatprep.subr.mxu0 0.0
        %3201 = vmatpush1.msra.mxu0 0.0
        %3202 = vmatprep.subr.mxu0 0.0
        %3203 = vmatpush1.msra.mxu0 0.0
        %3204 = vmatprep.subr.mxu0 0.0
        %3205 = vmatpush1.msra.mxu0 0.0
        %3206 = vmatprep.subr.mxu0 0.0
        %3207 = vmatpush1.msra.mxu0 0.0
        %3208 = vmatprep.subr.mxu0 0.0
        %3209 = vmatpush1.msra.mxu0 0.0
        %3210 = vmatprep.subr.mxu0 0.0
        %3211 = vmatpush1.msra.mxu0 0.0
        %3212 = vmatprep.subr.mxu0 0.0
        %3213 = vmatpush1.msra.mxu0 0.0
        %3214 = vmatprep.subr.mxu0 0.0
        %3215 = vmatpush1.msra.mxu0 0.0
        %3216 = vmatprep.subr.mxu0 0.0
        %3217 = vmatpush1.msra.mxu0 0.0
        %3218 = vmatprep.subr.mxu0 0.0
        %3219 = vmatpush1.msra.mxu0 0.0
        %3220 = vmatprep.subr.mxu0 0.0
        %3221 = vmatpush1.msra.mxu0 0.0
        %3222 = vmatprep.subr.mxu0 0.0
        %3223 = vmatpush1.msra.mxu0 0.0
        %3224 = vmatprep.subr.mxu0 0.0
        %3225 = vmatpush1.msra.mxu0 0.0
        %3226 = vmatprep.subr.mxu0 0.0
        %3227 = vmatpush1.msra.mxu0 0.0
        %3228 = vmatprep.subr.mxu0 0.0
        %3229 = vmatpush1.msra.mxu0 0.0
        %3230 = vmatprep.subr.mxu0 0.0
        %3231 = vmatpush1.msra.mxu0 0.0
        %3232 = vmatprep.subr.mxu0 0.0
        %3233 = vmatpush1.msra.mxu0 0.0
        %3234 = vmatprep.subr.mxu0 0.0
        %3235 = vmatpush1.msra.mxu0 0.0
        %3236 = vmatprep.subr.mxu0 0.0
        %3237 = vmatpush1.msra.mxu0 0.0
        %3238 = vmatprep.subr.mxu0 0.0
        %3239 = vmatpush1.msra.mxu0 0.0
        %3240 = vmatprep.subr.mxu0 0.0
        %3241 = vmatpush1.msra.mxu0 0.0
        %3242 = vmatprep.subr.mxu0 0.0
        %3243 = vmatpush1.msra.mxu0 0.0
        %3244 = vmatprep.subr.mxu0 0.0
        %3245 = vmatpush1.msra.mxu0 0.0
        %3246 = vmatprep.subr.mxu0 0.0
        %3247 = vmatpush1.msra.mxu0 0.0
        %3248 = vmatprep.subr.mxu0 0.0
        %3249 = vmatpush1.msra.mxu0 0.0
        %3250 = vmatprep.subr.mxu0 0.0
        %3251 = vmatpush1.msra.mxu0 0.0
        %3252 = vmatprep.subr.mxu0 0.0
        %3253 = vmatpush1.msra.mxu0 0.0
        %3254 = vmatprep.subr.mxu0 0.0
        %3255 = vmatpush1.msra.mxu0 0.0
        %3256 = vmatprep.mubr.f32.mxu0 0.0
        %3257 = vmatmul.mubr.f32.gmra.mrb[0].mxu0 %v3184
        %v3258 = vpop.f32.mrb[0].mxu0
        %v3259 = vadd.f32 0.0, %v3258
        %v3260 = vpop.f32.mrb[0].mxu0
        %v3261 = vadd.f32 0.0, %v3260
        %3262 = vdwg.mxu0
        %v3263 = vadd.f32 %v3173, %v3259
        %v3264 = vadd.f32 %v3174, %v3261
        %3265 = vrot.lane.b32.xlu0 %v2555, 111
        %v3266 = vpop.permute.xlu0 %3265
        %3267 = vrot.lane.b32.xlu0 %v2556, 111
        %v3268 = vpop.permute.xlu0 %3267
        %v3269 = vsel %vm1682, %v3266, %v3268
        %v3270 = vsel %vm1682, %v3268, %v3266
        %v3271 = vmul.f32 %v3269, %v1688
        %v3272 = vmul.f32 %v3270, %v1692
        %v3274 = vsel %vm1993, %v876, 0
        %v3277 = vsel %vm2006, %v3271, 0
        %v3280 = vsel %vm2006, %v3272, 0
        %3282 = vmatprep.subr.mxu0 %v3280
        %3283 = vmatpush1.msra.mxu0 %v3277
        %3284 = vmatprep.subr.mxu0 0.0
        %3285 = vmatpush1.msra.mxu0 0.0
        %3286 = vmatprep.subr.mxu0 0.0
        %3287 = vmatpush1.msra.mxu0 0.0
        %3288 = vmatprep.subr.mxu0 0.0
        %3289 = vmatpush1.msra.mxu0 0.0
        %3290 = vmatprep.subr.mxu0 0.0
        %3291 = vmatpush1.msra.mxu0 0.0
        %3292 = vmatprep.subr.mxu0 0.0
        %3293 = vmatpush1.msra.mxu0 0.0
        %3294 = vmatprep.subr.mxu0 0.0
        %3295 = vmatpush1.msra.mxu0 0.0
        %3296 = vmatprep.subr.mxu0 0.0
        %3297 = vmatpush1.msra.mxu0 0.0
        %3298 = vmatprep.subr.mxu0 0.0
        %3299 = vmatpush1.msra.mxu0 0.0
        %3300 = vmatprep.subr.mxu0 0.0
        %3301 = vmatpush1.msra.mxu0 0.0
        %3302 = vmatprep.subr.mxu0 0.0
        %3303 = vmatpush1.msra.mxu0 0.0
        %3304 = vmatprep.subr.mxu0 0.0
        %3305 = vmatpush1.msra.mxu0 0.0
        %3306 = vmatprep.subr.mxu0 0.0
        %3307 = vmatpush1.msra.mxu0 0.0
        %3308 = vmatprep.subr.mxu0 0.0
        %3309 = vmatpush1.msra.mxu0 0.0
        %3310 = vmatprep.subr.mxu0 0.0
        %3311 = vmatpush1.msra.mxu0 0.0
        %3312 = vmatprep.subr.mxu0 0.0
        %3313 = vmatpush1.msra.mxu0 0.0
        %3314 = vmatprep.subr.mxu0 0.0
        %3315 = vmatpush1.msra.mxu0 0.0
        %3316 = vmatprep.subr.mxu0 0.0
        %3317 = vmatpush1.msra.mxu0 0.0
        %3318 = vmatprep.subr.mxu0 0.0
        %3319 = vmatpush1.msra.mxu0 0.0
        %3320 = vmatprep.subr.mxu0 0.0
        %3321 = vmatpush1.msra.mxu0 0.0
        %3322 = vmatprep.subr.mxu0 0.0
        %3323 = vmatpush1.msra.mxu0 0.0
        %3324 = vmatprep.subr.mxu0 0.0
        %3325 = vmatpush1.msra.mxu0 0.0
        %3326 = vmatprep.subr.mxu0 0.0
        %3327 = vmatpush1.msra.mxu0 0.0
        %3328 = vmatprep.subr.mxu0 0.0
        %3329 = vmatpush1.msra.mxu0 0.0
        %3330 = vmatprep.subr.mxu0 0.0
        %3331 = vmatpush1.msra.mxu0 0.0
        %3332 = vmatprep.subr.mxu0 0.0
        %3333 = vmatpush1.msra.mxu0 0.0
        %3334 = vmatprep.subr.mxu0 0.0
        %3335 = vmatpush1.msra.mxu0 0.0
        %3336 = vmatprep.subr.mxu0 0.0
        %3337 = vmatpush1.msra.mxu0 0.0
        %3338 = vmatprep.subr.mxu0 0.0
        %3339 = vmatpush1.msra.mxu0 0.0
        %3340 = vmatprep.subr.mxu0 0.0
        %3341 = vmatpush1.msra.mxu0 0.0
        %3342 = vmatprep.subr.mxu0 0.0
        %3343 = vmatpush1.msra.mxu0 0.0
        %3344 = vmatprep.subr.mxu0 0.0
        %3345 = vmatpush1.msra.mxu0 0.0
        %3346 = vmatprep.mubr.f32.mxu0 0.0
        %3347 = vmatmul.mubr.f32.gmra.mrb[0].mxu0 %v3274
        %v3348 = vpop.f32.mrb[0].mxu0
        %v3349 = vadd.f32 0.0, %v3348
        %v3350 = vpop.f32.mrb[0].mxu0
        %v3351 = vadd.f32 0.0, %v3350
        %3352 = vdwg.mxu0
        %v3353 = vadd.f32 %v3263, %v3349
        %v3354 = vadd.f32 %v3264, %v3351
        %3356 = vset.pattern.permute.xlu0 0
        %3357 = vperm.xlu0 %3356, %v877
        %v3358 = vpop.permute.xlu0 %3357
        %v3360 = vadd.f32 %v3353, %v3358
        %v3361 = vadd.f32 %v3354, %v3358
        %v3362 = vsel %vm2006, %v2555, 0.0
        %v3363 = vsel %vm2006, %v2556, 0.0
        %v3364 = vadd.f32 %v3362, %v3363
        %3365 = vadd.xlane.f32.xlu0 %v3364
        %v3366 = vpop.xlane.xlu0 %3365
        %v3367 = vmul.f32 %v3366, %v2510
        %v3368 = vsel %vm2006, %v3367, -inf
        %v3369 = vrot.slane %v3368, 4
        %v3370 = vmax.f32 %v3368, %v3369
        %v3371 = vrot.slane %v3370, 2
        %v3372 = vmax.f32 %v3370, %v3371
        %v3373 = vrot.slane %v3372, 1
        %v3374 = vmax.f32 %v3372, %v3373
        %v3375 = vsub.f32 %v3367, %v3374
        %v3376 = vmul.f32 %v3375, 1.442695
        %v3377 = vpow.pop %v3376
        %v3378 = vsel %vm2006, %v3377, 0.0
        %v3379 = vrot.slane %v3378, 4
        %v3380 = vadd.f32 %v3378, %v3379
        %v3381 = vrot.slane %v3380, 2
        %v3382 = vadd.f32 %v3380, %v3381
        %v3383 = vrot.slane %v3382, 1
        %v3384 = vadd.f32 %v3382, %v3383
        %v3385 = vrcp.pop %v3384
        %v3386 = vmul.f32 %v3377, %v3385
        %v3387 = vsel %vm2006, %v3360, 0.0
        %v3388 = vsel %vm2006, %v3361, 0.0
        %v3389 = vadd.f32 %v3387, %v3388
        %3390 = vadd.xlane.f32.xlu0 %v3389
        %v3391 = vpop.xlane.xlu0 %3390
        %v3392 = vmul.f32 %v3391, %v2510
        %v3393 = vsel %vm2006, %v3392, -inf
        %v3394 = vrot.slane %v3393, 4
        %v3395 = vmax.f32 %v3393, %v3394
        %v3396 = vrot.slane %v3395, 2
        %v3397 = vmax.f32 %v3395, %v3396
        %v3398 = vrot.slane %v3397, 1
        %v3399 = vmax.f32 %v3397, %v3398
        %v3400 = vsub.f32 %v3392, %v3399
        %v3401 = vmul.f32 %v3400, 1.442695
        %v3402 = vpow.pop %v3401
        %v3403 = vsel %vm2006, %v3402, 0.0
        %v3404 = vrot.slane %v3403, 4
        %v3405 = vadd.f32 %v3403, %v3404
        %v3406 = vrot.slane %v3405, 2
        %v3407 = vadd.f32 %v3405, %v3406
        %v3408 = vrot.slane %v3407, 1
        %v3409 = vadd.f32 %v3407, %v3408
        %v3410 = vrcp.pop %v3409
        %v3411 = vmul.f32 %v3402, %v3410
        %v3412 = vmul.f32 %v3386, %v3360
        %v3413 = vmul.f32 %v3386, %v3361
        %v3414 = vmul.f32 %v3411, %v2555
        %v3415 = vmul.f32 %v3411, %v2556
        %v3416 = vadd.f32 %v3412, %v3414
        %v3417 = vadd.f32 %v3413, %v3415
        %v3418 = vsel %vm2006, %v3416, 0.0
        %v3419 = vrot.slane %v3418, 4
        %v3420 = vadd.f32 %v3418, %v3419
        %v3421 = vrot.slane %v3420, 2
        %v3422 = vadd.f32 %v3420, %v3421
        %v3423 = vrot.slane %v3422, 1
        %v3424 = vadd.f32 %v3422, %v3423
        %v3425 = vsel %vm2006, %v3417, 0.0
        %v3426 = vrot.slane %v3425, 4
        %v3427 = vadd.f32 %v3425, %v3426
        %v3428 = vrot.slane %v3427, 2
        %v3429 = vadd.f32 %v3427, %v3428
        %v3430 = vrot.slane %v3429, 1
        %v3431 = vadd.f32 %v3429, %v3430
        %v3432 = vxor.u32 %v3424, 2147483648
        %v3433 = vxor.u32 %v3431, 2147483648
        %v3434 = vmul.f32 %v3432, 1.442695
        %v3435 = vpow.pop %v3434
        %v3436 = vmul.f32 %v3433, 1.442695
        %v3437 = vpow.pop %v3436
        %v3438 = vadd.f32 %v3435, 1.0
        %v3439 = vadd.f32 %v3437, 1.0
        %v3440 = vrcp.pop %v3438
        %v3441 = vmul.f32 1.0, %v3440
        %v3442 = vrcp.pop %v3439
        %v3443 = vmul.f32 1.0, %v3442
        %v3444 = vmul.f32 %v2555, %v3441
        %v3445 = vmul.f32 %v2556, %v3443
        %v3448 = vrot.slane %v1829, 2
        %v3449 = vrot.slane %v1830, 2
        %v3452 = vadd.f32 %v1831, %v3448
        %v3453 = vadd.f32 %v1832, %v3449
        %3454 = vmatprep.subr.mxu0 0.0
        %3455 = vmatpush1.msra.mxu0 %v782
        %3456 = vmatprep.subr.mxu0 0.0
        %3457 = vmatpush1.msra.mxu0 %v783
        %3458 = vmatprep.subr.mxu0 0.0
        %3459 = vmatpush1.msra.mxu0 %v784
        %3460 = vmatprep.subr.mxu0 0.0
        %3461 = vmatpush1.msra.mxu0 %v785
        %3462 = vmatprep.subr.mxu0 0.0
        %3463 = vmatpush1.msra.mxu0 %v786
        %3464 = vmatprep.subr.mxu0 0.0
        %3465 = vmatpush1.msra.mxu0 %v787
        %3466 = vmatprep.subr.mxu0 0.0
        %3467 = vmatpush1.msra.mxu0 %v788
        %3468 = vmatprep.subr.mxu0 0.0
        %3469 = vmatpush1.msra.mxu0 %v789
        %3470 = vmatprep.subr.mxu0 0.0
        %3471 = vmatpush1.msra.mxu0 %v790
        %3472 = vmatprep.subr.mxu0 0.0
        %3473 = vmatpush1.msra.mxu0 %v791
        %3474 = vmatprep.subr.mxu0 0.0
        %3475 = vmatpush1.msra.mxu0 %v792
        %3476 = vmatprep.subr.mxu0 0.0
        %3477 = vmatpush1.msra.mxu0 %v793
        %3478 = vmatprep.subr.mxu0 0.0
        %3479 = vmatpush1.msra.mxu0 %v794
        %3480 = vmatprep.subr.mxu0 0.0
        %3481 = vmatpush1.msra.mxu0 %v795
        %3482 = vmatprep.subr.mxu0 0.0
        %3483 = vmatpush1.msra.mxu0 %v796
        %3484 = vmatprep.subr.mxu0 0.0
        %3485 = vmatpush1.msra.mxu0 %v797
        %3486 = vmatprep.subr.mxu0 0.0
        %3487 = vmatpush1.msra.mxu0 %v798
        %3488 = vmatprep.subr.mxu0 0.0
        %3489 = vmatpush1.msra.mxu0 %v799
        %3490 = vmatprep.subr.mxu0 0.0
        %3491 = vmatpush1.msra.mxu0 %v800
        %3492 = vmatprep.subr.mxu0 0.0
        %3493 = vmatpush1.msra.mxu0 %v801
        %3494 = vmatprep.subr.mxu0 0.0
        %3495 = vmatpush1.msra.mxu0 %v802
        %3496 = vmatprep.subr.mxu0 0.0
        %3497 = vmatpush1.msra.mxu0 %v803
        %3498 = vmatprep.subr.mxu0 0.0
        %3499 = vmatpush1.msra.mxu0 %v804
        %3500 = vmatprep.subr.mxu0 0.0
        %3501 = vmatpush1.msra.mxu0 %v805
        %3502 = vmatprep.subr.mxu0 0.0
        %3503 = vmatpush1.msra.mxu0 %v806
        %3504 = vmatprep.subr.mxu0 0.0
        %3505 = vmatpush1.msra.mxu0 %v807
        %3506 = vmatprep.subr.mxu0 0.0
        %3507 = vmatpush1.msra.mxu0 %v808
        %3508 = vmatprep.subr.mxu0 0.0
        %3509 = vmatpush1.msra.mxu0 %v809
        %3510 = vmatprep.subr.mxu0 0.0
        %3511 = vmatpush1.msra.mxu0 %v810
        %3512 = vmatprep.subr.mxu0 0.0
        %3513 = vmatpush1.msra.mxu0 %v811
        %3514 = vmatprep.subr.mxu0 0.0
        %3515 = vmatpush1.msra.mxu0 %v812
        %3516 = vmatprep.subr.mxu0 0.0
        %3517 = vmatpush1.msra.mxu0 %v813
        %3518 = vmatprep.mubr.f32.mxu0 %v3449
        %3519 = vmatmul.mubr.f32.gmra.mrb[0].mxu0 %v3448
        %v3520 = vpop.f32.mrb[0].mxu0
        %v3521 = vadd.f32 0.0, %v3520
        %v3522 = vpop.f32.mrb[0].mxu0
        %3523 = vdwg.mxu0
        %3524 = vmatprep.subr.mxu0 0.0
        %3525 = vmatpush1.msra.mxu0 %v814
        %3526 = vmatprep.subr.mxu0 0.0
        %3527 = vmatpush1.msra.mxu0 %v815
        %3528 = vmatprep.subr.mxu0 0.0
        %3529 = vmatpush1.msra.mxu0 %v816
        %3530 = vmatprep.subr.mxu0 0.0
        %3531 = vmatpush1.msra.mxu0 %v817
        %3532 = vmatprep.subr.mxu0 0.0
        %3533 = vmatpush1.msra.mxu0 %v818
        %3534 = vmatprep.subr.mxu0 0.0
        %3535 = vmatpush1.msra.mxu0 %v819
        %3536 = vmatprep.subr.mxu0 0.0
        %3537 = vmatpush1.msra.mxu0 %v820
        %3538 = vmatprep.subr.mxu0 0.0
        %3539 = vmatpush1.msra.mxu0 %v821
        %3540 = vmatprep.subr.mxu0 0.0
        %3541 = vmatpush1.msra.mxu0 %v822
        %3542 = vmatprep.subr.mxu0 0.0
        %3543 = vmatpush1.msra.mxu0 %v823
        %3544 = vmatprep.subr.mxu0 0.0
        %3545 = vmatpush1.msra.mxu0 %v824
        %3546 = vmatprep.subr.mxu0 0.0
        %3547 = vmatpush1.msra.mxu0 %v825
        %3548 = vmatprep.subr.mxu0 0.0
        %3549 = vmatpush1.msra.mxu0 %v826
        %3550 = vmatprep.subr.mxu0 0.0
        %3551 = vmatpush1.msra.mxu0 %v827
        %3552 = vmatprep.subr.mxu0 0.0
        %3553 = vmatpush1.msra.mxu0 %v828
        %3554 = vmatprep.subr.mxu0 0.0
        %3555 = vmatpush1.msra.mxu0 %v829
        %3556 = vmatprep.subr.mxu0 0.0
        %3557 = vmatpush1.msra.mxu0 %v830
        %3558 = vmatprep.subr.mxu0 0.0
        %3559 = vmatpush1.msra.mxu0 %v831
        %3560 = vmatprep.subr.mxu0 0.0
        %3561 = vmatpush1.msra.mxu0 %v832
        %3562 = vmatprep.subr.mxu0 0.0
        %3563 = vmatpush1.msra.mxu0 %v833
        %3564 = vmatprep.subr.mxu0 0.0
        %3565 = vmatpush1.msra.mxu0 %v834
        %3566 = vmatprep.subr.mxu0 0.0
        %3567 = vmatpush1.msra.mxu0 %v835
        %3568 = vmatprep.subr.mxu0 0.0
        %3569 = vmatpush1.msra.mxu0 %v836
        %3570 = vmatprep.subr.mxu0 0.0
        %3571 = vmatpush1.msra.mxu0 %v837
        %3572 = vmatprep.subr.mxu0 0.0
        %3573 = vmatpush1.msra.mxu0 %v838
        %3574 = vmatprep.subr.mxu0 0.0
        %3575 = vmatpush1.msra.mxu0 %v839
        %3576 = vmatprep.subr.mxu0 0.0
        %3577 = vmatpush1.msra.mxu0 %v840
        %3578 = vmatprep.subr.mxu0 0.0
        %3579 = vmatpush1.msra.mxu0 %v841
        %3580 = vmatprep.subr.mxu0 0.0
        %3581 = vmatpush1.msra.mxu0 %v842
        %3582 = vmatprep.subr.mxu0 0.0
        %3583 = vmatpush1.msra.mxu0 %v843
        %3584 = vmatprep.subr.mxu0 0.0
        %3585 = vmatpush1.msra.mxu0 %v844
        %3586 = vmatprep.subr.mxu0 0.0
        %3587 = vmatpush1.msra.mxu0 %v845
        %3588 = vmatprep.mubr.f32.mxu0 %v3449
        %3589 = vmatmul.mubr.f32.gmra.mrb[0].mxu0 %v3448
        %v3590 = vpop.f32.mrb[0].mxu0
        %v3591 = vadd.f32 0.0, %v3590
        %v3592 = vpop.f32.mrb[0].mxu0
        %3593 = vdwg.mxu0
        %v3595 = vsel %vm2006, %v3521, 0
        %3597 = vmatprep.subr.mxu0 0.0
        %3598 = vmatpush1.msra.mxu0 %v3595
        %3599 = vmatprep.subr.mxu0 0.0
        %3600 = vmatpush1.msra.mxu0 0.0
        %3601 = vmatprep.subr.mxu0 0.0
        %3602 = vmatpush1.msra.mxu0 0.0
        %3603 = vmatprep.subr.mxu0 0.0
        %3604 = vmatpush1.msra.mxu0 0.0
        %3605 = vmatprep.subr.mxu0 0.0
        %3606 = vmatpush1.msra.mxu0 0.0
        %3607 = vmatprep.subr.mxu0 0.0
        %3608 = vmatpush1.msra.mxu0 0.0
        %3609 = vmatprep.subr.mxu0 0.0
        %3610 = vmatpush1.msra.mxu0 0.0
        %3611 = vmatprep.subr.mxu0 0.0
        %3612 = vmatpush1.msra.mxu0 0.0
        %3613 = vmatprep.subr.mxu0 0.0
        %3614 = vmatpush1.msra.mxu0 0.0
        %3615 = vmatprep.subr.mxu0 0.0
        %3616 = vmatpush1.msra.mxu0 0.0
        %3617 = vmatprep.subr.mxu0 0.0
        %3618 = vmatpush1.msra.mxu0 0.0
        %3619 = vmatprep.subr.mxu0 0.0
        %3620 = vmatpush1.msra.mxu0 0.0
        %3621 = vmatprep.subr.mxu0 0.0
        %3622 = vmatpush1.msra.mxu0 0.0
        %3623 = vmatprep.subr.mxu0 0.0
        %3624 = vmatpush1.msra.mxu0 0.0
        %3625 = vmatprep.subr.mxu0 0.0
        %3626 = vmatpush1.msra.mxu0 0.0
        %3627 = vmatprep.subr.mxu0 0.0
        %3628 = vmatpush1.msra.mxu0 0.0
        %3629 = vmatprep.subr.mxu0 0.0
        %3630 = vmatpush1.msra.mxu0 0.0
        %3631 = vmatprep.subr.mxu0 0.0
        %3632 = vmatpush1.msra.mxu0 0.0
        %3633 = vmatprep.subr.mxu0 0.0
        %3634 = vmatpush1.msra.mxu0 0.0
        %3635 = vmatprep.subr.mxu0 0.0
        %3636 = vmatpush1.msra.mxu0 0.0
        %3637 = vmatprep.subr.mxu0 0.0
        %3638 = vmatpush1.msra.mxu0 0.0
        %3639 = vmatprep.subr.mxu0 0.0
        %3640 = vmatpush1.msra.mxu0 0.0
        %3641 = vmatprep.subr.mxu0 0.0
        %3642 = vmatpush1.msra.mxu0 0.0
        %3643 = vmatprep.subr.mxu0 0.0
        %3644 = vmatpush1.msra.mxu0 0.0
        %3645 = vmatprep.subr.mxu0 0.0
        %3646 = vmatpush1.msra.mxu0 0.0
        %3647 = vmatprep.subr.mxu0 0.0
        %3648 = vmatpush1.msra.mxu0 0.0
        %3649 = vmatprep.subr.mxu0 0.0
        %3650 = vmatpush1.msra.mxu0 0.0
        %3651 = vmatprep.subr.mxu0 0.0
        %3652 = vmatpush1.msra.mxu0 0.0
        %3653 = vmatprep.subr.mxu0 0.0
        %3654 = vmatpush1.msra.mxu0 0.0
        %3655 = vmatprep.subr.mxu0 0.0
        %3656 = vmatpush1.msra.mxu0 0.0
        %3657 = vmatprep.subr.mxu0 0.0
        %3658 = vmatpush1.msra.mxu0 0.0
        %3659 = vmatprep.subr.mxu0 0.0
        %3660 = vmatpush1.msra.mxu0 0.0
        %3661 = vmatprep.mubr.f32.mxu0 0.0
        %3662 = vmatmul.mubr.f32.gmra.mrb[0].mxu0 %v1995
        %v3663 = vpop.f32.mrb[0].mxu0
        %v3664 = vadd.f32 %v1976, %v3663
        %v3665 = vpop.f32.mrb[0].mxu0
        %3666 = vmatprep.mubr.f32.mxu0 0.0
        %3667 = vmatmul.mubr.f32.gmra.mrb[0].mxu0 %v1998
        %v3668 = vpop.f32.mrb[0].mxu0
        %v3669 = vadd.f32 %v1981, %v3668
        %v3670 = vpop.f32.mrb[0].mxu0
        %3671 = vmatprep.mubr.f32.mxu0 0.0
        %3672 = vmatmul.mubr.f32.gmra.mrb[0].mxu0 %v2001
        %v3673 = vpop.f32.mrb[0].mxu0
        %v3674 = vadd.f32 %v1986, %v3673
        %v3675 = vpop.f32.mrb[0].mxu0
        %3676 = vmatprep.mubr.f32.mxu0 0.0
        %3677 = vmatmul.mubr.f32.gmra.mrb[0].mxu0 %v2004
        %v3678 = vpop.f32.mrb[0].mxu0
        %v3679 = vadd.f32 %v1991, %v3678
        %v3680 = vpop.f32.mrb[0].mxu0
        %3681 = vdwg.mxu0
        %v3683 = vsel %vm2006, %v3591, 0
        %3685 = vmatprep.subr.mxu0 0.0
        %3686 = vmatpush1.msra.mxu0 %v3683
        %3687 = vmatprep.subr.mxu0 0.0
        %3688 = vmatpush1.msra.mxu0 0.0
        %3689 = vmatprep.subr.mxu0 0.0
        %3690 = vmatpush1.msra.mxu0 0.0
        %3691 = vmatprep.subr.mxu0 0.0
        %3692 = vmatpush1.msra.mxu0 0.0
        %3693 = vmatprep.subr.mxu0 0.0
        %3694 = vmatpush1.msra.mxu0 0.0
        %3695 = vmatprep.subr.mxu0 0.0
        %3696 = vmatpush1.msra.mxu0 0.0
        %3697 = vmatprep.subr.mxu0 0.0
        %3698 = vmatpush1.msra.mxu0 0.0
        %3699 = vmatprep.subr.mxu0 0.0
        %3700 = vmatpush1.msra.mxu0 0.0
        %3701 = vmatprep.subr.mxu0 0.0
        %3702 = vmatpush1.msra.mxu0 0.0
        %3703 = vmatprep.subr.mxu0 0.0
        %3704 = vmatpush1.msra.mxu0 0.0
        %3705 = vmatprep.subr.mxu0 0.0
        %3706 = vmatpush1.msra.mxu0 0.0
        %3707 = vmatprep.subr.mxu0 0.0
        %3708 = vmatpush1.msra.mxu0 0.0
        %3709 = vmatprep.subr.mxu0 0.0
        %3710 = vmatpush1.msra.mxu0 0.0
        %3711 = vmatprep.subr.mxu0 0.0
        %3712 = vmatpush1.msra.mxu0 0.0
        %3713 = vmatprep.subr.mxu0 0.0
        %3714 = vmatpush1.msra.mxu0 0.0
        %3715 = vmatprep.subr.mxu0 0.0
        %3716 = vmatpush1.msra.mxu0 0.0
        %3717 = vmatprep.subr.mxu0 0.0
        %3718 = vmatpush1.msra.mxu0 0.0
        %3719 = vmatprep.subr.mxu0 0.0
        %3720 = vmatpush1.msra.mxu0 0.0
        %3721 = vmatprep.subr.mxu0 0.0
        %3722 = vmatpush1.msra.mxu0 0.0
        %3723 = vmatprep.subr.mxu0 0.0
        %3724 = vmatpush1.msra.mxu0 0.0
        %3725 = vmatprep.subr.mxu0 0.0
        %3726 = vmatpush1.msra.mxu0 0.0
        %3727 = vmatprep.subr.mxu0 0.0
        %3728 = vmatpush1.msra.mxu0 0.0
        %3729 = vmatprep.subr.mxu0 0.0
        %3730 = vmatpush1.msra.mxu0 0.0
        %3731 = vmatprep.subr.mxu0 0.0
        %3732 = vmatpush1.msra.mxu0 0.0
        %3733 = vmatprep.subr.mxu0 0.0
        %3734 = vmatpush1.msra.mxu0 0.0
        %3735 = vmatprep.subr.mxu0 0.0
        %3736 = vmatpush1.msra.mxu0 0.0
        %3737 = vmatprep.subr.mxu0 0.0
        %3738 = vmatpush1.msra.mxu0 0.0
        %3739 = vmatprep.subr.mxu0 0.0
        %3740 = vmatpush1.msra.mxu0 0.0
        %3741 = vmatprep.subr.mxu0 0.0
        %3742 = vmatpush1.msra.mxu0 0.0
        %3743 = vmatprep.subr.mxu0 0.0
        %3744 = vmatpush1.msra.mxu0 0.0
        %3745 = vmatprep.subr.mxu0 0.0
        %3746 = vmatpush1.msra.mxu0 0.0
        %3747 = vmatprep.subr.mxu0 0.0
        %3748 = vmatpush1.msra.mxu0 0.0
        %3749 = vmatprep.mubr.f32.mxu0 0.0
        %3750 = vmatmul.mubr.f32.gmra.mrb[0].mxu0 %v1995
        %v3751 = vpop.f32.mrb[0].mxu0
        %v3752 = vadd.f32 %v1976, %v3751
        %v3753 = vpop.f32.mrb[0].mxu0
        %3754 = vmatprep.mubr.f32.mxu0 0.0
        %3755 = vmatmul.mubr.f32.gmra.mrb[0].mxu0 %v1998
        %v3756 = vpop.f32.mrb[0].mxu0
        %v3757 = vadd.f32 %v1981, %v3756
        %v3758 = vpop.f32.mrb[0].mxu0
        %3759 = vmatprep.mubr.f32.mxu0 0.0
        %3760 = vmatmul.mubr.f32.gmra.mrb[0].mxu0 %v2001
        %v3761 = vpop.f32.mrb[0].mxu0
        %v3762 = vadd.f32 %v1986, %v3761
        %v3763 = vpop.f32.mrb[0].mxu0
        %3764 = vmatprep.mubr.f32.mxu0 0.0
        %3765 = vmatmul.mubr.f32.gmra.mrb[0].mxu0 %v2004
        %v3766 = vpop.f32.mrb[0].mxu0
        %v3767 = vadd.f32 %v1991, %v3766
        %v3768 = vpop.f32.mrb[0].mxu0
        %3769 = vdwg.mxu0
        %3770 = vmatprep.subr.mxu0 0.0
        %3771 = vmatpush1.msra.mxu0 %v3664
        %3772 = vmatprep.subr.mxu0 0.0
        %3773 = vmatpush1.msra.mxu0 %v3669
        %3774 = vmatprep.subr.mxu0 0.0
        %3775 = vmatpush1.msra.mxu0 %v3674
        %3776 = vmatprep.subr.mxu0 0.0
        %3777 = vmatpush1.msra.mxu0 %v3679
        %3778 = vmatprep.subr.mxu0 0.0
        %3779 = vmatpush1.msra.mxu0 0.0
        %3780 = vmatprep.subr.mxu0 0.0
        %3781 = vmatpush1.msra.mxu0 0.0
        %3782 = vmatprep.subr.mxu0 0.0
        %3783 = vmatpush1.msra.mxu0 0.0
        %3784 = vmatprep.subr.mxu0 0.0
        %3785 = vmatpush1.msra.mxu0 0.0
        %3786 = vmatprep.subr.mxu0 0.0
        %3787 = vmatpush1.msra.mxu0 0.0
        %3788 = vmatprep.subr.mxu0 0.0
        %3789 = vmatpush1.msra.mxu0 0.0
        %3790 = vmatprep.subr.mxu0 0.0
        %3791 = vmatpush1.msra.mxu0 0.0
        %3792 = vmatprep.subr.mxu0 0.0
        %3793 = vmatpush1.msra.mxu0 0.0
        %3794 = vmatprep.subr.mxu0 0.0
        %3795 = vmatpush1.msra.mxu0 0.0
        %3796 = vmatprep.subr.mxu0 0.0
        %3797 = vmatpush1.msra.mxu0 0.0
        %3798 = vmatprep.subr.mxu0 0.0
        %3799 = vmatpush1.msra.mxu0 0.0
        %3800 = vmatprep.subr.mxu0 0.0
        %3801 = vmatpush1.msra.mxu0 0.0
        %3802 = vmatprep.subr.mxu0 0.0
        %3803 = vmatpush1.msra.mxu0 0.0
        %3804 = vmatprep.subr.mxu0 0.0
        %3805 = vmatpush1.msra.mxu0 0.0
        %3806 = vmatprep.subr.mxu0 0.0
        %3807 = vmatpush1.msra.mxu0 0.0
        %3808 = vmatprep.subr.mxu0 0.0
        %3809 = vmatpush1.msra.mxu0 0.0
        %3810 = vmatprep.subr.mxu0 0.0
        %3811 = vmatpush1.msra.mxu0 0.0
        %3812 = vmatprep.subr.mxu0 0.0
        %3813 = vmatpush1.msra.mxu0 0.0
        %3814 = vmatprep.subr.mxu0 0.0
        %3815 = vmatpush1.msra.mxu0 0.0
        %3816 = vmatprep.subr.mxu0 0.0
        %3817 = vmatpush1.msra.mxu0 0.0
        %3818 = vmatprep.subr.mxu0 0.0
        %3819 = vmatpush1.msra.mxu0 0.0
        %3820 = vmatprep.subr.mxu0 0.0
        %3821 = vmatpush1.msra.mxu0 0.0
        %3822 = vmatprep.subr.mxu0 0.0
        %3823 = vmatpush1.msra.mxu0 0.0
        %3824 = vmatprep.subr.mxu0 0.0
        %3825 = vmatpush1.msra.mxu0 0.0
        %3826 = vmatprep.subr.mxu0 0.0
        %3827 = vmatpush1.msra.mxu0 0.0
        %3828 = vmatprep.subr.mxu0 0.0
        %3829 = vmatpush1.msra.mxu0 0.0
        %3830 = vmatprep.subr.mxu0 0.0
        %3831 = vmatpush1.msra.mxu0 0.0
        %3832 = vmatprep.subr.mxu0 0.0
        %3833 = vmatpush1.msra.mxu0 0.0
        %3834 = vmatprep.mubr.f32.mxu0 0.0
        %3835 = vmatmul.mubr.f32.gmra.mrb[0].mxu0 %v2190
        %v3836 = vpop.f32.mrb[0].mxu0
        %v3837 = vadd.f32 %v2186, %v3836
        %v3838 = vpop.f32.mrb[0].mxu0
        %3839 = vdwg.mxu0
        %v3840 = vxor.u32 %v3837, 2147483648
        %v3841 = vmul.f32 %v3840, 1.442695
        %v3842 = vpow.pop %v3841
        %v3843 = vadd.f32 %v3842, 1.0
        %v3844 = vrcp.pop %v3843
        %v3845 = vmul.f32 1.0, %v3844
        %3846 = vmatprep.subr.mxu0 0.0
        %3847 = vmatpush1.msra.mxu0 %v3752
        %3848 = vmatprep.subr.mxu0 0.0
        %3849 = vmatpush1.msra.mxu0 %v3757
        %3850 = vmatprep.subr.mxu0 0.0
        %3851 = vmatpush1.msra.mxu0 %v3762
        %3852 = vmatprep.subr.mxu0 0.0
        %3853 = vmatpush1.msra.mxu0 %v3767
        %3854 = vmatprep.subr.mxu0 0.0
        %3855 = vmatpush1.msra.mxu0 0.0
        %3856 = vmatprep.subr.mxu0 0.0
        %3857 = vmatpush1.msra.mxu0 0.0
        %3858 = vmatprep.subr.mxu0 0.0
        %3859 = vmatpush1.msra.mxu0 0.0
        %3860 = vmatprep.subr.mxu0 0.0
        %3861 = vmatpush1.msra.mxu0 0.0
        %3862 = vmatprep.subr.mxu0 0.0
        %3863 = vmatpush1.msra.mxu0 0.0
        %3864 = vmatprep.subr.mxu0 0.0
        %3865 = vmatpush1.msra.mxu0 0.0
        %3866 = vmatprep.subr.mxu0 0.0
        %3867 = vmatpush1.msra.mxu0 0.0
        %3868 = vmatprep.subr.mxu0 0.0
        %3869 = vmatpush1.msra.mxu0 0.0
        %3870 = vmatprep.subr.mxu0 0.0
        %3871 = vmatpush1.msra.mxu0 0.0
        %3872 = vmatprep.subr.mxu0 0.0
        %3873 = vmatpush1.msra.mxu0 0.0
        %3874 = vmatprep.subr.mxu0 0.0
        %3875 = vmatpush1.msra.mxu0 0.0
        %3876 = vmatprep.subr.mxu0 0.0
        %3877 = vmatpush1.msra.mxu0 0.0
        %3878 = vmatprep.subr.mxu0 0.0
        %3879 = vmatpush1.msra.mxu0 0.0
        %3880 = vmatprep.subr.mxu0 0.0
        %3881 = vmatpush1.msra.mxu0 0.0
        %3882 = vmatprep.subr.mxu0 0.0
        %3883 = vmatpush1.msra.mxu0 0.0
        %3884 = vmatprep.subr.mxu0 0.0
        %3885 = vmatpush1.msra.mxu0 0.0
        %3886 = vmatprep.subr.mxu0 0.0
        %3887 = vmatpush1.msra.mxu0 0.0
        %3888 = vmatprep.subr.mxu0 0.0
        %3889 = vmatpush1.msra.mxu0 0.0
        %3890 = vmatprep.subr.mxu0 0.0
        %3891 = vmatpush1.msra.mxu0 0.0
        %3892 = vmatprep.subr.mxu0 0.0
        %3893 = vmatpush1.msra.mxu0 0.0
        %3894 = vmatprep.subr.mxu0 0.0
        %3895 = vmatpush1.msra.mxu0 0.0
        %3896 = vmatprep.subr.mxu0 0.0
        %3897 = vmatpush1.msra.mxu0 0.0
        %3898 = vmatprep.subr.mxu0 0.0
        %3899 = vmatpush1.msra.mxu0 0.0
        %3900 = vmatprep.subr.mxu0 0.0
        %3901 = vmatpush1.msra.mxu0 0.0
        %3902 = vmatprep.subr.mxu0 0.0
        %3903 = vmatpush1.msra.mxu0 0.0
        %3904 = vmatprep.subr.mxu0 0.0
        %3905 = vmatpush1.msra.mxu0 0.0
        %3906 = vmatprep.subr.mxu0 0.0
        %3907 = vmatpush1.msra.mxu0 0.0
        %3908 = vmatprep.subr.mxu0 0.0
        %3909 = vmatpush1.msra.mxu0 0.0
        %3910 = vmatprep.mubr.f32.mxu0 0.0
        %3911 = vmatmul.mubr.f32.gmra.mrb[0].mxu0 %v2274
        %v3912 = vpop.f32.mrb[0].mxu0
        %v3913 = vadd.f32 %v2271, %v3912
        %v3914 = vpop.f32.mrb[0].mxu0
        %3915 = vdwg.mxu0
        %v3916 = vxor.u32 %v3913, 2147483648
        %v3917 = vmul.f32 %v3916, 1.442695
        %v3918 = vpow.pop %v3917
        %v3919 = vadd.f32 %v3918, 1.0
        %v3920 = vrcp.pop %v3919
        %v3921 = vmul.f32 1.0, %v3920
        %v3923 = vsel %vm2352, %v3845, 0
        %3925 = vmatprep.subr.mxu0 %v847
        %3926 = vmatpush1.msra.mxu0 %v846
        %3927 = vmatprep.subr.mxu0 %v849
        %3928 = vmatpush1.msra.mxu0 %v848
        %3929 = vmatprep.subr.mxu0 0.0
        %3930 = vmatpush1.msra.mxu0 0.0
        %3931 = vmatprep.subr.mxu0 0.0
        %3932 = vmatpush1.msra.mxu0 0.0
        %3933 = vmatprep.subr.mxu0 0.0
        %3934 = vmatpush1.msra.mxu0 0.0
        %3935 = vmatprep.subr.mxu0 0.0
        %3936 = vmatpush1.msra.mxu0 0.0
        %3937 = vmatprep.subr.mxu0 0.0
        %3938 = vmatpush1.msra.mxu0 0.0
        %3939 = vmatprep.subr.mxu0 0.0
        %3940 = vmatpush1.msra.mxu0 0.0
        %3941 = vmatprep.subr.mxu0 0.0
        %3942 = vmatpush1.msra.mxu0 0.0
        %3943 = vmatprep.subr.mxu0 0.0
        %3944 = vmatpush1.msra.mxu0 0.0
        %3945 = vmatprep.subr.mxu0 0.0
        %3946 = vmatpush1.msra.mxu0 0.0
        %3947 = vmatprep.subr.mxu0 0.0
        %3948 = vmatpush1.msra.mxu0 0.0
        %3949 = vmatprep.subr.mxu0 0.0
        %3950 = vmatpush1.msra.mxu0 0.0
        %3951 = vmatprep.subr.mxu0 0.0
        %3952 = vmatpush1.msra.mxu0 0.0
        %3953 = vmatprep.subr.mxu0 0.0
        %3954 = vmatpush1.msra.mxu0 0.0
        %3955 = vmatprep.subr.mxu0 0.0
        %3956 = vmatpush1.msra.mxu0 0.0
        %3957 = vmatprep.subr.mxu0 0.0
        %3958 = vmatpush1.msra.mxu0 0.0
        %3959 = vmatprep.subr.mxu0 0.0
        %3960 = vmatpush1.msra.mxu0 0.0
        %3961 = vmatprep.subr.mxu0 0.0
        %3962 = vmatpush1.msra.mxu0 0.0
        %3963 = vmatprep.subr.mxu0 0.0
        %3964 = vmatpush1.msra.mxu0 0.0
        %3965 = vmatprep.subr.mxu0 0.0
        %3966 = vmatpush1.msra.mxu0 0.0
        %3967 = vmatprep.subr.mxu0 0.0
        %3968 = vmatpush1.msra.mxu0 0.0
        %3969 = vmatprep.subr.mxu0 0.0
        %3970 = vmatpush1.msra.mxu0 0.0
        %3971 = vmatprep.subr.mxu0 0.0
        %3972 = vmatpush1.msra.mxu0 0.0
        %3973 = vmatprep.subr.mxu0 0.0
        %3974 = vmatpush1.msra.mxu0 0.0
        %3975 = vmatprep.subr.mxu0 0.0
        %3976 = vmatpush1.msra.mxu0 0.0
        %3977 = vmatprep.subr.mxu0 0.0
        %3978 = vmatpush1.msra.mxu0 0.0
        %3979 = vmatprep.subr.mxu0 0.0
        %3980 = vmatpush1.msra.mxu0 0.0
        %3981 = vmatprep.subr.mxu0 0.0
        %3982 = vmatpush1.msra.mxu0 0.0
        %3983 = vmatprep.subr.mxu0 0.0
        %3984 = vmatpush1.msra.mxu0 0.0
        %3985 = vmatprep.subr.mxu0 0.0
        %3986 = vmatpush1.msra.mxu0 0.0
        %3987 = vmatprep.subr.mxu0 0.0
        %3988 = vmatpush1.msra.mxu0 0.0
        %3989 = vmatprep.mubr.f32.mxu0 0.0
        %3990 = vmatmul.mubr.f32.gmra.mrb[0].mxu0 %v3923
        %v3991 = vpop.f32.mrb[0].mxu0
        %v3992 = vadd.f32 0.0, %v3991
        %v3993 = vpop.f32.mrb[0].mxu0
        %v3994 = vadd.f32 0.0, %v3993
        %3995 = vdwg.mxu0
        %v3997 = vsel %vm2352, %v3921, 0
        %3999 = vmatprep.subr.mxu0 %v851
        %4000 = vmatpush1.msra.mxu0 %v850
        %4001 = vmatprep.subr.mxu0 %v853
        %4002 = vmatpush1.msra.mxu0 %v852
        %4003 = vmatprep.subr.mxu0 0.0
        %4004 = vmatpush1.msra.mxu0 0.0
        %4005 = vmatprep.subr.mxu0 0.0
        %4006 = vmatpush1.msra.mxu0 0.0
        %4007 = vmatprep.subr.mxu0 0.0
        %4008 = vmatpush1.msra.mxu0 0.0
        %4009 = vmatprep.subr.mxu0 0.0
        %4010 = vmatpush1.msra.mxu0 0.0
        %4011 = vmatprep.subr.mxu0 0.0
        %4012 = vmatpush1.msra.mxu0 0.0
        %4013 = vmatprep.subr.mxu0 0.0
        %4014 = vmatpush1.msra.mxu0 0.0
        %4015 = vmatprep.subr.mxu0 0.0
        %4016 = vmatpush1.msra.mxu0 0.0
        %4017 = vmatprep.subr.mxu0 0.0
        %4018 = vmatpush1.msra.mxu0 0.0
        %4019 = vmatprep.subr.mxu0 0.0
        %4020 = vmatpush1.msra.mxu0 0.0
        %4021 = vmatprep.subr.mxu0 0.0
        %4022 = vmatpush1.msra.mxu0 0.0
        %4023 = vmatprep.subr.mxu0 0.0
        %4024 = vmatpush1.msra.mxu0 0.0
        %4025 = vmatprep.subr.mxu0 0.0
        %4026 = vmatpush1.msra.mxu0 0.0
        %4027 = vmatprep.subr.mxu0 0.0
        %4028 = vmatpush1.msra.mxu0 0.0
        %4029 = vmatprep.subr.mxu0 0.0
        %4030 = vmatpush1.msra.mxu0 0.0
        %4031 = vmatprep.subr.mxu0 0.0
        %4032 = vmatpush1.msra.mxu0 0.0
        %4033 = vmatprep.subr.mxu0 0.0
        %4034 = vmatpush1.msra.mxu0 0.0
        %4035 = vmatprep.subr.mxu0 0.0
        %4036 = vmatpush1.msra.mxu0 0.0
        %4037 = vmatprep.subr.mxu0 0.0
        %4038 = vmatpush1.msra.mxu0 0.0
        %4039 = vmatprep.subr.mxu0 0.0
        %4040 = vmatpush1.msra.mxu0 0.0
        %4041 = vmatprep.subr.mxu0 0.0
        %4042 = vmatpush1.msra.mxu0 0.0
        %4043 = vmatprep.subr.mxu0 0.0
        %4044 = vmatpush1.msra.mxu0 0.0
        %4045 = vmatprep.subr.mxu0 0.0
        %4046 = vmatpush1.msra.mxu0 0.0
        %4047 = vmatprep.subr.mxu0 0.0
        %4048 = vmatpush1.msra.mxu0 0.0
        %4049 = vmatprep.subr.mxu0 0.0
        %4050 = vmatpush1.msra.mxu0 0.0
        %4051 = vmatprep.subr.mxu0 0.0
        %4052 = vmatpush1.msra.mxu0 0.0
        %4053 = vmatprep.subr.mxu0 0.0
        %4054 = vmatpush1.msra.mxu0 0.0
        %4055 = vmatprep.subr.mxu0 0.0
        %4056 = vmatpush1.msra.mxu0 0.0
        %4057 = vmatprep.subr.mxu0 0.0
        %4058 = vmatpush1.msra.mxu0 0.0
        %4059 = vmatprep.subr.mxu0 0.0
        %4060 = vmatpush1.msra.mxu0 0.0
        %4061 = vmatprep.subr.mxu0 0.0
        %4062 = vmatpush1.msra.mxu0 0.0
        %4063 = vmatprep.mubr.f32.mxu0 0.0
        %4064 = vmatmul.mubr.f32.gmra.mrb[0].mxu0 %v3997
        %v4065 = vpop.f32.mrb[0].mxu0
        %v4066 = vadd.f32 0.0, %v4065
        %v4067 = vpop.f32.mrb[0].mxu0
        %v4068 = vadd.f32 0.0, %v4067
        %4069 = vdwg.mxu0
        %v4070 = vmul.f32 %v3992, %v4066
        %v4071 = vmul.f32 %v3994, %v4068
        %v4072 = vmul.f32 %v4070, %v3448
        %v4073 = vmul.f32 %v4071, %v3449
        %v4074 = vsel %vm2006, %v4072, 0.0
        %v4075 = vsel %vm2006, %v4073, 0.0
        %v4076 = vadd.f32 %v4074, %v4075
        %4077 = vadd.xlane.f32.xlu0 %v4076
        %v4078 = vpop.xlane.xlu0 %4077
        %v4079 = vmul.f32 %v4078, %v2510
        %v4080 = vsel %vm2006, %v4079, 0.0
        %v4081 = vrot.slane %v4080, 4
        %v4082 = vadd.f32 %v4080, %v4081
        %v4083 = vrot.slane %v4082, 2
        %v4084 = vadd.f32 %v4082, %v4083
        %v4085 = vrot.slane %v4084, 1
        %v4086 = vadd.f32 %v4084, %v4085
        %v4087 = vmul.f32 %v4086, %v2519
        %v4088 = vsub.f32 %v4072, %v4087
        %v4089 = vsub.f32 %v4073, %v4087
        %v4090 = vmul.f32 %v4088, %v4088
        %v4091 = vmul.f32 %v4089, %v4089
        %v4092 = vsel %vm2006, %v4090, 0.0
        %v4093 = vsel %vm2006, %v4091, 0.0
        %v4094 = vadd.f32 %v4092, %v4093
        %4095 = vadd.xlane.f32.xlu0 %v4094
        %v4096 = vpop.xlane.xlu0 %4095
        %v4097 = vmul.f32 %v4096, %v2510
        %v4098 = vsel %vm2006, %v4097, 0.0
        %v4099 = vrot.slane %v4098, 4
        %v4100 = vadd.f32 %v4098, %v4099
        %v4101 = vrot.slane %v4100, 2
        %v4102 = vadd.f32 %v4100, %v4101
        %v4103 = vrot.slane %v4102, 1
        %v4104 = vadd.f32 %v4102, %v4103
        %v4105 = vmul.f32 %v4104, %v2519
        %v4106 = vadd.f32 %v4105, 1e-05
        %v4107 = vrsqrt.pop %v4106
        %v4108 = vmul.f32 %v4088, %v4107
        %v4109 = vmul.f32 %v4089, %v4107
        %v4110 = vmul.f32 %v4108, %v2546
        %v4111 = vmul.f32 %v4109, %v2546
        %v4112 = vadd.f32 %v4110, %v2553
        %v4113 = vadd.f32 %v4111, %v2553
        %4114 = vrot.lane.b32.xlu0 %v4112, 17
        %v4115 = vpop.permute.xlu0 %4114
        %4116 = vrot.lane.b32.xlu0 %v4113, 17
        %v4117 = vpop.permute.xlu0 %4116
        %v4118 = vsel %vm911, %v4115, %v4117
        %v4119 = vsel %vm911, %v4117, %v4115
        %v4120 = vmul.f32 %v4119, %v917
        %v4121 = vmul.f32 %v4118, %v921
        %4122 = vrot.lane.b32.xlu0 %v4112, 16
        %v4123 = vpop.permute.xlu0 %4122
        %4124 = vrot.lane.b32.xlu0 %v4113, 16
        %v4125 = vpop.permute.xlu0 %4124
        %v4126 = vsel %vm928, %v4123, %v4125
        %v4127 = vsel %vm928, %v4125, %v4123
        %v4128 = vmul.f32 %v4127, %v934
        %v4129 = vmul.f32 %v4126, %v938
        %v4131 = vsel %vm2006, %v4128, 0
        %v4134 = vsel %vm2006, %v4129, 0
        %4136 = vmatprep.subr.mxu0 %v4134
        %4137 = vmatpush1.msra.mxu0 %v4131
        %4138 = vmatprep.subr.mxu0 0.0
        %4139 = vmatpush1.msra.mxu0 0.0
        %4140 = vmatprep.subr.mxu0 0.0
        %4141 = vmatpush1.msra.mxu0 0.0
        %4142 = vmatprep.subr.mxu0 0.0
        %4143 = vmatpush1.msra.mxu0 0.0
        %4144 = vmatprep.subr.mxu0 0.0
        %4145 = vmatpush1.msra.mxu0 0.0
        %4146 = vmatprep.subr.mxu0 0.0
        %4147 = vmatpush1.msra.mxu0 0.0
        %4148 = vmatprep.subr.mxu0 0.0
        %4149 = vmatpush1.msra.mxu0 0.0
        %4150 = vmatprep.subr.mxu0 0.0
        %4151 = vmatpush1.msra.mxu0 0.0
        %4152 = vmatprep.subr.mxu0 0.0
        %4153 = vmatpush1.msra.mxu0 0.0
        %4154 = vmatprep.subr.mxu0 0.0
        %4155 = vmatpush1.msra.mxu0 0.0
        %4156 = vmatprep.subr.mxu0 0.0
        %4157 = vmatpush1.msra.mxu0 0.0
        %4158 = vmatprep.subr.mxu0 0.0
        %4159 = vmatpush1.msra.mxu0 0.0
        %4160 = vmatprep.subr.mxu0 0.0
        %4161 = vmatpush1.msra.mxu0 0.0
        %4162 = vmatprep.subr.mxu0 0.0
        %4163 = vmatpush1.msra.mxu0 0.0
        %4164 = vmatprep.subr.mxu0 0.0
        %4165 = vmatpush1.msra.mxu0 0.0
        %4166 = vmatprep.subr.mxu0 0.0
        %4167 = vmatpush1.msra.mxu0 0.0
        %4168 = vmatprep.subr.mxu0 0.0
        %4169 = vmatpush1.msra.mxu0 0.0
        %4170 = vmatprep.subr.mxu0 0.0
        %4171 = vmatpush1.msra.mxu0 0.0
        %4172 = vmatprep.subr.mxu0 0.0
        %4173 = vmatpush1.msra.mxu0 0.0
        %4174 = vmatprep.subr.mxu0 0.0
        %4175 = vmatpush1.msra.mxu0 0.0
        %4176 = vmatprep.subr.mxu0 0.0
        %4177 = vmatpush1.msra.mxu0 0.0
        %4178 = vmatprep.subr.mxu0 0.0
        %4179 = vmatpush1.msra.mxu0 0.0
        %4180 = vmatprep.subr.mxu0 0.0
        %4181 = vmatpush1.msra.mxu0 0.0
        %4182 = vmatprep.subr.mxu0 0.0
        %4183 = vmatpush1.msra.mxu0 0.0
        %4184 = vmatprep.subr.mxu0 0.0
        %4185 = vmatpush1.msra.mxu0 0.0
        %4186 = vmatprep.subr.mxu0 0.0
        %4187 = vmatpush1.msra.mxu0 0.0
        %4188 = vmatprep.subr.mxu0 0.0
        %4189 = vmatpush1.msra.mxu0 0.0
        %4190 = vmatprep.subr.mxu0 0.0
        %4191 = vmatpush1.msra.mxu0 0.0
        %4192 = vmatprep.subr.mxu0 0.0
        %4193 = vmatpush1.msra.mxu0 0.0
        %4194 = vmatprep.subr.mxu0 0.0
        %4195 = vmatpush1.msra.mxu0 0.0
        %4196 = vmatprep.subr.mxu0 0.0
        %4197 = vmatpush1.msra.mxu0 0.0
        %4198 = vmatprep.subr.mxu0 0.0
        %4199 = vmatpush1.msra.mxu0 0.0
        %4200 = vmatprep.mubr.f32.mxu0 0.0
        %4201 = vmatmul.mubr.f32.gmra.mrb[0].mxu0 %v2574
        %v4202 = vpop.f32.mrb[0].mxu0
        %v4203 = vadd.f32 0.0, %v4202
        %v4204 = vpop.f32.mrb[0].mxu0
        %v4205 = vadd.f32 0.0, %v4204
        %4206 = vdwg.mxu0
        %v4208 = vsel %vm2006, %v4120, 0
        %v4211 = vsel %vm2006, %v4121, 0
        %4213 = vmatprep.subr.mxu0 %v4211
        %4214 = vmatpush1.msra.mxu0 %v4208
        %4215 = vmatprep.subr.mxu0 0.0
        %4216 = vmatpush1.msra.mxu0 0.0
        %4217 = vmatprep.subr.mxu0 0.0
        %4218 = vmatpush1.msra.mxu0 0.0
        %4219 = vmatprep.subr.mxu0 0.0
        %4220 = vmatpush1.msra.mxu0 0.0
        %4221 = vmatprep.subr.mxu0 0.0
        %4222 = vmatpush1.msra.mxu0 0.0
        %4223 = vmatprep.subr.mxu0 0.0
        %4224 = vmatpush1.msra.mxu0 0.0
        %4225 = vmatprep.subr.mxu0 0.0
        %4226 = vmatpush1.msra.mxu0 0.0
        %4227 = vmatprep.subr.mxu0 0.0
        %4228 = vmatpush1.msra.mxu0 0.0
        %4229 = vmatprep.subr.mxu0 0.0
        %4230 = vmatpush1.msra.mxu0 0.0
        %4231 = vmatprep.subr.mxu0 0.0
        %4232 = vmatpush1.msra.mxu0 0.0
        %4233 = vmatprep.subr.mxu0 0.0
        %4234 = vmatpush1.msra.mxu0 0.0
        %4235 = vmatprep.subr.mxu0 0.0
        %4236 = vmatpush1.msra.mxu0 0.0
        %4237 = vmatprep.subr.mxu0 0.0
        %4238 = vmatpush1.msra.mxu0 0.0
        %4239 = vmatprep.subr.mxu0 0.0
        %4240 = vmatpush1.msra.mxu0 0.0
        %4241 = vmatprep.subr.mxu0 0.0
        %4242 = vmatpush1.msra.mxu0 0.0
        %4243 = vmatprep.subr.mxu0 0.0
        %4244 = vmatpush1.msra.mxu0 0.0
        %4245 = vmatprep.subr.mxu0 0.0
        %4246 = vmatpush1.msra.mxu0 0.0
        %4247 = vmatprep.subr.mxu0 0.0
        %4248 = vmatpush1.msra.mxu0 0.0
        %4249 = vmatprep.subr.mxu0 0.0
        %4250 = vmatpush1.msra.mxu0 0.0
        %4251 = vmatprep.subr.mxu0 0.0
        %4252 = vmatpush1.msra.mxu0 0.0
        %4253 = vmatprep.subr.mxu0 0.0
        %4254 = vmatpush1.msra.mxu0 0.0
        %4255 = vmatprep.subr.mxu0 0.0
        %4256 = vmatpush1.msra.mxu0 0.0
        %4257 = vmatprep.subr.mxu0 0.0
        %4258 = vmatpush1.msra.mxu0 0.0
        %4259 = vmatprep.subr.mxu0 0.0
        %4260 = vmatpush1.msra.mxu0 0.0
        %4261 = vmatprep.subr.mxu0 0.0
        %4262 = vmatpush1.msra.mxu0 0.0
        %4263 = vmatprep.subr.mxu0 0.0
        %4264 = vmatpush1.msra.mxu0 0.0
        %4265 = vmatprep.subr.mxu0 0.0
        %4266 = vmatpush1.msra.mxu0 0.0
        %4267 = vmatprep.subr.mxu0 0.0
        %4268 = vmatpush1.msra.mxu0 0.0
        %4269 = vmatprep.subr.mxu0 0.0
        %4270 = vmatpush1.msra.mxu0 0.0
        %4271 = vmatprep.subr.mxu0 0.0
        %4272 = vmatpush1.msra.mxu0 0.0
        %4273 = vmatprep.subr.mxu0 0.0
        %4274 = vmatpush1.msra.mxu0 0.0
        %4275 = vmatprep.subr.mxu0 0.0
        %4276 = vmatpush1.msra.mxu0 0.0
        %4277 = vmatprep.mubr.f32.mxu0 0.0
        %4278 = vmatmul.mubr.f32.gmra.mrb[0].mxu0 %v2654
        %v4279 = vpop.f32.mrb[0].mxu0
        %v4280 = vadd.f32 %v4203, %v4279
        %v4281 = vpop.f32.mrb[0].mxu0
        %v4282 = vadd.f32 %v4205, %v4281
        %4283 = vdwg.mxu0
        %4284 = vrot.lane.b32.xlu0 %v4112, 15
        %v4285 = vpop.permute.xlu0 %4284
        %4286 = vrot.lane.b32.xlu0 %v4113, 15
        %v4287 = vpop.permute.xlu0 %4286
        %v4288 = vsel %vm1107, %v4285, %v4287
        %v4289 = vsel %vm1107, %v4287, %v4285
        %v4290 = vmul.f32 %v4289, %v1113
        %v4291 = vmul.f32 %v4288, %v1117
        %v4293 = vsel %vm2006, %v4290, 0
        %v4296 = vsel %vm2006, %v4291, 0
        %4298 = vmatprep.subr.mxu0 %v4296
        %4299 = vmatpush1.msra.mxu0 %v4293
        %4300 = vmatprep.subr.mxu0 0.0
        %4301 = vmatpush1.msra.mxu0 0.0
        %4302 = vmatprep.subr.mxu0 0.0
        %4303 = vmatpush1.msra.mxu0 0.0
        %4304 = vmatprep.subr.mxu0 0.0
        %4305 = vmatpush1.msra.mxu0 0.0
        %4306 = vmatprep.subr.mxu0 0.0
        %4307 = vmatpush1.msra.mxu0 0.0
        %4308 = vmatprep.subr.mxu0 0.0
        %4309 = vmatpush1.msra.mxu0 0.0
        %4310 = vmatprep.subr.mxu0 0.0
        %4311 = vmatpush1.msra.mxu0 0.0
        %4312 = vmatprep.subr.mxu0 0.0
        %4313 = vmatpush1.msra.mxu0 0.0
        %4314 = vmatprep.subr.mxu0 0.0
        %4315 = vmatpush1.msra.mxu0 0.0
        %4316 = vmatprep.subr.mxu0 0.0
        %4317 = vmatpush1.msra.mxu0 0.0
        %4318 = vmatprep.subr.mxu0 0.0
        %4319 = vmatpush1.msra.mxu0 0.0
        %4320 = vmatprep.subr.mxu0 0.0
        %4321 = vmatpush1.msra.mxu0 0.0
        %4322 = vmatprep.subr.mxu0 0.0
        %4323 = vmatpush1.msra.mxu0 0.0
        %4324 = vmatprep.subr.mxu0 0.0
        %4325 = vmatpush1.msra.mxu0 0.0
        %4326 = vmatprep.subr.mxu0 0.0
        %4327 = vmatpush1.msra.mxu0 0.0
        %4328 = vmatprep.subr.mxu0 0.0
        %4329 = vmatpush1.msra.mxu0 0.0
        %4330 = vmatprep.subr.mxu0 0.0
        %4331 = vmatpush1.msra.mxu0 0.0
        %4332 = vmatprep.subr.mxu0 0.0
        %4333 = vmatpush1.msra.mxu0 0.0
        %4334 = vmatprep.subr.mxu0 0.0
        %4335 = vmatpush1.msra.mxu0 0.0
        %4336 = vmatprep.subr.mxu0 0.0
        %4337 = vmatpush1.msra.mxu0 0.0
        %4338 = vmatprep.subr.mxu0 0.0
        %4339 = vmatpush1.msra.mxu0 0.0
        %4340 = vmatprep.subr.mxu0 0.0
        %4341 = vmatpush1.msra.mxu0 0.0
        %4342 = vmatprep.subr.mxu0 0.0
        %4343 = vmatpush1.msra.mxu0 0.0
        %4344 = vmatprep.subr.mxu0 0.0
        %4345 = vmatpush1.msra.mxu0 0.0
        %4346 = vmatprep.subr.mxu0 0.0
        %4347 = vmatpush1.msra.mxu0 0.0
        %4348 = vmatprep.subr.mxu0 0.0
        %4349 = vmatpush1.msra.mxu0 0.0
        %4350 = vmatprep.subr.mxu0 0.0
        %4351 = vmatpush1.msra.mxu0 0.0
        %4352 = vmatprep.subr.mxu0 0.0
        %4353 = vmatpush1.msra.mxu0 0.0
        %4354 = vmatprep.subr.mxu0 0.0
        %4355 = vmatpush1.msra.mxu0 0.0
        %4356 = vmatprep.subr.mxu0 0.0
        %4357 = vmatpush1.msra.mxu0 0.0
        %4358 = vmatprep.subr.mxu0 0.0
        %4359 = vmatpush1.msra.mxu0 0.0
        %4360 = vmatprep.subr.mxu0 0.0
        %4361 = vmatpush1.msra.mxu0 0.0
        %4362 = vmatprep.mubr.f32.mxu0 0.0
        %4363 = vmatmul.mubr.f32.gmra.mrb[0].mxu0 %v2742
        %v4364 = vpop.f32.mrb[0].mxu0
        %v4365 = vadd.f32 0.0, %v4364
        %v4366 = vpop.f32.mrb[0].mxu0
        %v4367 = vadd.f32 0.0, %v4366
        %4368 = vdwg.mxu0
        %v4369 = vadd.f32 %v4280, %v4365
        %v4370 = vadd.f32 %v4282, %v4367
        %4371 = vrot.lane.b32.xlu0 %v4112, 1
        %v4372 = vpop.permute.xlu0 %4371
        %4373 = vrot.lane.b32.xlu0 %v4113, 1
        %v4374 = vpop.permute.xlu0 %4373
        %v4375 = vsel %vm1206, %v4372, %v4374
        %v4376 = vsel %vm1206, %v4374, %v4372
        %v4377 = vmul.f32 %v4376, %v1212
        %v4378 = vmul.f32 %v4375, %v1216
        %v4380 = vsel %vm2006, %v4377, 0
        %v4383 = vsel %vm2006, %v4378, 0
        %4385 = vmatprep.subr.mxu0 %v4383
        %4386 = vmatpush1.msra.mxu0 %v4380
        %4387 = vmatprep.subr.mxu0 0.0
        %4388 = vmatpush1.msra.mxu0 0.0
        %4389 = vmatprep.subr.mxu0 0.0
        %4390 = vmatpush1.msra.mxu0 0.0
        %4391 = vmatprep.subr.mxu0 0.0
        %4392 = vmatpush1.msra.mxu0 0.0
        %4393 = vmatprep.subr.mxu0 0.0
        %4394 = vmatpush1.msra.mxu0 0.0
        %4395 = vmatprep.subr.mxu0 0.0
        %4396 = vmatpush1.msra.mxu0 0.0
        %4397 = vmatprep.subr.mxu0 0.0
        %4398 = vmatpush1.msra.mxu0 0.0
        %4399 = vmatprep.subr.mxu0 0.0
        %4400 = vmatpush1.msra.mxu0 0.0
        %4401 = vmatprep.subr.mxu0 0.0
        %4402 = vmatpush1.msra.mxu0 0.0
        %4403 = vmatprep.subr.mxu0 0.0
        %4404 = vmatpush1.msra.mxu0 0.0
        %4405 = vmatprep.subr.mxu0 0.0
        %4406 = vmatpush1.msra.mxu0 0.0
        %4407 = vmatprep.subr.mxu0 0.0
        %4408 = vmatpush1.msra.mxu0 0.0
        %4409 = vmatprep.subr.mxu0 0.0
        %4410 = vmatpush1.msra.mxu0 0.0
        %4411 = vmatprep.subr.mxu0 0.0
        %4412 = vmatpush1.msra.mxu0 0.0
        %4413 = vmatprep.subr.mxu0 0.0
        %4414 = vmatpush1.msra.mxu0 0.0
        %4415 = vmatprep.subr.mxu0 0.0
        %4416 = vmatpush1.msra.mxu0 0.0
        %4417 = vmatprep.subr.mxu0 0.0
        %4418 = vmatpush1.msra.mxu0 0.0
        %4419 = vmatprep.subr.mxu0 0.0
        %4420 = vmatpush1.msra.mxu0 0.0
        %4421 = vmatprep.subr.mxu0 0.0
        %4422 = vmatpush1.msra.mxu0 0.0
        %4423 = vmatprep.subr.mxu0 0.0
        %4424 = vmatpush1.msra.mxu0 0.0
        %4425 = vmatprep.subr.mxu0 0.0
        %4426 = vmatpush1.msra.mxu0 0.0
        %4427 = vmatprep.subr.mxu0 0.0
        %4428 = vmatpush1.msra.mxu0 0.0
        %4429 = vmatprep.subr.mxu0 0.0
        %4430 = vmatpush1.msra.mxu0 0.0
        %4431 = vmatprep.subr.mxu0 0.0
        %4432 = vmatpush1.msra.mxu0 0.0
        %4433 = vmatprep.subr.mxu0 0.0
        %4434 = vmatpush1.msra.mxu0 0.0
        %4435 = vmatprep.subr.mxu0 0.0
        %4436 = vmatpush1.msra.mxu0 0.0
        %4437 = vmatprep.subr.mxu0 0.0
        %4438 = vmatpush1.msra.mxu0 0.0
        %4439 = vmatprep.subr.mxu0 0.0
        %4440 = vmatpush1.msra.mxu0 0.0
        %4441 = vmatprep.subr.mxu0 0.0
        %4442 = vmatpush1.msra.mxu0 0.0
        %4443 = vmatprep.subr.mxu0 0.0
        %4444 = vmatpush1.msra.mxu0 0.0
        %4445 = vmatprep.subr.mxu0 0.0
        %4446 = vmatpush1.msra.mxu0 0.0
        %4447 = vmatprep.subr.mxu0 0.0
        %4448 = vmatpush1.msra.mxu0 0.0
        %4449 = vmatprep.mubr.f32.mxu0 0.0
        %4450 = vmatmul.mubr.f32.gmra.mrb[0].mxu0 %v2832
        %v4451 = vpop.f32.mrb[0].mxu0
        %v4452 = vadd.f32 0.0, %v4451
        %v4453 = vpop.f32.mrb[0].mxu0
        %v4454 = vadd.f32 0.0, %v4453
        %4455 = vdwg.mxu0
        %v4456 = vadd.f32 %v4369, %v4452
        %v4457 = vadd.f32 %v4370, %v4454
        %v4459 = vsel %vm2006, %v4112, 0
        %v4462 = vsel %vm2006, %v4113, 0
        %4464 = vmatprep.subr.mxu0 %v4462
        %4465 = vmatpush1.msra.mxu0 %v4459
        %4466 = vmatprep.subr.mxu0 0.0
        %4467 = vmatpush1.msra.mxu0 0.0
        %4468 = vmatprep.subr.mxu0 0.0
        %4469 = vmatpush1.msra.mxu0 0.0
        %4470 = vmatprep.subr.mxu0 0.0
        %4471 = vmatpush1.msra.mxu0 0.0
        %4472 = vmatprep.subr.mxu0 0.0
        %4473 = vmatpush1.msra.mxu0 0.0
        %4474 = vmatprep.subr.mxu0 0.0
        %4475 = vmatpush1.msra.mxu0 0.0
        %4476 = vmatprep.subr.mxu0 0.0
        %4477 = vmatpush1.msra.mxu0 0.0
        %4478 = vmatprep.subr.mxu0 0.0
        %4479 = vmatpush1.msra.mxu0 0.0
        %4480 = vmatprep.subr.mxu0 0.0
        %4481 = vmatpush1.msra.mxu0 0.0
        %4482 = vmatprep.subr.mxu0 0.0
        %4483 = vmatpush1.msra.mxu0 0.0
        %4484 = vmatprep.subr.mxu0 0.0
        %4485 = vmatpush1.msra.mxu0 0.0
        %4486 = vmatprep.subr.mxu0 0.0
        %4487 = vmatpush1.msra.mxu0 0.0
        %4488 = vmatprep.subr.mxu0 0.0
        %4489 = vmatpush1.msra.mxu0 0.0
        %4490 = vmatprep.subr.mxu0 0.0
        %4491 = vmatpush1.msra.mxu0 0.0
        %4492 = vmatprep.subr.mxu0 0.0
        %4493 = vmatpush1.msra.mxu0 0.0
        %4494 = vmatprep.subr.mxu0 0.0
        %4495 = vmatpush1.msra.mxu0 0.0
        %4496 = vmatprep.subr.mxu0 0.0
        %4497 = vmatpush1.msra.mxu0 0.0
        %4498 = vmatprep.subr.mxu0 0.0
        %4499 = vmatpush1.msra.mxu0 0.0
        %4500 = vmatprep.subr.mxu0 0.0
        %4501 = vmatpush1.msra.mxu0 0.0
        %4502 = vmatprep.subr.mxu0 0.0
        %4503 = vmatpush1.msra.mxu0 0.0
        %4504 = vmatprep.subr.mxu0 0.0
        %4505 = vmatpush1.msra.mxu0 0.0
        %4506 = vmatprep.subr.mxu0 0.0
        %4507 = vmatpush1.msra.mxu0 0.0
        %4508 = vmatprep.subr.mxu0 0.0
        %4509 = vmatpush1.msra.mxu0 0.0
        %4510 = vmatprep.subr.mxu0 0.0
        %4511 = vmatpush1.msra.mxu0 0.0
        %4512 = vmatprep.subr.mxu0 0.0
        %4513 = vmatpush1.msra.mxu0 0.0
        %4514 = vmatprep.subr.mxu0 0.0
        %4515 = vmatpush1.msra.mxu0 0.0
        %4516 = vmatprep.subr.mxu0 0.0
        %4517 = vmatpush1.msra.mxu0 0.0
        %4518 = vmatprep.subr.mxu0 0.0
        %4519 = vmatpush1.msra.mxu0 0.0
        %4520 = vmatprep.subr.mxu0 0.0
        %4521 = vmatpush1.msra.mxu0 0.0
        %4522 = vmatprep.subr.mxu0 0.0
        %4523 = vmatpush1.msra.mxu0 0.0
        %4524 = vmatprep.subr.mxu0 0.0
        %4525 = vmatpush1.msra.mxu0 0.0
        %4526 = vmatprep.subr.mxu0 0.0
        %4527 = vmatpush1.msra.mxu0 0.0
        %4528 = vmatprep.mubr.f32.mxu0 0.0
        %4529 = vmatmul.mubr.f32.gmra.mrb[0].mxu0 %v2914
        %v4530 = vpop.f32.mrb[0].mxu0
        %v4531 = vadd.f32 0.0, %v4530
        %v4532 = vpop.f32.mrb[0].mxu0
        %v4533 = vadd.f32 0.0, %v4532
        %4534 = vdwg.mxu0
        %v4535 = vadd.f32 %v4456, %v4531
        %v4536 = vadd.f32 %v4457, %v4533
        %4537 = vrot.lane.b32.xlu0 %v4112, 127
        %v4538 = vpop.permute.xlu0 %4537
        %4539 = vrot.lane.b32.xlu0 %v4113, 127
        %v4540 = vpop.permute.xlu0 %4539
        %v4541 = vsel %vm1385, %v4538, %v4540
        %v4542 = vsel %vm1385, %v4540, %v4538
        %v4543 = vmul.f32 %v4541, %v1391
        %v4544 = vmul.f32 %v4542, %v1395
        %v4546 = vsel %vm2006, %v4543, 0
        %v4549 = vsel %vm2006, %v4544, 0
        %4551 = vmatprep.subr.mxu0 %v4549
        %4552 = vmatpush1.msra.mxu0 %v4546
        %4553 = vmatprep.subr.mxu0 0.0
        %4554 = vmatpush1.msra.mxu0 0.0
        %4555 = vmatprep.subr.mxu0 0.0
        %4556 = vmatpush1.msra.mxu0 0.0
        %4557 = vmatprep.subr.mxu0 0.0
        %4558 = vmatpush1.msra.mxu0 0.0
        %4559 = vmatprep.subr.mxu0 0.0
        %4560 = vmatpush1.msra.mxu0 0.0
        %4561 = vmatprep.subr.mxu0 0.0
        %4562 = vmatpush1.msra.mxu0 0.0
        %4563 = vmatprep.subr.mxu0 0.0
        %4564 = vmatpush1.msra.mxu0 0.0
        %4565 = vmatprep.subr.mxu0 0.0
        %4566 = vmatpush1.msra.mxu0 0.0
        %4567 = vmatprep.subr.mxu0 0.0
        %4568 = vmatpush1.msra.mxu0 0.0
        %4569 = vmatprep.subr.mxu0 0.0
        %4570 = vmatpush1.msra.mxu0 0.0
        %4571 = vmatprep.subr.mxu0 0.0
        %4572 = vmatpush1.msra.mxu0 0.0
        %4573 = vmatprep.subr.mxu0 0.0
        %4574 = vmatpush1.msra.mxu0 0.0
        %4575 = vmatprep.subr.mxu0 0.0
        %4576 = vmatpush1.msra.mxu0 0.0
        %4577 = vmatprep.subr.mxu0 0.0
        %4578 = vmatpush1.msra.mxu0 0.0
        %4579 = vmatprep.subr.mxu0 0.0
        %4580 = vmatpush1.msra.mxu0 0.0
        %4581 = vmatprep.subr.mxu0 0.0
        %4582 = vmatpush1.msra.mxu0 0.0
        %4583 = vmatprep.subr.mxu0 0.0
        %4584 = vmatpush1.msra.mxu0 0.0
        %4585 = vmatprep.subr.mxu0 0.0
        %4586 = vmatpush1.msra.mxu0 0.0
        %4587 = vmatprep.subr.mxu0 0.0
        %4588 = vmatpush1.msra.mxu0 0.0
        %4589 = vmatprep.subr.mxu0 0.0
        %4590 = vmatpush1.msra.mxu0 0.0
        %4591 = vmatprep.subr.mxu0 0.0
        %4592 = vmatpush1.msra.mxu0 0.0
        %4593 = vmatprep.subr.mxu0 0.0
        %4594 = vmatpush1.msra.mxu0 0.0
        %4595 = vmatprep.subr.mxu0 0.0
        %4596 = vmatpush1.msra.mxu0 0.0
        %4597 = vmatprep.subr.mxu0 0.0
        %4598 = vmatpush1.msra.mxu0 0.0
        %4599 = vmatprep.subr.mxu0 0.0
        %4600 = vmatpush1.msra.mxu0 0.0
        %4601 = vmatprep.subr.mxu0 0.0
        %4602 = vmatpush1.msra.mxu0 0.0
        %4603 = vmatprep.subr.mxu0 0.0
        %4604 = vmatpush1.msra.mxu0 0.0
        %4605 = vmatprep.subr.mxu0 0.0
        %4606 = vmatpush1.msra.mxu0 0.0
        %4607 = vmatprep.subr.mxu0 0.0
        %4608 = vmatpush1.msra.mxu0 0.0
        %4609 = vmatprep.subr.mxu0 0.0
        %4610 = vmatpush1.msra.mxu0 0.0
        %4611 = vmatprep.subr.mxu0 0.0
        %4612 = vmatpush1.msra.mxu0 0.0
        %4613 = vmatprep.subr.mxu0 0.0
        %4614 = vmatpush1.msra.mxu0 0.0
        %4615 = vmatprep.mubr.f32.mxu0 0.0
        %4616 = vmatmul.mubr.f32.gmra.mrb[0].mxu0 %v3004
        %v4617 = vpop.f32.mrb[0].mxu0
        %v4618 = vadd.f32 0.0, %v4617
        %v4619 = vpop.f32.mrb[0].mxu0
        %v4620 = vadd.f32 0.0, %v4619
        %4621 = vdwg.mxu0
        %v4622 = vadd.f32 %v4535, %v4618
        %v4623 = vadd.f32 %v4536, %v4620
        %4624 = vrot.lane.b32.xlu0 %v4112, 113
        %v4625 = vpop.permute.xlu0 %4624
        %4626 = vrot.lane.b32.xlu0 %v4113, 113
        %v4627 = vpop.permute.xlu0 %4626
        %v4628 = vsel %vm1484, %v4625, %v4627
        %v4629 = vsel %vm1484, %v4627, %v4625
        %v4630 = vmul.f32 %v4628, %v1490
        %v4631 = vmul.f32 %v4629, %v1494
        %v4633 = vsel %vm2006, %v4630, 0
        %v4636 = vsel %vm2006, %v4631, 0
        %4638 = vmatprep.subr.mxu0 %v4636
        %4639 = vmatpush1.msra.mxu0 %v4633
        %4640 = vmatprep.subr.mxu0 0.0
        %4641 = vmatpush1.msra.mxu0 0.0
        %4642 = vmatprep.subr.mxu0 0.0
        %4643 = vmatpush1.msra.mxu0 0.0
        %4644 = vmatprep.subr.mxu0 0.0
        %4645 = vmatpush1.msra.mxu0 0.0
        %4646 = vmatprep.subr.mxu0 0.0
        %4647 = vmatpush1.msra.mxu0 0.0
        %4648 = vmatprep.subr.mxu0 0.0
        %4649 = vmatpush1.msra.mxu0 0.0
        %4650 = vmatprep.subr.mxu0 0.0
        %4651 = vmatpush1.msra.mxu0 0.0
        %4652 = vmatprep.subr.mxu0 0.0
        %4653 = vmatpush1.msra.mxu0 0.0
        %4654 = vmatprep.subr.mxu0 0.0
        %4655 = vmatpush1.msra.mxu0 0.0
        %4656 = vmatprep.subr.mxu0 0.0
        %4657 = vmatpush1.msra.mxu0 0.0
        %4658 = vmatprep.subr.mxu0 0.0
        %4659 = vmatpush1.msra.mxu0 0.0
        %4660 = vmatprep.subr.mxu0 0.0
        %4661 = vmatpush1.msra.mxu0 0.0
        %4662 = vmatprep.subr.mxu0 0.0
        %4663 = vmatpush1.msra.mxu0 0.0
        %4664 = vmatprep.subr.mxu0 0.0
        %4665 = vmatpush1.msra.mxu0 0.0
        %4666 = vmatprep.subr.mxu0 0.0
        %4667 = vmatpush1.msra.mxu0 0.0
        %4668 = vmatprep.subr.mxu0 0.0
        %4669 = vmatpush1.msra.mxu0 0.0
        %4670 = vmatprep.subr.mxu0 0.0
        %4671 = vmatpush1.msra.mxu0 0.0
        %4672 = vmatprep.subr.mxu0 0.0
        %4673 = vmatpush1.msra.mxu0 0.0
        %4674 = vmatprep.subr.mxu0 0.0
        %4675 = vmatpush1.msra.mxu0 0.0
        %4676 = vmatprep.subr.mxu0 0.0
        %4677 = vmatpush1.msra.mxu0 0.0
        %4678 = vmatprep.subr.mxu0 0.0
        %4679 = vmatpush1.msra.mxu0 0.0
        %4680 = vmatprep.subr.mxu0 0.0
        %4681 = vmatpush1.msra.mxu0 0.0
        %4682 = vmatprep.subr.mxu0 0.0
        %4683 = vmatpush1.msra.mxu0 0.0
        %4684 = vmatprep.subr.mxu0 0.0
        %4685 = vmatpush1.msra.mxu0 0.0
        %4686 = vmatprep.subr.mxu0 0.0
        %4687 = vmatpush1.msra.mxu0 0.0
        %4688 = vmatprep.subr.mxu0 0.0
        %4689 = vmatpush1.msra.mxu0 0.0
        %4690 = vmatprep.subr.mxu0 0.0
        %4691 = vmatpush1.msra.mxu0 0.0
        %4692 = vmatprep.subr.mxu0 0.0
        %4693 = vmatpush1.msra.mxu0 0.0
        %4694 = vmatprep.subr.mxu0 0.0
        %4695 = vmatpush1.msra.mxu0 0.0
        %4696 = vmatprep.subr.mxu0 0.0
        %4697 = vmatpush1.msra.mxu0 0.0
        %4698 = vmatprep.subr.mxu0 0.0
        %4699 = vmatpush1.msra.mxu0 0.0
        %4700 = vmatprep.subr.mxu0 0.0
        %4701 = vmatpush1.msra.mxu0 0.0
        %4702 = vmatprep.mubr.f32.mxu0 0.0
        %4703 = vmatmul.mubr.f32.gmra.mrb[0].mxu0 %v3094
        %v4704 = vpop.f32.mrb[0].mxu0
        %v4705 = vadd.f32 0.0, %v4704
        %v4706 = vpop.f32.mrb[0].mxu0
        %v4707 = vadd.f32 0.0, %v4706
        %4708 = vdwg.mxu0
        %v4709 = vadd.f32 %v4622, %v4705
        %v4710 = vadd.f32 %v4623, %v4707
        %4711 = vrot.lane.b32.xlu0 %v4112, 112
        %v4712 = vpop.permute.xlu0 %4711
        %4713 = vrot.lane.b32.xlu0 %v4113, 112
        %v4714 = vpop.permute.xlu0 %4713
        %v4715 = vsel %vm1583, %v4712, %v4714
        %v4716 = vsel %vm1583, %v4714, %v4712
        %v4717 = vmul.f32 %v4715, %v1589
        %v4718 = vmul.f32 %v4716, %v1593
        %v4720 = vsel %vm2006, %v4717, 0
        %v4723 = vsel %vm2006, %v4718, 0
        %4725 = vmatprep.subr.mxu0 %v4723
        %4726 = vmatpush1.msra.mxu0 %v4720
        %4727 = vmatprep.subr.mxu0 0.0
        %4728 = vmatpush1.msra.mxu0 0.0
        %4729 = vmatprep.subr.mxu0 0.0
        %4730 = vmatpush1.msra.mxu0 0.0
        %4731 = vmatprep.subr.mxu0 0.0
        %4732 = vmatpush1.msra.mxu0 0.0
        %4733 = vmatprep.subr.mxu0 0.0
        %4734 = vmatpush1.msra.mxu0 0.0
        %4735 = vmatprep.subr.mxu0 0.0
        %4736 = vmatpush1.msra.mxu0 0.0
        %4737 = vmatprep.subr.mxu0 0.0
        %4738 = vmatpush1.msra.mxu0 0.0
        %4739 = vmatprep.subr.mxu0 0.0
        %4740 = vmatpush1.msra.mxu0 0.0
        %4741 = vmatprep.subr.mxu0 0.0
        %4742 = vmatpush1.msra.mxu0 0.0
        %4743 = vmatprep.subr.mxu0 0.0
        %4744 = vmatpush1.msra.mxu0 0.0
        %4745 = vmatprep.subr.mxu0 0.0
        %4746 = vmatpush1.msra.mxu0 0.0
        %4747 = vmatprep.subr.mxu0 0.0
        %4748 = vmatpush1.msra.mxu0 0.0
        %4749 = vmatprep.subr.mxu0 0.0
        %4750 = vmatpush1.msra.mxu0 0.0
        %4751 = vmatprep.subr.mxu0 0.0
        %4752 = vmatpush1.msra.mxu0 0.0
        %4753 = vmatprep.subr.mxu0 0.0
        %4754 = vmatpush1.msra.mxu0 0.0
        %4755 = vmatprep.subr.mxu0 0.0
        %4756 = vmatpush1.msra.mxu0 0.0
        %4757 = vmatprep.subr.mxu0 0.0
        %4758 = vmatpush1.msra.mxu0 0.0
        %4759 = vmatprep.subr.mxu0 0.0
        %4760 = vmatpush1.msra.mxu0 0.0
        %4761 = vmatprep.subr.mxu0 0.0
        %4762 = vmatpush1.msra.mxu0 0.0
        %4763 = vmatprep.subr.mxu0 0.0
        %4764 = vmatpush1.msra.mxu0 0.0
        %4765 = vmatprep.subr.mxu0 0.0
        %4766 = vmatpush1.msra.mxu0 0.0
        %4767 = vmatprep.subr.mxu0 0.0
        %4768 = vmatpush1.msra.mxu0 0.0
        %4769 = vmatprep.subr.mxu0 0.0
        %4770 = vmatpush1.msra.mxu0 0.0
        %4771 = vmatprep.subr.mxu0 0.0
        %4772 = vmatpush1.msra.mxu0 0.0
        %4773 = vmatprep.subr.mxu0 0.0
        %4774 = vmatpush1.msra.mxu0 0.0
        %4775 = vmatprep.subr.mxu0 0.0
        %4776 = vmatpush1.msra.mxu0 0.0
        %4777 = vmatprep.subr.mxu0 0.0
        %4778 = vmatpush1.msra.mxu0 0.0
        %4779 = vmatprep.subr.mxu0 0.0
        %4780 = vmatpush1.msra.mxu0 0.0
        %4781 = vmatprep.subr.mxu0 0.0
        %4782 = vmatpush1.msra.mxu0 0.0
        %4783 = vmatprep.subr.mxu0 0.0
        %4784 = vmatpush1.msra.mxu0 0.0
        %4785 = vmatprep.subr.mxu0 0.0
        %4786 = vmatpush1.msra.mxu0 0.0
        %4787 = vmatprep.subr.mxu0 0.0
        %4788 = vmatpush1.msra.mxu0 0.0
        %4789 = vmatprep.mubr.f32.mxu0 0.0
        %4790 = vmatmul.mubr.f32.gmra.mrb[0].mxu0 %v3184
        %v4791 = vpop.f32.mrb[0].mxu0
        %v4792 = vadd.f32 0.0, %v4791
        %v4793 = vpop.f32.mrb[0].mxu0
        %v4794 = vadd.f32 0.0, %v4793
        %4795 = vdwg.mxu0
        %v4796 = vadd.f32 %v4709, %v4792
        %v4797 = vadd.f32 %v4710, %v4794
        %4798 = vrot.lane.b32.xlu0 %v4112, 111
        %v4799 = vpop.permute.xlu0 %4798
        %4800 = vrot.lane.b32.xlu0 %v4113, 111
        %v4801 = vpop.permute.xlu0 %4800
        %v4802 = vsel %vm1682, %v4799, %v4801
        %v4803 = vsel %vm1682, %v4801, %v4799
        %v4804 = vmul.f32 %v4802, %v1688
        %v4805 = vmul.f32 %v4803, %v1692
        %v4807 = vsel %vm2006, %v4804, 0
        %v4810 = vsel %vm2006, %v4805, 0
        %4812 = vmatprep.subr.mxu0 %v4810
        %4813 = vmatpush1.msra.mxu0 %v4807
        %4814 = vmatprep.subr.mxu0 0.0
        %4815 = vmatpush1.msra.mxu0 0.0
        %4816 = vmatprep.subr.mxu0 0.0
        %4817 = vmatpush1.msra.mxu0 0.0
        %4818 = vmatprep.subr.mxu0 0.0
        %4819 = vmatpush1.msra.mxu0 0.0
        %4820 = vmatprep.subr.mxu0 0.0
        %4821 = vmatpush1.msra.mxu0 0.0
        %4822 = vmatprep.subr.mxu0 0.0
        %4823 = vmatpush1.msra.mxu0 0.0
        %4824 = vmatprep.subr.mxu0 0.0
        %4825 = vmatpush1.msra.mxu0 0.0
        %4826 = vmatprep.subr.mxu0 0.0
        %4827 = vmatpush1.msra.mxu0 0.0
        %4828 = vmatprep.subr.mxu0 0.0
        %4829 = vmatpush1.msra.mxu0 0.0
        %4830 = vmatprep.subr.mxu0 0.0
        %4831 = vmatpush1.msra.mxu0 0.0
        %4832 = vmatprep.subr.mxu0 0.0
        %4833 = vmatpush1.msra.mxu0 0.0
        %4834 = vmatprep.subr.mxu0 0.0
        %4835 = vmatpush1.msra.mxu0 0.0
        %4836 = vmatprep.subr.mxu0 0.0
        %4837 = vmatpush1.msra.mxu0 0.0
        %4838 = vmatprep.subr.mxu0 0.0
        %4839 = vmatpush1.msra.mxu0 0.0
        %4840 = vmatprep.subr.mxu0 0.0
        %4841 = vmatpush1.msra.mxu0 0.0
        %4842 = vmatprep.subr.mxu0 0.0
        %4843 = vmatpush1.msra.mxu0 0.0
        %4844 = vmatprep.subr.mxu0 0.0
        %4845 = vmatpush1.msra.mxu0 0.0
        %4846 = vmatprep.subr.mxu0 0.0
        %4847 = vmatpush1.msra.mxu0 0.0
        %4848 = vmatprep.subr.mxu0 0.0
        %4849 = vmatpush1.msra.mxu0 0.0
        %4850 = vmatprep.subr.mxu0 0.0
        %4851 = vmatpush1.msra.mxu0 0.0
        %4852 = vmatprep.subr.mxu0 0.0
        %4853 = vmatpush1.msra.mxu0 0.0
        %4854 = vmatprep.subr.mxu0 0.0
        %4855 = vmatpush1.msra.mxu0 0.0
        %4856 = vmatprep.subr.mxu0 0.0
        %4857 = vmatpush1.msra.mxu0 0.0
        %4858 = vmatprep.subr.mxu0 0.0
        %4859 = vmatpush1.msra.mxu0 0.0
        %4860 = vmatprep.subr.mxu0 0.0
        %4861 = vmatpush1.msra.mxu0 0.0
        %4862 = vmatprep.subr.mxu0 0.0
        %4863 = vmatpush1.msra.mxu0 0.0
        %4864 = vmatprep.subr.mxu0 0.0
        %4865 = vmatpush1.msra.mxu0 0.0
        %4866 = vmatprep.subr.mxu0 0.0
        %4867 = vmatpush1.msra.mxu0 0.0
        %4868 = vmatprep.subr.mxu0 0.0
        %4869 = vmatpush1.msra.mxu0 0.0
        %4870 = vmatprep.subr.mxu0 0.0
        %4871 = vmatpush1.msra.mxu0 0.0
        %4872 = vmatprep.subr.mxu0 0.0
        %4873 = vmatpush1.msra.mxu0 0.0
        %4874 = vmatprep.subr.mxu0 0.0
        %4875 = vmatpush1.msra.mxu0 0.0
        %4876 = vmatprep.mubr.f32.mxu0 0.0
        %4877 = vmatmul.mubr.f32.gmra.mrb[0].mxu0 %v3274
        %v4878 = vpop.f32.mrb[0].mxu0
        %v4879 = vadd.f32 0.0, %v4878
        %v4880 = vpop.f32.mrb[0].mxu0
        %v4881 = vadd.f32 0.0, %v4880
        %4882 = vdwg.mxu0
        %v4883 = vadd.f32 %v4796, %v4879
        %v4884 = vadd.f32 %v4797, %v4881
        %v4885 = vadd.f32 %v4883, %v3358
        %v4886 = vadd.f32 %v4884, %v3358
        %v4887 = vsel %vm2006, %v4112, 0.0
        %v4888 = vsel %vm2006, %v4113, 0.0
        %v4889 = vadd.f32 %v4887, %v4888
        %4890 = vadd.xlane.f32.xlu0 %v4889
        %v4891 = vpop.xlane.xlu0 %4890
        %v4892 = vmul.f32 %v4891, %v2510
        %v4893 = vsel %vm2006, %v4892, -inf
        %v4894 = vrot.slane %v4893, 4
        %v4895 = vmax.f32 %v4893, %v4894
        %v4896 = vrot.slane %v4895, 2
        %v4897 = vmax.f32 %v4895, %v4896
        %v4898 = vrot.slane %v4897, 1
        %v4899 = vmax.f32 %v4897, %v4898
        %v4900 = vsub.f32 %v4892, %v4899
        %v4901 = vmul.f32 %v4900, 1.442695
        %v4902 = vpow.pop %v4901
        %v4903 = vsel %vm2006, %v4902, 0.0
        %v4904 = vrot.slane %v4903, 4
        %v4905 = vadd.f32 %v4903, %v4904
        %v4906 = vrot.slane %v4905, 2
        %v4907 = vadd.f32 %v4905, %v4906
        %v4908 = vrot.slane %v4907, 1
        %v4909 = vadd.f32 %v4907, %v4908
        %v4910 = vrcp.pop %v4909
        %v4911 = vmul.f32 %v4902, %v4910
        %v4912 = vsel %vm2006, %v4885, 0.0
        %v4913 = vsel %vm2006, %v4886, 0.0
        %v4914 = vadd.f32 %v4912, %v4913
        %4915 = vadd.xlane.f32.xlu0 %v4914
        %v4916 = vpop.xlane.xlu0 %4915
        %v4917 = vmul.f32 %v4916, %v2510
        %v4918 = vsel %vm2006, %v4917, -inf
        %v4919 = vrot.slane %v4918, 4
        %v4920 = vmax.f32 %v4918, %v4919
        %v4921 = vrot.slane %v4920, 2
        %v4922 = vmax.f32 %v4920, %v4921
        %v4923 = vrot.slane %v4922, 1
        %v4924 = vmax.f32 %v4922, %v4923
        %v4925 = vsub.f32 %v4917, %v4924
        %v4926 = vmul.f32 %v4925, 1.442695
        %v4927 = vpow.pop %v4926
        %v4928 = vsel %vm2006, %v4927, 0.0
        %v4929 = vrot.slane %v4928, 4
        %v4930 = vadd.f32 %v4928, %v4929
        %v4931 = vrot.slane %v4930, 2
        %v4932 = vadd.f32 %v4930, %v4931
        %v4933 = vrot.slane %v4932, 1
        %v4934 = vadd.f32 %v4932, %v4933
        %v4935 = vrcp.pop %v4934
        %v4936 = vmul.f32 %v4927, %v4935
        %v4937 = vmul.f32 %v4911, %v4885
        %v4938 = vmul.f32 %v4911, %v4886
        %v4939 = vmul.f32 %v4936, %v4112
        %v4940 = vmul.f32 %v4936, %v4113
        %v4941 = vadd.f32 %v4937, %v4939
        %v4942 = vadd.f32 %v4938, %v4940
        %v4943 = vsel %vm2006, %v4941, 0.0
        %v4944 = vrot.slane %v4943, 4
        %v4945 = vadd.f32 %v4943, %v4944
        %v4946 = vrot.slane %v4945, 2
        %v4947 = vadd.f32 %v4945, %v4946
        %v4948 = vrot.slane %v4947, 1
        %v4949 = vadd.f32 %v4947, %v4948
        %v4950 = vsel %vm2006, %v4942, 0.0
        %v4951 = vrot.slane %v4950, 4
        %v4952 = vadd.f32 %v4950, %v4951
        %v4953 = vrot.slane %v4952, 2
        %v4954 = vadd.f32 %v4952, %v4953
        %v4955 = vrot.slane %v4954, 1
        %v4956 = vadd.f32 %v4954, %v4955
        %v4957 = vxor.u32 %v4949, 2147483648
        %v4958 = vxor.u32 %v4956, 2147483648
        %v4959 = vmul.f32 %v4957, 1.442695
        %v4960 = vpow.pop %v4959
        %v4961 = vmul.f32 %v4958, 1.442695
        %v4962 = vpow.pop %v4961
        %v4963 = vadd.f32 %v4960, 1.0
        %v4964 = vadd.f32 %v4962, 1.0
        %v4965 = vrcp.pop %v4963
        %v4966 = vmul.f32 1.0, %v4965
        %v4967 = vrcp.pop %v4964
        %v4968 = vmul.f32 1.0, %v4967
        %v4969 = vmul.f32 %v4112, %v4966
        %v4970 = vmul.f32 %v4113, %v4968
        %4972 = vrot.lane.b32.xlu0 %v890, 126
        %v4973 = vpop.permute.xlu0 %4972
        %v4974 = vsel %vm1993, %v4973, 0
        %v4977 = vsel %vm2006, %v4969, 0
        %v4980 = vsel %vm2006, %v4970, 0
        %4982 = vmatprep.subr.mxu0 %v4980
        %4983 = vmatpush1.msra.mxu0 %v4977
        %4984 = vmatprep.subr.mxu0 0.0
        %4985 = vmatpush1.msra.mxu0 0.0
        %4986 = vmatprep.subr.mxu0 0.0
        %4987 = vmatpush1.msra.mxu0 0.0
        %4988 = vmatprep.subr.mxu0 0.0
        %4989 = vmatpush1.msra.mxu0 0.0
        %4990 = vmatprep.subr.mxu0 0.0
        %4991 = vmatpush1.msra.mxu0 0.0
        %4992 = vmatprep.subr.mxu0 0.0
        %4993 = vmatpush1.msra.mxu0 0.0
        %4994 = vmatprep.subr.mxu0 0.0
        %4995 = vmatpush1.msra.mxu0 0.0
        %4996 = vmatprep.subr.mxu0 0.0
        %4997 = vmatpush1.msra.mxu0 0.0
        %4998 = vmatprep.subr.mxu0 0.0
        %4999 = vmatpush1.msra.mxu0 0.0
        %5000 = vmatprep.subr.mxu0 0.0
        %5001 = vmatpush1.msra.mxu0 0.0
        %5002 = vmatprep.subr.mxu0 0.0
        %5003 = vmatpush1.msra.mxu0 0.0
        %5004 = vmatprep.subr.mxu0 0.0
        %5005 = vmatpush1.msra.mxu0 0.0
        %5006 = vmatprep.subr.mxu0 0.0
        %5007 = vmatpush1.msra.mxu0 0.0
        %5008 = vmatprep.subr.mxu0 0.0
        %5009 = vmatpush1.msra.mxu0 0.0
        %5010 = vmatprep.subr.mxu0 0.0
        %5011 = vmatpush1.msra.mxu0 0.0
        %5012 = vmatprep.subr.mxu0 0.0
        %5013 = vmatpush1.msra.mxu0 0.0
        %5014 = vmatprep.subr.mxu0 0.0
        %5015 = vmatpush1.msra.mxu0 0.0
        %5016 = vmatprep.subr.mxu0 0.0
        %5017 = vmatpush1.msra.mxu0 0.0
        %5018 = vmatprep.subr.mxu0 0.0
        %5019 = vmatpush1.msra.mxu0 0.0
        %5020 = vmatprep.subr.mxu0 0.0
        %5021 = vmatpush1.msra.mxu0 0.0
        %5022 = vmatprep.subr.mxu0 0.0
        %5023 = vmatpush1.msra.mxu0 0.0
        %5024 = vmatprep.subr.mxu0 0.0
        %5025 = vmatpush1.msra.mxu0 0.0
        %5026 = vmatprep.subr.mxu0 0.0
        %5027 = vmatpush1.msra.mxu0 0.0
        %5028 = vmatprep.subr.mxu0 0.0
        %5029 = vmatpush1.msra.mxu0 0.0
        %5030 = vmatprep.subr.mxu0 0.0
        %5031 = vmatpush1.msra.mxu0 0.0
        %5032 = vmatprep.subr.mxu0 0.0
        %5033 = vmatpush1.msra.mxu0 0.0
        %5034 = vmatprep.subr.mxu0 0.0
        %5035 = vmatpush1.msra.mxu0 0.0
        %5036 = vmatprep.subr.mxu0 0.0
        %5037 = vmatpush1.msra.mxu0 0.0
        %5038 = vmatprep.subr.mxu0 0.0
        %5039 = vmatpush1.msra.mxu0 0.0
        %5040 = vmatprep.subr.mxu0 0.0
        %5041 = vmatpush1.msra.mxu0 0.0
        %5042 = vmatprep.subr.mxu0 0.0
        %5043 = vmatpush1.msra.mxu0 0.0
        %5044 = vmatprep.subr.mxu0 0.0
        %5045 = vmatpush1.msra.mxu0 0.0
        %5046 = vmatprep.mubr.f32.mxu0 0.0
        %5047 = vmatmul.mubr.f32.gmra.mrb[0].mxu0 %v4974
        %v5048 = vpop.f32.mrb[0].mxu0
        %v5049 = vadd.f32 0.0, %v5048
        %v5050 = vpop.f32.mrb[0].mxu0
        %v5051 = vadd.f32 0.0, %v5050
        %5052 = vdwg.mxu0
        %v5053 = vsel %vm1993, %v890, 0
        %v5056 = vsel %vm2006, %v3444, 0
        %v5059 = vsel %vm2006, %v3445, 0
        %5061 = vmatprep.subr.mxu0 %v5059
        %5062 = vmatpush1.msra.mxu0 %v5056
        %5063 = vmatprep.subr.mxu0 0.0
        %5064 = vmatpush1.msra.mxu0 0.0
        %5065 = vmatprep.subr.mxu0 0.0
        %5066 = vmatpush1.msra.mxu0 0.0
        %5067 = vmatprep.subr.mxu0 0.0
        %5068 = vmatpush1.msra.mxu0 0.0
        %5069 = vmatprep.subr.mxu0 0.0
        %5070 = vmatpush1.msra.mxu0 0.0
        %5071 = vmatprep.subr.mxu0 0.0
        %5072 = vmatpush1.msra.mxu0 0.0
        %5073 = vmatprep.subr.mxu0 0.0
        %5074 = vmatpush1.msra.mxu0 0.0
        %5075 = vmatprep.subr.mxu0 0.0
        %5076 = vmatpush1.msra.mxu0 0.0
        %5077 = vmatprep.subr.mxu0 0.0
        %5078 = vmatpush1.msra.mxu0 0.0
        %5079 = vmatprep.subr.mxu0 0.0
        %5080 = vmatpush1.msra.mxu0 0.0
        %5081 = vmatprep.subr.mxu0 0.0
        %5082 = vmatpush1.msra.mxu0 0.0
        %5083 = vmatprep.subr.mxu0 0.0
        %5084 = vmatpush1.msra.mxu0 0.0
        %5085 = vmatprep.subr.mxu0 0.0
        %5086 = vmatpush1.msra.mxu0 0.0
        %5087 = vmatprep.subr.mxu0 0.0
        %5088 = vmatpush1.msra.mxu0 0.0
        %5089 = vmatprep.subr.mxu0 0.0
        %5090 = vmatpush1.msra.mxu0 0.0
        %5091 = vmatprep.subr.mxu0 0.0
        %5092 = vmatpush1.msra.mxu0 0.0
        %5093 = vmatprep.subr.mxu0 0.0
        %5094 = vmatpush1.msra.mxu0 0.0
        %5095 = vmatprep.subr.mxu0 0.0
        %5096 = vmatpush1.msra.mxu0 0.0
        %5097 = vmatprep.subr.mxu0 0.0
        %5098 = vmatpush1.msra.mxu0 0.0
        %5099 = vmatprep.subr.mxu0 0.0
        %5100 = vmatpush1.msra.mxu0 0.0
        %5101 = vmatprep.subr.mxu0 0.0
        %5102 = vmatpush1.msra.mxu0 0.0
        %5103 = vmatprep.subr.mxu0 0.0
        %5104 = vmatpush1.msra.mxu0 0.0
        %5105 = vmatprep.subr.mxu0 0.0
        %5106 = vmatpush1.msra.mxu0 0.0
        %5107 = vmatprep.subr.mxu0 0.0
        %5108 = vmatpush1.msra.mxu0 0.0
        %5109 = vmatprep.subr.mxu0 0.0
        %5110 = vmatpush1.msra.mxu0 0.0
        %5111 = vmatprep.subr.mxu0 0.0
        %5112 = vmatpush1.msra.mxu0 0.0
        %5113 = vmatprep.subr.mxu0 0.0
        %5114 = vmatpush1.msra.mxu0 0.0
        %5115 = vmatprep.subr.mxu0 0.0
        %5116 = vmatpush1.msra.mxu0 0.0
        %5117 = vmatprep.subr.mxu0 0.0
        %5118 = vmatpush1.msra.mxu0 0.0
        %5119 = vmatprep.subr.mxu0 0.0
        %5120 = vmatpush1.msra.mxu0 0.0
        %5121 = vmatprep.subr.mxu0 0.0
        %5122 = vmatpush1.msra.mxu0 0.0
        %5123 = vmatprep.subr.mxu0 0.0
        %5124 = vmatpush1.msra.mxu0 0.0
        %5125 = vmatprep.mubr.f32.mxu0 0.0
        %5126 = vmatmul.mubr.f32.gmra.mrb[0].mxu0 %v5053
        %v5127 = vpop.f32.mrb[0].mxu0
        %v5128 = vadd.f32 %v5049, %v5127
        %v5129 = vpop.f32.mrb[0].mxu0
        %v5130 = vadd.f32 %v5051, %v5129
        %5131 = vdwg.mxu0
        %5133 = vset.pattern.permute.xlu0 0
        %5134 = vperm.xlu0 %5133, %v891
        %v5135 = vpop.permute.xlu0 %5134
        %v5137 = vadd.f32 %v5128, %v5135
        %v5138 = vadd.f32 %v5130, %v5135
        %5139 = vrot.lane.b32.xlu0 %v3452, 17
        %v5140 = vpop.permute.xlu0 %5139
        %5141 = vrot.lane.b32.xlu0 %v3453, 17
        %v5142 = vpop.permute.xlu0 %5141
        %v5143 = vsel %vm911, %v5140, %v5142
        %v5144 = vsel %vm911, %v5142, %v5140
        %v5145 = vmul.f32 %v5144, %v917
        %v5146 = vmul.f32 %v5143, %v921
        %5147 = vrot.lane.b32.xlu0 %v3452, 16
        %v5148 = vpop.permute.xlu0 %5147
        %5149 = vrot.lane.b32.xlu0 %v3453, 16
        %v5150 = vpop.permute.xlu0 %5149
        %v5151 = vsel %vm928, %v5148, %v5150
        %v5152 = vsel %vm928, %v5150, %v5148
        %v5153 = vmul.f32 %v5152, %v934
        %v5154 = vmul.f32 %v5151, %v938
        %v5156 = vsel %vm1993, %v879, 0
        %v5159 = vsel %vm2006, %v5153, 0
        %v5162 = vsel %vm2006, %v5154, 0
        %5164 = vmatprep.subr.mxu0 %v5162
        %5165 = vmatpush1.msra.mxu0 %v5159
        %5166 = vmatprep.subr.mxu0 0.0
        %5167 = vmatpush1.msra.mxu0 0.0
        %5168 = vmatprep.subr.mxu0 0.0
        %5169 = vmatpush1.msra.mxu0 0.0
        %5170 = vmatprep.subr.mxu0 0.0
        %5171 = vmatpush1.msra.mxu0 0.0
        %5172 = vmatprep.subr.mxu0 0.0
        %5173 = vmatpush1.msra.mxu0 0.0
        %5174 = vmatprep.subr.mxu0 0.0
        %5175 = vmatpush1.msra.mxu0 0.0
        %5176 = vmatprep.subr.mxu0 0.0
        %5177 = vmatpush1.msra.mxu0 0.0
        %5178 = vmatprep.subr.mxu0 0.0
        %5179 = vmatpush1.msra.mxu0 0.0
        %5180 = vmatprep.subr.mxu0 0.0
        %5181 = vmatpush1.msra.mxu0 0.0
        %5182 = vmatprep.subr.mxu0 0.0
        %5183 = vmatpush1.msra.mxu0 0.0
        %5184 = vmatprep.subr.mxu0 0.0
        %5185 = vmatpush1.msra.mxu0 0.0
        %5186 = vmatprep.subr.mxu0 0.0
        %5187 = vmatpush1.msra.mxu0 0.0
        %5188 = vmatprep.subr.mxu0 0.0
        %5189 = vmatpush1.msra.mxu0 0.0
        %5190 = vmatprep.subr.mxu0 0.0
        %5191 = vmatpush1.msra.mxu0 0.0
        %5192 = vmatprep.subr.mxu0 0.0
        %5193 = vmatpush1.msra.mxu0 0.0
        %5194 = vmatprep.subr.mxu0 0.0
        %5195 = vmatpush1.msra.mxu0 0.0
        %5196 = vmatprep.subr.mxu0 0.0
        %5197 = vmatpush1.msra.mxu0 0.0
        %5198 = vmatprep.subr.mxu0 0.0
        %5199 = vmatpush1.msra.mxu0 0.0
        %5200 = vmatprep.subr.mxu0 0.0
        %5201 = vmatpush1.msra.mxu0 0.0
        %5202 = vmatprep.subr.mxu0 0.0
        %5203 = vmatpush1.msra.mxu0 0.0
        %5204 = vmatprep.subr.mxu0 0.0
        %5205 = vmatpush1.msra.mxu0 0.0
        %5206 = vmatprep.subr.mxu0 0.0
        %5207 = vmatpush1.msra.mxu0 0.0
        %5208 = vmatprep.subr.mxu0 0.0
        %5209 = vmatpush1.msra.mxu0 0.0
        %5210 = vmatprep.subr.mxu0 0.0
        %5211 = vmatpush1.msra.mxu0 0.0
        %5212 = vmatprep.subr.mxu0 0.0
        %5213 = vmatpush1.msra.mxu0 0.0
        %5214 = vmatprep.subr.mxu0 0.0
        %5215 = vmatpush1.msra.mxu0 0.0
        %5216 = vmatprep.subr.mxu0 0.0
        %5217 = vmatpush1.msra.mxu0 0.0
        %5218 = vmatprep.subr.mxu0 0.0
        %5219 = vmatpush1.msra.mxu0 0.0
        %5220 = vmatprep.subr.mxu0 0.0
        %5221 = vmatpush1.msra.mxu0 0.0
        %5222 = vmatprep.subr.mxu0 0.0
        %5223 = vmatpush1.msra.mxu0 0.0
        %5224 = vmatprep.subr.mxu0 0.0
        %5225 = vmatpush1.msra.mxu0 0.0
        %5226 = vmatprep.subr.mxu0 0.0
        %5227 = vmatpush1.msra.mxu0 0.0
        %5228 = vmatprep.mubr.f32.mxu0 0.0
        %5229 = vmatmul.mubr.f32.gmra.mrb[0].mxu0 %v5156
        %v5230 = vpop.f32.mrb[0].mxu0
        %v5231 = vadd.f32 0.0, %v5230
        %v5232 = vpop.f32.mrb[0].mxu0
        %v5233 = vadd.f32 0.0, %v5232
        %5234 = vdwg.mxu0
        %v5236 = vsel %vm1993, %v878, 0
        %v5239 = vsel %vm2006, %v5145, 0
        %v5242 = vsel %vm2006, %v5146, 0
        %5244 = vmatprep.subr.mxu0 %v5242
        %5245 = vmatpush1.msra.mxu0 %v5239
        %5246 = vmatprep.subr.mxu0 0.0
        %5247 = vmatpush1.msra.mxu0 0.0
        %5248 = vmatprep.subr.mxu0 0.0
        %5249 = vmatpush1.msra.mxu0 0.0
        %5250 = vmatprep.subr.mxu0 0.0
        %5251 = vmatpush1.msra.mxu0 0.0
        %5252 = vmatprep.subr.mxu0 0.0
        %5253 = vmatpush1.msra.mxu0 0.0
        %5254 = vmatprep.subr.mxu0 0.0
        %5255 = vmatpush1.msra.mxu0 0.0
        %5256 = vmatprep.subr.mxu0 0.0
        %5257 = vmatpush1.msra.mxu0 0.0
        %5258 = vmatprep.subr.mxu0 0.0
        %5259 = vmatpush1.msra.mxu0 0.0
        %5260 = vmatprep.subr.mxu0 0.0
        %5261 = vmatpush1.msra.mxu0 0.0
        %5262 = vmatprep.subr.mxu0 0.0
        %5263 = vmatpush1.msra.mxu0 0.0
        %5264 = vmatprep.subr.mxu0 0.0
        %5265 = vmatpush1.msra.mxu0 0.0
        %5266 = vmatprep.subr.mxu0 0.0
        %5267 = vmatpush1.msra.mxu0 0.0
        %5268 = vmatprep.subr.mxu0 0.0
        %5269 = vmatpush1.msra.mxu0 0.0
        %5270 = vmatprep.subr.mxu0 0.0
        %5271 = vmatpush1.msra.mxu0 0.0
        %5272 = vmatprep.subr.mxu0 0.0
        %5273 = vmatpush1.msra.mxu0 0.0
        %5274 = vmatprep.subr.mxu0 0.0
        %5275 = vmatpush1.msra.mxu0 0.0
        %5276 = vmatprep.subr.mxu0 0.0
        %5277 = vmatpush1.msra.mxu0 0.0
        %5278 = vmatprep.subr.mxu0 0.0
        %5279 = vmatpush1.msra.mxu0 0.0
        %5280 = vmatprep.subr.mxu0 0.0
        %5281 = vmatpush1.msra.mxu0 0.0
        %5282 = vmatprep.subr.mxu0 0.0
        %5283 = vmatpush1.msra.mxu0 0.0
        %5284 = vmatprep.subr.mxu0 0.0
        %5285 = vmatpush1.msra.mxu0 0.0
        %5286 = vmatprep.subr.mxu0 0.0
        %5287 = vmatpush1.msra.mxu0 0.0
        %5288 = vmatprep.subr.mxu0 0.0
        %5289 = vmatpush1.msra.mxu0 0.0
        %5290 = vmatprep.subr.mxu0 0.0
        %5291 = vmatpush1.msra.mxu0 0.0
        %5292 = vmatprep.subr.mxu0 0.0
        %5293 = vmatpush1.msra.mxu0 0.0
        %5294 = vmatprep.subr.mxu0 0.0
        %5295 = vmatpush1.msra.mxu0 0.0
        %5296 = vmatprep.subr.mxu0 0.0
        %5297 = vmatpush1.msra.mxu0 0.0
        %5298 = vmatprep.subr.mxu0 0.0
        %5299 = vmatpush1.msra.mxu0 0.0
        %5300 = vmatprep.subr.mxu0 0.0
        %5301 = vmatpush1.msra.mxu0 0.0
        %5302 = vmatprep.subr.mxu0 0.0
        %5303 = vmatpush1.msra.mxu0 0.0
        %5304 = vmatprep.subr.mxu0 0.0
        %5305 = vmatpush1.msra.mxu0 0.0
        %5306 = vmatprep.subr.mxu0 0.0
        %5307 = vmatpush1.msra.mxu0 0.0
        %5308 = vmatprep.mubr.f32.mxu0 0.0
        %5309 = vmatmul.mubr.f32.gmra.mrb[0].mxu0 %v5236
        %v5310 = vpop.f32.mrb[0].mxu0
        %v5311 = vadd.f32 %v5231, %v5310
        %v5312 = vpop.f32.mrb[0].mxu0
        %v5313 = vadd.f32 %v5233, %v5312
        %5314 = vdwg.mxu0
        %5315 = vrot.lane.b32.xlu0 %v3452, 15
        %v5316 = vpop.permute.xlu0 %5315
        %5317 = vrot.lane.b32.xlu0 %v3453, 15
        %v5318 = vpop.permute.xlu0 %5317
        %v5319 = vsel %vm1107, %v5316, %v5318
        %v5320 = vsel %vm1107, %v5318, %v5316
        %v5321 = vmul.f32 %v5320, %v1113
        %v5322 = vmul.f32 %v5319, %v1117
        %v5324 = vsel %vm1993, %v880, 0
        %v5327 = vsel %vm2006, %v5321, 0
        %v5330 = vsel %vm2006, %v5322, 0
        %5332 = vmatprep.subr.mxu0 %v5330
        %5333 = vmatpush1.msra.mxu0 %v5327
        %5334 = vmatprep.subr.mxu0 0.0
        %5335 = vmatpush1.msra.mxu0 0.0
        %5336 = vmatprep.subr.mxu0 0.0
        %5337 = vmatpush1.msra.mxu0 0.0
        %5338 = vmatprep.subr.mxu0 0.0
        %5339 = vmatpush1.msra.mxu0 0.0
        %5340 = vmatprep.subr.mxu0 0.0
        %5341 = vmatpush1.msra.mxu0 0.0
        %5342 = vmatprep.subr.mxu0 0.0
        %5343 = vmatpush1.msra.mxu0 0.0
        %5344 = vmatprep.subr.mxu0 0.0
        %5345 = vmatpush1.msra.mxu0 0.0
        %5346 = vmatprep.subr.mxu0 0.0
        %5347 = vmatpush1.msra.mxu0 0.0
        %5348 = vmatprep.subr.mxu0 0.0
        %5349 = vmatpush1.msra.mxu0 0.0
        %5350 = vmatprep.subr.mxu0 0.0
        %5351 = vmatpush1.msra.mxu0 0.0
        %5352 = vmatprep.subr.mxu0 0.0
        %5353 = vmatpush1.msra.mxu0 0.0
        %5354 = vmatprep.subr.mxu0 0.0
        %5355 = vmatpush1.msra.mxu0 0.0
        %5356 = vmatprep.subr.mxu0 0.0
        %5357 = vmatpush1.msra.mxu0 0.0
        %5358 = vmatprep.subr.mxu0 0.0
        %5359 = vmatpush1.msra.mxu0 0.0
        %5360 = vmatprep.subr.mxu0 0.0
        %5361 = vmatpush1.msra.mxu0 0.0
        %5362 = vmatprep.subr.mxu0 0.0
        %5363 = vmatpush1.msra.mxu0 0.0
        %5364 = vmatprep.subr.mxu0 0.0
        %5365 = vmatpush1.msra.mxu0 0.0
        %5366 = vmatprep.subr.mxu0 0.0
        %5367 = vmatpush1.msra.mxu0 0.0
        %5368 = vmatprep.subr.mxu0 0.0
        %5369 = vmatpush1.msra.mxu0 0.0
        %5370 = vmatprep.subr.mxu0 0.0
        %5371 = vmatpush1.msra.mxu0 0.0
        %5372 = vmatprep.subr.mxu0 0.0
        %5373 = vmatpush1.msra.mxu0 0.0
        %5374 = vmatprep.subr.mxu0 0.0
        %5375 = vmatpush1.msra.mxu0 0.0
        %5376 = vmatprep.subr.mxu0 0.0
        %5377 = vmatpush1.msra.mxu0 0.0
        %5378 = vmatprep.subr.mxu0 0.0
        %5379 = vmatpush1.msra.mxu0 0.0
        %5380 = vmatprep.subr.mxu0 0.0
        %5381 = vmatpush1.msra.mxu0 0.0
        %5382 = vmatprep.subr.mxu0 0.0
        %5383 = vmatpush1.msra.mxu0 0.0
        %5384 = vmatprep.subr.mxu0 0.0
        %5385 = vmatpush1.msra.mxu0 0.0
        %5386 = vmatprep.subr.mxu0 0.0
        %5387 = vmatpush1.msra.mxu0 0.0
        %5388 = vmatprep.subr.mxu0 0.0
        %5389 = vmatpush1.msra.mxu0 0.0
        %5390 = vmatprep.subr.mxu0 0.0
        %5391 = vmatpush1.msra.mxu0 0.0
        %5392 = vmatprep.subr.mxu0 0.0
        %5393 = vmatpush1.msra.mxu0 0.0
        %5394 = vmatprep.subr.mxu0 0.0
        %5395 = vmatpush1.msra.mxu0 0.0
        %5396 = vmatprep.mubr.f32.mxu0 0.0
        %5397 = vmatmul.mubr.f32.gmra.mrb[0].mxu0 %v5324
        %v5398 = vpop.f32.mrb[0].mxu0
        %v5399 = vadd.f32 0.0, %v5398
        %v5400 = vpop.f32.mrb[0].mxu0
        %v5401 = vadd.f32 0.0, %v5400
        %5402 = vdwg.mxu0
        %v5403 = vadd.f32 %v5311, %v5399
        %v5404 = vadd.f32 %v5313, %v5401
        %5405 = vrot.lane.b32.xlu0 %v3452, 1
        %v5406 = vpop.permute.xlu0 %5405
        %5407 = vrot.lane.b32.xlu0 %v3453, 1
        %v5408 = vpop.permute.xlu0 %5407
        %v5409 = vsel %vm1206, %v5406, %v5408
        %v5410 = vsel %vm1206, %v5408, %v5406
        %v5411 = vmul.f32 %v5410, %v1212
        %v5412 = vmul.f32 %v5409, %v1216
        %v5414 = vsel %vm1993, %v881, 0
        %v5417 = vsel %vm2006, %v5411, 0
        %v5420 = vsel %vm2006, %v5412, 0
        %5422 = vmatprep.subr.mxu0 %v5420
        %5423 = vmatpush1.msra.mxu0 %v5417
        %5424 = vmatprep.subr.mxu0 0.0
        %5425 = vmatpush1.msra.mxu0 0.0
        %5426 = vmatprep.subr.mxu0 0.0
        %5427 = vmatpush1.msra.mxu0 0.0
        %5428 = vmatprep.subr.mxu0 0.0
        %5429 = vmatpush1.msra.mxu0 0.0
        %5430 = vmatprep.subr.mxu0 0.0
        %5431 = vmatpush1.msra.mxu0 0.0
        %5432 = vmatprep.subr.mxu0 0.0
        %5433 = vmatpush1.msra.mxu0 0.0
        %5434 = vmatprep.subr.mxu0 0.0
        %5435 = vmatpush1.msra.mxu0 0.0
        %5436 = vmatprep.subr.mxu0 0.0
        %5437 = vmatpush1.msra.mxu0 0.0
        %5438 = vmatprep.subr.mxu0 0.0
        %5439 = vmatpush1.msra.mxu0 0.0
        %5440 = vmatprep.subr.mxu0 0.0
        %5441 = vmatpush1.msra.mxu0 0.0
        %5442 = vmatprep.subr.mxu0 0.0
        %5443 = vmatpush1.msra.mxu0 0.0
        %5444 = vmatprep.subr.mxu0 0.0
        %5445 = vmatpush1.msra.mxu0 0.0
        %5446 = vmatprep.subr.mxu0 0.0
        %5447 = vmatpush1.msra.mxu0 0.0
        %5448 = vmatprep.subr.mxu0 0.0
        %5449 = vmatpush1.msra.mxu0 0.0
        %5450 = vmatprep.subr.mxu0 0.0
        %5451 = vmatpush1.msra.mxu0 0.0
        %5452 = vmatprep.subr.mxu0 0.0
        %5453 = vmatpush1.msra.mxu0 0.0
        %5454 = vmatprep.subr.mxu0 0.0
        %5455 = vmatpush1.msra.mxu0 0.0
        %5456 = vmatprep.subr.mxu0 0.0
        %5457 = vmatpush1.msra.mxu0 0.0
        %5458 = vmatprep.subr.mxu0 0.0
        %5459 = vmatpush1.msra.mxu0 0.0
        %5460 = vmatprep.subr.mxu0 0.0
        %5461 = vmatpush1.msra.mxu0 0.0
        %5462 = vmatprep.subr.mxu0 0.0
        %5463 = vmatpush1.msra.mxu0 0.0
        %5464 = vmatprep.subr.mxu0 0.0
        %5465 = vmatpush1.msra.mxu0 0.0
        %5466 = vmatprep.subr.mxu0 0.0
        %5467 = vmatpush1.msra.mxu0 0.0
        %5468 = vmatprep.subr.mxu0 0.0
        %5469 = vmatpush1.msra.mxu0 0.0
        %5470 = vmatprep.subr.mxu0 0.0
        %5471 = vmatpush1.msra.mxu0 0.0
        %5472 = vmatprep.subr.mxu0 0.0
        %5473 = vmatpush1.msra.mxu0 0.0
        %5474 = vmatprep.subr.mxu0 0.0
        %5475 = vmatpush1.msra.mxu0 0.0
        %5476 = vmatprep.subr.mxu0 0.0
        %5477 = vmatpush1.msra.mxu0 0.0
        %5478 = vmatprep.subr.mxu0 0.0
        %5479 = vmatpush1.msra.mxu0 0.0
        %5480 = vmatprep.subr.mxu0 0.0
        %5481 = vmatpush1.msra.mxu0 0.0
        %5482 = vmatprep.subr.mxu0 0.0
        %5483 = vmatpush1.msra.mxu0 0.0
        %5484 = vmatprep.subr.mxu0 0.0
        %5485 = vmatpush1.msra.mxu0 0.0
        %5486 = vmatprep.mubr.f32.mxu0 0.0
        %5487 = vmatmul.mubr.f32.gmra.mrb[0].mxu0 %v5414
        %v5488 = vpop.f32.mrb[0].mxu0
        %v5489 = vadd.f32 0.0, %v5488
        %v5490 = vpop.f32.mrb[0].mxu0
        %v5491 = vadd.f32 0.0, %v5490
        %5492 = vdwg.mxu0
        %v5493 = vadd.f32 %v5403, %v5489
        %v5494 = vadd.f32 %v5404, %v5491
        %v5496 = vsel %vm1993, %v882, 0
        %v5499 = vsel %vm2006, %v3452, 0
        %v5502 = vsel %vm2006, %v3453, 0
        %5504 = vmatprep.subr.mxu0 %v5502
        %5505 = vmatpush1.msra.mxu0 %v5499
        %5506 = vmatprep.subr.mxu0 0.0
        %5507 = vmatpush1.msra.mxu0 0.0
        %5508 = vmatprep.subr.mxu0 0.0
        %5509 = vmatpush1.msra.mxu0 0.0
        %5510 = vmatprep.subr.mxu0 0.0
        %5511 = vmatpush1.msra.mxu0 0.0
        %5512 = vmatprep.subr.mxu0 0.0
        %5513 = vmatpush1.msra.mxu0 0.0
        %5514 = vmatprep.subr.mxu0 0.0
        %5515 = vmatpush1.msra.mxu0 0.0
        %5516 = vmatprep.subr.mxu0 0.0
        %5517 = vmatpush1.msra.mxu0 0.0
        %5518 = vmatprep.subr.mxu0 0.0
        %5519 = vmatpush1.msra.mxu0 0.0
        %5520 = vmatprep.subr.mxu0 0.0
        %5521 = vmatpush1.msra.mxu0 0.0
        %5522 = vmatprep.subr.mxu0 0.0
        %5523 = vmatpush1.msra.mxu0 0.0
        %5524 = vmatprep.subr.mxu0 0.0
        %5525 = vmatpush1.msra.mxu0 0.0
        %5526 = vmatprep.subr.mxu0 0.0
        %5527 = vmatpush1.msra.mxu0 0.0
        %5528 = vmatprep.subr.mxu0 0.0
        %5529 = vmatpush1.msra.mxu0 0.0
        %5530 = vmatprep.subr.mxu0 0.0
        %5531 = vmatpush1.msra.mxu0 0.0
        %5532 = vmatprep.subr.mxu0 0.0
        %5533 = vmatpush1.msra.mxu0 0.0
        %5534 = vmatprep.subr.mxu0 0.0
        %5535 = vmatpush1.msra.mxu0 0.0
        %5536 = vmatprep.subr.mxu0 0.0
        %5537 = vmatpush1.msra.mxu0 0.0
        %5538 = vmatprep.subr.mxu0 0.0
        %5539 = vmatpush1.msra.mxu0 0.0
        %5540 = vmatprep.subr.mxu0 0.0
        %5541 = vmatpush1.msra.mxu0 0.0
        %5542 = vmatprep.subr.mxu0 0.0
        %5543 = vmatpush1.msra.mxu0 0.0
        %5544 = vmatprep.subr.mxu0 0.0
        %5545 = vmatpush1.msra.mxu0 0.0
        %5546 = vmatprep.subr.mxu0 0.0
        %5547 = vmatpush1.msra.mxu0 0.0
        %5548 = vmatprep.subr.mxu0 0.0
        %5549 = vmatpush1.msra.mxu0 0.0
        %5550 = vmatprep.subr.mxu0 0.0
        %5551 = vmatpush1.msra.mxu0 0.0
        %5552 = vmatprep.subr.mxu0 0.0
        %5553 = vmatpush1.msra.mxu0 0.0
        %5554 = vmatprep.subr.mxu0 0.0
        %5555 = vmatpush1.msra.mxu0 0.0
        %5556 = vmatprep.subr.mxu0 0.0
        %5557 = vmatpush1.msra.mxu0 0.0
        %5558 = vmatprep.subr.mxu0 0.0
        %5559 = vmatpush1.msra.mxu0 0.0
        %5560 = vmatprep.subr.mxu0 0.0
        %5561 = vmatpush1.msra.mxu0 0.0
        %5562 = vmatprep.subr.mxu0 0.0
        %5563 = vmatpush1.msra.mxu0 0.0
        %5564 = vmatprep.subr.mxu0 0.0
        %5565 = vmatpush1.msra.mxu0 0.0
        %5566 = vmatprep.subr.mxu0 0.0
        %5567 = vmatpush1.msra.mxu0 0.0
        %5568 = vmatprep.mubr.f32.mxu0 0.0
        %5569 = vmatmul.mubr.f32.gmra.mrb[0].mxu0 %v5496
        %v5570 = vpop.f32.mrb[0].mxu0
        %v5571 = vadd.f32 0.0, %v5570
        %v5572 = vpop.f32.mrb[0].mxu0
        %v5573 = vadd.f32 0.0, %v5572
        %5574 = vdwg.mxu0
        %v5575 = vadd.f32 %v5493, %v5571
        %v5576 = vadd.f32 %v5494, %v5573
        %5577 = vrot.lane.b32.xlu0 %v3452, 127
        %v5578 = vpop.permute.xlu0 %5577
        %5579 = vrot.lane.b32.xlu0 %v3453, 127
        %v5580 = vpop.permute.xlu0 %5579
        %v5581 = vsel %vm1385, %v5578, %v5580
        %v5582 = vsel %vm1385, %v5580, %v5578
        %v5583 = vmul.f32 %v5581, %v1391
        %v5584 = vmul.f32 %v5582, %v1395
        %v5586 = vsel %vm1993, %v883, 0
        %v5589 = vsel %vm2006, %v5583, 0
        %v5592 = vsel %vm2006, %v5584, 0
        %5594 = vmatprep.subr.mxu0 %v5592
        %5595 = vmatpush1.msra.mxu0 %v5589
        %5596 = vmatprep.subr.mxu0 0.0
        %5597 = vmatpush1.msra.mxu0 0.0
        %5598 = vmatprep.subr.mxu0 0.0
        %5599 = vmatpush1.msra.mxu0 0.0
        %5600 = vmatprep.subr.mxu0 0.0
        %5601 = vmatpush1.msra.mxu0 0.0
        %5602 = vmatprep.subr.mxu0 0.0
        %5603 = vmatpush1.msra.mxu0 0.0
        %5604 = vmatprep.subr.mxu0 0.0
        %5605 = vmatpush1.msra.mxu0 0.0
        %5606 = vmatprep.subr.mxu0 0.0
        %5607 = vmatpush1.msra.mxu0 0.0
        %5608 = vmatprep.subr.mxu0 0.0
        %5609 = vmatpush1.msra.mxu0 0.0
        %5610 = vmatprep.subr.mxu0 0.0
        %5611 = vmatpush1.msra.mxu0 0.0
        %5612 = vmatprep.subr.mxu0 0.0
        %5613 = vmatpush1.msra.mxu0 0.0
        %5614 = vmatprep.subr.mxu0 0.0
        %5615 = vmatpush1.msra.mxu0 0.0
        %5616 = vmatprep.subr.mxu0 0.0
        %5617 = vmatpush1.msra.mxu0 0.0
        %5618 = vmatprep.subr.mxu0 0.0
        %5619 = vmatpush1.msra.mxu0 0.0
        %5620 = vmatprep.subr.mxu0 0.0
        %5621 = vmatpush1.msra.mxu0 0.0
        %5622 = vmatprep.subr.mxu0 0.0
        %5623 = vmatpush1.msra.mxu0 0.0
        %5624 = vmatprep.subr.mxu0 0.0
        %5625 = vmatpush1.msra.mxu0 0.0
        %5626 = vmatprep.subr.mxu0 0.0
        %5627 = vmatpush1.msra.mxu0 0.0
        %5628 = vmatprep.subr.mxu0 0.0
        %5629 = vmatpush1.msra.mxu0 0.0
        %5630 = vmatprep.subr.mxu0 0.0
        %5631 = vmatpush1.msra.mxu0 0.0
        %5632 = vmatprep.subr.mxu0 0.0
        %5633 = vmatpush1.msra.mxu0 0.0
        %5634 = vmatprep.subr.mxu0 0.0
        %5635 = vmatpush1.msra.mxu0 0.0
        %5636 = vmatprep.subr.mxu0 0.0
        %5637 = vmatpush1.msra.mxu0 0.0
        %5638 = vmatprep.subr.mxu0 0.0
        %5639 = vmatpush1.msra.mxu0 0.0
        %5640 = vmatprep.subr.mxu0 0.0
        %5641 = vmatpush1.msra.mxu0 0.0
        %5642 = vmatprep.subr.mxu0 0.0
        %5643 = vmatpush1.msra.mxu0 0.0
        %5644 = vmatprep.subr.mxu0 0.0
        %5645 = vmatpush1.msra.mxu0 0.0
        %5646 = vmatprep.subr.mxu0 0.0
        %5647 = vmatpush1.msra.mxu0 0.0
        %5648 = vmatprep.subr.mxu0 0.0
        %5649 = vmatpush1.msra.mxu0 0.0
        %5650 = vmatprep.subr.mxu0 0.0
        %5651 = vmatpush1.msra.mxu0 0.0
        %5652 = vmatprep.subr.mxu0 0.0
        %5653 = vmatpush1.msra.mxu0 0.0
        %5654 = vmatprep.subr.mxu0 0.0
        %5655 = vmatpush1.msra.mxu0 0.0
        %5656 = vmatprep.subr.mxu0 0.0
        %5657 = vmatpush1.msra.mxu0 0.0
        %5658 = vmatprep.mubr.f32.mxu0 0.0
        %5659 = vmatmul.mubr.f32.gmra.mrb[0].mxu0 %v5586
        %v5660 = vpop.f32.mrb[0].mxu0
        %v5661 = vadd.f32 0.0, %v5660
        %v5662 = vpop.f32.mrb[0].mxu0
        %v5663 = vadd.f32 0.0, %v5662
        %5664 = vdwg.mxu0
        %v5665 = vadd.f32 %v5575, %v5661
        %v5666 = vadd.f32 %v5576, %v5663
        %5667 = vrot.lane.b32.xlu0 %v3452, 113
        %v5668 = vpop.permute.xlu0 %5667
        %5669 = vrot.lane.b32.xlu0 %v3453, 113
        %v5670 = vpop.permute.xlu0 %5669
        %v5671 = vsel %vm1484, %v5668, %v5670
        %v5672 = vsel %vm1484, %v5670, %v5668
        %v5673 = vmul.f32 %v5671, %v1490
        %v5674 = vmul.f32 %v5672, %v1494
        %v5676 = vsel %vm1993, %v884, 0
        %v5679 = vsel %vm2006, %v5673, 0
        %v5682 = vsel %vm2006, %v5674, 0
        %5684 = vmatprep.subr.mxu0 %v5682
        %5685 = vmatpush1.msra.mxu0 %v5679
        %5686 = vmatprep.subr.mxu0 0.0
        %5687 = vmatpush1.msra.mxu0 0.0
        %5688 = vmatprep.subr.mxu0 0.0
        %5689 = vmatpush1.msra.mxu0 0.0
        %5690 = vmatprep.subr.mxu0 0.0
        %5691 = vmatpush1.msra.mxu0 0.0
        %5692 = vmatprep.subr.mxu0 0.0
        %5693 = vmatpush1.msra.mxu0 0.0
        %5694 = vmatprep.subr.mxu0 0.0
        %5695 = vmatpush1.msra.mxu0 0.0
        %5696 = vmatprep.subr.mxu0 0.0
        %5697 = vmatpush1.msra.mxu0 0.0
        %5698 = vmatprep.subr.mxu0 0.0
        %5699 = vmatpush1.msra.mxu0 0.0
        %5700 = vmatprep.subr.mxu0 0.0
        %5701 = vmatpush1.msra.mxu0 0.0
        %5702 = vmatprep.subr.mxu0 0.0
        %5703 = vmatpush1.msra.mxu0 0.0
        %5704 = vmatprep.subr.mxu0 0.0
        %5705 = vmatpush1.msra.mxu0 0.0
        %5706 = vmatprep.subr.mxu0 0.0
        %5707 = vmatpush1.msra.mxu0 0.0
        %5708 = vmatprep.subr.mxu0 0.0
        %5709 = vmatpush1.msra.mxu0 0.0
        %5710 = vmatprep.subr.mxu0 0.0
        %5711 = vmatpush1.msra.mxu0 0.0
        %5712 = vmatprep.subr.mxu0 0.0
        %5713 = vmatpush1.msra.mxu0 0.0
        %5714 = vmatprep.subr.mxu0 0.0
        %5715 = vmatpush1.msra.mxu0 0.0
        %5716 = vmatprep.subr.mxu0 0.0
        %5717 = vmatpush1.msra.mxu0 0.0
        %5718 = vmatprep.subr.mxu0 0.0
        %5719 = vmatpush1.msra.mxu0 0.0
        %5720 = vmatprep.subr.mxu0 0.0
        %5721 = vmatpush1.msra.mxu0 0.0
        %5722 = vmatprep.subr.mxu0 0.0
        %5723 = vmatpush1.msra.mxu0 0.0
        %5724 = vmatprep.subr.mxu0 0.0
        %5725 = vmatpush1.msra.mxu0 0.0
        %5726 = vmatprep.subr.mxu0 0.0
        %5727 = vmatpush1.msra.mxu0 0.0
        %5728 = vmatprep.subr.mxu0 0.0
        %5729 = vmatpush1.msra.mxu0 0.0
        %5730 = vmatprep.subr.mxu0 0.0
        %5731 = vmatpush1.msra.mxu0 0.0
        %5732 = vmatprep.subr.mxu0 0.0
        %5733 = vmatpush1.msra.mxu0 0.0
        %5734 = vmatprep.subr.mxu0 0.0
        %5735 = vmatpush1.msra.mxu0 0.0
        %5736 = vmatprep.subr.mxu0 0.0
        %5737 = vmatpush1.msra.mxu0 0.0
        %5738 = vmatprep.subr.mxu0 0.0
        %5739 = vmatpush1.msra.mxu0 0.0
        %5740 = vmatprep.subr.mxu0 0.0
        %5741 = vmatpush1.msra.mxu0 0.0
        %5742 = vmatprep.subr.mxu0 0.0
        %5743 = vmatpush1.msra.mxu0 0.0
        %5744 = vmatprep.subr.mxu0 0.0
        %5745 = vmatpush1.msra.mxu0 0.0
        %5746 = vmatprep.subr.mxu0 0.0
        %5747 = vmatpush1.msra.mxu0 0.0
        %5748 = vmatprep.mubr.f32.mxu0 0.0
        %5749 = vmatmul.mubr.f32.gmra.mrb[0].mxu0 %v5676
        %v5750 = vpop.f32.mrb[0].mxu0
        %v5751 = vadd.f32 0.0, %v5750
        %v5752 = vpop.f32.mrb[0].mxu0
        %v5753 = vadd.f32 0.0, %v5752
        %5754 = vdwg.mxu0
        %v5755 = vadd.f32 %v5665, %v5751
        %v5756 = vadd.f32 %v5666, %v5753
        %5757 = vrot.lane.b32.xlu0 %v3452, 112
        %v5758 = vpop.permute.xlu0 %5757
        %5759 = vrot.lane.b32.xlu0 %v3453, 112
        %v5760 = vpop.permute.xlu0 %5759
        %v5761 = vsel %vm1583, %v5758, %v5760
        %v5762 = vsel %vm1583, %v5760, %v5758
        %v5763 = vmul.f32 %v5761, %v1589
        %v5764 = vmul.f32 %v5762, %v1593
        %v5766 = vsel %vm1993, %v885, 0
        %v5769 = vsel %vm2006, %v5763, 0
        %v5772 = vsel %vm2006, %v5764, 0
        %5774 = vmatprep.subr.mxu0 %v5772
        %5775 = vmatpush1.msra.mxu0 %v5769
        %5776 = vmatprep.subr.mxu0 0.0
        %5777 = vmatpush1.msra.mxu0 0.0
        %5778 = vmatprep.subr.mxu0 0.0
        %5779 = vmatpush1.msra.mxu0 0.0
        %5780 = vmatprep.subr.mxu0 0.0
        %5781 = vmatpush1.msra.mxu0 0.0
        %5782 = vmatprep.subr.mxu0 0.0
        %5783 = vmatpush1.msra.mxu0 0.0
        %5784 = vmatprep.subr.mxu0 0.0
        %5785 = vmatpush1.msra.mxu0 0.0
        %5786 = vmatprep.subr.mxu0 0.0
        %5787 = vmatpush1.msra.mxu0 0.0
        %5788 = vmatprep.subr.mxu0 0.0
        %5789 = vmatpush1.msra.mxu0 0.0
        %5790 = vmatprep.subr.mxu0 0.0
        %5791 = vmatpush1.msra.mxu0 0.0
        %5792 = vmatprep.subr.mxu0 0.0
        %5793 = vmatpush1.msra.mxu0 0.0
        %5794 = vmatprep.subr.mxu0 0.0
        %5795 = vmatpush1.msra.mxu0 0.0
        %5796 = vmatprep.subr.mxu0 0.0
        %5797 = vmatpush1.msra.mxu0 0.0
        %5798 = vmatprep.subr.mxu0 0.0
        %5799 = vmatpush1.msra.mxu0 0.0
        %5800 = vmatprep.subr.mxu0 0.0
        %5801 = vmatpush1.msra.mxu0 0.0
        %5802 = vmatprep.subr.mxu0 0.0
        %5803 = vmatpush1.msra.mxu0 0.0
        %5804 = vmatprep.subr.mxu0 0.0
        %5805 = vmatpush1.msra.mxu0 0.0
        %5806 = vmatprep.subr.mxu0 0.0
        %5807 = vmatpush1.msra.mxu0 0.0
        %5808 = vmatprep.subr.mxu0 0.0
        %5809 = vmatpush1.msra.mxu0 0.0
        %5810 = vmatprep.subr.mxu0 0.0
        %5811 = vmatpush1.msra.mxu0 0.0
        %5812 = vmatprep.subr.mxu0 0.0
        %5813 = vmatpush1.msra.mxu0 0.0
        %5814 = vmatprep.subr.mxu0 0.0
        %5815 = vmatpush1.msra.mxu0 0.0
        %5816 = vmatprep.subr.mxu0 0.0
        %5817 = vmatpush1.msra.mxu0 0.0
        %5818 = vmatprep.subr.mxu0 0.0
        %5819 = vmatpush1.msra.mxu0 0.0
        %5820 = vmatprep.subr.mxu0 0.0
        %5821 = vmatpush1.msra.mxu0 0.0
        %5822 = vmatprep.subr.mxu0 0.0
        %5823 = vmatpush1.msra.mxu0 0.0
        %5824 = vmatprep.subr.mxu0 0.0
        %5825 = vmatpush1.msra.mxu0 0.0
        %5826 = vmatprep.subr.mxu0 0.0
        %5827 = vmatpush1.msra.mxu0 0.0
        %5828 = vmatprep.subr.mxu0 0.0
        %5829 = vmatpush1.msra.mxu0 0.0
        %5830 = vmatprep.subr.mxu0 0.0
        %5831 = vmatpush1.msra.mxu0 0.0
        %5832 = vmatprep.subr.mxu0 0.0
        %5833 = vmatpush1.msra.mxu0 0.0
        %5834 = vmatprep.subr.mxu0 0.0
        %5835 = vmatpush1.msra.mxu0 0.0
        %5836 = vmatprep.subr.mxu0 0.0
        %5837 = vmatpush1.msra.mxu0 0.0
        %5838 = vmatprep.mubr.f32.mxu0 0.0
        %5839 = vmatmul.mubr.f32.gmra.mrb[0].mxu0 %v5766
        %v5840 = vpop.f32.mrb[0].mxu0
        %v5841 = vadd.f32 0.0, %v5840
        %v5842 = vpop.f32.mrb[0].mxu0
        %v5843 = vadd.f32 0.0, %v5842
        %5844 = vdwg.mxu0
        %v5845 = vadd.f32 %v5755, %v5841
        %v5846 = vadd.f32 %v5756, %v5843
        %5847 = vrot.lane.b32.xlu0 %v3452, 111
        %v5848 = vpop.permute.xlu0 %5847
        %5849 = vrot.lane.b32.xlu0 %v3453, 111
        %v5850 = vpop.permute.xlu0 %5849
        %v5851 = vsel %vm1682, %v5848, %v5850
        %v5852 = vsel %vm1682, %v5850, %v5848
        %v5853 = vmul.f32 %v5851, %v1688
        %v5854 = vmul.f32 %v5852, %v1692
        %v5856 = vsel %vm1993, %v886, 0
        %v5859 = vsel %vm2006, %v5853, 0
        %v5862 = vsel %vm2006, %v5854, 0
        %5864 = vmatprep.subr.mxu0 %v5862
        %5865 = vmatpush1.msra.mxu0 %v5859
        %5866 = vmatprep.subr.mxu0 0.0
        %5867 = vmatpush1.msra.mxu0 0.0
        %5868 = vmatprep.subr.mxu0 0.0
        %5869 = vmatpush1.msra.mxu0 0.0
        %5870 = vmatprep.subr.mxu0 0.0
        %5871 = vmatpush1.msra.mxu0 0.0
        %5872 = vmatprep.subr.mxu0 0.0
        %5873 = vmatpush1.msra.mxu0 0.0
        %5874 = vmatprep.subr.mxu0 0.0
        %5875 = vmatpush1.msra.mxu0 0.0
        %5876 = vmatprep.subr.mxu0 0.0
        %5877 = vmatpush1.msra.mxu0 0.0
        %5878 = vmatprep.subr.mxu0 0.0
        %5879 = vmatpush1.msra.mxu0 0.0
        %5880 = vmatprep.subr.mxu0 0.0
        %5881 = vmatpush1.msra.mxu0 0.0
        %5882 = vmatprep.subr.mxu0 0.0
        %5883 = vmatpush1.msra.mxu0 0.0
        %5884 = vmatprep.subr.mxu0 0.0
        %5885 = vmatpush1.msra.mxu0 0.0
        %5886 = vmatprep.subr.mxu0 0.0
        %5887 = vmatpush1.msra.mxu0 0.0
        %5888 = vmatprep.subr.mxu0 0.0
        %5889 = vmatpush1.msra.mxu0 0.0
        %5890 = vmatprep.subr.mxu0 0.0
        %5891 = vmatpush1.msra.mxu0 0.0
        %5892 = vmatprep.subr.mxu0 0.0
        %5893 = vmatpush1.msra.mxu0 0.0
        %5894 = vmatprep.subr.mxu0 0.0
        %5895 = vmatpush1.msra.mxu0 0.0
        %5896 = vmatprep.subr.mxu0 0.0
        %5897 = vmatpush1.msra.mxu0 0.0
        %5898 = vmatprep.subr.mxu0 0.0
        %5899 = vmatpush1.msra.mxu0 0.0
        %5900 = vmatprep.subr.mxu0 0.0
        %5901 = vmatpush1.msra.mxu0 0.0
        %5902 = vmatprep.subr.mxu0 0.0
        %5903 = vmatpush1.msra.mxu0 0.0
        %5904 = vmatprep.subr.mxu0 0.0
        %5905 = vmatpush1.msra.mxu0 0.0
        %5906 = vmatprep.subr.mxu0 0.0
        %5907 = vmatpush1.msra.mxu0 0.0
        %5908 = vmatprep.subr.mxu0 0.0
        %5909 = vmatpush1.msra.mxu0 0.0
        %5910 = vmatprep.subr.mxu0 0.0
        %5911 = vmatpush1.msra.mxu0 0.0
        %5912 = vmatprep.subr.mxu0 0.0
        %5913 = vmatpush1.msra.mxu0 0.0
        %5914 = vmatprep.subr.mxu0 0.0
        %5915 = vmatpush1.msra.mxu0 0.0
        %5916 = vmatprep.subr.mxu0 0.0
        %5917 = vmatpush1.msra.mxu0 0.0
        %5918 = vmatprep.subr.mxu0 0.0
        %5919 = vmatpush1.msra.mxu0 0.0
        %5920 = vmatprep.subr.mxu0 0.0
        %5921 = vmatpush1.msra.mxu0 0.0
        %5922 = vmatprep.subr.mxu0 0.0
        %5923 = vmatpush1.msra.mxu0 0.0
        %5924 = vmatprep.subr.mxu0 0.0
        %5925 = vmatpush1.msra.mxu0 0.0
        %5926 = vmatprep.subr.mxu0 0.0
        %5927 = vmatpush1.msra.mxu0 0.0
        %5928 = vmatprep.mubr.f32.mxu0 0.0
        %5929 = vmatmul.mubr.f32.gmra.mrb[0].mxu0 %v5856
        %v5930 = vpop.f32.mrb[0].mxu0
        %v5931 = vadd.f32 0.0, %v5930
        %v5932 = vpop.f32.mrb[0].mxu0
        %v5933 = vadd.f32 0.0, %v5932
        %5934 = vdwg.mxu0
        %v5935 = vadd.f32 %v5845, %v5931
        %v5936 = vadd.f32 %v5846, %v5933
        %5938 = vset.pattern.permute.xlu0 0
        %5939 = vperm.xlu0 %5938, %v887
        %v5940 = vpop.permute.xlu0 %5939
        %v5942 = vadd.f32 %v5935, %v5940
        %v5943 = vadd.f32 %v5936, %v5940
        %v5944 = vlaneseq
        %v5945 = vshrl.u32 %v5944, 7
        %v5946 = vsel %vm2006, %v5942, 0.0
        %v5947 = vsel %vm2006, %v5943, 0.0
        %v5948 = vadd.f32 %v5946, %v5947
        %5949 = vadd.xlane.f32.xlu0 %v5948
        %v5950 = vpop.xlane.xlu0 %5949
        %v5951 = vmul.f32 %v5950, %v2510
        %v5952 = vsel %vm2006, %v5951, 0.0
        %v5953 = vrot.slane %v5952, 4
        %v5954 = vadd.f32 %v5952, %v5953
        %v5955 = vrot.slane %v5954, 2
        %v5956 = vadd.f32 %v5954, %v5955
        %v5957 = vrot.slane %v5956, 1
        %v5958 = vadd.f32 %v5956, %v5957
        %v5959 = vmul.f32 %v5958, %v2519
        %v5960 = vsub.f32 %v5942, %v5959
        %v5961 = vsub.f32 %v5943, %v5959
        %v5962 = vmul.f32 %v5960, %v5960
        %v5963 = vmul.f32 %v5961, %v5961
        %v5964 = vsel %vm2006, %v5962, 0.0
        %v5965 = vsel %vm2006, %v5963, 0.0
        %v5966 = vadd.f32 %v5964, %v5965
        %5967 = vadd.xlane.f32.xlu0 %v5966
        %v5968 = vpop.xlane.xlu0 %5967
        %v5969 = vmul.f32 %v5968, %v2510
        %v5970 = vsel %vm2006, %v5969, 0.0
        %v5971 = vrot.slane %v5970, 4
        %v5972 = vadd.f32 %v5970, %v5971
        %v5973 = vrot.slane %v5972, 2
        %v5974 = vadd.f32 %v5972, %v5973
        %v5975 = vrot.slane %v5974, 1
        %v5976 = vadd.f32 %v5974, %v5975
        %v5977 = vmul.f32 %v5976, %v2519
        %vm5978 = vcmp.ge.s32.totalorder %v5945, 0
        %vm5979 = vcmp.lt.s32.totalorder %v5945, 2
        %vm5980 = vmand %vm5978, %vm5979
        %v5981 = vsel %vm5980, %v5959, 0.0
        %v5982 = vadd.f32 %v5977, 1e-05
        %v5983 = vrsqrt.pop %v5982
        %v5984 = vsel %vm5980, %v5983, 0.0
        %vm5985 = vcmask 1043458
        %v5986 = vsel %vm5985, %v5942, 0.0
        %v5987 = vsel %vm5985, %v5943, 0.0
        %v5988 = vadd.f32 %v5986, %v5987
        %5989 = vadd.xlane.f32.xlu0 %v5988
        %v5990 = vpop.xlane.xlu0 %5989
        %v5991 = vmul.f32 %v5990, %v2510
        %v5993 = vrot.slane %v5991, 2
        %v5995 = vsel %vm2006, %v5993, 0.0
        %v5996 = vrot.slane %v5995, 4
        %v5997 = vadd.f32 %v5995, %v5996
        %v5998 = vrot.slane %v5997, 2
        %v5999 = vadd.f32 %v5997, %v5998
        %v6000 = vrot.slane %v5999, 1
        %v6001 = vadd.f32 %v5999, %v6000
        %v6002 = vmul.f32 %v6001, %v2519
        %v6003 = vsub.f32 %v5942, %v6002
        %v6004 = vsub.f32 %v5943, %v6002
        %v6005 = vmul.f32 %v6003, %v6003
        %v6006 = vmul.f32 %v6004, %v6004
        %v6007 = vsel %vm5985, %v6005, 0.0
        %v6008 = vsel %vm5985, %v6006, 0.0
        %v6009 = vadd.f32 %v6007, %v6008
        %6010 = vadd.xlane.f32.xlu0 %v6009
        %v6011 = vpop.xlane.xlu0 %6010
        %v6012 = vmul.f32 %v6011, %v2510
        %v6014 = vrot.slane %v6012, 2
        %v6016 = vsel %vm2006, %v6014, 0.0
        %v6017 = vrot.slane %v6016, 4
        %v6018 = vadd.f32 %v6016, %v6017
        %v6019 = vrot.slane %v6018, 2
        %v6020 = vadd.f32 %v6018, %v6019
        %v6021 = vrot.slane %v6020, 1
        %v6022 = vadd.f32 %v6020, %v6021
        %v6023 = vmul.f32 %v6022, %v2519
        %vm6024 = vcmp.ge.s32.totalorder %v5945, 2
        %vm6025 = vcmp.lt.s32.totalorder %v5945, 4
        %vm6026 = vmand %vm6024, %vm6025
        %v6027 = vsel %vm6026, %v6002, %v5981
        %v6028 = vadd.f32 %v6023, 1e-05
        %v6029 = vrsqrt.pop %v6028
        %v6030 = vsel %vm6026, %v6029, %v5984
        %v6031 = vsub.f32 %v5942, %v6027
        %v6032 = vsub.f32 %v5943, %v6027
        %v6033 = vmul.f32 %v6031, %v6030
        %v6034 = vmul.f32 %v6032, %v6030
        %6036 = vset.pattern.permute.xlu0 0
        %6037 = vperm.xlu0 %6036, %v888
        %v6038 = vpop.permute.xlu0 %6037
        %v6040 = vmul.f32 %v6033, %v6038
        %v6041 = vmul.f32 %v6034, %v6038
        %6043 = vset.pattern.permute.xlu0 0
        %6044 = vperm.xlu0 %6043, %v889
        %v6045 = vpop.permute.xlu0 %6044
        %v6047 = vadd.f32 %v6040, %v6045
        %v6048 = vadd.f32 %v6041, %v6045
        %v6049 = vmul.f32 %v6047, 0.5
        %v6050 = vmul.f32 %v6048, 0.5
        %v6051 = vmul.f32 %v6047, 0.70710677
        %v6052 = vmul.f32 %v6048, 0.70710677
        %v6053 = vand.u32 2147483647, %v6051
        %v6054 = vand.u32 2147483647, %v6052
        %v6055 = vmul.f32 %v6053, 0.3275911
        %v6056 = vmul.f32 %v6054, 0.3275911
        %v6057 = vadd.f32 %v6055, 1.0
        %v6058 = vadd.f32 %v6056, 1.0
        %v6059 = vrcp.pop %v6057
        %v6060 = vmul.f32 1.0, %v6059
        %v6061 = vrcp.pop %v6058
        %v6062 = vmul.f32 1.0, %v6061
        %v6063 = vmul.f32 %v6060, 1.0614054
        %v6064 = vmul.f32 %v6062, 1.0614054
        %v6065 = vadd.f32 %v6063, -1.4531521
        %v6066 = vadd.f32 %v6064, -1.4531521
        %v6067 = vmul.f32 %v6065, %v6060
        %v6068 = vmul.f32 %v6066, %v6062
        %v6069 = vadd.f32 %v6067, 1.4214138
        %v6070 = vadd.f32 %v6068, 1.4214138
        %v6071 = vmul.f32 %v6069, %v6060
        %v6072 = vmul.f32 %v6070, %v6062
        %v6073 = vadd.f32 %v6071, -0.28449672
        %v6074 = vadd.f32 %v6072, -0.28449672
        %v6075 = vmul.f32 %v6073, %v6060
        %v6076 = vmul.f32 %v6074, %v6062
        %v6077 = vadd.f32 %v6075, 0.2548296
        %v6078 = vadd.f32 %v6076, 0.2548296
        %v6079 = vmul.f32 %v6077, %v6060
        %v6080 = vmul.f32 %v6078, %v6062
        %v6081 = vsub.f32 0.0, %v6053
        %v6082 = vsub.f32 0.0, %v6054
        %v6083 = vmul.f32 %v6081, %v6053
        %v6084 = vmul.f32 %v6082, %v6054
        %v6085 = vmul.f32 %v6083, 1.442695
        %v6086 = vpow.pop %v6085
        %v6087 = vmul.f32 %v6084, 1.442695
        %v6088 = vpow.pop %v6087
        %v6089 = vmul.f32 %v6079, %v6086
        %v6090 = vmul.f32 %v6080, %v6088
        %v6091 = vsub.f32 1.0, %v6089
        %v6092 = vsub.f32 1.0, %v6090
        %vm6093 = vcmp.ge.f32.partialorder %v6051, 0.0
        %vm6094 = vcmp.ge.f32.partialorder %v6052, 0.0
        %v6095 = vsub.f32 0.0, %v6091
        %v6096 = vsub.f32 0.0, %v6092
        %v6097 = vsel %vm6093, %v6091, %v6095
        %v6098 = vsel %vm6094, %v6092, %v6096
        %v6099 = vadd.f32 %v6097, 1.0
        %v6100 = vadd.f32 %v6098, 1.0
        %v6101 = vmul.f32 %v6049, %v6099
        %v6102 = vmul.f32 %v6050, %v6100
        %v6103 = vmul.f32 %v6101, %v5137
        %v6104 = vmul.f32 %v6102, %v5138
        %v6107 = vcombine.low %v6103, %v6104
        %6109 = vst [vmem:[%s777] sm:$0xff] %v6107
        %p6110 = scmp.lt.s32.totalorder %s37, 1
        %s6111 = scalar_select %p6110, %s37, 1
        %s6112 = smul.addr %s6111, 2
        %s6113 = smul.addr %s6112, 4
        %s6114 = scalar_lea.vmem %s23, %s6113
        // Predicated region
        $region133: #{seg_rs_forward.1} parent=111 // pred_check
          %p6115 = pneg %p543
        $region134: #{seg_rs_forward.1} parent=111 // pred_check_branch
          %6117 = sbr.rel (%p6115) target = $region136
        $region135: #{seg_rs_forward.1} parent=111 // pred_region
          _
        $region136: #{seg_rs_forward.1} parent=111 // pred_fallthru
          _
      $region112: #{seg_rs_forward.1} parent=5 // pred_fallthru
        _
      %p6118 = scmp.le.s32.totalorder 2, %s32
      // Predicated region
      $region137: #{seg_rs_forward.1} parent=5 // pred_check
        %p6119 = pneg %p6118
      $region138: #{seg_rs_forward.1} parent=5 // pred_check_branch
        %6121 = sbr.rel (%p6119) target = $region140
      $region139: #{seg_rs_forward.1} parent=5 // pred_region
        %s6122 = ssub.s32 %s32, 2
        // Predicated region
        $region141: #{seg_rs_forward.1} parent=139 // pred_check
          %p6123 = pneg %p549
        $region142: #{seg_rs_forward.1} parent=139 // pred_check_branch
          %6125 = sbr.rel (%p6123) target = $region144
        $region143: #{seg_rs_forward.1} parent=139 // pred_region
          %p6126 = scmp.lt.s32.totalorder %s38, 1
          %s6127 = scalar_select %p6126, %s38, 1
          %s6128 = smul.addr %s6127, 2
          %s6129 = smul.addr %s6128, 4
          %s6130 = scalar_lea.vmem %s23, %s6129
        $region144: #{seg_rs_forward.1} parent=139 // pred_fallthru
          _
      $region140: #{seg_rs_forward.1} parent=5 // pred_fallthru
        _
    $region6: #{seg_rs_forward.1} parent=1 // loop_footer
      %s36 = sadd.s32 1, %s32
    $region7: #{seg_rs_forward.1} parent=1 // loop_footer_branch
      %31 = sbr.rel target = $region3
    $region8: #{seg_rs_forward.1} parent=1 // loop_exit
      _
    %6131 = vsyncpa [#allocation3], 1
    %s6132 = scalar_lea.sflag [#allocation3], 1
    %6133 = vsyncpa %s6132, 1
    %6134 = vsyncpa [#allocation5], 1
    %6135 = vsyncpa [#allocation8], 1

</llo_original>
